<compile_context>
chip_gen: v5e
topology: v5e:2x2
jax: 0.10.0
libtpu: 0.0.40
codegen_flags: <defaults>
</compile_context>

<pallas_src>
import numpy as np

import jax
import jax.numpy as jnp
from jax.experimental import pallas as pl
from jax.experimental.pallas import tpu as pltpu


K1_PAD = 256     # conv1 contraction dim 7*7*3 = 147, zero-padded to 256
_CONV1_M = 1024  # 32*32 conv1 output positions per sample (de-duplicated)

# name, cin, cout, k, stride, pad, relu
_LAYER_SPECS = [
    ("c1", 3, 64, 7, 2, 3, True),
    ("c2", 64, 128, 3, 2, 1, True),
    ("c3", 128, 256, 3, 2, 1, True),
    ("h1", 256, 128, 3, 1, 1, True),
    ("h2", 128, 64, 3, 1, 1, True),
    ("h3", 64, 1, 1, 1, 0, False),
]


# ----------------------------------------------------------------------------
# Fused Pallas kernel: whole network, `block_batch` samples per grid step
# ----------------------------------------------------------------------------
def _bev_fused_kernel(x0_ref, w1_ref, b1_ref,
                      s2_ref, w2_ref, b2_ref,
                      s3_ref, w3_ref, b3_ref,
                      s4_ref, w4_ref, b4_ref,
                      w5_ref, b5_ref,
                      w6_ref, b6_ref,
                      out_ref):
    f32, bf16 = jnp.float32, jnp.bfloat16
    bsz = x0_ref.shape[0]

    # ---- conv1 (7x7, s2): one MXU matmul over all bsz samples' patch rows ----
    x0 = x0_ref[...].reshape(bsz * _CONV1_M, K1_PAD)                 # bf16
    a1 = jnp.dot(x0, w1_ref[...], preferred_element_type=f32)        # (bsz*1024, 64)

    # ---- fused MaxPool2d(3, stride=2, pad=1) via even/odd decimation ----
    # Row ordering per sample: (wpar, oy, px) with conv1 col ox = 2*px + wpar.
    # Pool window cols {2px-1, 2px, 2px+1} = {odd[px-1], even[px], odd[px]};
    # rows handled the same way after a free leading-dim reshape.
    px_is0 = jax.lax.broadcasted_iota(jnp.int32, (32, 16, 64), 1) == 0
    pooled = []
    for b in range(bsz):
        a = a1[b * _CONV1_M:(b + 1) * _CONV1_M].reshape(2, 32, 16, 64)
        c_ev, c_od = a[0], a[1]                      # cols 2px, 2px+1 -> (32,16,64)
        c_shift = pltpu.roll(c_od, shift=1, axis=1)  # c_od[:, px-1] (wrapped at 0)
        # px == 0: col -1 is outside the image; col 1 (= c_od[:,0]) is in-window,
        # and max over a duplicated in-window value is unchanged.
        c_om = jnp.where(px_is0, c_od, c_shift)
        wpool = jnp.maximum(jnp.maximum(c_ev, c_od), c_om)           # (32,16,64)
        r = wpool.reshape(16, 2, 16, 64)
        r_ev, r_od = r[:, 0], r[:, 1]                # rows 2py, 2py+1 -> (16,16,64)
        r_om = jnp.concatenate([r_od[0:1], r_od[0:15]], axis=0)      # rows 2py-1
        p = jnp.maximum(jnp.maximum(r_ev, r_od), r_om)               # (16,16,64)
        pooled.append(p.reshape(256, 64))
    x = jnp.stack(pooled, axis=0)                                    # (bsz,256,64)
    # conv1 bias + ReLU after the pool (per-channel bias and ReLU commute with max)
    x = jnp.maximum(x + b1_ref[...], 0.0).astype(bf16)

    def conv3x3(x3, s_ref, w_ref, b_ref):
        # x3: (bsz, Min, Cin) bf16; s: (9*Mo, Min) 0/1 bf16; w: (9, Cin, Cout) bf16
        nb, _, cin = x3.shape
        mo = s_ref.shape[0] // 9
        cout = w_ref.shape[2]
        # Tap gather (incl. zero padding) via one selection matmul per sample.
        p = jnp.stack([jnp.dot(s_ref[...], x3[b], preferred_element_type=f32)
                       for b in range(nb)], axis=0).astype(bf16)     # (nb,9*Mo,Cin)
        # 9 per-tap matmuls with batched rows M = nb*Mo, f32 accumulation.
        acc = jnp.dot(p[:, 0:mo, :].reshape(nb * mo, cin), w_ref[0],
                      preferred_element_type=f32)
        for t in range(1, 9):
            pt = p[:, t * mo:(t + 1) * mo, :].reshape(nb * mo, cin)
            acc = acc + jnp.dot(pt, w_ref[t], preferred_element_type=f32)
        y = jnp.maximum(acc + b_ref[...], 0.0)
        return y.reshape(nb, mo, cout).astype(bf16)

    x = conv3x3(x, s2_ref, w2_ref, b2_ref)   # conv2 : (bsz, 64, 128)   8x8
    x = conv3x3(x, s3_ref, w3_ref, b3_ref)   # conv3 : (bsz, 16, 256)   4x4
    x = conv3x3(x, s4_ref, w4_ref, b4_ref)   # head1 : (bsz, 16, 128)
    x = conv3x3(x, s4_ref, w5_ref, b5_ref)   # head2 : (bsz, 16, 64)

    # ---- head conv3 (1x1, Cout=1): VPU multiply + lane reduction ----
    y = jnp.sum(x.astype(f32) * w6_ref[...], axis=2) + b6_ref[...]   # (bsz, 16)
    out_ref[...] = y[:, None, :]                                     # (bsz, 1, 16)


# ----------------------------------------------------------------------------
# Static (shape-only) helpers: selection matrices, parameter init / repack
# ----------------------------------------------------------------------------
def _conv_selection_matrix(h, w, k, stride, pad):
    """0/1 matrix S of shape (k*k*Ho*Wo, h*w).  Row t*Ho*Wo + q holds a 1 at the
    input pixel read by tap t at output position q; all-zero rows encode the
    conv's zero padding."""
    ho = (h + 2 * pad - k) // stride + 1
    wo = (w + 2 * pad - k) // stride + 1
    s = np.zeros((k * k * ho * wo, h * w), np.float32)
    for t in range(k * k):
        ti, tj = divmod(t, k)
        for oy in range(ho):
            for ox in range(wo):
                iy = stride * oy - pad + ti
                ix = stride * ox - pad + tj
                if 0 <= iy < h and 0 <= ix < w:
                    s[t * ho * wo + oy * wo + ox, iy * w + ix] = 1.0
    return s


def init_params(key):
    """PyTorch-layout parameters: OIHW weight + bias per conv (He init)."""
    params = {}
    for name, cin, cout, k, _, _, _ in _LAYER_SPECS:
        key, kw_, kb_ = jax.random.split(key, 3)
        fan_in = cin * k * k
        w = jax.random.normal(kw_, (cout, cin, k, k), jnp.float32) * (2.0 / fan_in) ** 0.5
        b = jax.random.normal(kb_, (cout,), jnp.float32) * 0.01
        params[name] = (w, b)
    return params


def prepare_params(params):
    """One-time repack: (kh,kw,cin,cout) tap ordering, K padding, bf16 cast,
    and the static per-layer selection matrices."""
    def pack3x3(name):
        w, b = params[name]
        cout, cin = w.shape[0], w.shape[1]
        wp = jnp.transpose(w, (2, 3, 1, 0)).reshape(9, cin, cout).astype(jnp.bfloat16)
        return wp, b.reshape(1, cout).astype(jnp.float32)

    w1, b1 = params["c1"]
    w1p = jnp.transpose(w1, (2, 3, 1, 0)).reshape(147, 64)
    w1p = jnp.pad(w1p, ((0, K1_PAD - 147), (0, 0))).astype(jnp.bfloat16)
    b1p = b1.reshape(1, 64).astype(jnp.float32)

    w2p, b2p = pack3x3("c2")
    w3p, b3p = pack3x3("c3")
    w4p, b4p = pack3x3("h1")
    w5p, b5p = pack3x3("h2")

    w6, b6 = params["h3"]
    w6p = w6.reshape(1, 64).astype(jnp.float32)
    b6p = b6.reshape(1, 1).astype(jnp.float32)

    s2 = jnp.asarray(_conv_selection_matrix(16, 16, 3, 2, 1), jnp.bfloat16)
    s3 = jnp.asarray(_conv_selection_matrix(8, 8, 3, 2, 1), jnp.bfloat16)
    s4 = jnp.asarray(_conv_selection_matrix(4, 4, 3, 1, 1), jnp.bfloat16)  # h1 & h2

    return (w1p, b1p, s2, w2p, b2p, s3, w3p, b3p, s4, w4p, b4p, w5p, b5p, w6p, b6p)


# ----------------------------------------------------------------------------
# Wrapper: de-duplicated bf16 conv1 im2col (static slices only) + pallas_call
# ----------------------------------------------------------------------------
def _build_conv1_patches(x_nchw):
    """Plain conv1 im2col -> (N, 1024, K1_PAD) bf16.
    Rows are ordered (wpar, oy, px) with conv1 column ox = 2*px + wpar so the
    in-kernel fused MaxPool only decimates leading dims.  K ordering is
    (kh, kw, cin), matching the repacked conv1 weight."""
    n = x_nchw.shape[0]
    x = jnp.transpose(x_nchw, (0, 2, 3, 1)).astype(jnp.bfloat16)     # NHWC bf16
    xp = jnp.pad(x, ((0, 0), (3, 3), (3, 3), (0, 0)))                # conv1 pad=3
    taps = [xp[:, u:u + 64:2, v:v + 64:2, :]                         # static slices
            for u in range(7) for v in range(7)]
    patches = jnp.concatenate(taps, axis=-1)                         # (N,32,32,147)
    patches = patches.reshape(n, 32, 16, 2, 147)                     # ox -> (px,wpar)
    patches = jnp.transpose(patches, (0, 3, 1, 2, 4)).reshape(n, 1024, 147)
    return jnp.pad(patches, ((0, 0), (0, 0), (0, K1_PAD - 147)))     # (N,1024,256)


def _pick_block_batch(n, max_b=4):
    """Largest divisor of n (<= max_b) that keeps >= 2 grid steps (v7x: both
    TensorCores busy) and stays inside v5e's 16 MiB default scoped VMEM."""
    best = 1
    for b in range(1, min(n, max_b) + 1):
        if n % b == 0 and n // b >= 2:
            best = b
    return best


def simple_bevformer_forward(x_nchw, packed, block_batch=None):
    n = x_nchw.shape[0]
    x0 = _build_conv1_patches(x_nchw)                                # (N,1024,256) bf16
    (w1, b1, s2, w2, b2, s3, w3, b3, s4, w4, b4, w5, b5, w6, b6) = packed

    bsz = block_batch if block_batch is not None else _pick_block_batch(n)
    assert n % bsz == 0, (n, bsz)

    def full(a):
        nd = a.ndim
        return pl.BlockSpec(a.shape, lambda i, _nd=nd: (0,) * _nd)

    in_specs = [
        pl.BlockSpec((bsz,) + x0.shape[1:], lambda i: (i, 0, 0)),
        full(w1), full(b1),
        full(s2), full(w2), full(b2),
        full(s3), full(w3), full(b3),
        full(s4), full(w4), full(b4),
        full(w5), full(b5),
        full(w6), full(b6),
    ]
    out_spec = pl.BlockSpec((bsz, 1, 16), lambda i: (i, 0, 0))

    flops_per_sample = (
        2 * _CONV1_M * K1_PAD * 64                                   # conv1
        + 2 * (576 * 256 * 64 + 9 * 64 * 64 * 128)                   # conv2
        + 2 * (144 * 64 * 128 + 9 * 16 * 128 * 256)                  # conv3
        + 2 * (144 * 16 * 256 + 9 * 16 * 256 * 128)                  # head conv1
        + 2 * (144 * 16 * 128 + 9 * 16 * 128 * 64)                   # head conv2
        + 2 * 16 * 64)                                               # head conv3
    bytes_accessed = int(x0.size * x0.dtype.itemsize
                         + sum(int(np.prod(a.shape)) * a.dtype.itemsize for a in packed)
                         + n * 16 * 4)

    bev = pl.pallas_call(
        _bev_fused_kernel,
        grid=(n // bsz,),
        in_specs=in_specs,
        out_specs=out_spec,
        out_shape=jax.ShapeDtypeStruct((n, 1, 16), jnp.float32),
        compiler_params=pltpu.CompilerParams(
            dimension_semantics=("parallel",)),
        cost_estimate=pl.CostEstimate(flops=n * flops_per_sample, transcendentals=0,
                                      bytes_accessed=bytes_accessed),
    )(x0, w1, b1, s2, w2, b2, s3, w3, b3, s4, w4, b4, w5, b5, w6, b6)

    return bev.reshape(n, 1, 4, 4)


# ----------------------------------------------------------------------------
# Pure-JAX f32 reference (independent path) for verification
# ----------------------------------------------------------------------------
def ref_forward(x_nchw, params):
    def conv(x, w, b, stride, pad):
        y = jax.lax.conv_general_dilated(
            x, w, (stride, stride), [(pad, pad), (pad, pad)],
            dimension_numbers=("NCHW", "OIHW", "NCHW"),
            precision=jax.lax.Precision.HIGHEST)
        return y + b[None, :, None, None]

    x = x_nchw
    for name, _, _, _, stride, pad, relu in _LAYER_SPECS:
        w, b = params[name]
        x = conv(x, w, b, stride, pad)
        if relu:
            x = jax.nn.relu(x)
        if name == "c1":
            x = jax.lax.reduce_window(
                x, -jnp.inf, jax.lax.max,
                (1, 1, 3, 3), (1, 1, 2, 2),
                [(0, 0), (0, 0), (1, 1), (1, 1)])
    return x


if __name__ == "__main__":
    key = jax.random.PRNGKey(0)
    key, kp, kx = jax.random.split(key, 3)
    params = init_params(kp)
    packed = prepare_params(params)   # one-time weight repack / padding / bf16 cast

    # N=4 -> block_batch=2, grid=(2,): exercises the batched-M path and keeps
    # >= 2 grid steps so both v7x TensorCores get work.
    x = jax.random.normal(kx, (4, 3, 64, 64), jnp.float32)

    fwd = jax.jit(simple_bevformer_forward)
    bev = jax.block_until_ready(fwd(x, packed))
    assert bev.shape == (4, 1, 4, 4), bev.shape

    ref = jax.block_until_ready(ref_forward(x, params))
    max_err = float(jnp.max(jnp.abs(bev - ref)))
    scale = max(1.0, float(jnp.max(jnp.abs(ref))))
    # bf16 MXU operands with f32 accumulation: allow 5% of the output scale.
    assert max_err <= 5e-2 * scale, f"mismatch vs reference: {max_err} (scale {scale})"

    print("KERNEL_OK")
</pallas_src>

<mosaic_0001>
module attributes {stable_mosaic.version = 11 : i64} {
  func.func @_bev_fused_kernel(%arg0: i32, %arg1: memref<2x1024x256xbf16, #tpu.memory_space<vmem>>, %arg2: memref<256x64xbf16, #tpu.memory_space<vmem>>, %arg3: memref<1x64xf32, #tpu.memory_space<vmem>>, %arg4: memref<576x256xbf16, #tpu.memory_space<vmem>>, %arg5: memref<9x64x128xbf16, #tpu.memory_space<vmem>>, %arg6: memref<1x128xf32, #tpu.memory_space<vmem>>, %arg7: memref<144x64xbf16, #tpu.memory_space<vmem>>, %arg8: memref<9x128x256xbf16, #tpu.memory_space<vmem>>, %arg9: memref<1x256xf32, #tpu.memory_space<vmem>>, %arg10: memref<144x16xbf16, #tpu.memory_space<vmem>>, %arg11: memref<9x256x128xbf16, #tpu.memory_space<vmem>>, %arg12: memref<1x128xf32, #tpu.memory_space<vmem>>, %arg13: memref<9x128x64xbf16, #tpu.memory_space<vmem>>, %arg14: memref<1x64xf32, #tpu.memory_space<vmem>>, %arg15: memref<1x64xf32, #tpu.memory_space<vmem>>, %arg16: memref<1x1xf32, #tpu.memory_space<vmem>>, %arg17: memref<2x1x16xf32, #tpu.memory_space<vmem>>) attributes {dimension_semantics = [#tpu.dimension_semantics<parallel>], iteration_bounds = array<i64: 2>, scalar_prefetch = 0 : i64, scratch_operands = 0 : i64, tpu.core_type = #tpu.core_type<tc>, window_params = [{transform_indices = @transform_0, window_bounds = array<i64: 2, 1024, 256>}, {pipeline_mode = #tpu.pipeline_mode<synchronous>, transform_indices = @transform_1, window_bounds = array<i64: 256, 64>}, {pipeline_mode = #tpu.pipeline_mode<synchronous>, transform_indices = @transform_2, window_bounds = array<i64: 1, 64>}, {pipeline_mode = #tpu.pipeline_mode<synchronous>, transform_indices = @transform_3, window_bounds = array<i64: 576, 256>}, {pipeline_mode = #tpu.pipeline_mode<synchronous>, transform_indices = @transform_4, window_bounds = array<i64: 9, 64, 128>}, {pipeline_mode = #tpu.pipeline_mode<synchronous>, transform_indices = @transform_5, window_bounds = array<i64: 1, 128>}, {pipeline_mode = #tpu.pipeline_mode<synchronous>, transform_indices = @transform_6, window_bounds = array<i64: 144, 64>}, {pipeline_mode = #tpu.pipeline_mode<synchronous>, transform_indices = @transform_7, window_bounds = array<i64: 9, 128, 256>}, {pipeline_mode = #tpu.pipeline_mode<synchronous>, transform_indices = @transform_8, window_bounds = array<i64: 1, 256>}, {pipeline_mode = #tpu.pipeline_mode<synchronous>, transform_indices = @transform_9, window_bounds = array<i64: 144, 16>}, {pipeline_mode = #tpu.pipeline_mode<synchronous>, transform_indices = @transform_10, window_bounds = array<i64: 9, 256, 128>}, {pipeline_mode = #tpu.pipeline_mode<synchronous>, transform_indices = @transform_11, window_bounds = array<i64: 1, 128>}, {pipeline_mode = #tpu.pipeline_mode<synchronous>, transform_indices = @transform_12, window_bounds = array<i64: 9, 128, 64>}, {pipeline_mode = #tpu.pipeline_mode<synchronous>, transform_indices = @transform_13, window_bounds = array<i64: 1, 64>}, {pipeline_mode = #tpu.pipeline_mode<synchronous>, transform_indices = @transform_14, window_bounds = array<i64: 1, 64>}, {pipeline_mode = #tpu.pipeline_mode<synchronous>, transform_indices = @transform_15, window_bounds = array<i64: 1, 1>}, {transform_indices = @transform_16, window_bounds = array<i64: 2, 1, 16>}]} {
    %c0 = arith.constant 0 : index
    %c0_0 = arith.constant 0 : index
    %c0_1 = arith.constant 0 : index
    %0 = vector.load %arg1[%c0, %c0_0, %c0_1] : memref<2x1024x256xbf16, #tpu.memory_space<vmem>>, vector<2x1024x256xbf16>
    %1 = vector.shape_cast %0 : vector<2x1024x256xbf16> to vector<2048x256xbf16>
    %c0_2 = arith.constant 0 : index
    %c0_3 = arith.constant 0 : index
    %2 = vector.load %arg2[%c0_2, %c0_3] : memref<256x64xbf16, #tpu.memory_space<vmem>>, vector<256x64xbf16>
    %cst = arith.constant dense<0.000000e+00> : vector<2048x64xf32>
    %3 = tpu.matmul %1, %2, %cst {dimension_numbers = #tpu.dot_dimension_numbers<[1], [0], [0], [1], [0, 0, 1, 1], [], []>} : vector<2048x256xbf16>, vector<256x64xbf16>, vector<2048x64xf32> -> vector<2048x64xf32>
    %4 = tpu.iota {dimensions = array<i32: 1>} : vector<32x16x64xi32>
    %c0_i32 = arith.constant 0 : i32
    %5 = vector.broadcast %c0_i32 : i32 to vector<32x16x64xi32>
    %6 = arith.cmpi eq, %4, %5 : vector<32x16x64xi32>
    %7 = vector.extract_strided_slice %3 {offsets = [0, 0], sizes = [1024, 64], strides = [1, 1]} : vector<2048x64xf32> to vector<1024x64xf32>
    %8 = vector.shape_cast %7 : vector<1024x64xf32> to vector<2x32x16x64xf32>
    %9 = vector.extract_strided_slice %8 {offsets = [0, 0, 0, 0], sizes = [1, 32, 16, 64], strides = [1, 1, 1, 1]} : vector<2x32x16x64xf32> to vector<1x32x16x64xf32>
    %10 = vector.shape_cast %9 : vector<1x32x16x64xf32> to vector<32x16x64xf32>
    %11 = vector.extract_strided_slice %8 {offsets = [1, 0, 0, 0], sizes = [1, 32, 16, 64], strides = [1, 1, 1, 1]} : vector<2x32x16x64xf32> to vector<1x32x16x64xf32>
    %12 = vector.shape_cast %11 : vector<1x32x16x64xf32> to vector<32x16x64xf32>
    %c1_i32 = arith.constant 1 : i32
    %13 = tpu.dynamic_rotate %12 by %c1_i32 dim 1 : vector<32x16x64xf32>, i32 -> vector<32x16x64xf32>
    %14 = arith.select %6, %12, %13 : vector<32x16x64xi1>, vector<32x16x64xf32>
    %15 = arith.maximumf %10, %12 : vector<32x16x64xf32>
    %16 = arith.maximumf %15, %14 : vector<32x16x64xf32>
    %17 = vector.shape_cast %16 : vector<32x16x64xf32> to vector<16x2x16x64xf32>
    %18 = vector.extract_strided_slice %17 {offsets = [0, 0, 0, 0], sizes = [16, 1, 16, 64], strides = [1, 1, 1, 1]} : vector<16x2x16x64xf32> to vector<16x1x16x64xf32>
    %19 = vector.shape_cast %18 : vector<16x1x16x64xf32> to vector<16x16x64xf32>
    %20 = vector.extract_strided_slice %17 {offsets = [0, 1, 0, 0], sizes = [16, 1, 16, 64], strides = [1, 1, 1, 1]} : vector<16x2x16x64xf32> to vector<16x1x16x64xf32>
    %21 = vector.shape_cast %20 : vector<16x1x16x64xf32> to vector<16x16x64xf32>
    %22 = vector.extract_strided_slice %21 {offsets = [0, 0, 0], sizes = [1, 16, 64], strides = [1, 1, 1]} : vector<16x16x64xf32> to vector<1x16x64xf32>
    %23 = vector.extract_strided_slice %21 {offsets = [0, 0, 0], sizes = [15, 16, 64], strides = [1, 1, 1]} : vector<16x16x64xf32> to vector<15x16x64xf32>
    %24 = tpu.concatenate %22, %23 in 0 : vector<1x16x64xf32>, vector<15x16x64xf32> -> vector<16x16x64xf32>
    %25 = arith.maximumf %19, %21 : vector<16x16x64xf32>
    %26 = arith.maximumf %25, %24 : vector<16x16x64xf32>
    %27 = vector.shape_cast %26 : vector<16x16x64xf32> to vector<256x64xf32>
    %28 = vector.extract_strided_slice %3 {offsets = [1024, 0], sizes = [1024, 64], strides = [1, 1]} : vector<2048x64xf32> to vector<1024x64xf32>
    %29 = vector.shape_cast %28 : vector<1024x64xf32> to vector<2x32x16x64xf32>
    %30 = vector.extract_strided_slice %29 {offsets = [0, 0, 0, 0], sizes = [1, 32, 16, 64], strides = [1, 1, 1, 1]} : vector<2x32x16x64xf32> to vector<1x32x16x64xf32>
    %31 = vector.shape_cast %30 : vector<1x32x16x64xf32> to vector<32x16x64xf32>
    %32 = vector.extract_strided_slice %29 {offsets = [1, 0, 0, 0], sizes = [1, 32, 16, 64], strides = [1, 1, 1, 1]} : vector<2x32x16x64xf32> to vector<1x32x16x64xf32>
    %33 = vector.shape_cast %32 : vector<1x32x16x64xf32> to vector<32x16x64xf32>
    %c1_i32_4 = arith.constant 1 : i32
    %34 = tpu.dynamic_rotate %33 by %c1_i32_4 dim 1 : vector<32x16x64xf32>, i32 -> vector<32x16x64xf32>
    %35 = arith.select %6, %33, %34 : vector<32x16x64xi1>, vector<32x16x64xf32>
    %36 = arith.maximumf %31, %33 : vector<32x16x64xf32>
    %37 = arith.maximumf %36, %35 : vector<32x16x64xf32>
    %38 = vector.shape_cast %37 : vector<32x16x64xf32> to vector<16x2x16x64xf32>
    %39 = vector.extract_strided_slice %38 {offsets = [0, 0, 0, 0], sizes = [16, 1, 16, 64], strides = [1, 1, 1, 1]} : vector<16x2x16x64xf32> to vector<16x1x16x64xf32>
    %40 = vector.shape_cast %39 : vector<16x1x16x64xf32> to vector<16x16x64xf32>
    %41 = vector.extract_strided_slice %38 {offsets = [0, 1, 0, 0], sizes = [16, 1, 16, 64], strides = [1, 1, 1, 1]} : vector<16x2x16x64xf32> to vector<16x1x16x64xf32>
    %42 = vector.shape_cast %41 : vector<16x1x16x64xf32> to vector<16x16x64xf32>
    %43 = vector.extract_strided_slice %42 {offsets = [0, 0, 0], sizes = [1, 16, 64], strides = [1, 1, 1]} : vector<16x16x64xf32> to vector<1x16x64xf32>
    %44 = vector.extract_strided_slice %42 {offsets = [0, 0, 0], sizes = [15, 16, 64], strides = [1, 1, 1]} : vector<16x16x64xf32> to vector<15x16x64xf32>
    %45 = tpu.concatenate %43, %44 in 0 : vector<1x16x64xf32>, vector<15x16x64xf32> -> vector<16x16x64xf32>
    %46 = arith.maximumf %40, %42 : vector<16x16x64xf32>
    %47 = arith.maximumf %46, %45 : vector<16x16x64xf32>
    %48 = vector.shape_cast %47 : vector<16x16x64xf32> to vector<256x64xf32>
    %49 = vector.shape_cast %27 : vector<256x64xf32> to vector<1x256x64xf32>
    %50 = vector.shape_cast %48 : vector<256x64xf32> to vector<1x256x64xf32>
    %51 = tpu.concatenate %49, %50 in 0 : vector<1x256x64xf32>, vector<1x256x64xf32> -> vector<2x256x64xf32>
    %c0_5 = arith.constant 0 : index
    %c0_6 = arith.constant 0 : index
    %52 = vector.load %arg3[%c0_5, %c0_6] : memref<1x64xf32, #tpu.memory_space<vmem>>, vector<1x64xf32>
    %53 = vector.shape_cast %52 : vector<1x64xf32> to vector<1x1x64xf32>
    %54 = vector.broadcast %53 : vector<1x1x64xf32> to vector<2x256x64xf32>
    %55 = arith.addf %51, %54 : vector<2x256x64xf32>
    %cst_7 = arith.constant 0.000000e+00 : f32
    %56 = vector.broadcast %cst_7 : f32 to vector<2x256x64xf32>
    %57 = arith.maximumf %55, %56 : vector<2x256x64xf32>
    %58 = arith.truncf %57 : vector<2x256x64xf32> to vector<2x256x64xbf16>
    %c0_8 = arith.constant 0 : index
    %c0_9 = arith.constant 0 : index
    %59 = vector.load %arg4[%c0_8, %c0_9] : memref<576x256xbf16, #tpu.memory_space<vmem>>, vector<576x256xbf16>
    %60 = vector.extract_strided_slice %58 {offsets = [0, 0, 0], sizes = [1, 256, 64], strides = [1, 1, 1]} : vector<2x256x64xbf16> to vector<1x256x64xbf16>
    %61 = vector.shape_cast %60 : vector<1x256x64xbf16> to vector<256x64xbf16>
    %cst_10 = arith.constant dense<0.000000e+00> : vector<576x64xf32>
    %62 = tpu.matmul %59, %61, %cst_10 {dimension_numbers = #tpu.dot_dimension_numbers<[1], [0], [0], [1], [0, 0, 1, 1], [], []>} : vector<576x256xbf16>, vector<256x64xbf16>, vector<576x64xf32> -> vector<576x64xf32>
    %c0_11 = arith.constant 0 : index
    %c0_12 = arith.constant 0 : index
    %63 = vector.load %arg4[%c0_11, %c0_12] : memref<576x256xbf16, #tpu.memory_space<vmem>>, vector<576x256xbf16>
    %64 = vector.extract_strided_slice %58 {offsets = [1, 0, 0], sizes = [1, 256, 64], strides = [1, 1, 1]} : vector<2x256x64xbf16> to vector<1x256x64xbf16>
    %65 = vector.shape_cast %64 : vector<1x256x64xbf16> to vector<256x64xbf16>
    %cst_13 = arith.constant dense<0.000000e+00> : vector<576x64xf32>
    %66 = tpu.matmul %63, %65, %cst_13 {dimension_numbers = #tpu.dot_dimension_numbers<[1], [0], [0], [1], [0, 0, 1, 1], [], []>} : vector<576x256xbf16>, vector<256x64xbf16>, vector<576x64xf32> -> vector<576x64xf32>
    %67 = vector.shape_cast %62 : vector<576x64xf32> to vector<1x576x64xf32>
    %68 = vector.shape_cast %66 : vector<576x64xf32> to vector<1x576x64xf32>
    %69 = tpu.concatenate %67, %68 in 0 : vector<1x576x64xf32>, vector<1x576x64xf32> -> vector<2x576x64xf32>
    %70 = arith.truncf %69 : vector<2x576x64xf32> to vector<2x576x64xbf16>
    %71 = vector.extract_strided_slice %70 {offsets = [0, 0, 0], sizes = [2, 64, 64], strides = [1, 1, 1]} : vector<2x576x64xbf16> to vector<2x64x64xbf16>
    %72 = vector.shape_cast %71 : vector<2x64x64xbf16> to vector<128x64xbf16>
    %c0_14 = arith.constant 0 : index
    %c0_15 = arith.constant 0 : index
    %c0_16 = arith.constant 0 : index
    %73 = vector.load %arg5[%c0_14, %c0_15, %c0_16] : memref<9x64x128xbf16, #tpu.memory_space<vmem>>, vector<1x64x128xbf16>
    %74 = vector.shape_cast %73 : vector<1x64x128xbf16> to vector<64x128xbf16>
    %cst_17 = arith.constant dense<0.000000e+00> : vector<128x128xf32>
    %75 = tpu.matmul %72, %74, %cst_17 {dimension_numbers = #tpu.dot_dimension_numbers<[1], [0], [0], [1], [0, 0, 1, 1], [], []>} : vector<128x64xbf16>, vector<64x128xbf16>, vector<128x128xf32> -> vector<128x128xf32>
    %76 = vector.extract_strided_slice %70 {offsets = [0, 64, 0], sizes = [2, 64, 64], strides = [1, 1, 1]} : vector<2x576x64xbf16> to vector<2x64x64xbf16>
    %77 = vector.shape_cast %76 : vector<2x64x64xbf16> to vector<128x64xbf16>
    %c1 = arith.constant 1 : index
    %c0_18 = arith.constant 0 : index
    %c0_19 = arith.constant 0 : index
    %78 = vector.load %arg5[%c1, %c0_18, %c0_19] : memref<9x64x128xbf16, #tpu.memory_space<vmem>>, vector<1x64x128xbf16>
    %79 = vector.shape_cast %78 : vector<1x64x128xbf16> to vector<64x128xbf16>
    %cst_20 = arith.constant dense<0.000000e+00> : vector<128x128xf32>
    %80 = tpu.matmul %77, %79, %cst_20 {dimension_numbers = #tpu.dot_dimension_numbers<[1], [0], [0], [1], [0, 0, 1, 1], [], []>} : vector<128x64xbf16>, vector<64x128xbf16>, vector<128x128xf32> -> vector<128x128xf32>
    %81 = arith.addf %75, %80 : vector<128x128xf32>
    %82 = vector.extract_strided_slice %70 {offsets = [0, 128, 0], sizes = [2, 64, 64], strides = [1, 1, 1]} : vector<2x576x64xbf16> to vector<2x64x64xbf16>
    %83 = vector.shape_cast %82 : vector<2x64x64xbf16> to vector<128x64xbf16>
    %c2 = arith.constant 2 : index
    %c0_21 = arith.constant 0 : index
    %c0_22 = arith.constant 0 : index
    %84 = vector.load %arg5[%c2, %c0_21, %c0_22] : memref<9x64x128xbf16, #tpu.memory_space<vmem>>, vector<1x64x128xbf16>
    %85 = vector.shape_cast %84 : vector<1x64x128xbf16> to vector<64x128xbf16>
    %cst_23 = arith.constant dense<0.000000e+00> : vector<128x128xf32>
    %86 = tpu.matmul %83, %85, %cst_23 {dimension_numbers = #tpu.dot_dimension_numbers<[1], [0], [0], [1], [0, 0, 1, 1], [], []>} : vector<128x64xbf16>, vector<64x128xbf16>, vector<128x128xf32> -> vector<128x128xf32>
    %87 = arith.addf %81, %86 : vector<128x128xf32>
    %88 = vector.extract_strided_slice %70 {offsets = [0, 192, 0], sizes = [2, 64, 64], strides = [1, 1, 1]} : vector<2x576x64xbf16> to vector<2x64x64xbf16>
    %89 = vector.shape_cast %88 : vector<2x64x64xbf16> to vector<128x64xbf16>
    %c3 = arith.constant 3 : index
    %c0_24 = arith.constant 0 : index
    %c0_25 = arith.constant 0 : index
    %90 = vector.load %arg5[%c3, %c0_24, %c0_25] : memref<9x64x128xbf16, #tpu.memory_space<vmem>>, vector<1x64x128xbf16>
    %91 = vector.shape_cast %90 : vector<1x64x128xbf16> to vector<64x128xbf16>
    %cst_26 = arith.constant dense<0.000000e+00> : vector<128x128xf32>
    %92 = tpu.matmul %89, %91, %cst_26 {dimension_numbers = #tpu.dot_dimension_numbers<[1], [0], [0], [1], [0, 0, 1, 1], [], []>} : vector<128x64xbf16>, vector<64x128xbf16>, vector<128x128xf32> -> vector<128x128xf32>
    %93 = arith.addf %87, %92 : vector<128x128xf32>
    %94 = vector.extract_strided_slice %70 {offsets = [0, 256, 0], sizes = [2, 64, 64], strides = [1, 1, 1]} : vector<2x576x64xbf16> to vector<2x64x64xbf16>
    %95 = vector.shape_cast %94 : vector<2x64x64xbf16> to vector<128x64xbf16>
    %c4 = arith.constant 4 : index
    %c0_27 = arith.constant 0 : index
    %c0_28 = arith.constant 0 : index
    %96 = vector.load %arg5[%c4, %c0_27, %c0_28] : memref<9x64x128xbf16, #tpu.memory_space<vmem>>, vector<1x64x128xbf16>
    %97 = vector.shape_cast %96 : vector<1x64x128xbf16> to vector<64x128xbf16>
    %cst_29 = arith.constant dense<0.000000e+00> : vector<128x128xf32>
    %98 = tpu.matmul %95, %97, %cst_29 {dimension_numbers = #tpu.dot_dimension_numbers<[1], [0], [0], [1], [0, 0, 1, 1], [], []>} : vector<128x64xbf16>, vector<64x128xbf16>, vector<128x128xf32> -> vector<128x128xf32>
    %99 = arith.addf %93, %98 : vector<128x128xf32>
    %100 = vector.extract_strided_slice %70 {offsets = [0, 320, 0], sizes = [2, 64, 64], strides = [1, 1, 1]} : vector<2x576x64xbf16> to vector<2x64x64xbf16>
    %101 = vector.shape_cast %100 : vector<2x64x64xbf16> to vector<128x64xbf16>
    %c5 = arith.constant 5 : index
    %c0_30 = arith.constant 0 : index
    %c0_31 = arith.constant 0 : index
    %102 = vector.load %arg5[%c5, %c0_30, %c0_31] : memref<9x64x128xbf16, #tpu.memory_space<vmem>>, vector<1x64x128xbf16>
    %103 = vector.shape_cast %102 : vector<1x64x128xbf16> to vector<64x128xbf16>
    %cst_32 = arith.constant dense<0.000000e+00> : vector<128x128xf32>
    %104 = tpu.matmul %101, %103, %cst_32 {dimension_numbers = #tpu.dot_dimension_numbers<[1], [0], [0], [1], [0, 0, 1, 1], [], []>} : vector<128x64xbf16>, vector<64x128xbf16>, vector<128x128xf32> -> vector<128x128xf32>
    %105 = arith.addf %99, %104 : vector<128x128xf32>
    %106 = vector.extract_strided_slice %70 {offsets = [0, 384, 0], sizes = [2, 64, 64], strides = [1, 1, 1]} : vector<2x576x64xbf16> to vector<2x64x64xbf16>
    %107 = vector.shape_cast %106 : vector<2x64x64xbf16> to vector<128x64xbf16>
    %c6 = arith.constant 6 : index
    %c0_33 = arith.constant 0 : index
    %c0_34 = arith.constant 0 : index
    %108 = vector.load %arg5[%c6, %c0_33, %c0_34] : memref<9x64x128xbf16, #tpu.memory_space<vmem>>, vector<1x64x128xbf16>
    %109 = vector.shape_cast %108 : vector<1x64x128xbf16> to vector<64x128xbf16>
    %cst_35 = arith.constant dense<0.000000e+00> : vector<128x128xf32>
    %110 = tpu.matmul %107, %109, %cst_35 {dimension_numbers = #tpu.dot_dimension_numbers<[1], [0], [0], [1], [0, 0, 1, 1], [], []>} : vector<128x64xbf16>, vector<64x128xbf16>, vector<128x128xf32> -> vector<128x128xf32>
    %111 = arith.addf %105, %110 : vector<128x128xf32>
    %112 = vector.extract_strided_slice %70 {offsets = [0, 448, 0], sizes = [2, 64, 64], strides = [1, 1, 1]} : vector<2x576x64xbf16> to vector<2x64x64xbf16>
    %113 = vector.shape_cast %112 : vector<2x64x64xbf16> to vector<128x64xbf16>
    %c7 = arith.constant 7 : index
    %c0_36 = arith.constant 0 : index
    %c0_37 = arith.constant 0 : index
    %114 = vector.load %arg5[%c7, %c0_36, %c0_37] : memref<9x64x128xbf16, #tpu.memory_space<vmem>>, vector<1x64x128xbf16>
    %115 = vector.shape_cast %114 : vector<1x64x128xbf16> to vector<64x128xbf16>
    %cst_38 = arith.constant dense<0.000000e+00> : vector<128x128xf32>
    %116 = tpu.matmul %113, %115, %cst_38 {dimension_numbers = #tpu.dot_dimension_numbers<[1], [0], [0], [1], [0, 0, 1, 1], [], []>} : vector<128x64xbf16>, vector<64x128xbf16>, vector<128x128xf32> -> vector<128x128xf32>
    %117 = arith.addf %111, %116 : vector<128x128xf32>
    %118 = vector.extract_strided_slice %70 {offsets = [0, 512, 0], sizes = [2, 64, 64], strides = [1, 1, 1]} : vector<2x576x64xbf16> to vector<2x64x64xbf16>
    %119 = vector.shape_cast %118 : vector<2x64x64xbf16> to vector<128x64xbf16>
    %c8 = arith.constant 8 : index
    %c0_39 = arith.constant 0 : index
    %c0_40 = arith.constant 0 : index
    %120 = vector.load %arg5[%c8, %c0_39, %c0_40] : memref<9x64x128xbf16, #tpu.memory_space<vmem>>, vector<1x64x128xbf16>
    %121 = vector.shape_cast %120 : vector<1x64x128xbf16> to vector<64x128xbf16>
    %cst_41 = arith.constant dense<0.000000e+00> : vector<128x128xf32>
    %122 = tpu.matmul %119, %121, %cst_41 {dimension_numbers = #tpu.dot_dimension_numbers<[1], [0], [0], [1], [0, 0, 1, 1], [], []>} : vector<128x64xbf16>, vector<64x128xbf16>, vector<128x128xf32> -> vector<128x128xf32>
    %123 = arith.addf %117, %122 : vector<128x128xf32>
    %c0_42 = arith.constant 0 : index
    %c0_43 = arith.constant 0 : index
    %124 = vector.load %arg6[%c0_42, %c0_43] : memref<1x128xf32, #tpu.memory_space<vmem>>, vector<1x128xf32>
    %125 = vector.broadcast %124 : vector<1x128xf32> to vector<128x128xf32>
    %126 = arith.addf %123, %125 : vector<128x128xf32>
    %cst_44 = arith.constant 0.000000e+00 : f32
    %127 = vector.broadcast %cst_44 : f32 to vector<128x128xf32>
    %128 = arith.maximumf %126, %127 : vector<128x128xf32>
    %129 = vector.shape_cast %128 : vector<128x128xf32> to vector<2x64x128xf32>
    %130 = arith.truncf %129 : vector<2x64x128xf32> to vector<2x64x128xbf16>
    %c0_45 = arith.constant 0 : index
    %c0_46 = arith.constant 0 : index
    %131 = vector.load %arg7[%c0_45, %c0_46] : memref<144x64xbf16, #tpu.memory_space<vmem>>, vector<144x64xbf16>
    %132 = vector.extract_strided_slice %130 {offsets = [0, 0, 0], sizes = [1, 64, 128], strides = [1, 1, 1]} : vector<2x64x128xbf16> to vector<1x64x128xbf16>
    %133 = vector.shape_cast %132 : vector<1x64x128xbf16> to vector<64x128xbf16>
    %cst_47 = arith.constant dense<0.000000e+00> : vector<144x128xf32>
    %134 = tpu.matmul %131, %133, %cst_47 {dimension_numbers = #tpu.dot_dimension_numbers<[1], [0], [0], [1], [0, 0, 1, 1], [], []>} : vector<144x64xbf16>, vector<64x128xbf16>, vector<144x128xf32> -> vector<144x128xf32>
    %c0_48 = arith.constant 0 : index
    %c0_49 = arith.constant 0 : index
    %135 = vector.load %arg7[%c0_48, %c0_49] : memref<144x64xbf16, #tpu.memory_space<vmem>>, vector<144x64xbf16>
    %136 = vector.extract_strided_slice %130 {offsets = [1, 0, 0], sizes = [1, 64, 128], strides = [1, 1, 1]} : vector<2x64x128xbf16> to vector<1x64x128xbf16>
    %137 = vector.shape_cast %136 : vector<1x64x128xbf16> to vector<64x128xbf16>
    %cst_50 = arith.constant dense<0.000000e+00> : vector<144x128xf32>
    %138 = tpu.matmul %135, %137, %cst_50 {dimension_numbers = #tpu.dot_dimension_numbers<[1], [0], [0], [1], [0, 0, 1, 1], [], []>} : vector<144x64xbf16>, vector<64x128xbf16>, vector<144x128xf32> -> vector<144x128xf32>
    %139 = vector.shape_cast %134 : vector<144x128xf32> to vector<1x144x128xf32>
    %140 = vector.shape_cast %138 : vector<144x128xf32> to vector<1x144x128xf32>
    %141 = tpu.concatenate %139, %140 in 0 : vector<1x144x128xf32>, vector<1x144x128xf32> -> vector<2x144x128xf32>
    %142 = arith.truncf %141 : vector<2x144x128xf32> to vector<2x144x128xbf16>
    %143 = vector.extract_strided_slice %142 {offsets = [0, 0, 0], sizes = [2, 16, 128], strides = [1, 1, 1]} : vector<2x144x128xbf16> to vector<2x16x128xbf16>
    %144 = vector.shape_cast %143 : vector<2x16x128xbf16> to vector<32x128xbf16>
    %c0_51 = arith.constant 0 : index
    %c0_52 = arith.constant 0 : index
    %c0_53 = arith.constant 0 : index
    %145 = vector.load %arg8[%c0_51, %c0_52, %c0_53] : memref<9x128x256xbf16, #tpu.memory_space<vmem>>, vector<1x128x256xbf16>
    %146 = vector.shape_cast %145 : vector<1x128x256xbf16> to vector<128x256xbf16>
    %cst_54 = arith.constant dense<0.000000e+00> : vector<32x256xf32>
    %147 = tpu.matmul %144, %146, %cst_54 {dimension_numbers = #tpu.dot_dimension_numbers<[1], [0], [0], [1], [0, 0, 1, 1], [], []>} : vector<32x128xbf16>, vector<128x256xbf16>, vector<32x256xf32> -> vector<32x256xf32>
    %148 = vector.extract_strided_slice %142 {offsets = [0, 16, 0], sizes = [2, 16, 128], strides = [1, 1, 1]} : vector<2x144x128xbf16> to vector<2x16x128xbf16>
    %149 = vector.shape_cast %148 : vector<2x16x128xbf16> to vector<32x128xbf16>
    %c1_55 = arith.constant 1 : index
    %c0_56 = arith.constant 0 : index
    %c0_57 = arith.constant 0 : index
    %150 = vector.load %arg8[%c1_55, %c0_56, %c0_57] : memref<9x128x256xbf16, #tpu.memory_space<vmem>>, vector<1x128x256xbf16>
    %151 = vector.shape_cast %150 : vector<1x128x256xbf16> to vector<128x256xbf16>
    %cst_58 = arith.constant dense<0.000000e+00> : vector<32x256xf32>
    %152 = tpu.matmul %149, %151, %cst_58 {dimension_numbers = #tpu.dot_dimension_numbers<[1], [0], [0], [1], [0, 0, 1, 1], [], []>} : vector<32x128xbf16>, vector<128x256xbf16>, vector<32x256xf32> -> vector<32x256xf32>
    %153 = arith.addf %147, %152 : vector<32x256xf32>
    %154 = vector.extract_strided_slice %142 {offsets = [0, 32, 0], sizes = [2, 16, 128], strides = [1, 1, 1]} : vector<2x144x128xbf16> to vector<2x16x128xbf16>
    %155 = vector.shape_cast %154 : vector<2x16x128xbf16> to vector<32x128xbf16>
    %c2_59 = arith.constant 2 : index
    %c0_60 = arith.constant 0 : index
    %c0_61 = arith.constant 0 : index
    %156 = vector.load %arg8[%c2_59, %c0_60, %c0_61] : memref<9x128x256xbf16, #tpu.memory_space<vmem>>, vector<1x128x256xbf16>
    %157 = vector.shape_cast %156 : vector<1x128x256xbf16> to vector<128x256xbf16>
    %cst_62 = arith.constant dense<0.000000e+00> : vector<32x256xf32>
    %158 = tpu.matmul %155, %157, %cst_62 {dimension_numbers = #tpu.dot_dimension_numbers<[1], [0], [0], [1], [0, 0, 1, 1], [], []>} : vector<32x128xbf16>, vector<128x256xbf16>, vector<32x256xf32> -> vector<32x256xf32>
    %159 = arith.addf %153, %158 : vector<32x256xf32>
    %160 = vector.extract_strided_slice %142 {offsets = [0, 48, 0], sizes = [2, 16, 128], strides = [1, 1, 1]} : vector<2x144x128xbf16> to vector<2x16x128xbf16>
    %161 = vector.shape_cast %160 : vector<2x16x128xbf16> to vector<32x128xbf16>
    %c3_63 = arith.constant 3 : index
    %c0_64 = arith.constant 0 : index
    %c0_65 = arith.constant 0 : index
    %162 = vector.load %arg8[%c3_63, %c0_64, %c0_65] : memref<9x128x256xbf16, #tpu.memory_space<vmem>>, vector<1x128x256xbf16>
    %163 = vector.shape_cast %162 : vector<1x128x256xbf16> to vector<128x256xbf16>
    %cst_66 = arith.constant dense<0.000000e+00> : vector<32x256xf32>
    %164 = tpu.matmul %161, %163, %cst_66 {dimension_numbers = #tpu.dot_dimension_numbers<[1], [0], [0], [1], [0, 0, 1, 1], [], []>} : vector<32x128xbf16>, vector<128x256xbf16>, vector<32x256xf32> -> vector<32x256xf32>
    %165 = arith.addf %159, %164 : vector<32x256xf32>
    %166 = vector.extract_strided_slice %142 {offsets = [0, 64, 0], sizes = [2, 16, 128], strides = [1, 1, 1]} : vector<2x144x128xbf16> to vector<2x16x128xbf16>
    %167 = vector.shape_cast %166 : vector<2x16x128xbf16> to vector<32x128xbf16>
    %c4_67 = arith.constant 4 : index
    %c0_68 = arith.constant 0 : index
    %c0_69 = arith.constant 0 : index
    %168 = vector.load %arg8[%c4_67, %c0_68, %c0_69] : memref<9x128x256xbf16, #tpu.memory_space<vmem>>, vector<1x128x256xbf16>
    %169 = vector.shape_cast %168 : vector<1x128x256xbf16> to vector<128x256xbf16>
    %cst_70 = arith.constant dense<0.000000e+00> : vector<32x256xf32>
    %170 = tpu.matmul %167, %169, %cst_70 {dimension_numbers = #tpu.dot_dimension_numbers<[1], [0], [0], [1], [0, 0, 1, 1], [], []>} : vector<32x128xbf16>, vector<128x256xbf16>, vector<32x256xf32> -> vector<32x256xf32>
    %171 = arith.addf %165, %170 : vector<32x256xf32>
    %172 = vector.extract_strided_slice %142 {offsets = [0, 80, 0], sizes = [2, 16, 128], strides = [1, 1, 1]} : vector<2x144x128xbf16> to vector<2x16x128xbf16>
    %173 = vector.shape_cast %172 : vector<2x16x128xbf16> to vector<32x128xbf16>
    %c5_71 = arith.constant 5 : index
    %c0_72 = arith.constant 0 : index
    %c0_73 = arith.constant 0 : index
    %174 = vector.load %arg8[%c5_71, %c0_72, %c0_73] : memref<9x128x256xbf16, #tpu.memory_space<vmem>>, vector<1x128x256xbf16>
    %175 = vector.shape_cast %174 : vector<1x128x256xbf16> to vector<128x256xbf16>
    %cst_74 = arith.constant dense<0.000000e+00> : vector<32x256xf32>
    %176 = tpu.matmul %173, %175, %cst_74 {dimension_numbers = #tpu.dot_dimension_numbers<[1], [0], [0], [1], [0, 0, 1, 1], [], []>} : vector<32x128xbf16>, vector<128x256xbf16>, vector<32x256xf32> -> vector<32x256xf32>
    %177 = arith.addf %171, %176 : vector<32x256xf32>
    %178 = vector.extract_strided_slice %142 {offsets = [0, 96, 0], sizes = [2, 16, 128], strides = [1, 1, 1]} : vector<2x144x128xbf16> to vector<2x16x128xbf16>
    %179 = vector.shape_cast %178 : vector<2x16x128xbf16> to vector<32x128xbf16>
    %c6_75 = arith.constant 6 : index
    %c0_76 = arith.constant 0 : index
    %c0_77 = arith.constant 0 : index
    %180 = vector.load %arg8[%c6_75, %c0_76, %c0_77] : memref<9x128x256xbf16, #tpu.memory_space<vmem>>, vector<1x128x256xbf16>
    %181 = vector.shape_cast %180 : vector<1x128x256xbf16> to vector<128x256xbf16>
    %cst_78 = arith.constant dense<0.000000e+00> : vector<32x256xf32>
    %182 = tpu.matmul %179, %181, %cst_78 {dimension_numbers = #tpu.dot_dimension_numbers<[1], [0], [0], [1], [0, 0, 1, 1], [], []>} : vector<32x128xbf16>, vector<128x256xbf16>, vector<32x256xf32> -> vector<32x256xf32>
    %183 = arith.addf %177, %182 : vector<32x256xf32>
    %184 = vector.extract_strided_slice %142 {offsets = [0, 112, 0], sizes = [2, 16, 128], strides = [1, 1, 1]} : vector<2x144x128xbf16> to vector<2x16x128xbf16>
    %185 = vector.shape_cast %184 : vector<2x16x128xbf16> to vector<32x128xbf16>
    %c7_79 = arith.constant 7 : index
    %c0_80 = arith.constant 0 : index
    %c0_81 = arith.constant 0 : index
    %186 = vector.load %arg8[%c7_79, %c0_80, %c0_81] : memref<9x128x256xbf16, #tpu.memory_space<vmem>>, vector<1x128x256xbf16>
    %187 = vector.shape_cast %186 : vector<1x128x256xbf16> to vector<128x256xbf16>
    %cst_82 = arith.constant dense<0.000000e+00> : vector<32x256xf32>
    %188 = tpu.matmul %185, %187, %cst_82 {dimension_numbers = #tpu.dot_dimension_numbers<[1], [0], [0], [1], [0, 0, 1, 1], [], []>} : vector<32x128xbf16>, vector<128x256xbf16>, vector<32x256xf32> -> vector<32x256xf32>
    %189 = arith.addf %183, %188 : vector<32x256xf32>
    %190 = vector.extract_strided_slice %142 {offsets = [0, 128, 0], sizes = [2, 16, 128], strides = [1, 1, 1]} : vector<2x144x128xbf16> to vector<2x16x128xbf16>
    %191 = vector.shape_cast %190 : vector<2x16x128xbf16> to vector<32x128xbf16>
    %c8_83 = arith.constant 8 : index
    %c0_84 = arith.constant 0 : index
    %c0_85 = arith.constant 0 : index
    %192 = vector.load %arg8[%c8_83, %c0_84, %c0_85] : memref<9x128x256xbf16, #tpu.memory_space<vmem>>, vector<1x128x256xbf16>
    %193 = vector.shape_cast %192 : vector<1x128x256xbf16> to vector<128x256xbf16>
    %cst_86 = arith.constant dense<0.000000e+00> : vector<32x256xf32>
    %194 = tpu.matmul %191, %193, %cst_86 {dimension_numbers = #tpu.dot_dimension_numbers<[1], [0], [0], [1], [0, 0, 1, 1], [], []>} : vector<32x128xbf16>, vector<128x256xbf16>, vector<32x256xf32> -> vector<32x256xf32>
    %195 = arith.addf %189, %194 : vector<32x256xf32>
    %c0_87 = arith.constant 0 : index
    %c0_88 = arith.constant 0 : index
    %196 = vector.load %arg9[%c0_87, %c0_88] : memref<1x256xf32, #tpu.memory_space<vmem>>, vector<1x256xf32>
    %197 = vector.broadcast %196 : vector<1x256xf32> to vector<32x256xf32>
    %198 = arith.addf %195, %197 : vector<32x256xf32>
    %cst_89 = arith.constant 0.000000e+00 : f32
    %199 = vector.broadcast %cst_89 : f32 to vector<32x256xf32>
    %200 = arith.maximumf %198, %199 : vector<32x256xf32>
    %201 = vector.shape_cast %200 : vector<32x256xf32> to vector<2x16x256xf32>
    %202 = arith.truncf %201 : vector<2x16x256xf32> to vector<2x16x256xbf16>
    %c0_90 = arith.constant 0 : index
    %c0_91 = arith.constant 0 : index
    %203 = vector.load %arg10[%c0_90, %c0_91] : memref<144x16xbf16, #tpu.memory_space<vmem>>, vector<144x16xbf16>
    %204 = vector.extract_strided_slice %202 {offsets = [0, 0, 0], sizes = [1, 16, 256], strides = [1, 1, 1]} : vector<2x16x256xbf16> to vector<1x16x256xbf16>
    %205 = vector.shape_cast %204 : vector<1x16x256xbf16> to vector<16x256xbf16>
    %cst_92 = arith.constant dense<0.000000e+00> : vector<144x256xf32>
    %206 = tpu.matmul %203, %205, %cst_92 {dimension_numbers = #tpu.dot_dimension_numbers<[1], [0], [0], [1], [0, 0, 1, 1], [], []>} : vector<144x16xbf16>, vector<16x256xbf16>, vector<144x256xf32> -> vector<144x256xf32>
    %c0_93 = arith.constant 0 : index
    %c0_94 = arith.constant 0 : index
    %207 = vector.load %arg10[%c0_93, %c0_94] : memref<144x16xbf16, #tpu.memory_space<vmem>>, vector<144x16xbf16>
    %208 = vector.extract_strided_slice %202 {offsets = [1, 0, 0], sizes = [1, 16, 256], strides = [1, 1, 1]} : vector<2x16x256xbf16> to vector<1x16x256xbf16>
    %209 = vector.shape_cast %208 : vector<1x16x256xbf16> to vector<16x256xbf16>
    %cst_95 = arith.constant dense<0.000000e+00> : vector<144x256xf32>
    %210 = tpu.matmul %207, %209, %cst_95 {dimension_numbers = #tpu.dot_dimension_numbers<[1], [0], [0], [1], [0, 0, 1, 1], [], []>} : vector<144x16xbf16>, vector<16x256xbf16>, vector<144x256xf32> -> vector<144x256xf32>
    %211 = vector.shape_cast %206 : vector<144x256xf32> to vector<1x144x256xf32>
    %212 = vector.shape_cast %210 : vector<144x256xf32> to vector<1x144x256xf32>
    %213 = tpu.concatenate %211, %212 in 0 : vector<1x144x256xf32>, vector<1x144x256xf32> -> vector<2x144x256xf32>
    %214 = arith.truncf %213 : vector<2x144x256xf32> to vector<2x144x256xbf16>
    %215 = vector.extract_strided_slice %214 {offsets = [0, 0, 0], sizes = [2, 16, 256], strides = [1, 1, 1]} : vector<2x144x256xbf16> to vector<2x16x256xbf16>
    %216 = vector.shape_cast %215 : vector<2x16x256xbf16> to vector<32x256xbf16>
    %c0_96 = arith.constant 0 : index
    %c0_97 = arith.constant 0 : index
    %c0_98 = arith.constant 0 : index
    %217 = vector.load %arg11[%c0_96, %c0_97, %c0_98] : memref<9x256x128xbf16, #tpu.memory_space<vmem>>, vector<1x256x128xbf16>
    %218 = vector.shape_cast %217 : vector<1x256x128xbf16> to vector<256x128xbf16>
    %cst_99 = arith.constant dense<0.000000e+00> : vector<32x128xf32>
    %219 = tpu.matmul %216, %218, %cst_99 {dimension_numbers = #tpu.dot_dimension_numbers<[1], [0], [0], [1], [0, 0, 1, 1], [], []>} : vector<32x256xbf16>, vector<256x128xbf16>, vector<32x128xf32> -> vector<32x128xf32>
    %220 = vector.extract_strided_slice %214 {offsets = [0, 16, 0], sizes = [2, 16, 256], strides = [1, 1, 1]} : vector<2x144x256xbf16> to vector<2x16x256xbf16>
    %221 = vector.shape_cast %220 : vector<2x16x256xbf16> to vector<32x256xbf16>
    %c1_100 = arith.constant 1 : index
    %c0_101 = arith.constant 0 : index
    %c0_102 = arith.constant 0 : index
    %222 = vector.load %arg11[%c1_100, %c0_101, %c0_102] : memref<9x256x128xbf16, #tpu.memory_space<vmem>>, vector<1x256x128xbf16>
    %223 = vector.shape_cast %222 : vector<1x256x128xbf16> to vector<256x128xbf16>
    %cst_103 = arith.constant dense<0.000000e+00> : vector<32x128xf32>
    %224 = tpu.matmul %221, %223, %cst_103 {dimension_numbers = #tpu.dot_dimension_numbers<[1], [0], [0], [1], [0, 0, 1, 1], [], []>} : vector<32x256xbf16>, vector<256x128xbf16>, vector<32x128xf32> -> vector<32x128xf32>
    %225 = arith.addf %219, %224 : vector<32x128xf32>
    %226 = vector.extract_strided_slice %214 {offsets = [0, 32, 0], sizes = [2, 16, 256], strides = [1, 1, 1]} : vector<2x144x256xbf16> to vector<2x16x256xbf16>
    %227 = vector.shape_cast %226 : vector<2x16x256xbf16> to vector<32x256xbf16>
    %c2_104 = arith.constant 2 : index
    %c0_105 = arith.constant 0 : index
    %c0_106 = arith.constant 0 : index
    %228 = vector.load %arg11[%c2_104, %c0_105, %c0_106] : memref<9x256x128xbf16, #tpu.memory_space<vmem>>, vector<1x256x128xbf16>
    %229 = vector.shape_cast %228 : vector<1x256x128xbf16> to vector<256x128xbf16>
    %cst_107 = arith.constant dense<0.000000e+00> : vector<32x128xf32>
    %230 = tpu.matmul %227, %229, %cst_107 {dimension_numbers = #tpu.dot_dimension_numbers<[1], [0], [0], [1], [0, 0, 1, 1], [], []>} : vector<32x256xbf16>, vector<256x128xbf16>, vector<32x128xf32> -> vector<32x128xf32>
    %231 = arith.addf %225, %230 : vector<32x128xf32>
    %232 = vector.extract_strided_slice %214 {offsets = [0, 48, 0], sizes = [2, 16, 256], strides = [1, 1, 1]} : vector<2x144x256xbf16> to vector<2x16x256xbf16>
    %233 = vector.shape_cast %232 : vector<2x16x256xbf16> to vector<32x256xbf16>
    %c3_108 = arith.constant 3 : index
    %c0_109 = arith.constant 0 : index
    %c0_110 = arith.constant 0 : index
    %234 = vector.load %arg11[%c3_108, %c0_109, %c0_110] : memref<9x256x128xbf16, #tpu.memory_space<vmem>>, vector<1x256x128xbf16>
    %235 = vector.shape_cast %234 : vector<1x256x128xbf16> to vector<256x128xbf16>
    %cst_111 = arith.constant dense<0.000000e+00> : vector<32x128xf32>
    %236 = tpu.matmul %233, %235, %cst_111 {dimension_numbers = #tpu.dot_dimension_numbers<[1], [0], [0], [1], [0, 0, 1, 1], [], []>} : vector<32x256xbf16>, vector<256x128xbf16>, vector<32x128xf32> -> vector<32x128xf32>
    %237 = arith.addf %231, %236 : vector<32x128xf32>
    %238 = vector.extract_strided_slice %214 {offsets = [0, 64, 0], sizes = [2, 16, 256], strides = [1, 1, 1]} : vector<2x144x256xbf16> to vector<2x16x256xbf16>
    %239 = vector.shape_cast %238 : vector<2x16x256xbf16> to vector<32x256xbf16>
    %c4_112 = arith.constant 4 : index
    %c0_113 = arith.constant 0 : index
    %c0_114 = arith.constant 0 : index
    %240 = vector.load %arg11[%c4_112, %c0_113, %c0_114] : memref<9x256x128xbf16, #tpu.memory_space<vmem>>, vector<1x256x128xbf16>
    %241 = vector.shape_cast %240 : vector<1x256x128xbf16> to vector<256x128xbf16>
    %cst_115 = arith.constant dense<0.000000e+00> : vector<32x128xf32>
    %242 = tpu.matmul %239, %241, %cst_115 {dimension_numbers = #tpu.dot_dimension_numbers<[1], [0], [0], [1], [0, 0, 1, 1], [], []>} : vector<32x256xbf16>, vector<256x128xbf16>, vector<32x128xf32> -> vector<32x128xf32>
    %243 = arith.addf %237, %242 : vector<32x128xf32>
    %244 = vector.extract_strided_slice %214 {offsets = [0, 80, 0], sizes = [2, 16, 256], strides = [1, 1, 1]} : vector<2x144x256xbf16> to vector<2x16x256xbf16>
    %245 = vector.shape_cast %244 : vector<2x16x256xbf16> to vector<32x256xbf16>
    %c5_116 = arith.constant 5 : index
    %c0_117 = arith.constant 0 : index
    %c0_118 = arith.constant 0 : index
    %246 = vector.load %arg11[%c5_116, %c0_117, %c0_118] : memref<9x256x128xbf16, #tpu.memory_space<vmem>>, vector<1x256x128xbf16>
    %247 = vector.shape_cast %246 : vector<1x256x128xbf16> to vector<256x128xbf16>
    %cst_119 = arith.constant dense<0.000000e+00> : vector<32x128xf32>
    %248 = tpu.matmul %245, %247, %cst_119 {dimension_numbers = #tpu.dot_dimension_numbers<[1], [0], [0], [1], [0, 0, 1, 1], [], []>} : vector<32x256xbf16>, vector<256x128xbf16>, vector<32x128xf32> -> vector<32x128xf32>
    %249 = arith.addf %243, %248 : vector<32x128xf32>
    %250 = vector.extract_strided_slice %214 {offsets = [0, 96, 0], sizes = [2, 16, 256], strides = [1, 1, 1]} : vector<2x144x256xbf16> to vector<2x16x256xbf16>
    %251 = vector.shape_cast %250 : vector<2x16x256xbf16> to vector<32x256xbf16>
    %c6_120 = arith.constant 6 : index
    %c0_121 = arith.constant 0 : index
    %c0_122 = arith.constant 0 : index
    %252 = vector.load %arg11[%c6_120, %c0_121, %c0_122] : memref<9x256x128xbf16, #tpu.memory_space<vmem>>, vector<1x256x128xbf16>
    %253 = vector.shape_cast %252 : vector<1x256x128xbf16> to vector<256x128xbf16>
    %cst_123 = arith.constant dense<0.000000e+00> : vector<32x128xf32>
    %254 = tpu.matmul %251, %253, %cst_123 {dimension_numbers = #tpu.dot_dimension_numbers<[1], [0], [0], [1], [0, 0, 1, 1], [], []>} : vector<32x256xbf16>, vector<256x128xbf16>, vector<32x128xf32> -> vector<32x128xf32>
    %255 = arith.addf %249, %254 : vector<32x128xf32>
    %256 = vector.extract_strided_slice %214 {offsets = [0, 112, 0], sizes = [2, 16, 256], strides = [1, 1, 1]} : vector<2x144x256xbf16> to vector<2x16x256xbf16>
    %257 = vector.shape_cast %256 : vector<2x16x256xbf16> to vector<32x256xbf16>
    %c7_124 = arith.constant 7 : index
    %c0_125 = arith.constant 0 : index
    %c0_126 = arith.constant 0 : index
    %258 = vector.load %arg11[%c7_124, %c0_125, %c0_126] : memref<9x256x128xbf16, #tpu.memory_space<vmem>>, vector<1x256x128xbf16>
    %259 = vector.shape_cast %258 : vector<1x256x128xbf16> to vector<256x128xbf16>
    %cst_127 = arith.constant dense<0.000000e+00> : vector<32x128xf32>
    %260 = tpu.matmul %257, %259, %cst_127 {dimension_numbers = #tpu.dot_dimension_numbers<[1], [0], [0], [1], [0, 0, 1, 1], [], []>} : vector<32x256xbf16>, vector<256x128xbf16>, vector<32x128xf32> -> vector<32x128xf32>
    %261 = arith.addf %255, %260 : vector<32x128xf32>
    %262 = vector.extract_strided_slice %214 {offsets = [0, 128, 0], sizes = [2, 16, 256], strides = [1, 1, 1]} : vector<2x144x256xbf16> to vector<2x16x256xbf16>
    %263 = vector.shape_cast %262 : vector<2x16x256xbf16> to vector<32x256xbf16>
    %c8_128 = arith.constant 8 : index
    %c0_129 = arith.constant 0 : index
    %c0_130 = arith.constant 0 : index
    %264 = vector.load %arg11[%c8_128, %c0_129, %c0_130] : memref<9x256x128xbf16, #tpu.memory_space<vmem>>, vector<1x256x128xbf16>
    %265 = vector.shape_cast %264 : vector<1x256x128xbf16> to vector<256x128xbf16>
    %cst_131 = arith.constant dense<0.000000e+00> : vector<32x128xf32>
    %266 = tpu.matmul %263, %265, %cst_131 {dimension_numbers = #tpu.dot_dimension_numbers<[1], [0], [0], [1], [0, 0, 1, 1], [], []>} : vector<32x256xbf16>, vector<256x128xbf16>, vector<32x128xf32> -> vector<32x128xf32>
    %267 = arith.addf %261, %266 : vector<32x128xf32>
    %c0_132 = arith.constant 0 : index
    %c0_133 = arith.constant 0 : index
    %268 = vector.load %arg12[%c0_132, %c0_133] : memref<1x128xf32, #tpu.memory_space<vmem>>, vector<1x128xf32>
    %269 = vector.broadcast %268 : vector<1x128xf32> to vector<32x128xf32>
    %270 = arith.addf %267, %269 : vector<32x128xf32>
    %cst_134 = arith.constant 0.000000e+00 : f32
    %271 = vector.broadcast %cst_134 : f32 to vector<32x128xf32>
    %272 = arith.maximumf %270, %271 : vector<32x128xf32>
    %273 = vector.shape_cast %272 : vector<32x128xf32> to vector<2x16x128xf32>
    %274 = arith.truncf %273 : vector<2x16x128xf32> to vector<2x16x128xbf16>
    %c0_135 = arith.constant 0 : index
    %c0_136 = arith.constant 0 : index
    %275 = vector.load %arg10[%c0_135, %c0_136] : memref<144x16xbf16, #tpu.memory_space<vmem>>, vector<144x16xbf16>
    %276 = vector.extract_strided_slice %274 {offsets = [0, 0, 0], sizes = [1, 16, 128], strides = [1, 1, 1]} : vector<2x16x128xbf16> to vector<1x16x128xbf16>
    %277 = vector.shape_cast %276 : vector<1x16x128xbf16> to vector<16x128xbf16>
    %cst_137 = arith.constant dense<0.000000e+00> : vector<144x128xf32>
    %278 = tpu.matmul %275, %277, %cst_137 {dimension_numbers = #tpu.dot_dimension_numbers<[1], [0], [0], [1], [0, 0, 1, 1], [], []>} : vector<144x16xbf16>, vector<16x128xbf16>, vector<144x128xf32> -> vector<144x128xf32>
    %c0_138 = arith.constant 0 : index
    %c0_139 = arith.constant 0 : index
    %279 = vector.load %arg10[%c0_138, %c0_139] : memref<144x16xbf16, #tpu.memory_space<vmem>>, vector<144x16xbf16>
    %280 = vector.extract_strided_slice %274 {offsets = [1, 0, 0], sizes = [1, 16, 128], strides = [1, 1, 1]} : vector<2x16x128xbf16> to vector<1x16x128xbf16>
    %281 = vector.shape_cast %280 : vector<1x16x128xbf16> to vector<16x128xbf16>
    %cst_140 = arith.constant dense<0.000000e+00> : vector<144x128xf32>
    %282 = tpu.matmul %279, %281, %cst_140 {dimension_numbers = #tpu.dot_dimension_numbers<[1], [0], [0], [1], [0, 0, 1, 1], [], []>} : vector<144x16xbf16>, vector<16x128xbf16>, vector<144x128xf32> -> vector<144x128xf32>
    %283 = vector.shape_cast %278 : vector<144x128xf32> to vector<1x144x128xf32>
    %284 = vector.shape_cast %282 : vector<144x128xf32> to vector<1x144x128xf32>
    %285 = tpu.concatenate %283, %284 in 0 : vector<1x144x128xf32>, vector<1x144x128xf32> -> vector<2x144x128xf32>
    %286 = arith.truncf %285 : vector<2x144x128xf32> to vector<2x144x128xbf16>
    %287 = vector.extract_strided_slice %286 {offsets = [0, 0, 0], sizes = [2, 16, 128], strides = [1, 1, 1]} : vector<2x144x128xbf16> to vector<2x16x128xbf16>
    %288 = vector.shape_cast %287 : vector<2x16x128xbf16> to vector<32x128xbf16>
    %c0_141 = arith.constant 0 : index
    %c0_142 = arith.constant 0 : index
    %c0_143 = arith.constant 0 : index
    %289 = vector.load %arg13[%c0_141, %c0_142, %c0_143] : memref<9x128x64xbf16, #tpu.memory_space<vmem>>, vector<1x128x64xbf16>
    %290 = vector.shape_cast %289 : vector<1x128x64xbf16> to vector<128x64xbf16>
    %cst_144 = arith.constant dense<0.000000e+00> : vector<32x64xf32>
    %291 = tpu.matmul %288, %290, %cst_144 {dimension_numbers = #tpu.dot_dimension_numbers<[1], [0], [0], [1], [0, 0, 1, 1], [], []>} : vector<32x128xbf16>, vector<128x64xbf16>, vector<32x64xf32> -> vector<32x64xf32>
    %292 = vector.extract_strided_slice %286 {offsets = [0, 16, 0], sizes = [2, 16, 128], strides = [1, 1, 1]} : vector<2x144x128xbf16> to vector<2x16x128xbf16>
    %293 = vector.shape_cast %292 : vector<2x16x128xbf16> to vector<32x128xbf16>
    %c1_145 = arith.constant 1 : index
    %c0_146 = arith.constant 0 : index
    %c0_147 = arith.constant 0 : index
    %294 = vector.load %arg13[%c1_145, %c0_146, %c0_147] : memref<9x128x64xbf16, #tpu.memory_space<vmem>>, vector<1x128x64xbf16>
    %295 = vector.shape_cast %294 : vector<1x128x64xbf16> to vector<128x64xbf16>
    %cst_148 = arith.constant dense<0.000000e+00> : vector<32x64xf32>
    %296 = tpu.matmul %293, %295, %cst_148 {dimension_numbers = #tpu.dot_dimension_numbers<[1], [0], [0], [1], [0, 0, 1, 1], [], []>} : vector<32x128xbf16>, vector<128x64xbf16>, vector<32x64xf32> -> vector<32x64xf32>
    %297 = arith.addf %291, %296 : vector<32x64xf32>
    %298 = vector.extract_strided_slice %286 {offsets = [0, 32, 0], sizes = [2, 16, 128], strides = [1, 1, 1]} : vector<2x144x128xbf16> to vector<2x16x128xbf16>
    %299 = vector.shape_cast %298 : vector<2x16x128xbf16> to vector<32x128xbf16>
    %c2_149 = arith.constant 2 : index
    %c0_150 = arith.constant 0 : index
    %c0_151 = arith.constant 0 : index
    %300 = vector.load %arg13[%c2_149, %c0_150, %c0_151] : memref<9x128x64xbf16, #tpu.memory_space<vmem>>, vector<1x128x64xbf16>
    %301 = vector.shape_cast %300 : vector<1x128x64xbf16> to vector<128x64xbf16>
    %cst_152 = arith.constant dense<0.000000e+00> : vector<32x64xf32>
    %302 = tpu.matmul %299, %301, %cst_152 {dimension_numbers = #tpu.dot_dimension_numbers<[1], [0], [0], [1], [0, 0, 1, 1], [], []>} : vector<32x128xbf16>, vector<128x64xbf16>, vector<32x64xf32> -> vector<32x64xf32>
    %303 = arith.addf %297, %302 : vector<32x64xf32>
    %304 = vector.extract_strided_slice %286 {offsets = [0, 48, 0], sizes = [2, 16, 128], strides = [1, 1, 1]} : vector<2x144x128xbf16> to vector<2x16x128xbf16>
    %305 = vector.shape_cast %304 : vector<2x16x128xbf16> to vector<32x128xbf16>
    %c3_153 = arith.constant 3 : index
    %c0_154 = arith.constant 0 : index
    %c0_155 = arith.constant 0 : index
    %306 = vector.load %arg13[%c3_153, %c0_154, %c0_155] : memref<9x128x64xbf16, #tpu.memory_space<vmem>>, vector<1x128x64xbf16>
    %307 = vector.shape_cast %306 : vector<1x128x64xbf16> to vector<128x64xbf16>
    %cst_156 = arith.constant dense<0.000000e+00> : vector<32x64xf32>
    %308 = tpu.matmul %305, %307, %cst_156 {dimension_numbers = #tpu.dot_dimension_numbers<[1], [0], [0], [1], [0, 0, 1, 1], [], []>} : vector<32x128xbf16>, vector<128x64xbf16>, vector<32x64xf32> -> vector<32x64xf32>
    %309 = arith.addf %303, %308 : vector<32x64xf32>
    %310 = vector.extract_strided_slice %286 {offsets = [0, 64, 0], sizes = [2, 16, 128], strides = [1, 1, 1]} : vector<2x144x128xbf16> to vector<2x16x128xbf16>
    %311 = vector.shape_cast %310 : vector<2x16x128xbf16> to vector<32x128xbf16>
    %c4_157 = arith.constant 4 : index
    %c0_158 = arith.constant 0 : index
    %c0_159 = arith.constant 0 : index
    %312 = vector.load %arg13[%c4_157, %c0_158, %c0_159] : memref<9x128x64xbf16, #tpu.memory_space<vmem>>, vector<1x128x64xbf16>
    %313 = vector.shape_cast %312 : vector<1x128x64xbf16> to vector<128x64xbf16>
    %cst_160 = arith.constant dense<0.000000e+00> : vector<32x64xf32>
    %314 = tpu.matmul %311, %313, %cst_160 {dimension_numbers = #tpu.dot_dimension_numbers<[1], [0], [0], [1], [0, 0, 1, 1], [], []>} : vector<32x128xbf16>, vector<128x64xbf16>, vector<32x64xf32> -> vector<32x64xf32>
    %315 = arith.addf %309, %314 : vector<32x64xf32>
    %316 = vector.extract_strided_slice %286 {offsets = [0, 80, 0], sizes = [2, 16, 128], strides = [1, 1, 1]} : vector<2x144x128xbf16> to vector<2x16x128xbf16>
    %317 = vector.shape_cast %316 : vector<2x16x128xbf16> to vector<32x128xbf16>
    %c5_161 = arith.constant 5 : index
    %c0_162 = arith.constant 0 : index
    %c0_163 = arith.constant 0 : index
    %318 = vector.load %arg13[%c5_161, %c0_162, %c0_163] : memref<9x128x64xbf16, #tpu.memory_space<vmem>>, vector<1x128x64xbf16>
    %319 = vector.shape_cast %318 : vector<1x128x64xbf16> to vector<128x64xbf16>
    %cst_164 = arith.constant dense<0.000000e+00> : vector<32x64xf32>
    %320 = tpu.matmul %317, %319, %cst_164 {dimension_numbers = #tpu.dot_dimension_numbers<[1], [0], [0], [1], [0, 0, 1, 1], [], []>} : vector<32x128xbf16>, vector<128x64xbf16>, vector<32x64xf32> -> vector<32x64xf32>
    %321 = arith.addf %315, %320 : vector<32x64xf32>
    %322 = vector.extract_strided_slice %286 {offsets = [0, 96, 0], sizes = [2, 16, 128], strides = [1, 1, 1]} : vector<2x144x128xbf16> to vector<2x16x128xbf16>
    %323 = vector.shape_cast %322 : vector<2x16x128xbf16> to vector<32x128xbf16>
    %c6_165 = arith.constant 6 : index
    %c0_166 = arith.constant 0 : index
    %c0_167 = arith.constant 0 : index
    %324 = vector.load %arg13[%c6_165, %c0_166, %c0_167] : memref<9x128x64xbf16, #tpu.memory_space<vmem>>, vector<1x128x64xbf16>
    %325 = vector.shape_cast %324 : vector<1x128x64xbf16> to vector<128x64xbf16>
    %cst_168 = arith.constant dense<0.000000e+00> : vector<32x64xf32>
    %326 = tpu.matmul %323, %325, %cst_168 {dimension_numbers = #tpu.dot_dimension_numbers<[1], [0], [0], [1], [0, 0, 1, 1], [], []>} : vector<32x128xbf16>, vector<128x64xbf16>, vector<32x64xf32> -> vector<32x64xf32>
    %327 = arith.addf %321, %326 : vector<32x64xf32>
    %328 = vector.extract_strided_slice %286 {offsets = [0, 112, 0], sizes = [2, 16, 128], strides = [1, 1, 1]} : vector<2x144x128xbf16> to vector<2x16x128xbf16>
    %329 = vector.shape_cast %328 : vector<2x16x128xbf16> to vector<32x128xbf16>
    %c7_169 = arith.constant 7 : index
    %c0_170 = arith.constant 0 : index
    %c0_171 = arith.constant 0 : index
    %330 = vector.load %arg13[%c7_169, %c0_170, %c0_171] : memref<9x128x64xbf16, #tpu.memory_space<vmem>>, vector<1x128x64xbf16>
    %331 = vector.shape_cast %330 : vector<1x128x64xbf16> to vector<128x64xbf16>
    %cst_172 = arith.constant dense<0.000000e+00> : vector<32x64xf32>
    %332 = tpu.matmul %329, %331, %cst_172 {dimension_numbers = #tpu.dot_dimension_numbers<[1], [0], [0], [1], [0, 0, 1, 1], [], []>} : vector<32x128xbf16>, vector<128x64xbf16>, vector<32x64xf32> -> vector<32x64xf32>
    %333 = arith.addf %327, %332 : vector<32x64xf32>
    %334 = vector.extract_strided_slice %286 {offsets = [0, 128, 0], sizes = [2, 16, 128], strides = [1, 1, 1]} : vector<2x144x128xbf16> to vector<2x16x128xbf16>
    %335 = vector.shape_cast %334 : vector<2x16x128xbf16> to vector<32x128xbf16>
    %c8_173 = arith.constant 8 : index
    %c0_174 = arith.constant 0 : index
    %c0_175 = arith.constant 0 : index
    %336 = vector.load %arg13[%c8_173, %c0_174, %c0_175] : memref<9x128x64xbf16, #tpu.memory_space<vmem>>, vector<1x128x64xbf16>
    %337 = vector.shape_cast %336 : vector<1x128x64xbf16> to vector<128x64xbf16>
    %cst_176 = arith.constant dense<0.000000e+00> : vector<32x64xf32>
    %338 = tpu.matmul %335, %337, %cst_176 {dimension_numbers = #tpu.dot_dimension_numbers<[1], [0], [0], [1], [0, 0, 1, 1], [], []>} : vector<32x128xbf16>, vector<128x64xbf16>, vector<32x64xf32> -> vector<32x64xf32>
    %339 = arith.addf %333, %338 : vector<32x64xf32>
    %c0_177 = arith.constant 0 : index
    %c0_178 = arith.constant 0 : index
    %340 = vector.load %arg14[%c0_177, %c0_178] : memref<1x64xf32, #tpu.memory_space<vmem>>, vector<1x64xf32>
    %341 = vector.broadcast %340 : vector<1x64xf32> to vector<32x64xf32>
    %342 = arith.addf %339, %341 : vector<32x64xf32>
    %cst_179 = arith.constant 0.000000e+00 : f32
    %343 = vector.broadcast %cst_179 : f32 to vector<32x64xf32>
    %344 = arith.maximumf %342, %343 : vector<32x64xf32>
    %345 = vector.shape_cast %344 : vector<32x64xf32> to vector<2x16x64xf32>
    %346 = arith.truncf %345 : vector<2x16x64xf32> to vector<2x16x64xbf16>
    %347 = arith.extf %346 : vector<2x16x64xbf16> to vector<2x16x64xf32>
    %c0_180 = arith.constant 0 : index
    %c0_181 = arith.constant 0 : index
    %348 = vector.load %arg15[%c0_180, %c0_181] : memref<1x64xf32, #tpu.memory_space<vmem>>, vector<1x64xf32>
    %349 = vector.shape_cast %348 : vector<1x64xf32> to vector<1x1x64xf32>
    %350 = vector.broadcast %349 : vector<1x1x64xf32> to vector<2x16x64xf32>
    %351 = arith.mulf %347, %350 : vector<2x16x64xf32>
    %cst_182 = arith.constant dense<0.000000e+00> : vector<2x16xf32>
    %352 = vector.multi_reduction <add>, %351, %cst_182 [2] : vector<2x16x64xf32> to vector<2x16xf32>
    %c0_183 = arith.constant 0 : index
    %c0_184 = arith.constant 0 : index
    %353 = vector.load %arg16[%c0_183, %c0_184] : memref<1x1xf32, #tpu.memory_space<vmem>>, vector<1x1xf32>
    %354 = vector.broadcast %353 : vector<1x1xf32> to vector<2x16xf32>
    %355 = arith.addf %352, %354 : vector<2x16xf32>
    %356 = vector.shape_cast %355 : vector<2x16xf32> to vector<2x1x16xf32>
    %c0_185 = arith.constant 0 : index
    %c0_186 = arith.constant 0 : index
    %c0_187 = arith.constant 0 : index
    %357 = vector.load %arg17[%c0_185, %c0_186, %c0_187] : memref<2x1x16xf32, #tpu.memory_space<vmem>>, vector<2x1x16xf32>
    tpu.vector_store %arg17[%c0_185, %c0_186, %c0_187], %356 {strides = array<i32>} : memref<2x1x16xf32, #tpu.memory_space<vmem>>, vector<2x1x16xf32>,
    return
  }
  func.func @transform_0(%arg0: i32) -> (i32, i32, i32) {
    %c0_i32 = arith.constant 0 : i32
    %c0_i32_0 = arith.constant 0 : i32
    %c0_i32_1 = arith.constant 0 : i32
    return %arg0, %c0_i32, %c0_i32_0 : i32, i32, i32
  }
  func.func @transform_1(%arg0: i32) -> (i32, i32) {
    %c0_i32 = arith.constant 0 : i32
    %c0_i32_0 = arith.constant 0 : i32
    %c0_i32_1 = arith.constant 0 : i32
    return %c0_i32, %c0_i32_0 : i32, i32
  }
  func.func @transform_2(%arg0: i32) -> (i32, i32) {
    %c0_i32 = arith.constant 0 : i32
    %c0_i32_0 = arith.constant 0 : i32
    %c0_i32_1 = arith.constant 0 : i32
    return %c0_i32, %c0_i32_0 : i32, i32
  }
  func.func @transform_3(%arg0: i32) -> (i32, i32) {
    %c0_i32 = arith.constant 0 : i32
    %c0_i32_0 = arith.constant 0 : i32
    %c0_i32_1 = arith.constant 0 : i32
    return %c0_i32, %c0_i32_0 : i32, i32
  }
  func.func @transform_4(%arg0: i32) -> (i32, i32, i32) {
    %c0_i32 = arith.constant 0 : i32
    %c0_i32_0 = arith.constant 0 : i32
    %c0_i32_1 = arith.constant 0 : i32
    %c0_i32_2 = arith.constant 0 : i32
    return %c0_i32, %c0_i32_0, %c0_i32_1 : i32, i32, i32
  }
  func.func @transform_5(%arg0: i32) -> (i32, i32) {
    %c0_i32 = arith.constant 0 : i32
    %c0_i32_0 = arith.constant 0 : i32
    %c0_i32_1 = arith.constant 0 : i32
    return %c0_i32, %c0_i32_0 : i32, i32
  }
  func.func @transform_6(%arg0: i32) -> (i32, i32) {
    %c0_i32 = arith.constant 0 : i32
    %c0_i32_0 = arith.constant 0 : i32
    %c0_i32_1 = arith.constant 0 : i32
    return %c0_i32, %c0_i32_0 : i32, i32
  }
  func.func @transform_7(%arg0: i32) -> (i32, i32, i32) {
    %c0_i32 = arith.constant 0 : i32
    %c0_i32_0 = arith.constant 0 : i32
    %c0_i32_1 = arith.constant 0 : i32
    %c0_i32_2 = arith.constant 0 : i32
    return %c0_i32, %c0_i32_0, %c0_i32_1 : i32, i32, i32
  }
  func.func @transform_8(%arg0: i32) -> (i32, i32) {
    %c0_i32 = arith.constant 0 : i32
    %c0_i32_0 = arith.constant 0 : i32
    %c0_i32_1 = arith.constant 0 : i32
    return %c0_i32, %c0_i32_0 : i32, i32
  }
  func.func @transform_9(%arg0: i32) -> (i32, i32) {
    %c0_i32 = arith.constant 0 : i32
    %c0_i32_0 = arith.constant 0 : i32
    %c0_i32_1 = arith.constant 0 : i32
    return %c0_i32, %c0_i32_0 : i32, i32
  }
  func.func @transform_10(%arg0: i32) -> (i32, i32, i32) {
    %c0_i32 = arith.constant 0 : i32
    %c0_i32_0 = arith.constant 0 : i32
    %c0_i32_1 = arith.constant 0 : i32
    %c0_i32_2 = arith.constant 0 : i32
    return %c0_i32, %c0_i32_0, %c0_i32_1 : i32, i32, i32
  }
  func.func @transform_11(%arg0: i32) -> (i32, i32) {
    %c0_i32 = arith.constant 0 : i32
    %c0_i32_0 = arith.constant 0 : i32
    %c0_i32_1 = arith.constant 0 : i32
    return %c0_i32, %c0_i32_0 : i32, i32
  }
  func.func @transform_12(%arg0: i32) -> (i32, i32, i32) {
    %c0_i32 = arith.constant 0 : i32
    %c0_i32_0 = arith.constant 0 : i32
    %c0_i32_1 = arith.constant 0 : i32
    %c0_i32_2 = arith.constant 0 : i32
    return %c0_i32, %c0_i32_0, %c0_i32_1 : i32, i32, i32
  }
  func.func @transform_13(%arg0: i32) -> (i32, i32) {
    %c0_i32 = arith.constant 0 : i32
    %c0_i32_0 = arith.constant 0 : i32
    %c0_i32_1 = arith.constant 0 : i32
    return %c0_i32, %c0_i32_0 : i32, i32
  }
  func.func @transform_14(%arg0: i32) -> (i32, i32) {
    %c0_i32 = arith.constant 0 : i32
    %c0_i32_0 = arith.constant 0 : i32
    %c0_i32_1 = arith.constant 0 : i32
    return %c0_i32, %c0_i32_0 : i32, i32
  }
  func.func @transform_15(%arg0: i32) -> (i32, i32) {
    %c0_i32 = arith.constant 0 : i32
    %c0_i32_0 = arith.constant 0 : i32
    %c0_i32_1 = arith.constant 0 : i32
    return %c0_i32, %c0_i32_0 : i32, i32
  }
  func.func @transform_16(%arg0: i32) -> (i32, i32, i32) {
    %c0_i32 = arith.constant 0 : i32
    %c0_i32_0 = arith.constant 0 : i32
    %c0_i32_1 = arith.constant 0 : i32
    return %arg0, %c0_i32, %c0_i32_0 : i32, i32, i32
  }
}

</mosaic_0001>

<llo_original>
// kernel: simple_bevformer_forward.1
$region0: #{simple_bevformer_forward.1}
  #allocation0 [shape = 'u32[]', space=smem, size = 0x4, offset = 0x4, fixed_abs, tag = 'smem constant byte address 0x4 - core index']
  #allocation1 [shape = 'u32[72,128]{1,0:T(1,128)}', space=vmem, size = 0x9000, scoped, tag = 'internal scratch']
  #allocation2 [shape = 'f32[1,1]{1,0:T(1,128)S(1)}', space=vmem, size = 0x200, scoped, tag = 'scoped memory for simple_bevformer_forward.1']
  %s0 = inlined_call_operand.vmem [shape: bf16[4,1024,256], index: 0, kind: input, shape index: {}]
  %s1 = inlined_call_operand.vmem [shape: bf16[256,64], index: 1, kind: input, shape index: {}]
  %s2 = inlined_call_operand.vmem [shape: f32[1,64], index: 2, kind: input, shape index: {}]
  %s3 = inlined_call_operand.vmem [shape: bf16[576,256], index: 3, kind: input, shape index: {}]
  %s4 = inlined_call_operand.vmem [shape: bf16[9,64,128], index: 4, kind: input, shape index: {}]
  %s5 = inlined_call_operand.vmem [shape: f32[1,128], index: 5, kind: input, shape index: {}]
  %s6 = inlined_call_operand.vmem [shape: bf16[144,64], index: 6, kind: input, shape index: {}]
  %s7 = inlined_call_operand.vmem [shape: bf16[9,128,256], index: 7, kind: input, shape index: {}]
  %s8 = inlined_call_operand.vmem [shape: f32[1,256], index: 8, kind: input, shape index: {}]
  %s9 = inlined_call_operand.vmem [shape: bf16[144,16], index: 9, kind: input, shape index: {}]
  %s10 = inlined_call_operand.vmem [shape: bf16[9,256,128], index: 10, kind: input, shape index: {}]
  %s11 = inlined_call_operand.vmem [shape: f32[1,128], index: 11, kind: input, shape index: {}]
  %s12 = inlined_call_operand.vmem [shape: bf16[9,128,64], index: 12, kind: input, shape index: {}]
  %s13 = inlined_call_operand.vmem [shape: f32[1,64], index: 13, kind: input, shape index: {}]
  %s14 = inlined_call_operand.vmem [shape: f32[1,64], index: 14, kind: input, shape index: {}]
  %s15 = inlined_call_operand.<no memory space> [shape: f32[1,1], index: 15, kind: input, shape index: {}]
  %s16 = inlined_call_operand.vmem [shape: f32[4,1,16], index: 16, kind: output, shape index: {}]
  %s17 = sld [smem:[#allocation0]]
  $region97: #{simple_bevformer_forward.1} parent=0
    _
  %s19 = ssub.s32 1, %s17
  %s20 = scalar_select 0, %s19, %s17
  %v21 = vstv %s15
  %22 = vst [vmem:[#allocation2] sm:$0x1] %v21
  loop: start=0, step=1, limit=4
  $region2: #{simple_bevformer_forward.1} parent=0 // loop_pre_header
    _
  $region3: #{simple_bevformer_forward.1} parent=0 // loop_header
    %s24 = sphi 0, %s28
    %p25 = scmp.ge.s32.totalorder %s24, 4
    %s34 = sphi 0, %s36
    %s37 = sphi 0, %s34
    %s38 = sphi 0, %s37
    %s54 = sphi 0, %s38
    %s58 = sphi 0, %s58
    %s60 = sphi 0, %s58
    %s61 = sphi 0, %s60
    %s75 = sphi 0, %s61
    %s79 = sphi 0, %s79
    %s81 = sphi 0, %s79
    %s82 = sphi 0, %s81
    %s96 = sphi 0, %s82
    %s100 = sphi 0, %s100
    %s102 = sphi 0, %s100
    %s103 = sphi 0, %s102
    %s117 = sphi 0, %s103
    %s121 = sphi 0, %s121
    %s123 = sphi 0, %s121
    %s124 = sphi 0, %s123
    %s138 = sphi 0, %s124
    %s142 = sphi 0, %s142
    %s144 = sphi 0, %s142
    %s145 = sphi 0, %s144
    %s159 = sphi 0, %s145
    %s163 = sphi 0, %s163
    %s165 = sphi 0, %s163
    %s166 = sphi 0, %s165
    %s180 = sphi 0, %s166
    %s184 = sphi 0, %s184
    %s186 = sphi 0, %s184
    %s187 = sphi 0, %s186
    %s201 = sphi 0, %s187
    %s205 = sphi 0, %s205
    %s207 = sphi 0, %s205
    %s208 = sphi 0, %s207
    %s222 = sphi 0, %s208
    %s226 = sphi 0, %s226
    %s228 = sphi 0, %s226
    %s229 = sphi 0, %s228
    %s243 = sphi 0, %s229
    %s247 = sphi 0, %s247
    %s249 = sphi 0, %s247
    %s250 = sphi 0, %s249
    %s264 = sphi 0, %s250
    %s268 = sphi 0, %s268
    %s270 = sphi 0, %s268
    %s271 = sphi 0, %s270
    %s285 = sphi 0, %s271
    %s289 = sphi 0, %s289
    %s291 = sphi 0, %s289
    %s292 = sphi 0, %s291
    %s306 = sphi 0, %s292
    %s310 = sphi 0, %s310
    %s312 = sphi 0, %s310
    %s313 = sphi 0, %s312
    %s327 = sphi 0, %s313
    %s331 = sphi 0, %s331
    %s333 = sphi 0, %s331
    %s334 = sphi 0, %s333
    %s348 = sphi 0, %s334
    %s352 = sphi 0, %s352
    %s354 = sphi 0, %s352
    %s355 = sphi 0, %s354
    %s369 = sphi 0, %s355
    %s375 = sphi 0, %s377
    %s378 = sphi 0, %s375
    %s379 = sphi 0, %s378
    %s395 = sphi 0, %s379
  $region4: #{simple_bevformer_forward.1} parent=0 // loop_header_branch
    %27 = sbr.rel (%p25) target = $region8
  $region5: #{simple_bevformer_forward.1} parent=0 // loop_body
    %s29 = ssub.s32 %s24, 1
    %s30 = ssub.s32 %s24, 2
    %s31 = sadd.s32 %s24, 1
    %s32 = ssub.s32 %s24, %s31
    %p33 = scmp.eq.s32.totalorder %s32, 0
    %s35 = sadd.s32 %s34, 1
    %s36 = scalar_select %p33, %s34, %s35
    %p39 = pneg %p33
    %p40 = scmp.eq.s32.totalorder %s24, 1
    %p41 = por %p39, %p40
    %p42 = scmp.ne.s32.totalorder %s34, %s37
    %p43 = scmp.eq.s32.totalorder %s24, 0
    %p44 = por %p42, %p43
    %p45 = scmp.ne.s32.totalorder %s34, %s37
    %p46 = scmp.eq.s32.totalorder %s29, 1
    %p47 = por %p45, %p46
    %p48 = scmp.ne.s32.totalorder %s37, %s38
    %p49 = scmp.eq.s32.totalorder %s29, 0
    %p50 = por %p48, %p49
    %p51 = scmp.ne.s32.totalorder %s37, %s38
    %p52 = scmp.eq.s32.totalorder %s30, 1
    %p53 = por %p51, %p52
    %p55 = scmp.ne.s32.totalorder %s38, %s54
    %p56 = scmp.eq.s32.totalorder %s30, 0
    %p57 = por %p55, %p56
    %s59 = sadd.s32 %s58, 1
    %p62 = scmp.eq.s32.totalorder %s24, 1
    %p63 = scmp.ne.s32.totalorder %s58, %s60
    %p64 = scmp.eq.s32.totalorder %s24, 0
    %p65 = por %p63, %p64
    %p66 = scmp.ne.s32.totalorder %s58, %s60
    %p67 = scmp.eq.s32.totalorder %s29, 1
    %p68 = por %p66, %p67
    %p69 = scmp.ne.s32.totalorder %s60, %s61
    %p70 = scmp.eq.s32.totalorder %s29, 0
    %p71 = por %p69, %p70
    %p72 = scmp.ne.s32.totalorder %s60, %s61
    %p73 = scmp.eq.s32.totalorder %s30, 1
    %p74 = por %p72, %p73
    %p76 = scmp.ne.s32.totalorder %s61, %s75
    %p77 = scmp.eq.s32.totalorder %s30, 0
    %p78 = por %p76, %p77
    %s80 = sadd.s32 %s79, 1
    %p83 = scmp.eq.s32.totalorder %s24, 1
    %p84 = scmp.ne.s32.totalorder %s79, %s81
    %p85 = scmp.eq.s32.totalorder %s24, 0
    %p86 = por %p84, %p85
    %p87 = scmp.ne.s32.totalorder %s79, %s81
    %p88 = scmp.eq.s32.totalorder %s29, 1
    %p89 = por %p87, %p88
    %p90 = scmp.ne.s32.totalorder %s81, %s82
    %p91 = scmp.eq.s32.totalorder %s29, 0
    %p92 = por %p90, %p91
    %p93 = scmp.ne.s32.totalorder %s81, %s82
    %p94 = scmp.eq.s32.totalorder %s30, 1
    %p95 = por %p93, %p94
    %p97 = scmp.ne.s32.totalorder %s82, %s96
    %p98 = scmp.eq.s32.totalorder %s30, 0
    %p99 = por %p97, %p98
    %s101 = sadd.s32 %s100, 1
    %p104 = scmp.eq.s32.totalorder %s24, 1
    %p105 = scmp.ne.s32.totalorder %s100, %s102
    %p106 = scmp.eq.s32.totalorder %s24, 0
    %p107 = por %p105, %p106
    %p108 = scmp.ne.s32.totalorder %s100, %s102
    %p109 = scmp.eq.s32.totalorder %s29, 1
    %p110 = por %p108, %p109
    %p111 = scmp.ne.s32.totalorder %s102, %s103
    %p112 = scmp.eq.s32.totalorder %s29, 0
    %p113 = por %p111, %p112
    %p114 = scmp.ne.s32.totalorder %s102, %s103
    %p115 = scmp.eq.s32.totalorder %s30, 1
    %p116 = por %p114, %p115
    %p118 = scmp.ne.s32.totalorder %s103, %s117
    %p119 = scmp.eq.s32.totalorder %s30, 0
    %p120 = por %p118, %p119
    %s122 = sadd.s32 %s121, 1
    %p125 = scmp.eq.s32.totalorder %s24, 1
    %p126 = scmp.ne.s32.totalorder %s121, %s123
    %p127 = scmp.eq.s32.totalorder %s24, 0
    %p128 = por %p126, %p127
    %p129 = scmp.ne.s32.totalorder %s121, %s123
    %p130 = scmp.eq.s32.totalorder %s29, 1
    %p131 = por %p129, %p130
    %p132 = scmp.ne.s32.totalorder %s123, %s124
    %p133 = scmp.eq.s32.totalorder %s29, 0
    %p134 = por %p132, %p133
    %p135 = scmp.ne.s32.totalorder %s123, %s124
    %p136 = scmp.eq.s32.totalorder %s30, 1
    %p137 = por %p135, %p136
    %p139 = scmp.ne.s32.totalorder %s124, %s138
    %p140 = scmp.eq.s32.totalorder %s30, 0
    %p141 = por %p139, %p140
    %s143 = sadd.s32 %s142, 1
    %p146 = scmp.eq.s32.totalorder %s24, 1
    %p147 = scmp.ne.s32.totalorder %s142, %s144
    %p148 = scmp.eq.s32.totalorder %s24, 0
    %p149 = por %p147, %p148
    %p150 = scmp.ne.s32.totalorder %s142, %s144
    %p151 = scmp.eq.s32.totalorder %s29, 1
    %p152 = por %p150, %p151
    %p153 = scmp.ne.s32.totalorder %s144, %s145
    %p154 = scmp.eq.s32.totalorder %s29, 0
    %p155 = por %p153, %p154
    %p156 = scmp.ne.s32.totalorder %s144, %s145
    %p157 = scmp.eq.s32.totalorder %s30, 1
    %p158 = por %p156, %p157
    %p160 = scmp.ne.s32.totalorder %s145, %s159
    %p161 = scmp.eq.s32.totalorder %s30, 0
    %p162 = por %p160, %p161
    %s164 = sadd.s32 %s163, 1
    %p167 = scmp.eq.s32.totalorder %s24, 1
    %p168 = scmp.ne.s32.totalorder %s163, %s165
    %p169 = scmp.eq.s32.totalorder %s24, 0
    %p170 = por %p168, %p169
    %p171 = scmp.ne.s32.totalorder %s163, %s165
    %p172 = scmp.eq.s32.totalorder %s29, 1
    %p173 = por %p171, %p172
    %p174 = scmp.ne.s32.totalorder %s165, %s166
    %p175 = scmp.eq.s32.totalorder %s29, 0
    %p176 = por %p174, %p175
    %p177 = scmp.ne.s32.totalorder %s165, %s166
    %p178 = scmp.eq.s32.totalorder %s30, 1
    %p179 = por %p177, %p178
    %p181 = scmp.ne.s32.totalorder %s166, %s180
    %p182 = scmp.eq.s32.totalorder %s30, 0
    %p183 = por %p181, %p182
    %s185 = sadd.s32 %s184, 1
    %p188 = scmp.eq.s32.totalorder %s24, 1
    %p189 = scmp.ne.s32.totalorder %s184, %s186
    %p190 = scmp.eq.s32.totalorder %s24, 0
    %p191 = por %p189, %p190
    %p192 = scmp.ne.s32.totalorder %s184, %s186
    %p193 = scmp.eq.s32.totalorder %s29, 1
    %p194 = por %p192, %p193
    %p195 = scmp.ne.s32.totalorder %s186, %s187
    %p196 = scmp.eq.s32.totalorder %s29, 0
    %p197 = por %p195, %p196
    %p198 = scmp.ne.s32.totalorder %s186, %s187
    %p199 = scmp.eq.s32.totalorder %s30, 1
    %p200 = por %p198, %p199
    %p202 = scmp.ne.s32.totalorder %s187, %s201
    %p203 = scmp.eq.s32.totalorder %s30, 0
    %p204 = por %p202, %p203
    %s206 = sadd.s32 %s205, 1
    %p209 = scmp.eq.s32.totalorder %s24, 1
    %p210 = scmp.ne.s32.totalorder %s205, %s207
    %p211 = scmp.eq.s32.totalorder %s24, 0
    %p212 = por %p210, %p211
    %p213 = scmp.ne.s32.totalorder %s205, %s207
    %p214 = scmp.eq.s32.totalorder %s29, 1
    %p215 = por %p213, %p214
    %p216 = scmp.ne.s32.totalorder %s207, %s208
    %p217 = scmp.eq.s32.totalorder %s29, 0
    %p218 = por %p216, %p217
    %p219 = scmp.ne.s32.totalorder %s207, %s208
    %p220 = scmp.eq.s32.totalorder %s30, 1
    %p221 = por %p219, %p220
    %p223 = scmp.ne.s32.totalorder %s208, %s222
    %p224 = scmp.eq.s32.totalorder %s30, 0
    %p225 = por %p223, %p224
    %s227 = sadd.s32 %s226, 1
    %p230 = scmp.eq.s32.totalorder %s24, 1
    %p231 = scmp.ne.s32.totalorder %s226, %s228
    %p232 = scmp.eq.s32.totalorder %s24, 0
    %p233 = por %p231, %p232
    %p234 = scmp.ne.s32.totalorder %s226, %s228
    %p235 = scmp.eq.s32.totalorder %s29, 1
    %p236 = por %p234, %p235
    %p237 = scmp.ne.s32.totalorder %s228, %s229
    %p238 = scmp.eq.s32.totalorder %s29, 0
    %p239 = por %p237, %p238
    %p240 = scmp.ne.s32.totalorder %s228, %s229
    %p241 = scmp.eq.s32.totalorder %s30, 1
    %p242 = por %p240, %p241
    %p244 = scmp.ne.s32.totalorder %s229, %s243
    %p245 = scmp.eq.s32.totalorder %s30, 0
    %p246 = por %p244, %p245
    %s248 = sadd.s32 %s247, 1
    %p251 = scmp.eq.s32.totalorder %s24, 1
    %p252 = scmp.ne.s32.totalorder %s247, %s249
    %p253 = scmp.eq.s32.totalorder %s24, 0
    %p254 = por %p252, %p253
    %p255 = scmp.ne.s32.totalorder %s247, %s249
    %p256 = scmp.eq.s32.totalorder %s29, 1
    %p257 = por %p255, %p256
    %p258 = scmp.ne.s32.totalorder %s249, %s250
    %p259 = scmp.eq.s32.totalorder %s29, 0
    %p260 = por %p258, %p259
    %p261 = scmp.ne.s32.totalorder %s249, %s250
    %p262 = scmp.eq.s32.totalorder %s30, 1
    %p263 = por %p261, %p262
    %p265 = scmp.ne.s32.totalorder %s250, %s264
    %p266 = scmp.eq.s32.totalorder %s30, 0
    %p267 = por %p265, %p266
    %s269 = sadd.s32 %s268, 1
    %p272 = scmp.eq.s32.totalorder %s24, 1
    %p273 = scmp.ne.s32.totalorder %s268, %s270
    %p274 = scmp.eq.s32.totalorder %s24, 0
    %p275 = por %p273, %p274
    %p276 = scmp.ne.s32.totalorder %s268, %s270
    %p277 = scmp.eq.s32.totalorder %s29, 1
    %p278 = por %p276, %p277
    %p279 = scmp.ne.s32.totalorder %s270, %s271
    %p280 = scmp.eq.s32.totalorder %s29, 0
    %p281 = por %p279, %p280
    %p282 = scmp.ne.s32.totalorder %s270, %s271
    %p283 = scmp.eq.s32.totalorder %s30, 1
    %p284 = por %p282, %p283
    %p286 = scmp.ne.s32.totalorder %s271, %s285
    %p287 = scmp.eq.s32.totalorder %s30, 0
    %p288 = por %p286, %p287
    %s290 = sadd.s32 %s289, 1
    %p293 = scmp.eq.s32.totalorder %s24, 1
    %p294 = scmp.ne.s32.totalorder %s289, %s291
    %p295 = scmp.eq.s32.totalorder %s24, 0
    %p296 = por %p294, %p295
    %p297 = scmp.ne.s32.totalorder %s289, %s291
    %p298 = scmp.eq.s32.totalorder %s29, 1
    %p299 = por %p297, %p298
    %p300 = scmp.ne.s32.totalorder %s291, %s292
    %p301 = scmp.eq.s32.totalorder %s29, 0
    %p302 = por %p300, %p301
    %p303 = scmp.ne.s32.totalorder %s291, %s292
    %p304 = scmp.eq.s32.totalorder %s30, 1
    %p305 = por %p303, %p304
    %p307 = scmp.ne.s32.totalorder %s292, %s306
    %p308 = scmp.eq.s32.totalorder %s30, 0
    %p309 = por %p307, %p308
    %s311 = sadd.s32 %s310, 1
    %p314 = scmp.eq.s32.totalorder %s24, 1
    %p315 = scmp.ne.s32.totalorder %s310, %s312
    %p316 = scmp.eq.s32.totalorder %s24, 0
    %p317 = por %p315, %p316
    %p318 = scmp.ne.s32.totalorder %s310, %s312
    %p319 = scmp.eq.s32.totalorder %s29, 1
    %p320 = por %p318, %p319
    %p321 = scmp.ne.s32.totalorder %s312, %s313
    %p322 = scmp.eq.s32.totalorder %s29, 0
    %p323 = por %p321, %p322
    %p324 = scmp.ne.s32.totalorder %s312, %s313
    %p325 = scmp.eq.s32.totalorder %s30, 1
    %p326 = por %p324, %p325
    %p328 = scmp.ne.s32.totalorder %s313, %s327
    %p329 = scmp.eq.s32.totalorder %s30, 0
    %p330 = por %p328, %p329
    %s332 = sadd.s32 %s331, 1
    %p335 = scmp.eq.s32.totalorder %s24, 1
    %p336 = scmp.ne.s32.totalorder %s331, %s333
    %p337 = scmp.eq.s32.totalorder %s24, 0
    %p338 = por %p336, %p337
    %p339 = scmp.ne.s32.totalorder %s331, %s333
    %p340 = scmp.eq.s32.totalorder %s29, 1
    %p341 = por %p339, %p340
    %p342 = scmp.ne.s32.totalorder %s333, %s334
    %p343 = scmp.eq.s32.totalorder %s29, 0
    %p344 = por %p342, %p343
    %p345 = scmp.ne.s32.totalorder %s333, %s334
    %p346 = scmp.eq.s32.totalorder %s30, 1
    %p347 = por %p345, %p346
    %p349 = scmp.ne.s32.totalorder %s334, %s348
    %p350 = scmp.eq.s32.totalorder %s30, 0
    %p351 = por %p349, %p350
    %s353 = sadd.s32 %s352, 1
    %p356 = scmp.eq.s32.totalorder %s24, 1
    %p357 = scmp.ne.s32.totalorder %s352, %s354
    %p358 = scmp.eq.s32.totalorder %s24, 0
    %p359 = por %p357, %p358
    %p360 = scmp.ne.s32.totalorder %s352, %s354
    %p361 = scmp.eq.s32.totalorder %s29, 1
    %p362 = por %p360, %p361
    %p363 = scmp.ne.s32.totalorder %s354, %s355
    %p364 = scmp.eq.s32.totalorder %s29, 0
    %p365 = por %p363, %p364
    %p366 = scmp.ne.s32.totalorder %s354, %s355
    %p367 = scmp.eq.s32.totalorder %s30, 1
    %p368 = por %p366, %p367
    %p370 = scmp.ne.s32.totalorder %s355, %s369
    %p371 = scmp.eq.s32.totalorder %s30, 0
    %p372 = por %p370, %p371
    %s373 = ssub.s32 %s24, %s31
    %p374 = scmp.eq.s32.totalorder %s373, 0
    %s376 = sadd.s32 %s375, 1
    %s377 = scalar_select %p374, %s375, %s376
    %p380 = pneg %p374
    %p381 = scmp.eq.s32.totalorder %s24, 1
    %p382 = por %p380, %p381
    %p383 = scmp.ne.s32.totalorder %s375, %s378
    %p384 = scmp.eq.s32.totalorder %s24, 0
    %p385 = por %p383, %p384
    %p386 = scmp.ne.s32.totalorder %s375, %s378
    %p387 = scmp.eq.s32.totalorder %s29, 1
    %p388 = por %p386, %p387
    %p389 = scmp.ne.s32.totalorder %s378, %s379
    %p390 = scmp.eq.s32.totalorder %s29, 0
    %p391 = por %p389, %p390
    %p392 = scmp.ne.s32.totalorder %s378, %s379
    %p393 = scmp.eq.s32.totalorder %s30, 1
    %p394 = por %p392, %p393
    %p396 = scmp.ne.s32.totalorder %s379, %s395
    %p397 = scmp.eq.s32.totalorder %s30, 0
    %p398 = por %p396, %p397
    %p399 = scmp.le.s32.totalorder 1, %s24
    %p400 = scmp.lt.s32.totalorder %s24, 3
    %p401 = pnand %p399, %p400
    %p402 = pneg %p401
    // Predicated region
    $region9: #{simple_bevformer_forward.1} parent=5 // pred_check
      _
    $region10: #{simple_bevformer_forward.1} parent=5 // pred_check_branch
      %404 = sbr.rel (%p401) target = $region12
    $region11: #{simple_bevformer_forward.1} parent=5 // pred_region
      %s405 = ssub.s32 %s24, 1
      // Predicated region
      $region13: #{simple_bevformer_forward.1} parent=11 // pred_check
        %p406 = pneg %p71
      $region14: #{simple_bevformer_forward.1} parent=11 // pred_check_branch
        %408 = sbr.rel (%p406) target = $region16
      $region15: #{simple_bevformer_forward.1} parent=11 // pred_region
        _
      $region16: #{simple_bevformer_forward.1} parent=11 // pred_fallthru
        _
      // Predicated region
      $region17: #{simple_bevformer_forward.1} parent=11 // pred_check
        %p409 = pneg %p92
      $region18: #{simple_bevformer_forward.1} parent=11 // pred_check_branch
        %411 = sbr.rel (%p409) target = $region20
      $region19: #{simple_bevformer_forward.1} parent=11 // pred_region
        _
      $region20: #{simple_bevformer_forward.1} parent=11 // pred_fallthru
        _
      // Predicated region
      $region21: #{simple_bevformer_forward.1} parent=11 // pred_check
        %p412 = pneg %p113
      $region22: #{simple_bevformer_forward.1} parent=11 // pred_check_branch
        %414 = sbr.rel (%p412) target = $region24
      $region23: #{simple_bevformer_forward.1} parent=11 // pred_region
        _
      $region24: #{simple_bevformer_forward.1} parent=11 // pred_fallthru
        _
      // Predicated region
      $region25: #{simple_bevformer_forward.1} parent=11 // pred_check
        %p415 = pneg %p134
      $region26: #{simple_bevformer_forward.1} parent=11 // pred_check_branch
        %417 = sbr.rel (%p415) target = $region28
      $region27: #{simple_bevformer_forward.1} parent=11 // pred_region
        _
      $region28: #{simple_bevformer_forward.1} parent=11 // pred_fallthru
        _
      // Predicated region
      $region29: #{simple_bevformer_forward.1} parent=11 // pred_check
        %p418 = pneg %p155
      $region30: #{simple_bevformer_forward.1} parent=11 // pred_check_branch
        %420 = sbr.rel (%p418) target = $region32
      $region31: #{simple_bevformer_forward.1} parent=11 // pred_region
        _
      $region32: #{simple_bevformer_forward.1} parent=11 // pred_fallthru
        _
      // Predicated region
      $region33: #{simple_bevformer_forward.1} parent=11 // pred_check
        %p421 = pneg %p176
      $region34: #{simple_bevformer_forward.1} parent=11 // pred_check_branch
        %423 = sbr.rel (%p421) target = $region36
      $region35: #{simple_bevformer_forward.1} parent=11 // pred_region
        _
      $region36: #{simple_bevformer_forward.1} parent=11 // pred_fallthru
        _
      // Predicated region
      $region37: #{simple_bevformer_forward.1} parent=11 // pred_check
        %p424 = pneg %p197
      $region38: #{simple_bevformer_forward.1} parent=11 // pred_check_branch
        %426 = sbr.rel (%p424) target = $region40
      $region39: #{simple_bevformer_forward.1} parent=11 // pred_region
        _
      $region40: #{simple_bevformer_forward.1} parent=11 // pred_fallthru
        _
      // Predicated region
      $region41: #{simple_bevformer_forward.1} parent=11 // pred_check
        %p427 = pneg %p218
      $region42: #{simple_bevformer_forward.1} parent=11 // pred_check_branch
        %429 = sbr.rel (%p427) target = $region44
      $region43: #{simple_bevformer_forward.1} parent=11 // pred_region
        _
      $region44: #{simple_bevformer_forward.1} parent=11 // pred_fallthru
        _
      // Predicated region
      $region45: #{simple_bevformer_forward.1} parent=11 // pred_check
        %p430 = pneg %p239
      $region46: #{simple_bevformer_forward.1} parent=11 // pred_check_branch
        %432 = sbr.rel (%p430) target = $region48
      $region47: #{simple_bevformer_forward.1} parent=11 // pred_region
        _
      $region48: #{simple_bevformer_forward.1} parent=11 // pred_fallthru
        _
      // Predicated region
      $region49: #{simple_bevformer_forward.1} parent=11 // pred_check
        %p433 = pneg %p260
      $region50: #{simple_bevformer_forward.1} parent=11 // pred_check_branch
        %435 = sbr.rel (%p433) target = $region52
      $region51: #{simple_bevformer_forward.1} parent=11 // pred_region
        _
      $region52: #{simple_bevformer_forward.1} parent=11 // pred_fallthru
        _
      // Predicated region
      $region53: #{simple_bevformer_forward.1} parent=11 // pred_check
        %p436 = pneg %p281
      $region54: #{simple_bevformer_forward.1} parent=11 // pred_check_branch
        %438 = sbr.rel (%p436) target = $region56
      $region55: #{simple_bevformer_forward.1} parent=11 // pred_region
        _
      $region56: #{simple_bevformer_forward.1} parent=11 // pred_fallthru
        _
      // Predicated region
      $region57: #{simple_bevformer_forward.1} parent=11 // pred_check
        %p439 = pneg %p302
      $region58: #{simple_bevformer_forward.1} parent=11 // pred_check_branch
        %441 = sbr.rel (%p439) target = $region60
      $region59: #{simple_bevformer_forward.1} parent=11 // pred_region
        _
      $region60: #{simple_bevformer_forward.1} parent=11 // pred_fallthru
        _
      // Predicated region
      $region61: #{simple_bevformer_forward.1} parent=11 // pred_check
        %p442 = pneg %p323
      $region62: #{simple_bevformer_forward.1} parent=11 // pred_check_branch
        %444 = sbr.rel (%p442) target = $region64
      $region63: #{simple_bevformer_forward.1} parent=11 // pred_region
        _
      $region64: #{simple_bevformer_forward.1} parent=11 // pred_fallthru
        _
      // Predicated region
      $region65: #{simple_bevformer_forward.1} parent=11 // pred_check
        %p445 = pneg %p344
      $region66: #{simple_bevformer_forward.1} parent=11 // pred_check_branch
        %447 = sbr.rel (%p445) target = $region68
      $region67: #{simple_bevformer_forward.1} parent=11 // pred_region
        _
      $region68: #{simple_bevformer_forward.1} parent=11 // pred_fallthru
        _
      // Predicated region
      $region69: #{simple_bevformer_forward.1} parent=11 // pred_check
        %p448 = pneg %p365
      $region70: #{simple_bevformer_forward.1} parent=11 // pred_check_branch
        %450 = sbr.rel (%p448) target = $region72
      $region71: #{simple_bevformer_forward.1} parent=11 // pred_region
        _
      $region72: #{simple_bevformer_forward.1} parent=11 // pred_fallthru
        _
    $region12: #{simple_bevformer_forward.1} parent=5 // pred_fallthru
      _
    %p451 = scmp.lt.s32.totalorder %s24, 2
    // Predicated region
    $region73: #{simple_bevformer_forward.1} parent=5 // pred_check
      %p452 = pneg %p451
    $region74: #{simple_bevformer_forward.1} parent=5 // pred_check_branch
      %454 = sbr.rel (%p452) target = $region76
    $region75: #{simple_bevformer_forward.1} parent=5 // pred_region
      // Predicated region
      $region77: #{simple_bevformer_forward.1} parent=75 // pred_check
        %p455 = pneg %p44
      $region78: #{simple_bevformer_forward.1} parent=75 // pred_check_branch
        %457 = sbr.rel (%p455) target = $region80
      $region79: #{simple_bevformer_forward.1} parent=75 // pred_region
        %s458 = smul.u32 2, %s24
        %p459 = scmp.lt.s32.totalorder %s458, 3
        %s460 = scalar_select %p459, %s458, 3
        %s461 = smul.addr %s460, 256
        %s462 = smul.addr %s461, 4
        %s463 = scalar_lea.vmem %s0, %s462
        %s464 = smul.u32 2, %s24
      $region80: #{simple_bevformer_forward.1} parent=75 // pred_fallthru
        _
    $region76: #{simple_bevformer_forward.1} parent=5 // pred_fallthru
      _
    %p465 = scmp.le.s32.totalorder 1, %s24
    %p466 = scmp.lt.s32.totalorder %s24, 3
    %p467 = pnand %p465, %p466
    %p468 = pneg %p467
    // Predicated region
    $region81: #{simple_bevformer_forward.1} parent=5 // pred_check
      _
    $region82: #{simple_bevformer_forward.1} parent=5 // pred_check_branch
      %470 = sbr.rel (%p467) target = $region84
    $region83: #{simple_bevformer_forward.1} parent=5 // pred_region
      %s471 = ssub.s32 %s24, 1
      %s472 = smul.u32 2, %s29
      %p473 = scmp.lt.s32.totalorder %s472, 3
      %s474 = scalar_select %p473, %s472, 3
      %s475 = smul.addr %s474, 256
      %s476 = smul.addr %s475, 4
      %s477 = scalar_lea.vmem %s0, %s476
      %p478 = pneg %p50
      %p479 = pneg %p47
      %p480 = pneg %p71
      %p481 = pneg %p68
      %p482 = pneg %p92
      %p483 = pneg %p89
      %p484 = pneg %p113
      %p485 = pneg %p110
      %p486 = pneg %p134
      %p487 = pneg %p131
      %p488 = pneg %p155
      %p489 = pneg %p152
      %p490 = pneg %p176
      %p491 = pneg %p173
      %p492 = pneg %p197
      %p493 = pneg %p194
      %p494 = pneg %p218
      %p495 = pneg %p215
      %p496 = pneg %p239
      %p497 = pneg %p236
      %p498 = pneg %p260
      %p499 = pneg %p257
      %p500 = pneg %p281
      %p501 = pneg %p278
      %p502 = pneg %p302
      %p503 = pneg %p299
      %p504 = pneg %p323
      %p505 = pneg %p320
      %p506 = pneg %p344
      %p507 = pneg %p341
      %p508 = pneg %p365
      %p509 = pneg %p362
      %p510 = pneg %p391
      %p511 = pneg %p388
      %s512 = smul.u32 2, %s29
      %p513 = scmp.lt.s32.totalorder %s512, 3
      %s514 = scalar_select %p513, %s512, 3
      %s515 = scalar_lea.vmem %s16, %s514
      %s516 = smul.u32 2, %s29
      %p517 = scmp.lt.s32.totalorder %s516, 3
      %s518 = scalar_select %p517, %s516, 3
      %s519 = smul.addr %s518, 256
      %s520 = smul.addr %s519, 4
      %s521 = scalar_lea.vmem %s0, %s520
      %s522 = smul.u32 2, %s29
      %s523 = smul.u32 2, %s29
      %p524 = scmp.lt.s32.totalorder %s523, 3
      %s525 = scalar_select %p524, %s523, 3
      %s526 = scalar_lea.vmem %s16, %s525
      %s527 = smul.u32 2, %s29
      %v529 = vld [vmem:[%s521] sm:$0xff]
      %v530 = vld [vmem:[%s521 + $0x8] sm:$0xff]
      %v531 = vld [vmem:[%s521 + $0x10] sm:$0xff]
      %v532 = vld [vmem:[%s521 + $0x18] sm:$0xff]
      %v533 = vld [vmem:[%s521 + $0x20] sm:$0xff]
      %v534 = vld [vmem:[%s521 + $0x28] sm:$0xff]
      %v535 = vld [vmem:[%s521 + $0x30] sm:$0xff]
      %v536 = vld [vmem:[%s521 + $0x38] sm:$0xff]
      %v537 = vld [vmem:[%s521 + $0x40] sm:$0xff]
      %v538 = vld [vmem:[%s521 + $0x48] sm:$0xff]
      %v539 = vld [vmem:[%s521 + $0x50] sm:$0xff]
      %v540 = vld [vmem:[%s521 + $0x58] sm:$0xff]
      %v541 = vld [vmem:[%s521 + $0x60] sm:$0xff]
      %v542 = vld [vmem:[%s521 + $0x68] sm:$0xff]
      %v543 = vld [vmem:[%s521 + $0x70] sm:$0xff]
      %v544 = vld [vmem:[%s521 + $0x78] sm:$0xff]
      %v545 = vld [vmem:[%s521 + $0x80] sm:$0xff]
      %v546 = vld [vmem:[%s521 + $0x88] sm:$0xff]
      %v547 = vld [vmem:[%s521 + $0x90] sm:$0xff]
      %v548 = vld [vmem:[%s521 + $0x98] sm:$0xff]
      %v549 = vld [vmem:[%s521 + $0xa0] sm:$0xff]
      %v550 = vld [vmem:[%s521 + $0xa8] sm:$0xff]
      %v551 = vld [vmem:[%s521 + $0xb0] sm:$0xff]
      %v552 = vld [vmem:[%s521 + $0xb8] sm:$0xff]
      %v553 = vld [vmem:[%s521 + $0xc0] sm:$0xff]
      %v554 = vld [vmem:[%s521 + $0xc8] sm:$0xff]
      %v555 = vld [vmem:[%s521 + $0xd0] sm:$0xff]
      %v556 = vld [vmem:[%s521 + $0xd8] sm:$0xff]
      %v557 = vld [vmem:[%s521 + $0xe0] sm:$0xff]
      %v558 = vld [vmem:[%s521 + $0xe8] sm:$0xff]
      %v559 = vld [vmem:[%s521 + $0xf0] sm:$0xff]
      %v560 = vld [vmem:[%s521 + $0xf8] sm:$0xff]
      %v561 = vld [vmem:[%s521 + $0x100] sm:$0xff]
      %v562 = vld [vmem:[%s521 + $0x108] sm:$0xff]
      %v563 = vld [vmem:[%s521 + $0x110] sm:$0xff]
      %v564 = vld [vmem:[%s521 + $0x118] sm:$0xff]
      %v565 = vld [vmem:[%s521 + $0x120] sm:$0xff]
      %v566 = vld [vmem:[%s521 + $0x128] sm:$0xff]
      %v567 = vld [vmem:[%s521 + $0x130] sm:$0xff]
      %v568 = vld [vmem:[%s521 + $0x138] sm:$0xff]
      %v569 = vld [vmem:[%s521 + $0x140] sm:$0xff]
      %v570 = vld [vmem:[%s521 + $0x148] sm:$0xff]
      %v571 = vld [vmem:[%s521 + $0x150] sm:$0xff]
      %v572 = vld [vmem:[%s521 + $0x158] sm:$0xff]
      %v573 = vld [vmem:[%s521 + $0x160] sm:$0xff]
      %v574 = vld [vmem:[%s521 + $0x168] sm:$0xff]
      %v575 = vld [vmem:[%s521 + $0x170] sm:$0xff]
      %v576 = vld [vmem:[%s521 + $0x178] sm:$0xff]
      %v577 = vld [vmem:[%s521 + $0x180] sm:$0xff]
      %v578 = vld [vmem:[%s521 + $0x188] sm:$0xff]
      %v579 = vld [vmem:[%s521 + $0x190] sm:$0xff]
      %v580 = vld [vmem:[%s521 + $0x198] sm:$0xff]
      %v581 = vld [vmem:[%s521 + $0x1a0] sm:$0xff]
      %v582 = vld [vmem:[%s521 + $0x1a8] sm:$0xff]
      %v583 = vld [vmem:[%s521 + $0x1b0] sm:$0xff]
      %v584 = vld [vmem:[%s521 + $0x1b8] sm:$0xff]
      %v585 = vld [vmem:[%s521 + $0x1c0] sm:$0xff]
      %v586 = vld [vmem:[%s521 + $0x1c8] sm:$0xff]
      %v587 = vld [vmem:[%s521 + $0x1d0] sm:$0xff]
      %v588 = vld [vmem:[%s521 + $0x1d8] sm:$0xff]
      %v589 = vld [vmem:[%s521 + $0x1e0] sm:$0xff]
      %v590 = vld [vmem:[%s521 + $0x1e8] sm:$0xff]
      %v591 = vld [vmem:[%s521 + $0x1f0] sm:$0xff]
      %v592 = vld [vmem:[%s521 + $0x1f8] sm:$0xff]
      %v593 = vld [vmem:[%s521 + $0x200] sm:$0xff]
      %v594 = vld [vmem:[%s521 + $0x208] sm:$0xff]
      %v595 = vld [vmem:[%s521 + $0x210] sm:$0xff]
      %v596 = vld [vmem:[%s521 + $0x218] sm:$0xff]
      %v597 = vld [vmem:[%s521 + $0x220] sm:$0xff]
      %v598 = vld [vmem:[%s521 + $0x228] sm:$0xff]
      %v599 = vld [vmem:[%s521 + $0x230] sm:$0xff]
      %v600 = vld [vmem:[%s521 + $0x238] sm:$0xff]
      %v601 = vld [vmem:[%s521 + $0x240] sm:$0xff]
      %v602 = vld [vmem:[%s521 + $0x248] sm:$0xff]
      %v603 = vld [vmem:[%s521 + $0x250] sm:$0xff]
      %v604 = vld [vmem:[%s521 + $0x258] sm:$0xff]
      %v605 = vld [vmem:[%s521 + $0x260] sm:$0xff]
      %v606 = vld [vmem:[%s521 + $0x268] sm:$0xff]
      %v607 = vld [vmem:[%s521 + $0x270] sm:$0xff]
      %v608 = vld [vmem:[%s521 + $0x278] sm:$0xff]
      %v609 = vld [vmem:[%s521 + $0x280] sm:$0xff]
      %v610 = vld [vmem:[%s521 + $0x288] sm:$0xff]
      %v611 = vld [vmem:[%s521 + $0x290] sm:$0xff]
      %v612 = vld [vmem:[%s521 + $0x298] sm:$0xff]
      %v613 = vld [vmem:[%s521 + $0x2a0] sm:$0xff]
      %v614 = vld [vmem:[%s521 + $0x2a8] sm:$0xff]
      %v615 = vld [vmem:[%s521 + $0x2b0] sm:$0xff]
      %v616 = vld [vmem:[%s521 + $0x2b8] sm:$0xff]
      %v617 = vld [vmem:[%s521 + $0x2c0] sm:$0xff]
      %v618 = vld [vmem:[%s521 + $0x2c8] sm:$0xff]
      %v619 = vld [vmem:[%s521 + $0x2d0] sm:$0xff]
      %v620 = vld [vmem:[%s521 + $0x2d8] sm:$0xff]
      %v621 = vld [vmem:[%s521 + $0x2e0] sm:$0xff]
      %v622 = vld [vmem:[%s521 + $0x2e8] sm:$0xff]
      %v623 = vld [vmem:[%s521 + $0x2f0] sm:$0xff]
      %v624 = vld [vmem:[%s521 + $0x2f8] sm:$0xff]
      %v625 = vld [vmem:[%s521 + $0x300] sm:$0xff]
      %v626 = vld [vmem:[%s521 + $0x308] sm:$0xff]
      %v627 = vld [vmem:[%s521 + $0x310] sm:$0xff]
      %v628 = vld [vmem:[%s521 + $0x318] sm:$0xff]
      %v629 = vld [vmem:[%s521 + $0x320] sm:$0xff]
      %v630 = vld [vmem:[%s521 + $0x328] sm:$0xff]
      %v631 = vld [vmem:[%s521 + $0x330] sm:$0xff]
      %v632 = vld [vmem:[%s521 + $0x338] sm:$0xff]
      %v633 = vld [vmem:[%s521 + $0x340] sm:$0xff]
      %v634 = vld [vmem:[%s521 + $0x348] sm:$0xff]
      %v635 = vld [vmem:[%s521 + $0x350] sm:$0xff]
      %v636 = vld [vmem:[%s521 + $0x358] sm:$0xff]
      %v637 = vld [vmem:[%s521 + $0x360] sm:$0xff]
      %v638 = vld [vmem:[%s521 + $0x368] sm:$0xff]
      %v639 = vld [vmem:[%s521 + $0x370] sm:$0xff]
      %v640 = vld [vmem:[%s521 + $0x378] sm:$0xff]
      %v641 = vld [vmem:[%s521 + $0x380] sm:$0xff]
      %v642 = vld [vmem:[%s521 + $0x388] sm:$0xff]
      %v643 = vld [vmem:[%s521 + $0x390] sm:$0xff]
      %v644 = vld [vmem:[%s521 + $0x398] sm:$0xff]
      %v645 = vld [vmem:[%s521 + $0x3a0] sm:$0xff]
      %v646 = vld [vmem:[%s521 + $0x3a8] sm:$0xff]
      %v647 = vld [vmem:[%s521 + $0x3b0] sm:$0xff]
      %v648 = vld [vmem:[%s521 + $0x3b8] sm:$0xff]
      %v649 = vld [vmem:[%s521 + $0x3c0] sm:$0xff]
      %v650 = vld [vmem:[%s521 + $0x3c8] sm:$0xff]
      %v651 = vld [vmem:[%s521 + $0x3d0] sm:$0xff]
      %v652 = vld [vmem:[%s521 + $0x3d8] sm:$0xff]
      %v653 = vld [vmem:[%s521 + $0x3e0] sm:$0xff]
      %v654 = vld [vmem:[%s521 + $0x3e8] sm:$0xff]
      %v655 = vld [vmem:[%s521 + $0x3f0] sm:$0xff]
      %v656 = vld [vmem:[%s521 + $0x3f8] sm:$0xff]
      %v657 = vld [vmem:[%s521 + $0x400] sm:$0xff]
      %v658 = vld [vmem:[%s521 + $0x408] sm:$0xff]
      %v659 = vld [vmem:[%s521 + $0x410] sm:$0xff]
      %v660 = vld [vmem:[%s521 + $0x418] sm:$0xff]
      %v661 = vld [vmem:[%s521 + $0x420] sm:$0xff]
      %v662 = vld [vmem:[%s521 + $0x428] sm:$0xff]
      %v663 = vld [vmem:[%s521 + $0x430] sm:$0xff]
      %v664 = vld [vmem:[%s521 + $0x438] sm:$0xff]
      %v665 = vld [vmem:[%s521 + $0x440] sm:$0xff]
      %v666 = vld [vmem:[%s521 + $0x448] sm:$0xff]
      %v667 = vld [vmem:[%s521 + $0x450] sm:$0xff]
      %v668 = vld [vmem:[%s521 + $0x458] sm:$0xff]
      %v669 = vld [vmem:[%s521 + $0x460] sm:$0xff]
      %v670 = vld [vmem:[%s521 + $0x468] sm:$0xff]
      %v671 = vld [vmem:[%s521 + $0x470] sm:$0xff]
      %v672 = vld [vmem:[%s521 + $0x478] sm:$0xff]
      %v673 = vld [vmem:[%s521 + $0x480] sm:$0xff]
      %v674 = vld [vmem:[%s521 + $0x488] sm:$0xff]
      %v675 = vld [vmem:[%s521 + $0x490] sm:$0xff]
      %v676 = vld [vmem:[%s521 + $0x498] sm:$0xff]
      %v677 = vld [vmem:[%s521 + $0x4a0] sm:$0xff]
      %v678 = vld [vmem:[%s521 + $0x4a8] sm:$0xff]
      %v679 = vld [vmem:[%s521 + $0x4b0] sm:$0xff]
      %v680 = vld [vmem:[%s521 + $0x4b8] sm:$0xff]
      %v681 = vld [vmem:[%s521 + $0x4c0] sm:$0xff]
      %v682 = vld [vmem:[%s521 + $0x4c8] sm:$0xff]
      %v683 = vld [vmem:[%s521 + $0x4d0] sm:$0xff]
      %v684 = vld [vmem:[%s521 + $0x4d8] sm:$0xff]
      %v685 = vld [vmem:[%s521 + $0x4e0] sm:$0xff]
      %v686 = vld [vmem:[%s521 + $0x4e8] sm:$0xff]
      %v687 = vld [vmem:[%s521 + $0x4f0] sm:$0xff]
      %v688 = vld [vmem:[%s521 + $0x4f8] sm:$0xff]
      %v689 = vld [vmem:[%s521 + $0x500] sm:$0xff]
      %v690 = vld [vmem:[%s521 + $0x508] sm:$0xff]
      %v691 = vld [vmem:[%s521 + $0x510] sm:$0xff]
      %v692 = vld [vmem:[%s521 + $0x518] sm:$0xff]
      %v693 = vld [vmem:[%s521 + $0x520] sm:$0xff]
      %v694 = vld [vmem:[%s521 + $0x528] sm:$0xff]
      %v695 = vld [vmem:[%s521 + $0x530] sm:$0xff]
      %v696 = vld [vmem:[%s521 + $0x538] sm:$0xff]
      %v697 = vld [vmem:[%s521 + $0x540] sm:$0xff]
      %v698 = vld [vmem:[%s521 + $0x548] sm:$0xff]
      %v699 = vld [vmem:[%s521 + $0x550] sm:$0xff]
      %v700 = vld [vmem:[%s521 + $0x558] sm:$0xff]
      %v701 = vld [vmem:[%s521 + $0x560] sm:$0xff]
      %v702 = vld [vmem:[%s521 + $0x568] sm:$0xff]
      %v703 = vld [vmem:[%s521 + $0x570] sm:$0xff]
      %v704 = vld [vmem:[%s521 + $0x578] sm:$0xff]
      %v705 = vld [vmem:[%s521 + $0x580] sm:$0xff]
      %v706 = vld [vmem:[%s521 + $0x588] sm:$0xff]
      %v707 = vld [vmem:[%s521 + $0x590] sm:$0xff]
      %v708 = vld [vmem:[%s521 + $0x598] sm:$0xff]
      %v709 = vld [vmem:[%s521 + $0x5a0] sm:$0xff]
      %v710 = vld [vmem:[%s521 + $0x5a8] sm:$0xff]
      %v711 = vld [vmem:[%s521 + $0x5b0] sm:$0xff]
      %v712 = vld [vmem:[%s521 + $0x5b8] sm:$0xff]
      %v713 = vld [vmem:[%s521 + $0x5c0] sm:$0xff]
      %v714 = vld [vmem:[%s521 + $0x5c8] sm:$0xff]
      %v715 = vld [vmem:[%s521 + $0x5d0] sm:$0xff]
      %v716 = vld [vmem:[%s521 + $0x5d8] sm:$0xff]
      %v717 = vld [vmem:[%s521 + $0x5e0] sm:$0xff]
      %v718 = vld [vmem:[%s521 + $0x5e8] sm:$0xff]
      %v719 = vld [vmem:[%s521 + $0x5f0] sm:$0xff]
      %v720 = vld [vmem:[%s521 + $0x5f8] sm:$0xff]
      %v721 = vld [vmem:[%s521 + $0x600] sm:$0xff]
      %v722 = vld [vmem:[%s521 + $0x608] sm:$0xff]
      %v723 = vld [vmem:[%s521 + $0x610] sm:$0xff]
      %v724 = vld [vmem:[%s521 + $0x618] sm:$0xff]
      %v725 = vld [vmem:[%s521 + $0x620] sm:$0xff]
      %v726 = vld [vmem:[%s521 + $0x628] sm:$0xff]
      %v727 = vld [vmem:[%s521 + $0x630] sm:$0xff]
      %v728 = vld [vmem:[%s521 + $0x638] sm:$0xff]
      %v729 = vld [vmem:[%s521 + $0x640] sm:$0xff]
      %v730 = vld [vmem:[%s521 + $0x648] sm:$0xff]
      %v731 = vld [vmem:[%s521 + $0x650] sm:$0xff]
      %v732 = vld [vmem:[%s521 + $0x658] sm:$0xff]
      %v733 = vld [vmem:[%s521 + $0x660] sm:$0xff]
      %v734 = vld [vmem:[%s521 + $0x668] sm:$0xff]
      %v735 = vld [vmem:[%s521 + $0x670] sm:$0xff]
      %v736 = vld [vmem:[%s521 + $0x678] sm:$0xff]
      %v737 = vld [vmem:[%s521 + $0x680] sm:$0xff]
      %v738 = vld [vmem:[%s521 + $0x688] sm:$0xff]
      %v739 = vld [vmem:[%s521 + $0x690] sm:$0xff]
      %v740 = vld [vmem:[%s521 + $0x698] sm:$0xff]
      %v741 = vld [vmem:[%s521 + $0x6a0] sm:$0xff]
      %v742 = vld [vmem:[%s521 + $0x6a8] sm:$0xff]
      %v743 = vld [vmem:[%s521 + $0x6b0] sm:$0xff]
      %v744 = vld [vmem:[%s521 + $0x6b8] sm:$0xff]
      %v745 = vld [vmem:[%s521 + $0x6c0] sm:$0xff]
      %v746 = vld [vmem:[%s521 + $0x6c8] sm:$0xff]
      %v747 = vld [vmem:[%s521 + $0x6d0] sm:$0xff]
      %v748 = vld [vmem:[%s521 + $0x6d8] sm:$0xff]
      %v749 = vld [vmem:[%s521 + $0x6e0] sm:$0xff]
      %v750 = vld [vmem:[%s521 + $0x6e8] sm:$0xff]
      %v751 = vld [vmem:[%s521 + $0x6f0] sm:$0xff]
      %v752 = vld [vmem:[%s521 + $0x6f8] sm:$0xff]
      %v753 = vld [vmem:[%s521 + $0x700] sm:$0xff]
      %v754 = vld [vmem:[%s521 + $0x708] sm:$0xff]
      %v755 = vld [vmem:[%s521 + $0x710] sm:$0xff]
      %v756 = vld [vmem:[%s521 + $0x718] sm:$0xff]
      %v757 = vld [vmem:[%s521 + $0x720] sm:$0xff]
      %v758 = vld [vmem:[%s521 + $0x728] sm:$0xff]
      %v759 = vld [vmem:[%s521 + $0x730] sm:$0xff]
      %v760 = vld [vmem:[%s521 + $0x738] sm:$0xff]
      %v761 = vld [vmem:[%s521 + $0x740] sm:$0xff]
      %v762 = vld [vmem:[%s521 + $0x748] sm:$0xff]
      %v763 = vld [vmem:[%s521 + $0x750] sm:$0xff]
      %v764 = vld [vmem:[%s521 + $0x758] sm:$0xff]
      %v765 = vld [vmem:[%s521 + $0x760] sm:$0xff]
      %v766 = vld [vmem:[%s521 + $0x768] sm:$0xff]
      %v767 = vld [vmem:[%s521 + $0x770] sm:$0xff]
      %v768 = vld [vmem:[%s521 + $0x778] sm:$0xff]
      %v769 = vld [vmem:[%s521 + $0x780] sm:$0xff]
      %v770 = vld [vmem:[%s521 + $0x788] sm:$0xff]
      %v771 = vld [vmem:[%s521 + $0x790] sm:$0xff]
      %v772 = vld [vmem:[%s521 + $0x798] sm:$0xff]
      %v773 = vld [vmem:[%s521 + $0x7a0] sm:$0xff]
      %v774 = vld [vmem:[%s521 + $0x7a8] sm:$0xff]
      %v775 = vld [vmem:[%s521 + $0x7b0] sm:$0xff]
      %v776 = vld [vmem:[%s521 + $0x7b8] sm:$0xff]
      %v777 = vld [vmem:[%s521 + $0x7c0] sm:$0xff]
      %v778 = vld [vmem:[%s521 + $0x7c8] sm:$0xff]
      %v779 = vld [vmem:[%s521 + $0x7d0] sm:$0xff]
      %v780 = vld [vmem:[%s521 + $0x7d8] sm:$0xff]
      %v781 = vld [vmem:[%s521 + $0x7e0] sm:$0xff]
      %v782 = vld [vmem:[%s521 + $0x7e8] sm:$0xff]
      %v783 = vld [vmem:[%s521 + $0x7f0] sm:$0xff]
      %v784 = vld [vmem:[%s521 + $0x7f8] sm:$0xff]
      %v785 = vld [vmem:[%s1] sm:$0xf]
      %v786 = vld [vmem:[%s1 + $0x4] sm:$0xf]
      %v787 = vld [vmem:[%s1 + $0x8] sm:$0xf]
      %v788 = vld [vmem:[%s1 + $0xc] sm:$0xf]
      %v789 = vld [vmem:[%s1 + $0x10] sm:$0xf]
      %v790 = vld [vmem:[%s1 + $0x14] sm:$0xf]
      %v791 = vld [vmem:[%s1 + $0x18] sm:$0xf]
      %v792 = vld [vmem:[%s1 + $0x1c] sm:$0xf]
      %v793 = vld [vmem:[%s1 + $0x20] sm:$0xf]
      %v794 = vld [vmem:[%s1 + $0x24] sm:$0xf]
      %v795 = vld [vmem:[%s1 + $0x28] sm:$0xf]
      %v796 = vld [vmem:[%s1 + $0x2c] sm:$0xf]
      %v797 = vld [vmem:[%s1 + $0x30] sm:$0xf]
      %v798 = vld [vmem:[%s1 + $0x34] sm:$0xf]
      %v799 = vld [vmem:[%s1 + $0x38] sm:$0xf]
      %v800 = vld [vmem:[%s1 + $0x3c] sm:$0xf]
      %v801 = vld [vmem:[%s1 + $0x40] sm:$0xf]
      %v802 = vld [vmem:[%s1 + $0x44] sm:$0xf]
      %v803 = vld [vmem:[%s1 + $0x48] sm:$0xf]
      %v804 = vld [vmem:[%s1 + $0x4c] sm:$0xf]
      %v805 = vld [vmem:[%s1 + $0x50] sm:$0xf]
      %v806 = vld [vmem:[%s1 + $0x54] sm:$0xf]
      %v807 = vld [vmem:[%s1 + $0x58] sm:$0xf]
      %v808 = vld [vmem:[%s1 + $0x5c] sm:$0xf]
      %v809 = vld [vmem:[%s1 + $0x60] sm:$0xf]
      %v810 = vld [vmem:[%s1 + $0x64] sm:$0xf]
      %v811 = vld [vmem:[%s1 + $0x68] sm:$0xf]
      %v812 = vld [vmem:[%s1 + $0x6c] sm:$0xf]
      %v813 = vld [vmem:[%s1 + $0x70] sm:$0xf]
      %v814 = vld [vmem:[%s1 + $0x74] sm:$0xf]
      %v815 = vld [vmem:[%s1 + $0x78] sm:$0xf]
      %v816 = vld [vmem:[%s1 + $0x7c] sm:$0xf]
      %v1073 = vunpack.c.l.b16 %v529
      %v1074 = vunpack.c.h.b16 %v529
      %v1075 = vunpack.c.l.b16 %v530
      %v1076 = vunpack.c.h.b16 %v530
      %v1077 = vunpack.c.l.b16 %v531
      %v1078 = vunpack.c.h.b16 %v531
      %v1079 = vunpack.c.l.b16 %v532
      %v1080 = vunpack.c.h.b16 %v532
      %v1081 = vunpack.c.l.b16 %v533
      %v1082 = vunpack.c.h.b16 %v533
      %v1083 = vunpack.c.l.b16 %v534
      %v1084 = vunpack.c.h.b16 %v534
      %v1085 = vunpack.c.l.b16 %v535
      %v1086 = vunpack.c.h.b16 %v535
      %v1087 = vunpack.c.l.b16 %v536
      %v1088 = vunpack.c.h.b16 %v536
      %v1089 = vunpack.c.l.b16 %v537
      %v1090 = vunpack.c.h.b16 %v537
      %v1091 = vunpack.c.l.b16 %v538
      %v1092 = vunpack.c.h.b16 %v538
      %v1093 = vunpack.c.l.b16 %v539
      %v1094 = vunpack.c.h.b16 %v539
      %v1095 = vunpack.c.l.b16 %v540
      %v1096 = vunpack.c.h.b16 %v540
      %v1097 = vunpack.c.l.b16 %v541
      %v1098 = vunpack.c.h.b16 %v541
      %v1099 = vunpack.c.l.b16 %v542
      %v1100 = vunpack.c.h.b16 %v542
      %v1101 = vunpack.c.l.b16 %v543
      %v1102 = vunpack.c.h.b16 %v543
      %v1103 = vunpack.c.l.b16 %v544
      %v1104 = vunpack.c.h.b16 %v544
      %v1105 = vunpack.c.l.b16 %v545
      %v1106 = vunpack.c.h.b16 %v545
      %v1107 = vunpack.c.l.b16 %v546
      %v1108 = vunpack.c.h.b16 %v546
      %v1109 = vunpack.c.l.b16 %v547
      %v1110 = vunpack.c.h.b16 %v547
      %v1111 = vunpack.c.l.b16 %v548
      %v1112 = vunpack.c.h.b16 %v548
      %v1113 = vunpack.c.l.b16 %v549
      %v1114 = vunpack.c.h.b16 %v549
      %v1115 = vunpack.c.l.b16 %v550
      %v1116 = vunpack.c.h.b16 %v550
      %v1117 = vunpack.c.l.b16 %v551
      %v1118 = vunpack.c.h.b16 %v551
      %v1119 = vunpack.c.l.b16 %v552
      %v1120 = vunpack.c.h.b16 %v552
      %v1121 = vunpack.c.l.b16 %v553
      %v1122 = vunpack.c.h.b16 %v553
      %v1123 = vunpack.c.l.b16 %v554
      %v1124 = vunpack.c.h.b16 %v554
      %v1125 = vunpack.c.l.b16 %v555
      %v1126 = vunpack.c.h.b16 %v555
      %v1127 = vunpack.c.l.b16 %v556
      %v1128 = vunpack.c.h.b16 %v556
      %v1129 = vunpack.c.l.b16 %v557
      %v1130 = vunpack.c.h.b16 %v557
      %v1131 = vunpack.c.l.b16 %v558
      %v1132 = vunpack.c.h.b16 %v558
      %v1133 = vunpack.c.l.b16 %v559
      %v1134 = vunpack.c.h.b16 %v559
      %v1135 = vunpack.c.l.b16 %v560
      %v1136 = vunpack.c.h.b16 %v560
      %v1137 = vunpack.c.l.b16 %v561
      %v1138 = vunpack.c.h.b16 %v561
      %v1139 = vunpack.c.l.b16 %v562
      %v1140 = vunpack.c.h.b16 %v562
      %v1141 = vunpack.c.l.b16 %v563
      %v1142 = vunpack.c.h.b16 %v563
      %v1143 = vunpack.c.l.b16 %v564
      %v1144 = vunpack.c.h.b16 %v564
      %v1145 = vunpack.c.l.b16 %v565
      %v1146 = vunpack.c.h.b16 %v565
      %v1147 = vunpack.c.l.b16 %v566
      %v1148 = vunpack.c.h.b16 %v566
      %v1149 = vunpack.c.l.b16 %v567
      %v1150 = vunpack.c.h.b16 %v567
      %v1151 = vunpack.c.l.b16 %v568
      %v1152 = vunpack.c.h.b16 %v568
      %v1153 = vunpack.c.l.b16 %v569
      %v1154 = vunpack.c.h.b16 %v569
      %v1155 = vunpack.c.l.b16 %v570
      %v1156 = vunpack.c.h.b16 %v570
      %v1157 = vunpack.c.l.b16 %v571
      %v1158 = vunpack.c.h.b16 %v571
      %v1159 = vunpack.c.l.b16 %v572
      %v1160 = vunpack.c.h.b16 %v572
      %v1161 = vunpack.c.l.b16 %v573
      %v1162 = vunpack.c.h.b16 %v573
      %v1163 = vunpack.c.l.b16 %v574
      %v1164 = vunpack.c.h.b16 %v574
      %v1165 = vunpack.c.l.b16 %v575
      %v1166 = vunpack.c.h.b16 %v575
      %v1167 = vunpack.c.l.b16 %v576
      %v1168 = vunpack.c.h.b16 %v576
      %v1169 = vunpack.c.l.b16 %v577
      %v1170 = vunpack.c.h.b16 %v577
      %v1171 = vunpack.c.l.b16 %v578
      %v1172 = vunpack.c.h.b16 %v578
      %v1173 = vunpack.c.l.b16 %v579
      %v1174 = vunpack.c.h.b16 %v579
      %v1175 = vunpack.c.l.b16 %v580
      %v1176 = vunpack.c.h.b16 %v580
      %v1177 = vunpack.c.l.b16 %v581
      %v1178 = vunpack.c.h.b16 %v581
      %v1179 = vunpack.c.l.b16 %v582
      %v1180 = vunpack.c.h.b16 %v582
      %v1181 = vunpack.c.l.b16 %v583
      %v1182 = vunpack.c.h.b16 %v583
      %v1183 = vunpack.c.l.b16 %v584
      %v1184 = vunpack.c.h.b16 %v584
      %v1185 = vunpack.c.l.b16 %v585
      %v1186 = vunpack.c.h.b16 %v585
      %v1187 = vunpack.c.l.b16 %v586
      %v1188 = vunpack.c.h.b16 %v586
      %v1189 = vunpack.c.l.b16 %v587
      %v1190 = vunpack.c.h.b16 %v587
      %v1191 = vunpack.c.l.b16 %v588
      %v1192 = vunpack.c.h.b16 %v588
      %v1193 = vunpack.c.l.b16 %v589
      %v1194 = vunpack.c.h.b16 %v589
      %v1195 = vunpack.c.l.b16 %v590
      %v1196 = vunpack.c.h.b16 %v590
      %v1197 = vunpack.c.l.b16 %v591
      %v1198 = vunpack.c.h.b16 %v591
      %v1199 = vunpack.c.l.b16 %v592
      %v1200 = vunpack.c.h.b16 %v592
      %v1201 = vunpack.c.l.b16 %v593
      %v1202 = vunpack.c.h.b16 %v593
      %v1203 = vunpack.c.l.b16 %v594
      %v1204 = vunpack.c.h.b16 %v594
      %v1205 = vunpack.c.l.b16 %v595
      %v1206 = vunpack.c.h.b16 %v595
      %v1207 = vunpack.c.l.b16 %v596
      %v1208 = vunpack.c.h.b16 %v596
      %v1209 = vunpack.c.l.b16 %v597
      %v1210 = vunpack.c.h.b16 %v597
      %v1211 = vunpack.c.l.b16 %v598
      %v1212 = vunpack.c.h.b16 %v598
      %v1213 = vunpack.c.l.b16 %v599
      %v1214 = vunpack.c.h.b16 %v599
      %v1215 = vunpack.c.l.b16 %v600
      %v1216 = vunpack.c.h.b16 %v600
      %v1217 = vunpack.c.l.b16 %v601
      %v1218 = vunpack.c.h.b16 %v601
      %v1219 = vunpack.c.l.b16 %v602
      %v1220 = vunpack.c.h.b16 %v602
      %v1221 = vunpack.c.l.b16 %v603
      %v1222 = vunpack.c.h.b16 %v603
      %v1223 = vunpack.c.l.b16 %v604
      %v1224 = vunpack.c.h.b16 %v604
      %v1225 = vunpack.c.l.b16 %v605
      %v1226 = vunpack.c.h.b16 %v605
      %v1227 = vunpack.c.l.b16 %v606
      %v1228 = vunpack.c.h.b16 %v606
      %v1229 = vunpack.c.l.b16 %v607
      %v1230 = vunpack.c.h.b16 %v607
      %v1231 = vunpack.c.l.b16 %v608
      %v1232 = vunpack.c.h.b16 %v608
      %v1233 = vunpack.c.l.b16 %v609
      %v1234 = vunpack.c.h.b16 %v609
      %v1235 = vunpack.c.l.b16 %v610
      %v1236 = vunpack.c.h.b16 %v610
      %v1237 = vunpack.c.l.b16 %v611
      %v1238 = vunpack.c.h.b16 %v611
      %v1239 = vunpack.c.l.b16 %v612
      %v1240 = vunpack.c.h.b16 %v612
      %v1241 = vunpack.c.l.b16 %v613
      %v1242 = vunpack.c.h.b16 %v613
      %v1243 = vunpack.c.l.b16 %v614
      %v1244 = vunpack.c.h.b16 %v614
      %v1245 = vunpack.c.l.b16 %v615
      %v1246 = vunpack.c.h.b16 %v615
      %v1247 = vunpack.c.l.b16 %v616
      %v1248 = vunpack.c.h.b16 %v616
      %v1249 = vunpack.c.l.b16 %v617
      %v1250 = vunpack.c.h.b16 %v617
      %v1251 = vunpack.c.l.b16 %v618
      %v1252 = vunpack.c.h.b16 %v618
      %v1253 = vunpack.c.l.b16 %v619
      %v1254 = vunpack.c.h.b16 %v619
      %v1255 = vunpack.c.l.b16 %v620
      %v1256 = vunpack.c.h.b16 %v620
      %v1257 = vunpack.c.l.b16 %v621
      %v1258 = vunpack.c.h.b16 %v621
      %v1259 = vunpack.c.l.b16 %v622
      %v1260 = vunpack.c.h.b16 %v622
      %v1261 = vunpack.c.l.b16 %v623
      %v1262 = vunpack.c.h.b16 %v623
      %v1263 = vunpack.c.l.b16 %v624
      %v1264 = vunpack.c.h.b16 %v624
      %v1265 = vunpack.c.l.b16 %v625
      %v1266 = vunpack.c.h.b16 %v625
      %v1267 = vunpack.c.l.b16 %v626
      %v1268 = vunpack.c.h.b16 %v626
      %v1269 = vunpack.c.l.b16 %v627
      %v1270 = vunpack.c.h.b16 %v627
      %v1271 = vunpack.c.l.b16 %v628
      %v1272 = vunpack.c.h.b16 %v628
      %v1273 = vunpack.c.l.b16 %v629
      %v1274 = vunpack.c.h.b16 %v629
      %v1275 = vunpack.c.l.b16 %v630
      %v1276 = vunpack.c.h.b16 %v630
      %v1277 = vunpack.c.l.b16 %v631
      %v1278 = vunpack.c.h.b16 %v631
      %v1279 = vunpack.c.l.b16 %v632
      %v1280 = vunpack.c.h.b16 %v632
      %v1281 = vunpack.c.l.b16 %v633
      %v1282 = vunpack.c.h.b16 %v633
      %v1283 = vunpack.c.l.b16 %v634
      %v1284 = vunpack.c.h.b16 %v634
      %v1285 = vunpack.c.l.b16 %v635
      %v1286 = vunpack.c.h.b16 %v635
      %v1287 = vunpack.c.l.b16 %v636
      %v1288 = vunpack.c.h.b16 %v636
      %v1289 = vunpack.c.l.b16 %v637
      %v1290 = vunpack.c.h.b16 %v637
      %v1291 = vunpack.c.l.b16 %v638
      %v1292 = vunpack.c.h.b16 %v638
      %v1293 = vunpack.c.l.b16 %v639
      %v1294 = vunpack.c.h.b16 %v639
      %v1295 = vunpack.c.l.b16 %v640
      %v1296 = vunpack.c.h.b16 %v640
      %v1297 = vunpack.c.l.b16 %v641
      %v1298 = vunpack.c.h.b16 %v641
      %v1299 = vunpack.c.l.b16 %v642
      %v1300 = vunpack.c.h.b16 %v642
      %v1301 = vunpack.c.l.b16 %v643
      %v1302 = vunpack.c.h.b16 %v643
      %v1303 = vunpack.c.l.b16 %v644
      %v1304 = vunpack.c.h.b16 %v644
      %v1305 = vunpack.c.l.b16 %v645
      %v1306 = vunpack.c.h.b16 %v645
      %v1307 = vunpack.c.l.b16 %v646
      %v1308 = vunpack.c.h.b16 %v646
      %v1309 = vunpack.c.l.b16 %v647
      %v1310 = vunpack.c.h.b16 %v647
      %v1311 = vunpack.c.l.b16 %v648
      %v1312 = vunpack.c.h.b16 %v648
      %v1313 = vunpack.c.l.b16 %v649
      %v1314 = vunpack.c.h.b16 %v649
      %v1315 = vunpack.c.l.b16 %v650
      %v1316 = vunpack.c.h.b16 %v650
      %v1317 = vunpack.c.l.b16 %v651
      %v1318 = vunpack.c.h.b16 %v651
      %v1319 = vunpack.c.l.b16 %v652
      %v1320 = vunpack.c.h.b16 %v652
      %v1321 = vunpack.c.l.b16 %v653
      %v1322 = vunpack.c.h.b16 %v653
      %v1323 = vunpack.c.l.b16 %v654
      %v1324 = vunpack.c.h.b16 %v654
      %v1325 = vunpack.c.l.b16 %v655
      %v1326 = vunpack.c.h.b16 %v655
      %v1327 = vunpack.c.l.b16 %v656
      %v1328 = vunpack.c.h.b16 %v656
      %v1329 = vunpack.c.l.b16 %v657
      %v1330 = vunpack.c.h.b16 %v657
      %v1331 = vunpack.c.l.b16 %v658
      %v1332 = vunpack.c.h.b16 %v658
      %v1333 = vunpack.c.l.b16 %v659
      %v1334 = vunpack.c.h.b16 %v659
      %v1335 = vunpack.c.l.b16 %v660
      %v1336 = vunpack.c.h.b16 %v660
      %v1337 = vunpack.c.l.b16 %v661
      %v1338 = vunpack.c.h.b16 %v661
      %v1339 = vunpack.c.l.b16 %v662
      %v1340 = vunpack.c.h.b16 %v662
      %v1341 = vunpack.c.l.b16 %v663
      %v1342 = vunpack.c.h.b16 %v663
      %v1343 = vunpack.c.l.b16 %v664
      %v1344 = vunpack.c.h.b16 %v664
      %v1345 = vunpack.c.l.b16 %v665
      %v1346 = vunpack.c.h.b16 %v665
      %v1347 = vunpack.c.l.b16 %v666
      %v1348 = vunpack.c.h.b16 %v666
      %v1349 = vunpack.c.l.b16 %v667
      %v1350 = vunpack.c.h.b16 %v667
      %v1351 = vunpack.c.l.b16 %v668
      %v1352 = vunpack.c.h.b16 %v668
      %v1353 = vunpack.c.l.b16 %v669
      %v1354 = vunpack.c.h.b16 %v669
      %v1355 = vunpack.c.l.b16 %v670
      %v1356 = vunpack.c.h.b16 %v670
      %v1357 = vunpack.c.l.b16 %v671
      %v1358 = vunpack.c.h.b16 %v671
      %v1359 = vunpack.c.l.b16 %v672
      %v1360 = vunpack.c.h.b16 %v672
      %v1361 = vunpack.c.l.b16 %v673
      %v1362 = vunpack.c.h.b16 %v673
      %v1363 = vunpack.c.l.b16 %v674
      %v1364 = vunpack.c.h.b16 %v674
      %v1365 = vunpack.c.l.b16 %v675
      %v1366 = vunpack.c.h.b16 %v675
      %v1367 = vunpack.c.l.b16 %v676
      %v1368 = vunpack.c.h.b16 %v676
      %v1369 = vunpack.c.l.b16 %v677
      %v1370 = vunpack.c.h.b16 %v677
      %v1371 = vunpack.c.l.b16 %v678
      %v1372 = vunpack.c.h.b16 %v678
      %v1373 = vunpack.c.l.b16 %v679
      %v1374 = vunpack.c.h.b16 %v679
      %v1375 = vunpack.c.l.b16 %v680
      %v1376 = vunpack.c.h.b16 %v680
      %v1377 = vunpack.c.l.b16 %v681
      %v1378 = vunpack.c.h.b16 %v681
      %v1379 = vunpack.c.l.b16 %v682
      %v1380 = vunpack.c.h.b16 %v682
      %v1381 = vunpack.c.l.b16 %v683
      %v1382 = vunpack.c.h.b16 %v683
      %v1383 = vunpack.c.l.b16 %v684
      %v1384 = vunpack.c.h.b16 %v684
      %v1385 = vunpack.c.l.b16 %v685
      %v1386 = vunpack.c.h.b16 %v685
      %v1387 = vunpack.c.l.b16 %v686
      %v1388 = vunpack.c.h.b16 %v686
      %v1389 = vunpack.c.l.b16 %v687
      %v1390 = vunpack.c.h.b16 %v687
      %v1391 = vunpack.c.l.b16 %v688
      %v1392 = vunpack.c.h.b16 %v688
      %v1393 = vunpack.c.l.b16 %v689
      %v1394 = vunpack.c.h.b16 %v689
      %v1395 = vunpack.c.l.b16 %v690
      %v1396 = vunpack.c.h.b16 %v690
      %v1397 = vunpack.c.l.b16 %v691
      %v1398 = vunpack.c.h.b16 %v691
      %v1399 = vunpack.c.l.b16 %v692
      %v1400 = vunpack.c.h.b16 %v692
      %v1401 = vunpack.c.l.b16 %v693
      %v1402 = vunpack.c.h.b16 %v693
      %v1403 = vunpack.c.l.b16 %v694
      %v1404 = vunpack.c.h.b16 %v694
      %v1405 = vunpack.c.l.b16 %v695
      %v1406 = vunpack.c.h.b16 %v695
      %v1407 = vunpack.c.l.b16 %v696
      %v1408 = vunpack.c.h.b16 %v696
      %v1409 = vunpack.c.l.b16 %v697
      %v1410 = vunpack.c.h.b16 %v697
      %v1411 = vunpack.c.l.b16 %v698
      %v1412 = vunpack.c.h.b16 %v698
      %v1413 = vunpack.c.l.b16 %v699
      %v1414 = vunpack.c.h.b16 %v699
      %v1415 = vunpack.c.l.b16 %v700
      %v1416 = vunpack.c.h.b16 %v700
      %v1417 = vunpack.c.l.b16 %v701
      %v1418 = vunpack.c.h.b16 %v701
      %v1419 = vunpack.c.l.b16 %v702
      %v1420 = vunpack.c.h.b16 %v702
      %v1421 = vunpack.c.l.b16 %v703
      %v1422 = vunpack.c.h.b16 %v703
      %v1423 = vunpack.c.l.b16 %v704
      %v1424 = vunpack.c.h.b16 %v704
      %v1425 = vunpack.c.l.b16 %v705
      %v1426 = vunpack.c.h.b16 %v705
      %v1427 = vunpack.c.l.b16 %v706
      %v1428 = vunpack.c.h.b16 %v706
      %v1429 = vunpack.c.l.b16 %v707
      %v1430 = vunpack.c.h.b16 %v707
      %v1431 = vunpack.c.l.b16 %v708
      %v1432 = vunpack.c.h.b16 %v708
      %v1433 = vunpack.c.l.b16 %v709
      %v1434 = vunpack.c.h.b16 %v709
      %v1435 = vunpack.c.l.b16 %v710
      %v1436 = vunpack.c.h.b16 %v710
      %v1437 = vunpack.c.l.b16 %v711
      %v1438 = vunpack.c.h.b16 %v711
      %v1439 = vunpack.c.l.b16 %v712
      %v1440 = vunpack.c.h.b16 %v712
      %v1441 = vunpack.c.l.b16 %v713
      %v1442 = vunpack.c.h.b16 %v713
      %v1443 = vunpack.c.l.b16 %v714
      %v1444 = vunpack.c.h.b16 %v714
      %v1445 = vunpack.c.l.b16 %v715
      %v1446 = vunpack.c.h.b16 %v715
      %v1447 = vunpack.c.l.b16 %v716
      %v1448 = vunpack.c.h.b16 %v716
      %v1449 = vunpack.c.l.b16 %v717
      %v1450 = vunpack.c.h.b16 %v717
      %v1451 = vunpack.c.l.b16 %v718
      %v1452 = vunpack.c.h.b16 %v718
      %v1453 = vunpack.c.l.b16 %v719
      %v1454 = vunpack.c.h.b16 %v719
      %v1455 = vunpack.c.l.b16 %v720
      %v1456 = vunpack.c.h.b16 %v720
      %v1457 = vunpack.c.l.b16 %v721
      %v1458 = vunpack.c.h.b16 %v721
      %v1459 = vunpack.c.l.b16 %v722
      %v1460 = vunpack.c.h.b16 %v722
      %v1461 = vunpack.c.l.b16 %v723
      %v1462 = vunpack.c.h.b16 %v723
      %v1463 = vunpack.c.l.b16 %v724
      %v1464 = vunpack.c.h.b16 %v724
      %v1465 = vunpack.c.l.b16 %v725
      %v1466 = vunpack.c.h.b16 %v725
      %v1467 = vunpack.c.l.b16 %v726
      %v1468 = vunpack.c.h.b16 %v726
      %v1469 = vunpack.c.l.b16 %v727
      %v1470 = vunpack.c.h.b16 %v727
      %v1471 = vunpack.c.l.b16 %v728
      %v1472 = vunpack.c.h.b16 %v728
      %v1473 = vunpack.c.l.b16 %v729
      %v1474 = vunpack.c.h.b16 %v729
      %v1475 = vunpack.c.l.b16 %v730
      %v1476 = vunpack.c.h.b16 %v730
      %v1477 = vunpack.c.l.b16 %v731
      %v1478 = vunpack.c.h.b16 %v731
      %v1479 = vunpack.c.l.b16 %v732
      %v1480 = vunpack.c.h.b16 %v732
      %v1481 = vunpack.c.l.b16 %v733
      %v1482 = vunpack.c.h.b16 %v733
      %v1483 = vunpack.c.l.b16 %v734
      %v1484 = vunpack.c.h.b16 %v734
      %v1485 = vunpack.c.l.b16 %v735
      %v1486 = vunpack.c.h.b16 %v735
      %v1487 = vunpack.c.l.b16 %v736
      %v1488 = vunpack.c.h.b16 %v736
      %v1489 = vunpack.c.l.b16 %v737
      %v1490 = vunpack.c.h.b16 %v737
      %v1491 = vunpack.c.l.b16 %v738
      %v1492 = vunpack.c.h.b16 %v738
      %v1493 = vunpack.c.l.b16 %v739
      %v1494 = vunpack.c.h.b16 %v739
      %v1495 = vunpack.c.l.b16 %v740
      %v1496 = vunpack.c.h.b16 %v740
      %v1497 = vunpack.c.l.b16 %v741
      %v1498 = vunpack.c.h.b16 %v741
      %v1499 = vunpack.c.l.b16 %v742
      %v1500 = vunpack.c.h.b16 %v742
      %v1501 = vunpack.c.l.b16 %v743
      %v1502 = vunpack.c.h.b16 %v743
      %v1503 = vunpack.c.l.b16 %v744
      %v1504 = vunpack.c.h.b16 %v744
      %v1505 = vunpack.c.l.b16 %v745
      %v1506 = vunpack.c.h.b16 %v745
      %v1507 = vunpack.c.l.b16 %v746
      %v1508 = vunpack.c.h.b16 %v746
      %v1509 = vunpack.c.l.b16 %v747
      %v1510 = vunpack.c.h.b16 %v747
      %v1511 = vunpack.c.l.b16 %v748
      %v1512 = vunpack.c.h.b16 %v748
      %v1513 = vunpack.c.l.b16 %v749
      %v1514 = vunpack.c.h.b16 %v749
      %v1515 = vunpack.c.l.b16 %v750
      %v1516 = vunpack.c.h.b16 %v750
      %v1517 = vunpack.c.l.b16 %v751
      %v1518 = vunpack.c.h.b16 %v751
      %v1519 = vunpack.c.l.b16 %v752
      %v1520 = vunpack.c.h.b16 %v752
      %v1521 = vunpack.c.l.b16 %v753
      %v1522 = vunpack.c.h.b16 %v753
      %v1523 = vunpack.c.l.b16 %v754
      %v1524 = vunpack.c.h.b16 %v754
      %v1525 = vunpack.c.l.b16 %v755
      %v1526 = vunpack.c.h.b16 %v755
      %v1527 = vunpack.c.l.b16 %v756
      %v1528 = vunpack.c.h.b16 %v756
      %v1529 = vunpack.c.l.b16 %v757
      %v1530 = vunpack.c.h.b16 %v757
      %v1531 = vunpack.c.l.b16 %v758
      %v1532 = vunpack.c.h.b16 %v758
      %v1533 = vunpack.c.l.b16 %v759
      %v1534 = vunpack.c.h.b16 %v759
      %v1535 = vunpack.c.l.b16 %v760
      %v1536 = vunpack.c.h.b16 %v760
      %v1537 = vunpack.c.l.b16 %v761
      %v1538 = vunpack.c.h.b16 %v761
      %v1539 = vunpack.c.l.b16 %v762
      %v1540 = vunpack.c.h.b16 %v762
      %v1541 = vunpack.c.l.b16 %v763
      %v1542 = vunpack.c.h.b16 %v763
      %v1543 = vunpack.c.l.b16 %v764
      %v1544 = vunpack.c.h.b16 %v764
      %v1545 = vunpack.c.l.b16 %v765
      %v1546 = vunpack.c.h.b16 %v765
      %v1547 = vunpack.c.l.b16 %v766
      %v1548 = vunpack.c.h.b16 %v766
      %v1549 = vunpack.c.l.b16 %v767
      %v1550 = vunpack.c.h.b16 %v767
      %v1551 = vunpack.c.l.b16 %v768
      %v1552 = vunpack.c.h.b16 %v768
      %v1553 = vunpack.c.l.b16 %v769
      %v1554 = vunpack.c.h.b16 %v769
      %v1555 = vunpack.c.l.b16 %v770
      %v1556 = vunpack.c.h.b16 %v770
      %v1557 = vunpack.c.l.b16 %v771
      %v1558 = vunpack.c.h.b16 %v771
      %v1559 = vunpack.c.l.b16 %v772
      %v1560 = vunpack.c.h.b16 %v772
      %v1561 = vunpack.c.l.b16 %v773
      %v1562 = vunpack.c.h.b16 %v773
      %v1563 = vunpack.c.l.b16 %v774
      %v1564 = vunpack.c.h.b16 %v774
      %v1565 = vunpack.c.l.b16 %v775
      %v1566 = vunpack.c.h.b16 %v775
      %v1567 = vunpack.c.l.b16 %v776
      %v1568 = vunpack.c.h.b16 %v776
      %v1569 = vunpack.c.l.b16 %v777
      %v1570 = vunpack.c.h.b16 %v777
      %v1571 = vunpack.c.l.b16 %v778
      %v1572 = vunpack.c.h.b16 %v778
      %v1573 = vunpack.c.l.b16 %v779
      %v1574 = vunpack.c.h.b16 %v779
      %v1575 = vunpack.c.l.b16 %v780
      %v1576 = vunpack.c.h.b16 %v780
      %v1577 = vunpack.c.l.b16 %v781
      %v1578 = vunpack.c.h.b16 %v781
      %v1579 = vunpack.c.l.b16 %v782
      %v1580 = vunpack.c.h.b16 %v782
      %v1581 = vunpack.c.l.b16 %v783
      %v1582 = vunpack.c.h.b16 %v783
      %v1583 = vunpack.c.l.b16 %v784
      %v1584 = vunpack.c.h.b16 %v784
      %v1585 = vpack.c.b16 %v1075, %v1073
      %v1586 = vpack.c.b16 %v1076, %v1074
      %v1587 = vpack.c.b16 %v1079, %v1077
      %v1588 = vpack.c.b16 %v1080, %v1078
      %v1589 = vpack.c.b16 %v1083, %v1081
      %v1590 = vpack.c.b16 %v1084, %v1082
      %v1591 = vpack.c.b16 %v1087, %v1085
      %v1592 = vpack.c.b16 %v1088, %v1086
      %v1593 = vpack.c.b16 %v1091, %v1089
      %v1594 = vpack.c.b16 %v1092, %v1090
      %v1595 = vpack.c.b16 %v1095, %v1093
      %v1596 = vpack.c.b16 %v1096, %v1094
      %v1597 = vpack.c.b16 %v1099, %v1097
      %v1598 = vpack.c.b16 %v1100, %v1098
      %v1599 = vpack.c.b16 %v1103, %v1101
      %v1600 = vpack.c.b16 %v1104, %v1102
      %v1601 = vpack.c.b16 %v1107, %v1105
      %v1602 = vpack.c.b16 %v1108, %v1106
      %v1603 = vpack.c.b16 %v1111, %v1109
      %v1604 = vpack.c.b16 %v1112, %v1110
      %v1605 = vpack.c.b16 %v1115, %v1113
      %v1606 = vpack.c.b16 %v1116, %v1114
      %v1607 = vpack.c.b16 %v1119, %v1117
      %v1608 = vpack.c.b16 %v1120, %v1118
      %v1609 = vpack.c.b16 %v1123, %v1121
      %v1610 = vpack.c.b16 %v1124, %v1122
      %v1611 = vpack.c.b16 %v1127, %v1125
      %v1612 = vpack.c.b16 %v1128, %v1126
      %v1613 = vpack.c.b16 %v1131, %v1129
      %v1614 = vpack.c.b16 %v1132, %v1130
      %v1615 = vpack.c.b16 %v1135, %v1133
      %v1616 = vpack.c.b16 %v1136, %v1134
      %v1617 = vpack.c.b16 %v1139, %v1137
      %v1618 = vpack.c.b16 %v1140, %v1138
      %v1619 = vpack.c.b16 %v1143, %v1141
      %v1620 = vpack.c.b16 %v1144, %v1142
      %v1621 = vpack.c.b16 %v1147, %v1145
      %v1622 = vpack.c.b16 %v1148, %v1146
      %v1623 = vpack.c.b16 %v1151, %v1149
      %v1624 = vpack.c.b16 %v1152, %v1150
      %v1625 = vpack.c.b16 %v1155, %v1153
      %v1626 = vpack.c.b16 %v1156, %v1154
      %v1627 = vpack.c.b16 %v1159, %v1157
      %v1628 = vpack.c.b16 %v1160, %v1158
      %v1629 = vpack.c.b16 %v1163, %v1161
      %v1630 = vpack.c.b16 %v1164, %v1162
      %v1631 = vpack.c.b16 %v1167, %v1165
      %v1632 = vpack.c.b16 %v1168, %v1166
      %v1633 = vpack.c.b16 %v1171, %v1169
      %v1634 = vpack.c.b16 %v1172, %v1170
      %v1635 = vpack.c.b16 %v1175, %v1173
      %v1636 = vpack.c.b16 %v1176, %v1174
      %v1637 = vpack.c.b16 %v1179, %v1177
      %v1638 = vpack.c.b16 %v1180, %v1178
      %v1639 = vpack.c.b16 %v1183, %v1181
      %v1640 = vpack.c.b16 %v1184, %v1182
      %v1641 = vpack.c.b16 %v1187, %v1185
      %v1642 = vpack.c.b16 %v1188, %v1186
      %v1643 = vpack.c.b16 %v1191, %v1189
      %v1644 = vpack.c.b16 %v1192, %v1190
      %v1645 = vpack.c.b16 %v1195, %v1193
      %v1646 = vpack.c.b16 %v1196, %v1194
      %v1647 = vpack.c.b16 %v1199, %v1197
      %v1648 = vpack.c.b16 %v1200, %v1198
      %v1649 = vpack.c.b16 %v1203, %v1201
      %v1650 = vpack.c.b16 %v1204, %v1202
      %v1651 = vpack.c.b16 %v1207, %v1205
      %v1652 = vpack.c.b16 %v1208, %v1206
      %v1653 = vpack.c.b16 %v1211, %v1209
      %v1654 = vpack.c.b16 %v1212, %v1210
      %v1655 = vpack.c.b16 %v1215, %v1213
      %v1656 = vpack.c.b16 %v1216, %v1214
      %v1657 = vpack.c.b16 %v1219, %v1217
      %v1658 = vpack.c.b16 %v1220, %v1218
      %v1659 = vpack.c.b16 %v1223, %v1221
      %v1660 = vpack.c.b16 %v1224, %v1222
      %v1661 = vpack.c.b16 %v1227, %v1225
      %v1662 = vpack.c.b16 %v1228, %v1226
      %v1663 = vpack.c.b16 %v1231, %v1229
      %v1664 = vpack.c.b16 %v1232, %v1230
      %v1665 = vpack.c.b16 %v1235, %v1233
      %v1666 = vpack.c.b16 %v1236, %v1234
      %v1667 = vpack.c.b16 %v1239, %v1237
      %v1668 = vpack.c.b16 %v1240, %v1238
      %v1669 = vpack.c.b16 %v1243, %v1241
      %v1670 = vpack.c.b16 %v1244, %v1242
      %v1671 = vpack.c.b16 %v1247, %v1245
      %v1672 = vpack.c.b16 %v1248, %v1246
      %v1673 = vpack.c.b16 %v1251, %v1249
      %v1674 = vpack.c.b16 %v1252, %v1250
      %v1675 = vpack.c.b16 %v1255, %v1253
      %v1676 = vpack.c.b16 %v1256, %v1254
      %v1677 = vpack.c.b16 %v1259, %v1257
      %v1678 = vpack.c.b16 %v1260, %v1258
      %v1679 = vpack.c.b16 %v1263, %v1261
      %v1680 = vpack.c.b16 %v1264, %v1262
      %v1681 = vpack.c.b16 %v1267, %v1265
      %v1682 = vpack.c.b16 %v1268, %v1266
      %v1683 = vpack.c.b16 %v1271, %v1269
      %v1684 = vpack.c.b16 %v1272, %v1270
      %v1685 = vpack.c.b16 %v1275, %v1273
      %v1686 = vpack.c.b16 %v1276, %v1274
      %v1687 = vpack.c.b16 %v1279, %v1277
      %v1688 = vpack.c.b16 %v1280, %v1278
      %v1689 = vpack.c.b16 %v1283, %v1281
      %v1690 = vpack.c.b16 %v1284, %v1282
      %v1691 = vpack.c.b16 %v1287, %v1285
      %v1692 = vpack.c.b16 %v1288, %v1286
      %v1693 = vpack.c.b16 %v1291, %v1289
      %v1694 = vpack.c.b16 %v1292, %v1290
      %v1695 = vpack.c.b16 %v1295, %v1293
      %v1696 = vpack.c.b16 %v1296, %v1294
      %v1697 = vpack.c.b16 %v1299, %v1297
      %v1698 = vpack.c.b16 %v1300, %v1298
      %v1699 = vpack.c.b16 %v1303, %v1301
      %v1700 = vpack.c.b16 %v1304, %v1302
      %v1701 = vpack.c.b16 %v1307, %v1305
      %v1702 = vpack.c.b16 %v1308, %v1306
      %v1703 = vpack.c.b16 %v1311, %v1309
      %v1704 = vpack.c.b16 %v1312, %v1310
      %v1705 = vpack.c.b16 %v1315, %v1313
      %v1706 = vpack.c.b16 %v1316, %v1314
      %v1707 = vpack.c.b16 %v1319, %v1317
      %v1708 = vpack.c.b16 %v1320, %v1318
      %v1709 = vpack.c.b16 %v1323, %v1321
      %v1710 = vpack.c.b16 %v1324, %v1322
      %v1711 = vpack.c.b16 %v1327, %v1325
      %v1712 = vpack.c.b16 %v1328, %v1326
      %v1713 = vpack.c.b16 %v1331, %v1329
      %v1714 = vpack.c.b16 %v1332, %v1330
      %v1715 = vpack.c.b16 %v1335, %v1333
      %v1716 = vpack.c.b16 %v1336, %v1334
      %v1717 = vpack.c.b16 %v1339, %v1337
      %v1718 = vpack.c.b16 %v1340, %v1338
      %v1719 = vpack.c.b16 %v1343, %v1341
      %v1720 = vpack.c.b16 %v1344, %v1342
      %v1721 = vpack.c.b16 %v1347, %v1345
      %v1722 = vpack.c.b16 %v1348, %v1346
      %v1723 = vpack.c.b16 %v1351, %v1349
      %v1724 = vpack.c.b16 %v1352, %v1350
      %v1725 = vpack.c.b16 %v1355, %v1353
      %v1726 = vpack.c.b16 %v1356, %v1354
      %v1727 = vpack.c.b16 %v1359, %v1357
      %v1728 = vpack.c.b16 %v1360, %v1358
      %v1729 = vpack.c.b16 %v1363, %v1361
      %v1730 = vpack.c.b16 %v1364, %v1362
      %v1731 = vpack.c.b16 %v1367, %v1365
      %v1732 = vpack.c.b16 %v1368, %v1366
      %v1733 = vpack.c.b16 %v1371, %v1369
      %v1734 = vpack.c.b16 %v1372, %v1370
      %v1735 = vpack.c.b16 %v1375, %v1373
      %v1736 = vpack.c.b16 %v1376, %v1374
      %v1737 = vpack.c.b16 %v1379, %v1377
      %v1738 = vpack.c.b16 %v1380, %v1378
      %v1739 = vpack.c.b16 %v1383, %v1381
      %v1740 = vpack.c.b16 %v1384, %v1382
      %v1741 = vpack.c.b16 %v1387, %v1385
      %v1742 = vpack.c.b16 %v1388, %v1386
      %v1743 = vpack.c.b16 %v1391, %v1389
      %v1744 = vpack.c.b16 %v1392, %v1390
      %v1745 = vpack.c.b16 %v1395, %v1393
      %v1746 = vpack.c.b16 %v1396, %v1394
      %v1747 = vpack.c.b16 %v1399, %v1397
      %v1748 = vpack.c.b16 %v1400, %v1398
      %v1749 = vpack.c.b16 %v1403, %v1401
      %v1750 = vpack.c.b16 %v1404, %v1402
      %v1751 = vpack.c.b16 %v1407, %v1405
      %v1752 = vpack.c.b16 %v1408, %v1406
      %v1753 = vpack.c.b16 %v1411, %v1409
      %v1754 = vpack.c.b16 %v1412, %v1410
      %v1755 = vpack.c.b16 %v1415, %v1413
      %v1756 = vpack.c.b16 %v1416, %v1414
      %v1757 = vpack.c.b16 %v1419, %v1417
      %v1758 = vpack.c.b16 %v1420, %v1418
      %v1759 = vpack.c.b16 %v1423, %v1421
      %v1760 = vpack.c.b16 %v1424, %v1422
      %v1761 = vpack.c.b16 %v1427, %v1425
      %v1762 = vpack.c.b16 %v1428, %v1426
      %v1763 = vpack.c.b16 %v1431, %v1429
      %v1764 = vpack.c.b16 %v1432, %v1430
      %v1765 = vpack.c.b16 %v1435, %v1433
      %v1766 = vpack.c.b16 %v1436, %v1434
      %v1767 = vpack.c.b16 %v1439, %v1437
      %v1768 = vpack.c.b16 %v1440, %v1438
      %v1769 = vpack.c.b16 %v1443, %v1441
      %v1770 = vpack.c.b16 %v1444, %v1442
      %v1771 = vpack.c.b16 %v1447, %v1445
      %v1772 = vpack.c.b16 %v1448, %v1446
      %v1773 = vpack.c.b16 %v1451, %v1449
      %v1774 = vpack.c.b16 %v1452, %v1450
      %v1775 = vpack.c.b16 %v1455, %v1453
      %v1776 = vpack.c.b16 %v1456, %v1454
      %v1777 = vpack.c.b16 %v1459, %v1457
      %v1778 = vpack.c.b16 %v1460, %v1458
      %v1779 = vpack.c.b16 %v1463, %v1461
      %v1780 = vpack.c.b16 %v1464, %v1462
      %v1781 = vpack.c.b16 %v1467, %v1465
      %v1782 = vpack.c.b16 %v1468, %v1466
      %v1783 = vpack.c.b16 %v1471, %v1469
      %v1784 = vpack.c.b16 %v1472, %v1470
      %v1785 = vpack.c.b16 %v1475, %v1473
      %v1786 = vpack.c.b16 %v1476, %v1474
      %v1787 = vpack.c.b16 %v1479, %v1477
      %v1788 = vpack.c.b16 %v1480, %v1478
      %v1789 = vpack.c.b16 %v1483, %v1481
      %v1790 = vpack.c.b16 %v1484, %v1482
      %v1791 = vpack.c.b16 %v1487, %v1485
      %v1792 = vpack.c.b16 %v1488, %v1486
      %v1793 = vpack.c.b16 %v1491, %v1489
      %v1794 = vpack.c.b16 %v1492, %v1490
      %v1795 = vpack.c.b16 %v1495, %v1493
      %v1796 = vpack.c.b16 %v1496, %v1494
      %v1797 = vpack.c.b16 %v1499, %v1497
      %v1798 = vpack.c.b16 %v1500, %v1498
      %v1799 = vpack.c.b16 %v1503, %v1501
      %v1800 = vpack.c.b16 %v1504, %v1502
      %v1801 = vpack.c.b16 %v1507, %v1505
      %v1802 = vpack.c.b16 %v1508, %v1506
      %v1803 = vpack.c.b16 %v1511, %v1509
      %v1804 = vpack.c.b16 %v1512, %v1510
      %v1805 = vpack.c.b16 %v1515, %v1513
      %v1806 = vpack.c.b16 %v1516, %v1514
      %v1807 = vpack.c.b16 %v1519, %v1517
      %v1808 = vpack.c.b16 %v1520, %v1518
      %v1809 = vpack.c.b16 %v1523, %v1521
      %v1810 = vpack.c.b16 %v1524, %v1522
      %v1811 = vpack.c.b16 %v1527, %v1525
      %v1812 = vpack.c.b16 %v1528, %v1526
      %v1813 = vpack.c.b16 %v1531, %v1529
      %v1814 = vpack.c.b16 %v1532, %v1530
      %v1815 = vpack.c.b16 %v1535, %v1533
      %v1816 = vpack.c.b16 %v1536, %v1534
      %v1817 = vpack.c.b16 %v1539, %v1537
      %v1818 = vpack.c.b16 %v1540, %v1538
      %v1819 = vpack.c.b16 %v1543, %v1541
      %v1820 = vpack.c.b16 %v1544, %v1542
      %v1821 = vpack.c.b16 %v1547, %v1545
      %v1822 = vpack.c.b16 %v1548, %v1546
      %v1823 = vpack.c.b16 %v1551, %v1549
      %v1824 = vpack.c.b16 %v1552, %v1550
      %v1825 = vpack.c.b16 %v1555, %v1553
      %v1826 = vpack.c.b16 %v1556, %v1554
      %v1827 = vpack.c.b16 %v1559, %v1557
      %v1828 = vpack.c.b16 %v1560, %v1558
      %v1829 = vpack.c.b16 %v1563, %v1561
      %v1830 = vpack.c.b16 %v1564, %v1562
      %v1831 = vpack.c.b16 %v1567, %v1565
      %v1832 = vpack.c.b16 %v1568, %v1566
      %v1833 = vpack.c.b16 %v1571, %v1569
      %v1834 = vpack.c.b16 %v1572, %v1570
      %v1835 = vpack.c.b16 %v1575, %v1573
      %v1836 = vpack.c.b16 %v1576, %v1574
      %v1837 = vpack.c.b16 %v1579, %v1577
      %v1838 = vpack.c.b16 %v1580, %v1578
      %v1839 = vpack.c.b16 %v1583, %v1581
      %v1840 = vpack.c.b16 %v1584, %v1582
      %v2129 = vunpack.c.l.b16 %v785
      %v2130 = vunpack.c.l.b16 %v786
      %v2131 = vunpack.c.l.b16 %v787
      %v2132 = vunpack.c.l.b16 %v788
      %v2133 = vunpack.c.l.b16 %v789
      %v2134 = vunpack.c.l.b16 %v790
      %v2135 = vunpack.c.l.b16 %v791
      %v2136 = vunpack.c.l.b16 %v792
      %v2137 = vunpack.c.l.b16 %v793
      %v2138 = vunpack.c.l.b16 %v794
      %v2139 = vunpack.c.l.b16 %v795
      %v2140 = vunpack.c.l.b16 %v796
      %v2141 = vunpack.c.l.b16 %v797
      %v2142 = vunpack.c.l.b16 %v798
      %v2143 = vunpack.c.l.b16 %v799
      %v2144 = vunpack.c.l.b16 %v800
      %v2145 = vunpack.c.l.b16 %v801
      %v2146 = vunpack.c.l.b16 %v802
      %v2147 = vunpack.c.l.b16 %v803
      %v2148 = vunpack.c.l.b16 %v804
      %v2149 = vunpack.c.l.b16 %v805
      %v2150 = vunpack.c.l.b16 %v806
      %v2151 = vunpack.c.l.b16 %v807
      %v2152 = vunpack.c.l.b16 %v808
      %v2153 = vunpack.c.l.b16 %v809
      %v2154 = vunpack.c.l.b16 %v810
      %v2155 = vunpack.c.l.b16 %v811
      %v2156 = vunpack.c.l.b16 %v812
      %v2157 = vunpack.c.l.b16 %v813
      %v2158 = vunpack.c.l.b16 %v814
      %v2159 = vunpack.c.l.b16 %v815
      %v2160 = vunpack.c.l.b16 %v816
      %v2161 = vpack.c.b16 %v2130, %v2129
      %v2162 = vpack.c.b16 %v2132, %v2131
      %v2163 = vpack.c.b16 %v2134, %v2133
      %v2164 = vpack.c.b16 %v2136, %v2135
      %v2165 = vpack.c.b16 %v2138, %v2137
      %v2166 = vpack.c.b16 %v2140, %v2139
      %v2167 = vpack.c.b16 %v2142, %v2141
      %v2168 = vpack.c.b16 %v2144, %v2143
      %v2169 = vpack.c.b16 %v2146, %v2145
      %v2170 = vpack.c.b16 %v2148, %v2147
      %v2171 = vpack.c.b16 %v2150, %v2149
      %v2172 = vpack.c.b16 %v2152, %v2151
      %v2173 = vpack.c.b16 %v2154, %v2153
      %v2174 = vpack.c.b16 %v2156, %v2155
      %v2175 = vpack.c.b16 %v2158, %v2157
      %v2176 = vpack.c.b16 %v2160, %v2159
      %2193 = vmatpush.bf16.msra.mxu0 %v2168
      %2194 = vmatpush.bf16.msra.mxu0 %v2167
      %2195 = vmatpush.bf16.msra.mxu0 %v2166
      %2196 = vmatpush.bf16.msra.mxu0 %v2165
      %2197 = vmatpush.bf16.msra.mxu0 %v2164
      %2198 = vmatpush.bf16.msra.mxu0 %v2163
      %2199 = vmatpush.bf16.msra.mxu0 %v2162
      %2200 = vmatpush.bf16.msra.mxu0 %v2161
      %2201 = vmatmul.bf16.gmra.mxu0 %v1585
      %v2202 = vpop.f32.mrf.mxu0
      %v2203 = vadd.f32 0.0, %v2202
      %v2204 = vpop.f32.mrf.mxu0
      %v2205 = vadd.f32 0.0, %v2204
      %2206 = vmatmul.bf16.gmra.mxu0 %v1587
      %v2207 = vpop.f32.mrf.mxu0
      %v2208 = vadd.f32 0.0, %v2207
      %v2209 = vpop.f32.mrf.mxu0
      %v2210 = vadd.f32 0.0, %v2209
      %2211 = vmatmul.bf16.gmra.mxu0 %v1589
      %v2212 = vpop.f32.mrf.mxu0
      %v2213 = vadd.f32 0.0, %v2212
      %v2214 = vpop.f32.mrf.mxu0
      %v2215 = vadd.f32 0.0, %v2214
      %2216 = vmatmul.bf16.gmra.mxu0 %v1591
      %v2217 = vpop.f32.mrf.mxu0
      %v2218 = vadd.f32 0.0, %v2217
      %v2219 = vpop.f32.mrf.mxu0
      %v2220 = vadd.f32 0.0, %v2219
      %2221 = vmatmul.bf16.gmra.mxu0 %v1593
      %v2222 = vpop.f32.mrf.mxu0
      %v2223 = vadd.f32 0.0, %v2222
      %v2224 = vpop.f32.mrf.mxu0
      %v2225 = vadd.f32 0.0, %v2224
      %2226 = vmatmul.bf16.gmra.mxu0 %v1595
      %v2227 = vpop.f32.mrf.mxu0
      %v2228 = vadd.f32 0.0, %v2227
      %v2229 = vpop.f32.mrf.mxu0
      %v2230 = vadd.f32 0.0, %v2229
      %2231 = vmatmul.bf16.gmra.mxu0 %v1597
      %v2232 = vpop.f32.mrf.mxu0
      %v2233 = vadd.f32 0.0, %v2232
      %v2234 = vpop.f32.mrf.mxu0
      %v2235 = vadd.f32 0.0, %v2234
      %2236 = vmatmul.bf16.gmra.mxu0 %v1599
      %v2237 = vpop.f32.mrf.mxu0
      %v2238 = vadd.f32 0.0, %v2237
      %v2239 = vpop.f32.mrf.mxu0
      %v2240 = vadd.f32 0.0, %v2239
      %2241 = vmatmul.bf16.gmra.mxu0 %v1601
      %v2242 = vpop.f32.mrf.mxu0
      %v2243 = vadd.f32 0.0, %v2242
      %v2244 = vpop.f32.mrf.mxu0
      %v2245 = vadd.f32 0.0, %v2244
      %2246 = vmatmul.bf16.gmra.mxu0 %v1603
      %v2247 = vpop.f32.mrf.mxu0
      %v2248 = vadd.f32 0.0, %v2247
      %v2249 = vpop.f32.mrf.mxu0
      %v2250 = vadd.f32 0.0, %v2249
      %2251 = vmatmul.bf16.gmra.mxu0 %v1605
      %v2252 = vpop.f32.mrf.mxu0
      %v2253 = vadd.f32 0.0, %v2252
      %v2254 = vpop.f32.mrf.mxu0
      %v2255 = vadd.f32 0.0, %v2254
      %2256 = vmatmul.bf16.gmra.mxu0 %v1607
      %v2257 = vpop.f32.mrf.mxu0
      %v2258 = vadd.f32 0.0, %v2257
      %v2259 = vpop.f32.mrf.mxu0
      %v2260 = vadd.f32 0.0, %v2259
      %2261 = vmatmul.bf16.gmra.mxu0 %v1609
      %v2262 = vpop.f32.mrf.mxu0
      %v2263 = vadd.f32 0.0, %v2262
      %v2264 = vpop.f32.mrf.mxu0
      %v2265 = vadd.f32 0.0, %v2264
      %2266 = vmatmul.bf16.gmra.mxu0 %v1611
      %v2267 = vpop.f32.mrf.mxu0
      %v2268 = vadd.f32 0.0, %v2267
      %v2269 = vpop.f32.mrf.mxu0
      %v2270 = vadd.f32 0.0, %v2269
      %2271 = vmatmul.bf16.gmra.mxu0 %v1613
      %v2272 = vpop.f32.mrf.mxu0
      %v2273 = vadd.f32 0.0, %v2272
      %v2274 = vpop.f32.mrf.mxu0
      %v2275 = vadd.f32 0.0, %v2274
      %2276 = vmatmul.bf16.gmra.mxu0 %v1615
      %v2277 = vpop.f32.mrf.mxu0
      %v2278 = vadd.f32 0.0, %v2277
      %v2279 = vpop.f32.mrf.mxu0
      %v2280 = vadd.f32 0.0, %v2279
      %2281 = vmatmul.bf16.gmra.mxu0 %v1617
      %v2282 = vpop.f32.mrf.mxu0
      %v2283 = vadd.f32 0.0, %v2282
      %v2284 = vpop.f32.mrf.mxu0
      %v2285 = vadd.f32 0.0, %v2284
      %2286 = vmatmul.bf16.gmra.mxu0 %v1619
      %v2287 = vpop.f32.mrf.mxu0
      %v2288 = vadd.f32 0.0, %v2287
      %v2289 = vpop.f32.mrf.mxu0
      %v2290 = vadd.f32 0.0, %v2289
      %2291 = vmatmul.bf16.gmra.mxu0 %v1621
      %v2292 = vpop.f32.mrf.mxu0
      %v2293 = vadd.f32 0.0, %v2292
      %v2294 = vpop.f32.mrf.mxu0
      %v2295 = vadd.f32 0.0, %v2294
      %2296 = vmatmul.bf16.gmra.mxu0 %v1623
      %v2297 = vpop.f32.mrf.mxu0
      %v2298 = vadd.f32 0.0, %v2297
      %v2299 = vpop.f32.mrf.mxu0
      %v2300 = vadd.f32 0.0, %v2299
      %2301 = vmatmul.bf16.gmra.mxu0 %v1625
      %v2302 = vpop.f32.mrf.mxu0
      %v2303 = vadd.f32 0.0, %v2302
      %v2304 = vpop.f32.mrf.mxu0
      %v2305 = vadd.f32 0.0, %v2304
      %2306 = vmatmul.bf16.gmra.mxu0 %v1627
      %v2307 = vpop.f32.mrf.mxu0
      %v2308 = vadd.f32 0.0, %v2307
      %v2309 = vpop.f32.mrf.mxu0
      %v2310 = vadd.f32 0.0, %v2309
      %2311 = vmatmul.bf16.gmra.mxu0 %v1629
      %v2312 = vpop.f32.mrf.mxu0
      %v2313 = vadd.f32 0.0, %v2312
      %v2314 = vpop.f32.mrf.mxu0
      %v2315 = vadd.f32 0.0, %v2314
      %2316 = vmatmul.bf16.gmra.mxu0 %v1631
      %v2317 = vpop.f32.mrf.mxu0
      %v2318 = vadd.f32 0.0, %v2317
      %v2319 = vpop.f32.mrf.mxu0
      %v2320 = vadd.f32 0.0, %v2319
      %2321 = vmatmul.bf16.gmra.mxu0 %v1633
      %v2322 = vpop.f32.mrf.mxu0
      %v2323 = vadd.f32 0.0, %v2322
      %v2324 = vpop.f32.mrf.mxu0
      %v2325 = vadd.f32 0.0, %v2324
      %2326 = vmatmul.bf16.gmra.mxu0 %v1635
      %v2327 = vpop.f32.mrf.mxu0
      %v2328 = vadd.f32 0.0, %v2327
      %v2329 = vpop.f32.mrf.mxu0
      %v2330 = vadd.f32 0.0, %v2329
      %2331 = vmatmul.bf16.gmra.mxu0 %v1637
      %v2332 = vpop.f32.mrf.mxu0
      %v2333 = vadd.f32 0.0, %v2332
      %v2334 = vpop.f32.mrf.mxu0
      %v2335 = vadd.f32 0.0, %v2334
      %2336 = vmatmul.bf16.gmra.mxu0 %v1639
      %v2337 = vpop.f32.mrf.mxu0
      %v2338 = vadd.f32 0.0, %v2337
      %v2339 = vpop.f32.mrf.mxu0
      %v2340 = vadd.f32 0.0, %v2339
      %2341 = vmatmul.bf16.gmra.mxu0 %v1641
      %v2342 = vpop.f32.mrf.mxu0
      %v2343 = vadd.f32 0.0, %v2342
      %v2344 = vpop.f32.mrf.mxu0
      %v2345 = vadd.f32 0.0, %v2344
      %2346 = vmatmul.bf16.gmra.mxu0 %v1643
      %v2347 = vpop.f32.mrf.mxu0
      %v2348 = vadd.f32 0.0, %v2347
      %v2349 = vpop.f32.mrf.mxu0
      %v2350 = vadd.f32 0.0, %v2349
      %2351 = vmatmul.bf16.gmra.mxu0 %v1645
      %v2352 = vpop.f32.mrf.mxu0
      %v2353 = vadd.f32 0.0, %v2352
      %v2354 = vpop.f32.mrf.mxu0
      %v2355 = vadd.f32 0.0, %v2354
      %2356 = vmatmul.bf16.gmra.mxu0 %v1647
      %v2357 = vpop.f32.mrf.mxu0
      %v2358 = vadd.f32 0.0, %v2357
      %v2359 = vpop.f32.mrf.mxu0
      %v2360 = vadd.f32 0.0, %v2359
      %2361 = vmatmul.bf16.gmra.mxu0 %v1649
      %v2362 = vpop.f32.mrf.mxu0
      %v2363 = vadd.f32 0.0, %v2362
      %v2364 = vpop.f32.mrf.mxu0
      %v2365 = vadd.f32 0.0, %v2364
      %2366 = vmatmul.bf16.gmra.mxu0 %v1651
      %v2367 = vpop.f32.mrf.mxu0
      %v2368 = vadd.f32 0.0, %v2367
      %v2369 = vpop.f32.mrf.mxu0
      %v2370 = vadd.f32 0.0, %v2369
      %2371 = vmatmul.bf16.gmra.mxu0 %v1653
      %v2372 = vpop.f32.mrf.mxu0
      %v2373 = vadd.f32 0.0, %v2372
      %v2374 = vpop.f32.mrf.mxu0
      %v2375 = vadd.f32 0.0, %v2374
      %2376 = vmatmul.bf16.gmra.mxu0 %v1655
      %v2377 = vpop.f32.mrf.mxu0
      %v2378 = vadd.f32 0.0, %v2377
      %v2379 = vpop.f32.mrf.mxu0
      %v2380 = vadd.f32 0.0, %v2379
      %2381 = vmatmul.bf16.gmra.mxu0 %v1657
      %v2382 = vpop.f32.mrf.mxu0
      %v2383 = vadd.f32 0.0, %v2382
      %v2384 = vpop.f32.mrf.mxu0
      %v2385 = vadd.f32 0.0, %v2384
      %2386 = vmatmul.bf16.gmra.mxu0 %v1659
      %v2387 = vpop.f32.mrf.mxu0
      %v2388 = vadd.f32 0.0, %v2387
      %v2389 = vpop.f32.mrf.mxu0
      %v2390 = vadd.f32 0.0, %v2389
      %2391 = vmatmul.bf16.gmra.mxu0 %v1661
      %v2392 = vpop.f32.mrf.mxu0
      %v2393 = vadd.f32 0.0, %v2392
      %v2394 = vpop.f32.mrf.mxu0
      %v2395 = vadd.f32 0.0, %v2394
      %2396 = vmatmul.bf16.gmra.mxu0 %v1663
      %v2397 = vpop.f32.mrf.mxu0
      %v2398 = vadd.f32 0.0, %v2397
      %v2399 = vpop.f32.mrf.mxu0
      %v2400 = vadd.f32 0.0, %v2399
      %2401 = vmatmul.bf16.gmra.mxu0 %v1665
      %v2402 = vpop.f32.mrf.mxu0
      %v2403 = vadd.f32 0.0, %v2402
      %v2404 = vpop.f32.mrf.mxu0
      %v2405 = vadd.f32 0.0, %v2404
      %2406 = vmatmul.bf16.gmra.mxu0 %v1667
      %v2407 = vpop.f32.mrf.mxu0
      %v2408 = vadd.f32 0.0, %v2407
      %v2409 = vpop.f32.mrf.mxu0
      %v2410 = vadd.f32 0.0, %v2409
      %2411 = vmatmul.bf16.gmra.mxu0 %v1669
      %v2412 = vpop.f32.mrf.mxu0
      %v2413 = vadd.f32 0.0, %v2412
      %v2414 = vpop.f32.mrf.mxu0
      %v2415 = vadd.f32 0.0, %v2414
      %2416 = vmatmul.bf16.gmra.mxu0 %v1671
      %v2417 = vpop.f32.mrf.mxu0
      %v2418 = vadd.f32 0.0, %v2417
      %v2419 = vpop.f32.mrf.mxu0
      %v2420 = vadd.f32 0.0, %v2419
      %2421 = vmatmul.bf16.gmra.mxu0 %v1673
      %v2422 = vpop.f32.mrf.mxu0
      %v2423 = vadd.f32 0.0, %v2422
      %v2424 = vpop.f32.mrf.mxu0
      %v2425 = vadd.f32 0.0, %v2424
      %2426 = vmatmul.bf16.gmra.mxu0 %v1675
      %v2427 = vpop.f32.mrf.mxu0
      %v2428 = vadd.f32 0.0, %v2427
      %v2429 = vpop.f32.mrf.mxu0
      %v2430 = vadd.f32 0.0, %v2429
      %2431 = vmatmul.bf16.gmra.mxu0 %v1677
      %v2432 = vpop.f32.mrf.mxu0
      %v2433 = vadd.f32 0.0, %v2432
      %v2434 = vpop.f32.mrf.mxu0
      %v2435 = vadd.f32 0.0, %v2434
      %2436 = vmatmul.bf16.gmra.mxu0 %v1679
      %v2437 = vpop.f32.mrf.mxu0
      %v2438 = vadd.f32 0.0, %v2437
      %v2439 = vpop.f32.mrf.mxu0
      %v2440 = vadd.f32 0.0, %v2439
      %2441 = vmatmul.bf16.gmra.mxu0 %v1681
      %v2442 = vpop.f32.mrf.mxu0
      %v2443 = vadd.f32 0.0, %v2442
      %v2444 = vpop.f32.mrf.mxu0
      %v2445 = vadd.f32 0.0, %v2444
      %2446 = vmatmul.bf16.gmra.mxu0 %v1683
      %v2447 = vpop.f32.mrf.mxu0
      %v2448 = vadd.f32 0.0, %v2447
      %v2449 = vpop.f32.mrf.mxu0
      %v2450 = vadd.f32 0.0, %v2449
      %2451 = vmatmul.bf16.gmra.mxu0 %v1685
      %v2452 = vpop.f32.mrf.mxu0
      %v2453 = vadd.f32 0.0, %v2452
      %v2454 = vpop.f32.mrf.mxu0
      %v2455 = vadd.f32 0.0, %v2454
      %2456 = vmatmul.bf16.gmra.mxu0 %v1687
      %v2457 = vpop.f32.mrf.mxu0
      %v2458 = vadd.f32 0.0, %v2457
      %v2459 = vpop.f32.mrf.mxu0
      %v2460 = vadd.f32 0.0, %v2459
      %2461 = vmatmul.bf16.gmra.mxu0 %v1689
      %v2462 = vpop.f32.mrf.mxu0
      %v2463 = vadd.f32 0.0, %v2462
      %v2464 = vpop.f32.mrf.mxu0
      %v2465 = vadd.f32 0.0, %v2464
      %2466 = vmatmul.bf16.gmra.mxu0 %v1691
      %v2467 = vpop.f32.mrf.mxu0
      %v2468 = vadd.f32 0.0, %v2467
      %v2469 = vpop.f32.mrf.mxu0
      %v2470 = vadd.f32 0.0, %v2469
      %2471 = vmatmul.bf16.gmra.mxu0 %v1693
      %v2472 = vpop.f32.mrf.mxu0
      %v2473 = vadd.f32 0.0, %v2472
      %v2474 = vpop.f32.mrf.mxu0
      %v2475 = vadd.f32 0.0, %v2474
      %2476 = vmatmul.bf16.gmra.mxu0 %v1695
      %v2477 = vpop.f32.mrf.mxu0
      %v2478 = vadd.f32 0.0, %v2477
      %v2479 = vpop.f32.mrf.mxu0
      %v2480 = vadd.f32 0.0, %v2479
      %2481 = vmatmul.bf16.gmra.mxu0 %v1697
      %v2482 = vpop.f32.mrf.mxu0
      %v2483 = vadd.f32 0.0, %v2482
      %v2484 = vpop.f32.mrf.mxu0
      %v2485 = vadd.f32 0.0, %v2484
      %2486 = vmatmul.bf16.gmra.mxu0 %v1699
      %v2487 = vpop.f32.mrf.mxu0
      %v2488 = vadd.f32 0.0, %v2487
      %v2489 = vpop.f32.mrf.mxu0
      %v2490 = vadd.f32 0.0, %v2489
      %2491 = vmatmul.bf16.gmra.mxu0 %v1701
      %v2492 = vpop.f32.mrf.mxu0
      %v2493 = vadd.f32 0.0, %v2492
      %v2494 = vpop.f32.mrf.mxu0
      %v2495 = vadd.f32 0.0, %v2494
      %2496 = vmatmul.bf16.gmra.mxu0 %v1703
      %v2497 = vpop.f32.mrf.mxu0
      %v2498 = vadd.f32 0.0, %v2497
      %v2499 = vpop.f32.mrf.mxu0
      %v2500 = vadd.f32 0.0, %v2499
      %2501 = vmatmul.bf16.gmra.mxu0 %v1705
      %v2502 = vpop.f32.mrf.mxu0
      %v2503 = vadd.f32 0.0, %v2502
      %v2504 = vpop.f32.mrf.mxu0
      %v2505 = vadd.f32 0.0, %v2504
      %2506 = vmatmul.bf16.gmra.mxu0 %v1707
      %v2507 = vpop.f32.mrf.mxu0
      %v2508 = vadd.f32 0.0, %v2507
      %v2509 = vpop.f32.mrf.mxu0
      %v2510 = vadd.f32 0.0, %v2509
      %2511 = vmatmul.bf16.gmra.mxu0 %v1709
      %v2512 = vpop.f32.mrf.mxu0
      %v2513 = vadd.f32 0.0, %v2512
      %v2514 = vpop.f32.mrf.mxu0
      %v2515 = vadd.f32 0.0, %v2514
      %2516 = vmatmul.bf16.gmra.mxu0 %v1711
      %v2517 = vpop.f32.mrf.mxu0
      %v2518 = vadd.f32 0.0, %v2517
      %v2519 = vpop.f32.mrf.mxu0
      %v2520 = vadd.f32 0.0, %v2519
      %2521 = vmatmul.bf16.gmra.mxu0 %v1713
      %v2522 = vpop.f32.mrf.mxu0
      %v2523 = vadd.f32 0.0, %v2522
      %v2524 = vpop.f32.mrf.mxu0
      %v2525 = vadd.f32 0.0, %v2524
      %2526 = vmatmul.bf16.gmra.mxu0 %v1715
      %v2527 = vpop.f32.mrf.mxu0
      %v2528 = vadd.f32 0.0, %v2527
      %v2529 = vpop.f32.mrf.mxu0
      %v2530 = vadd.f32 0.0, %v2529
      %2531 = vmatmul.bf16.gmra.mxu0 %v1717
      %v2532 = vpop.f32.mrf.mxu0
      %v2533 = vadd.f32 0.0, %v2532
      %v2534 = vpop.f32.mrf.mxu0
      %v2535 = vadd.f32 0.0, %v2534
      %2536 = vmatmul.bf16.gmra.mxu0 %v1719
      %v2537 = vpop.f32.mrf.mxu0
      %v2538 = vadd.f32 0.0, %v2537
      %v2539 = vpop.f32.mrf.mxu0
      %v2540 = vadd.f32 0.0, %v2539
      %2541 = vmatmul.bf16.gmra.mxu0 %v1721
      %v2542 = vpop.f32.mrf.mxu0
      %v2543 = vadd.f32 0.0, %v2542
      %v2544 = vpop.f32.mrf.mxu0
      %v2545 = vadd.f32 0.0, %v2544
      %2546 = vmatmul.bf16.gmra.mxu0 %v1723
      %v2547 = vpop.f32.mrf.mxu0
      %v2548 = vadd.f32 0.0, %v2547
      %v2549 = vpop.f32.mrf.mxu0
      %v2550 = vadd.f32 0.0, %v2549
      %2551 = vmatmul.bf16.gmra.mxu0 %v1725
      %v2552 = vpop.f32.mrf.mxu0
      %v2553 = vadd.f32 0.0, %v2552
      %v2554 = vpop.f32.mrf.mxu0
      %v2555 = vadd.f32 0.0, %v2554
      %2556 = vmatmul.bf16.gmra.mxu0 %v1727
      %v2557 = vpop.f32.mrf.mxu0
      %v2558 = vadd.f32 0.0, %v2557
      %v2559 = vpop.f32.mrf.mxu0
      %v2560 = vadd.f32 0.0, %v2559
      %2561 = vmatmul.bf16.gmra.mxu0 %v1729
      %v2562 = vpop.f32.mrf.mxu0
      %v2563 = vadd.f32 0.0, %v2562
      %v2564 = vpop.f32.mrf.mxu0
      %v2565 = vadd.f32 0.0, %v2564
      %2566 = vmatmul.bf16.gmra.mxu0 %v1731
      %v2567 = vpop.f32.mrf.mxu0
      %v2568 = vadd.f32 0.0, %v2567
      %v2569 = vpop.f32.mrf.mxu0
      %v2570 = vadd.f32 0.0, %v2569
      %2571 = vmatmul.bf16.gmra.mxu0 %v1733
      %v2572 = vpop.f32.mrf.mxu0
      %v2573 = vadd.f32 0.0, %v2572
      %v2574 = vpop.f32.mrf.mxu0
      %v2575 = vadd.f32 0.0, %v2574
      %2576 = vmatmul.bf16.gmra.mxu0 %v1735
      %v2577 = vpop.f32.mrf.mxu0
      %v2578 = vadd.f32 0.0, %v2577
      %v2579 = vpop.f32.mrf.mxu0
      %v2580 = vadd.f32 0.0, %v2579
      %2581 = vmatmul.bf16.gmra.mxu0 %v1737
      %v2582 = vpop.f32.mrf.mxu0
      %v2583 = vadd.f32 0.0, %v2582
      %v2584 = vpop.f32.mrf.mxu0
      %v2585 = vadd.f32 0.0, %v2584
      %2586 = vmatmul.bf16.gmra.mxu0 %v1739
      %v2587 = vpop.f32.mrf.mxu0
      %v2588 = vadd.f32 0.0, %v2587
      %v2589 = vpop.f32.mrf.mxu0
      %v2590 = vadd.f32 0.0, %v2589
      %2591 = vmatmul.bf16.gmra.mxu0 %v1741
      %v2592 = vpop.f32.mrf.mxu0
      %v2593 = vadd.f32 0.0, %v2592
      %v2594 = vpop.f32.mrf.mxu0
      %v2595 = vadd.f32 0.0, %v2594
      %2596 = vmatmul.bf16.gmra.mxu0 %v1743
      %v2597 = vpop.f32.mrf.mxu0
      %v2598 = vadd.f32 0.0, %v2597
      %v2599 = vpop.f32.mrf.mxu0
      %v2600 = vadd.f32 0.0, %v2599
      %2601 = vmatmul.bf16.gmra.mxu0 %v1745
      %v2602 = vpop.f32.mrf.mxu0
      %v2603 = vadd.f32 0.0, %v2602
      %v2604 = vpop.f32.mrf.mxu0
      %v2605 = vadd.f32 0.0, %v2604
      %2606 = vmatmul.bf16.gmra.mxu0 %v1747
      %v2607 = vpop.f32.mrf.mxu0
      %v2608 = vadd.f32 0.0, %v2607
      %v2609 = vpop.f32.mrf.mxu0
      %v2610 = vadd.f32 0.0, %v2609
      %2611 = vmatmul.bf16.gmra.mxu0 %v1749
      %v2612 = vpop.f32.mrf.mxu0
      %v2613 = vadd.f32 0.0, %v2612
      %v2614 = vpop.f32.mrf.mxu0
      %v2615 = vadd.f32 0.0, %v2614
      %2616 = vmatmul.bf16.gmra.mxu0 %v1751
      %v2617 = vpop.f32.mrf.mxu0
      %v2618 = vadd.f32 0.0, %v2617
      %v2619 = vpop.f32.mrf.mxu0
      %v2620 = vadd.f32 0.0, %v2619
      %2621 = vmatmul.bf16.gmra.mxu0 %v1753
      %v2622 = vpop.f32.mrf.mxu0
      %v2623 = vadd.f32 0.0, %v2622
      %v2624 = vpop.f32.mrf.mxu0
      %v2625 = vadd.f32 0.0, %v2624
      %2626 = vmatmul.bf16.gmra.mxu0 %v1755
      %v2627 = vpop.f32.mrf.mxu0
      %v2628 = vadd.f32 0.0, %v2627
      %v2629 = vpop.f32.mrf.mxu0
      %v2630 = vadd.f32 0.0, %v2629
      %2631 = vmatmul.bf16.gmra.mxu0 %v1757
      %v2632 = vpop.f32.mrf.mxu0
      %v2633 = vadd.f32 0.0, %v2632
      %v2634 = vpop.f32.mrf.mxu0
      %v2635 = vadd.f32 0.0, %v2634
      %2636 = vmatmul.bf16.gmra.mxu0 %v1759
      %v2637 = vpop.f32.mrf.mxu0
      %v2638 = vadd.f32 0.0, %v2637
      %v2639 = vpop.f32.mrf.mxu0
      %v2640 = vadd.f32 0.0, %v2639
      %2641 = vmatmul.bf16.gmra.mxu0 %v1761
      %v2642 = vpop.f32.mrf.mxu0
      %v2643 = vadd.f32 0.0, %v2642
      %v2644 = vpop.f32.mrf.mxu0
      %v2645 = vadd.f32 0.0, %v2644
      %2646 = vmatmul.bf16.gmra.mxu0 %v1763
      %v2647 = vpop.f32.mrf.mxu0
      %v2648 = vadd.f32 0.0, %v2647
      %v2649 = vpop.f32.mrf.mxu0
      %v2650 = vadd.f32 0.0, %v2649
      %2651 = vmatmul.bf16.gmra.mxu0 %v1765
      %v2652 = vpop.f32.mrf.mxu0
      %v2653 = vadd.f32 0.0, %v2652
      %v2654 = vpop.f32.mrf.mxu0
      %v2655 = vadd.f32 0.0, %v2654
      %2656 = vmatmul.bf16.gmra.mxu0 %v1767
      %v2657 = vpop.f32.mrf.mxu0
      %v2658 = vadd.f32 0.0, %v2657
      %v2659 = vpop.f32.mrf.mxu0
      %v2660 = vadd.f32 0.0, %v2659
      %2661 = vmatmul.bf16.gmra.mxu0 %v1769
      %v2662 = vpop.f32.mrf.mxu0
      %v2663 = vadd.f32 0.0, %v2662
      %v2664 = vpop.f32.mrf.mxu0
      %v2665 = vadd.f32 0.0, %v2664
      %2666 = vmatmul.bf16.gmra.mxu0 %v1771
      %v2667 = vpop.f32.mrf.mxu0
      %v2668 = vadd.f32 0.0, %v2667
      %v2669 = vpop.f32.mrf.mxu0
      %v2670 = vadd.f32 0.0, %v2669
      %2671 = vmatmul.bf16.gmra.mxu0 %v1773
      %v2672 = vpop.f32.mrf.mxu0
      %v2673 = vadd.f32 0.0, %v2672
      %v2674 = vpop.f32.mrf.mxu0
      %v2675 = vadd.f32 0.0, %v2674
      %2676 = vmatmul.bf16.gmra.mxu0 %v1775
      %v2677 = vpop.f32.mrf.mxu0
      %v2678 = vadd.f32 0.0, %v2677
      %v2679 = vpop.f32.mrf.mxu0
      %v2680 = vadd.f32 0.0, %v2679
      %2681 = vmatmul.bf16.gmra.mxu0 %v1777
      %v2682 = vpop.f32.mrf.mxu0
      %v2683 = vadd.f32 0.0, %v2682
      %v2684 = vpop.f32.mrf.mxu0
      %v2685 = vadd.f32 0.0, %v2684
      %2686 = vmatmul.bf16.gmra.mxu0 %v1779
      %v2687 = vpop.f32.mrf.mxu0
      %v2688 = vadd.f32 0.0, %v2687
      %v2689 = vpop.f32.mrf.mxu0
      %v2690 = vadd.f32 0.0, %v2689
      %2691 = vmatmul.bf16.gmra.mxu0 %v1781
      %v2692 = vpop.f32.mrf.mxu0
      %v2693 = vadd.f32 0.0, %v2692
      %v2694 = vpop.f32.mrf.mxu0
      %v2695 = vadd.f32 0.0, %v2694
      %2696 = vmatmul.bf16.gmra.mxu0 %v1783
      %v2697 = vpop.f32.mrf.mxu0
      %v2698 = vadd.f32 0.0, %v2697
      %v2699 = vpop.f32.mrf.mxu0
      %v2700 = vadd.f32 0.0, %v2699
      %2701 = vmatmul.bf16.gmra.mxu0 %v1785
      %v2702 = vpop.f32.mrf.mxu0
      %v2703 = vadd.f32 0.0, %v2702
      %v2704 = vpop.f32.mrf.mxu0
      %v2705 = vadd.f32 0.0, %v2704
      %2706 = vmatmul.bf16.gmra.mxu0 %v1787
      %v2707 = vpop.f32.mrf.mxu0
      %v2708 = vadd.f32 0.0, %v2707
      %v2709 = vpop.f32.mrf.mxu0
      %v2710 = vadd.f32 0.0, %v2709
      %2711 = vmatmul.bf16.gmra.mxu0 %v1789
      %v2712 = vpop.f32.mrf.mxu0
      %v2713 = vadd.f32 0.0, %v2712
      %v2714 = vpop.f32.mrf.mxu0
      %v2715 = vadd.f32 0.0, %v2714
      %2716 = vmatmul.bf16.gmra.mxu0 %v1791
      %v2717 = vpop.f32.mrf.mxu0
      %v2718 = vadd.f32 0.0, %v2717
      %v2719 = vpop.f32.mrf.mxu0
      %v2720 = vadd.f32 0.0, %v2719
      %2721 = vmatmul.bf16.gmra.mxu0 %v1793
      %v2722 = vpop.f32.mrf.mxu0
      %v2723 = vadd.f32 0.0, %v2722
      %v2724 = vpop.f32.mrf.mxu0
      %v2725 = vadd.f32 0.0, %v2724
      %2726 = vmatmul.bf16.gmra.mxu0 %v1795
      %v2727 = vpop.f32.mrf.mxu0
      %v2728 = vadd.f32 0.0, %v2727
      %v2729 = vpop.f32.mrf.mxu0
      %v2730 = vadd.f32 0.0, %v2729
      %2731 = vmatmul.bf16.gmra.mxu0 %v1797
      %v2732 = vpop.f32.mrf.mxu0
      %v2733 = vadd.f32 0.0, %v2732
      %v2734 = vpop.f32.mrf.mxu0
      %v2735 = vadd.f32 0.0, %v2734
      %2736 = vmatmul.bf16.gmra.mxu0 %v1799
      %v2737 = vpop.f32.mrf.mxu0
      %v2738 = vadd.f32 0.0, %v2737
      %v2739 = vpop.f32.mrf.mxu0
      %v2740 = vadd.f32 0.0, %v2739
      %2741 = vmatmul.bf16.gmra.mxu0 %v1801
      %v2742 = vpop.f32.mrf.mxu0
      %v2743 = vadd.f32 0.0, %v2742
      %v2744 = vpop.f32.mrf.mxu0
      %v2745 = vadd.f32 0.0, %v2744
      %2746 = vmatmul.bf16.gmra.mxu0 %v1803
      %v2747 = vpop.f32.mrf.mxu0
      %v2748 = vadd.f32 0.0, %v2747
      %v2749 = vpop.f32.mrf.mxu0
      %v2750 = vadd.f32 0.0, %v2749
      %2751 = vmatmul.bf16.gmra.mxu0 %v1805
      %v2752 = vpop.f32.mrf.mxu0
      %v2753 = vadd.f32 0.0, %v2752
      %v2754 = vpop.f32.mrf.mxu0
      %v2755 = vadd.f32 0.0, %v2754
      %2756 = vmatmul.bf16.gmra.mxu0 %v1807
      %v2757 = vpop.f32.mrf.mxu0
      %v2758 = vadd.f32 0.0, %v2757
      %v2759 = vpop.f32.mrf.mxu0
      %v2760 = vadd.f32 0.0, %v2759
      %2761 = vmatmul.bf16.gmra.mxu0 %v1809
      %v2762 = vpop.f32.mrf.mxu0
      %v2763 = vadd.f32 0.0, %v2762
      %v2764 = vpop.f32.mrf.mxu0
      %v2765 = vadd.f32 0.0, %v2764
      %2766 = vmatmul.bf16.gmra.mxu0 %v1811
      %v2767 = vpop.f32.mrf.mxu0
      %v2768 = vadd.f32 0.0, %v2767
      %v2769 = vpop.f32.mrf.mxu0
      %v2770 = vadd.f32 0.0, %v2769
      %2771 = vmatmul.bf16.gmra.mxu0 %v1813
      %v2772 = vpop.f32.mrf.mxu0
      %v2773 = vadd.f32 0.0, %v2772
      %v2774 = vpop.f32.mrf.mxu0
      %v2775 = vadd.f32 0.0, %v2774
      %2776 = vmatmul.bf16.gmra.mxu0 %v1815
      %v2777 = vpop.f32.mrf.mxu0
      %v2778 = vadd.f32 0.0, %v2777
      %v2779 = vpop.f32.mrf.mxu0
      %v2780 = vadd.f32 0.0, %v2779
      %2781 = vmatmul.bf16.gmra.mxu0 %v1817
      %v2782 = vpop.f32.mrf.mxu0
      %v2783 = vadd.f32 0.0, %v2782
      %v2784 = vpop.f32.mrf.mxu0
      %v2785 = vadd.f32 0.0, %v2784
      %2786 = vmatmul.bf16.gmra.mxu0 %v1819
      %v2787 = vpop.f32.mrf.mxu0
      %v2788 = vadd.f32 0.0, %v2787
      %v2789 = vpop.f32.mrf.mxu0
      %v2790 = vadd.f32 0.0, %v2789
      %2791 = vmatmul.bf16.gmra.mxu0 %v1821
      %v2792 = vpop.f32.mrf.mxu0
      %v2793 = vadd.f32 0.0, %v2792
      %v2794 = vpop.f32.mrf.mxu0
      %v2795 = vadd.f32 0.0, %v2794
      %2796 = vmatmul.bf16.gmra.mxu0 %v1823
      %v2797 = vpop.f32.mrf.mxu0
      %v2798 = vadd.f32 0.0, %v2797
      %v2799 = vpop.f32.mrf.mxu0
      %v2800 = vadd.f32 0.0, %v2799
      %2801 = vmatmul.bf16.gmra.mxu0 %v1825
      %v2802 = vpop.f32.mrf.mxu0
      %v2803 = vadd.f32 0.0, %v2802
      %v2804 = vpop.f32.mrf.mxu0
      %v2805 = vadd.f32 0.0, %v2804
      %2806 = vmatmul.bf16.gmra.mxu0 %v1827
      %v2807 = vpop.f32.mrf.mxu0
      %v2808 = vadd.f32 0.0, %v2807
      %v2809 = vpop.f32.mrf.mxu0
      %v2810 = vadd.f32 0.0, %v2809
      %2811 = vmatmul.bf16.gmra.mxu0 %v1829
      %v2812 = vpop.f32.mrf.mxu0
      %v2813 = vadd.f32 0.0, %v2812
      %v2814 = vpop.f32.mrf.mxu0
      %v2815 = vadd.f32 0.0, %v2814
      %2816 = vmatmul.bf16.gmra.mxu0 %v1831
      %v2817 = vpop.f32.mrf.mxu0
      %v2818 = vadd.f32 0.0, %v2817
      %v2819 = vpop.f32.mrf.mxu0
      %v2820 = vadd.f32 0.0, %v2819
      %2821 = vmatmul.bf16.gmra.mxu0 %v1833
      %v2822 = vpop.f32.mrf.mxu0
      %v2823 = vadd.f32 0.0, %v2822
      %v2824 = vpop.f32.mrf.mxu0
      %v2825 = vadd.f32 0.0, %v2824
      %2826 = vmatmul.bf16.gmra.mxu0 %v1835
      %v2827 = vpop.f32.mrf.mxu0
      %v2828 = vadd.f32 0.0, %v2827
      %v2829 = vpop.f32.mrf.mxu0
      %v2830 = vadd.f32 0.0, %v2829
      %2831 = vmatmul.bf16.gmra.mxu0 %v1837
      %v2832 = vpop.f32.mrf.mxu0
      %v2833 = vadd.f32 0.0, %v2832
      %v2834 = vpop.f32.mrf.mxu0
      %v2835 = vadd.f32 0.0, %v2834
      %2836 = vmatmul.bf16.gmra.mxu0 %v1839
      %v2837 = vpop.f32.mrf.mxu0
      %v2838 = vadd.f32 0.0, %v2837
      %v2839 = vpop.f32.mrf.mxu0
      %v2840 = vadd.f32 0.0, %v2839
      %2841 = vdwg.mxu0
      %2842 = vmatpush.bf16.msra.mxu0 %v2176
      %2843 = vmatpush.bf16.msra.mxu0 %v2175
      %2844 = vmatpush.bf16.msra.mxu0 %v2174
      %2845 = vmatpush.bf16.msra.mxu0 %v2173
      %2846 = vmatpush.bf16.msra.mxu0 %v2172
      %2847 = vmatpush.bf16.msra.mxu0 %v2171
      %2848 = vmatpush.bf16.msra.mxu0 %v2170
      %2849 = vmatpush.bf16.msra.mxu0 %v2169
      %2850 = vmatmul.bf16.gmra.mxu0 %v1586
      %v2851 = vpop.f32.mrf.mxu0
      %v2852 = vadd.f32 %v2203, %v2851
      %v2853 = vpop.f32.mrf.mxu0
      %v2854 = vadd.f32 %v2205, %v2853
      %2855 = vmatmul.bf16.gmra.mxu0 %v1588
      %v2856 = vpop.f32.mrf.mxu0
      %v2857 = vadd.f32 %v2208, %v2856
      %v2858 = vpop.f32.mrf.mxu0
      %v2859 = vadd.f32 %v2210, %v2858
      %2860 = vmatmul.bf16.gmra.mxu0 %v1590
      %v2861 = vpop.f32.mrf.mxu0
      %v2862 = vadd.f32 %v2213, %v2861
      %v2863 = vpop.f32.mrf.mxu0
      %v2864 = vadd.f32 %v2215, %v2863
      %2865 = vmatmul.bf16.gmra.mxu0 %v1592
      %v2866 = vpop.f32.mrf.mxu0
      %v2867 = vadd.f32 %v2218, %v2866
      %v2868 = vpop.f32.mrf.mxu0
      %v2869 = vadd.f32 %v2220, %v2868
      %2870 = vmatmul.bf16.gmra.mxu0 %v1594
      %v2871 = vpop.f32.mrf.mxu0
      %v2872 = vadd.f32 %v2223, %v2871
      %v2873 = vpop.f32.mrf.mxu0
      %v2874 = vadd.f32 %v2225, %v2873
      %2875 = vmatmul.bf16.gmra.mxu0 %v1596
      %v2876 = vpop.f32.mrf.mxu0
      %v2877 = vadd.f32 %v2228, %v2876
      %v2878 = vpop.f32.mrf.mxu0
      %v2879 = vadd.f32 %v2230, %v2878
      %2880 = vmatmul.bf16.gmra.mxu0 %v1598
      %v2881 = vpop.f32.mrf.mxu0
      %v2882 = vadd.f32 %v2233, %v2881
      %v2883 = vpop.f32.mrf.mxu0
      %v2884 = vadd.f32 %v2235, %v2883
      %2885 = vmatmul.bf16.gmra.mxu0 %v1600
      %v2886 = vpop.f32.mrf.mxu0
      %v2887 = vadd.f32 %v2238, %v2886
      %v2888 = vpop.f32.mrf.mxu0
      %v2889 = vadd.f32 %v2240, %v2888
      %2890 = vmatmul.bf16.gmra.mxu0 %v1602
      %v2891 = vpop.f32.mrf.mxu0
      %v2892 = vadd.f32 %v2243, %v2891
      %v2893 = vpop.f32.mrf.mxu0
      %v2894 = vadd.f32 %v2245, %v2893
      %2895 = vmatmul.bf16.gmra.mxu0 %v1604
      %v2896 = vpop.f32.mrf.mxu0
      %v2897 = vadd.f32 %v2248, %v2896
      %v2898 = vpop.f32.mrf.mxu0
      %v2899 = vadd.f32 %v2250, %v2898
      %2900 = vmatmul.bf16.gmra.mxu0 %v1606
      %v2901 = vpop.f32.mrf.mxu0
      %v2902 = vadd.f32 %v2253, %v2901
      %v2903 = vpop.f32.mrf.mxu0
      %v2904 = vadd.f32 %v2255, %v2903
      %2905 = vmatmul.bf16.gmra.mxu0 %v1608
      %v2906 = vpop.f32.mrf.mxu0
      %v2907 = vadd.f32 %v2258, %v2906
      %v2908 = vpop.f32.mrf.mxu0
      %v2909 = vadd.f32 %v2260, %v2908
      %2910 = vmatmul.bf16.gmra.mxu0 %v1610
      %v2911 = vpop.f32.mrf.mxu0
      %v2912 = vadd.f32 %v2263, %v2911
      %v2913 = vpop.f32.mrf.mxu0
      %v2914 = vadd.f32 %v2265, %v2913
      %2915 = vmatmul.bf16.gmra.mxu0 %v1612
      %v2916 = vpop.f32.mrf.mxu0
      %v2917 = vadd.f32 %v2268, %v2916
      %v2918 = vpop.f32.mrf.mxu0
      %v2919 = vadd.f32 %v2270, %v2918
      %2920 = vmatmul.bf16.gmra.mxu0 %v1614
      %v2921 = vpop.f32.mrf.mxu0
      %v2922 = vadd.f32 %v2273, %v2921
      %v2923 = vpop.f32.mrf.mxu0
      %v2924 = vadd.f32 %v2275, %v2923
      %2925 = vmatmul.bf16.gmra.mxu0 %v1616
      %v2926 = vpop.f32.mrf.mxu0
      %v2927 = vadd.f32 %v2278, %v2926
      %v2928 = vpop.f32.mrf.mxu0
      %v2929 = vadd.f32 %v2280, %v2928
      %2930 = vmatmul.bf16.gmra.mxu0 %v1618
      %v2931 = vpop.f32.mrf.mxu0
      %v2932 = vadd.f32 %v2283, %v2931
      %v2933 = vpop.f32.mrf.mxu0
      %v2934 = vadd.f32 %v2285, %v2933
      %2935 = vmatmul.bf16.gmra.mxu0 %v1620
      %v2936 = vpop.f32.mrf.mxu0
      %v2937 = vadd.f32 %v2288, %v2936
      %v2938 = vpop.f32.mrf.mxu0
      %v2939 = vadd.f32 %v2290, %v2938
      %2940 = vmatmul.bf16.gmra.mxu0 %v1622
      %v2941 = vpop.f32.mrf.mxu0
      %v2942 = vadd.f32 %v2293, %v2941
      %v2943 = vpop.f32.mrf.mxu0
      %v2944 = vadd.f32 %v2295, %v2943
      %2945 = vmatmul.bf16.gmra.mxu0 %v1624
      %v2946 = vpop.f32.mrf.mxu0
      %v2947 = vadd.f32 %v2298, %v2946
      %v2948 = vpop.f32.mrf.mxu0
      %v2949 = vadd.f32 %v2300, %v2948
      %2950 = vmatmul.bf16.gmra.mxu0 %v1626
      %v2951 = vpop.f32.mrf.mxu0
      %v2952 = vadd.f32 %v2303, %v2951
      %v2953 = vpop.f32.mrf.mxu0
      %v2954 = vadd.f32 %v2305, %v2953
      %2955 = vmatmul.bf16.gmra.mxu0 %v1628
      %v2956 = vpop.f32.mrf.mxu0
      %v2957 = vadd.f32 %v2308, %v2956
      %v2958 = vpop.f32.mrf.mxu0
      %v2959 = vadd.f32 %v2310, %v2958
      %2960 = vmatmul.bf16.gmra.mxu0 %v1630
      %v2961 = vpop.f32.mrf.mxu0
      %v2962 = vadd.f32 %v2313, %v2961
      %v2963 = vpop.f32.mrf.mxu0
      %v2964 = vadd.f32 %v2315, %v2963
      %2965 = vmatmul.bf16.gmra.mxu0 %v1632
      %v2966 = vpop.f32.mrf.mxu0
      %v2967 = vadd.f32 %v2318, %v2966
      %v2968 = vpop.f32.mrf.mxu0
      %v2969 = vadd.f32 %v2320, %v2968
      %2970 = vmatmul.bf16.gmra.mxu0 %v1634
      %v2971 = vpop.f32.mrf.mxu0
      %v2972 = vadd.f32 %v2323, %v2971
      %v2973 = vpop.f32.mrf.mxu0
      %v2974 = vadd.f32 %v2325, %v2973
      %2975 = vmatmul.bf16.gmra.mxu0 %v1636
      %v2976 = vpop.f32.mrf.mxu0
      %v2977 = vadd.f32 %v2328, %v2976
      %v2978 = vpop.f32.mrf.mxu0
      %v2979 = vadd.f32 %v2330, %v2978
      %2980 = vmatmul.bf16.gmra.mxu0 %v1638
      %v2981 = vpop.f32.mrf.mxu0
      %v2982 = vadd.f32 %v2333, %v2981
      %v2983 = vpop.f32.mrf.mxu0
      %v2984 = vadd.f32 %v2335, %v2983
      %2985 = vmatmul.bf16.gmra.mxu0 %v1640
      %v2986 = vpop.f32.mrf.mxu0
      %v2987 = vadd.f32 %v2338, %v2986
      %v2988 = vpop.f32.mrf.mxu0
      %v2989 = vadd.f32 %v2340, %v2988
      %2990 = vmatmul.bf16.gmra.mxu0 %v1642
      %v2991 = vpop.f32.mrf.mxu0
      %v2992 = vadd.f32 %v2343, %v2991
      %v2993 = vpop.f32.mrf.mxu0
      %v2994 = vadd.f32 %v2345, %v2993
      %2995 = vmatmul.bf16.gmra.mxu0 %v1644
      %v2996 = vpop.f32.mrf.mxu0
      %v2997 = vadd.f32 %v2348, %v2996
      %v2998 = vpop.f32.mrf.mxu0
      %v2999 = vadd.f32 %v2350, %v2998
      %3000 = vmatmul.bf16.gmra.mxu0 %v1646
      %v3001 = vpop.f32.mrf.mxu0
      %v3002 = vadd.f32 %v2353, %v3001
      %v3003 = vpop.f32.mrf.mxu0
      %v3004 = vadd.f32 %v2355, %v3003
      %3005 = vmatmul.bf16.gmra.mxu0 %v1648
      %v3006 = vpop.f32.mrf.mxu0
      %v3007 = vadd.f32 %v2358, %v3006
      %v3008 = vpop.f32.mrf.mxu0
      %v3009 = vadd.f32 %v2360, %v3008
      %3010 = vmatmul.bf16.gmra.mxu0 %v1650
      %v3011 = vpop.f32.mrf.mxu0
      %v3012 = vadd.f32 %v2363, %v3011
      %v3013 = vpop.f32.mrf.mxu0
      %v3014 = vadd.f32 %v2365, %v3013
      %3015 = vmatmul.bf16.gmra.mxu0 %v1652
      %v3016 = vpop.f32.mrf.mxu0
      %v3017 = vadd.f32 %v2368, %v3016
      %v3018 = vpop.f32.mrf.mxu0
      %v3019 = vadd.f32 %v2370, %v3018
      %3020 = vmatmul.bf16.gmra.mxu0 %v1654
      %v3021 = vpop.f32.mrf.mxu0
      %v3022 = vadd.f32 %v2373, %v3021
      %v3023 = vpop.f32.mrf.mxu0
      %v3024 = vadd.f32 %v2375, %v3023
      %3025 = vmatmul.bf16.gmra.mxu0 %v1656
      %v3026 = vpop.f32.mrf.mxu0
      %v3027 = vadd.f32 %v2378, %v3026
      %v3028 = vpop.f32.mrf.mxu0
      %v3029 = vadd.f32 %v2380, %v3028
      %3030 = vmatmul.bf16.gmra.mxu0 %v1658
      %v3031 = vpop.f32.mrf.mxu0
      %v3032 = vadd.f32 %v2383, %v3031
      %v3033 = vpop.f32.mrf.mxu0
      %v3034 = vadd.f32 %v2385, %v3033
      %3035 = vmatmul.bf16.gmra.mxu0 %v1660
      %v3036 = vpop.f32.mrf.mxu0
      %v3037 = vadd.f32 %v2388, %v3036
      %v3038 = vpop.f32.mrf.mxu0
      %v3039 = vadd.f32 %v2390, %v3038
      %3040 = vmatmul.bf16.gmra.mxu0 %v1662
      %v3041 = vpop.f32.mrf.mxu0
      %v3042 = vadd.f32 %v2393, %v3041
      %v3043 = vpop.f32.mrf.mxu0
      %v3044 = vadd.f32 %v2395, %v3043
      %3045 = vmatmul.bf16.gmra.mxu0 %v1664
      %v3046 = vpop.f32.mrf.mxu0
      %v3047 = vadd.f32 %v2398, %v3046
      %v3048 = vpop.f32.mrf.mxu0
      %v3049 = vadd.f32 %v2400, %v3048
      %3050 = vmatmul.bf16.gmra.mxu0 %v1666
      %v3051 = vpop.f32.mrf.mxu0
      %v3052 = vadd.f32 %v2403, %v3051
      %v3053 = vpop.f32.mrf.mxu0
      %v3054 = vadd.f32 %v2405, %v3053
      %3055 = vmatmul.bf16.gmra.mxu0 %v1668
      %v3056 = vpop.f32.mrf.mxu0
      %v3057 = vadd.f32 %v2408, %v3056
      %v3058 = vpop.f32.mrf.mxu0
      %v3059 = vadd.f32 %v2410, %v3058
      %3060 = vmatmul.bf16.gmra.mxu0 %v1670
      %v3061 = vpop.f32.mrf.mxu0
      %v3062 = vadd.f32 %v2413, %v3061
      %v3063 = vpop.f32.mrf.mxu0
      %v3064 = vadd.f32 %v2415, %v3063
      %3065 = vmatmul.bf16.gmra.mxu0 %v1672
      %v3066 = vpop.f32.mrf.mxu0
      %v3067 = vadd.f32 %v2418, %v3066
      %v3068 = vpop.f32.mrf.mxu0
      %v3069 = vadd.f32 %v2420, %v3068
      %3070 = vmatmul.bf16.gmra.mxu0 %v1674
      %v3071 = vpop.f32.mrf.mxu0
      %v3072 = vadd.f32 %v2423, %v3071
      %v3073 = vpop.f32.mrf.mxu0
      %v3074 = vadd.f32 %v2425, %v3073
      %3075 = vmatmul.bf16.gmra.mxu0 %v1676
      %v3076 = vpop.f32.mrf.mxu0
      %v3077 = vadd.f32 %v2428, %v3076
      %v3078 = vpop.f32.mrf.mxu0
      %v3079 = vadd.f32 %v2430, %v3078
      %3080 = vmatmul.bf16.gmra.mxu0 %v1678
      %v3081 = vpop.f32.mrf.mxu0
      %v3082 = vadd.f32 %v2433, %v3081
      %v3083 = vpop.f32.mrf.mxu0
      %v3084 = vadd.f32 %v2435, %v3083
      %3085 = vmatmul.bf16.gmra.mxu0 %v1680
      %v3086 = vpop.f32.mrf.mxu0
      %v3087 = vadd.f32 %v2438, %v3086
      %v3088 = vpop.f32.mrf.mxu0
      %v3089 = vadd.f32 %v2440, %v3088
      %3090 = vmatmul.bf16.gmra.mxu0 %v1682
      %v3091 = vpop.f32.mrf.mxu0
      %v3092 = vadd.f32 %v2443, %v3091
      %v3093 = vpop.f32.mrf.mxu0
      %v3094 = vadd.f32 %v2445, %v3093
      %3095 = vmatmul.bf16.gmra.mxu0 %v1684
      %v3096 = vpop.f32.mrf.mxu0
      %v3097 = vadd.f32 %v2448, %v3096
      %v3098 = vpop.f32.mrf.mxu0
      %v3099 = vadd.f32 %v2450, %v3098
      %3100 = vmatmul.bf16.gmra.mxu0 %v1686
      %v3101 = vpop.f32.mrf.mxu0
      %v3102 = vadd.f32 %v2453, %v3101
      %v3103 = vpop.f32.mrf.mxu0
      %v3104 = vadd.f32 %v2455, %v3103
      %3105 = vmatmul.bf16.gmra.mxu0 %v1688
      %v3106 = vpop.f32.mrf.mxu0
      %v3107 = vadd.f32 %v2458, %v3106
      %v3108 = vpop.f32.mrf.mxu0
      %v3109 = vadd.f32 %v2460, %v3108
      %3110 = vmatmul.bf16.gmra.mxu0 %v1690
      %v3111 = vpop.f32.mrf.mxu0
      %v3112 = vadd.f32 %v2463, %v3111
      %v3113 = vpop.f32.mrf.mxu0
      %v3114 = vadd.f32 %v2465, %v3113
      %3115 = vmatmul.bf16.gmra.mxu0 %v1692
      %v3116 = vpop.f32.mrf.mxu0
      %v3117 = vadd.f32 %v2468, %v3116
      %v3118 = vpop.f32.mrf.mxu0
      %v3119 = vadd.f32 %v2470, %v3118
      %3120 = vmatmul.bf16.gmra.mxu0 %v1694
      %v3121 = vpop.f32.mrf.mxu0
      %v3122 = vadd.f32 %v2473, %v3121
      %v3123 = vpop.f32.mrf.mxu0
      %v3124 = vadd.f32 %v2475, %v3123
      %3125 = vmatmul.bf16.gmra.mxu0 %v1696
      %v3126 = vpop.f32.mrf.mxu0
      %v3127 = vadd.f32 %v2478, %v3126
      %v3128 = vpop.f32.mrf.mxu0
      %v3129 = vadd.f32 %v2480, %v3128
      %3130 = vmatmul.bf16.gmra.mxu0 %v1698
      %v3131 = vpop.f32.mrf.mxu0
      %v3132 = vadd.f32 %v2483, %v3131
      %v3133 = vpop.f32.mrf.mxu0
      %v3134 = vadd.f32 %v2485, %v3133
      %3135 = vmatmul.bf16.gmra.mxu0 %v1700
      %v3136 = vpop.f32.mrf.mxu0
      %v3137 = vadd.f32 %v2488, %v3136
      %v3138 = vpop.f32.mrf.mxu0
      %v3139 = vadd.f32 %v2490, %v3138
      %3140 = vmatmul.bf16.gmra.mxu0 %v1702
      %v3141 = vpop.f32.mrf.mxu0
      %v3142 = vadd.f32 %v2493, %v3141
      %v3143 = vpop.f32.mrf.mxu0
      %v3144 = vadd.f32 %v2495, %v3143
      %3145 = vmatmul.bf16.gmra.mxu0 %v1704
      %v3146 = vpop.f32.mrf.mxu0
      %v3147 = vadd.f32 %v2498, %v3146
      %v3148 = vpop.f32.mrf.mxu0
      %v3149 = vadd.f32 %v2500, %v3148
      %3150 = vmatmul.bf16.gmra.mxu0 %v1706
      %v3151 = vpop.f32.mrf.mxu0
      %v3152 = vadd.f32 %v2503, %v3151
      %v3153 = vpop.f32.mrf.mxu0
      %v3154 = vadd.f32 %v2505, %v3153
      %3155 = vmatmul.bf16.gmra.mxu0 %v1708
      %v3156 = vpop.f32.mrf.mxu0
      %v3157 = vadd.f32 %v2508, %v3156
      %v3158 = vpop.f32.mrf.mxu0
      %v3159 = vadd.f32 %v2510, %v3158
      %3160 = vmatmul.bf16.gmra.mxu0 %v1710
      %v3161 = vpop.f32.mrf.mxu0
      %v3162 = vadd.f32 %v2513, %v3161
      %v3163 = vpop.f32.mrf.mxu0
      %v3164 = vadd.f32 %v2515, %v3163
      %3165 = vmatmul.bf16.gmra.mxu0 %v1712
      %v3166 = vpop.f32.mrf.mxu0
      %v3167 = vadd.f32 %v2518, %v3166
      %v3168 = vpop.f32.mrf.mxu0
      %v3169 = vadd.f32 %v2520, %v3168
      %3170 = vmatmul.bf16.gmra.mxu0 %v1714
      %v3171 = vpop.f32.mrf.mxu0
      %v3172 = vadd.f32 %v2523, %v3171
      %v3173 = vpop.f32.mrf.mxu0
      %v3174 = vadd.f32 %v2525, %v3173
      %3175 = vmatmul.bf16.gmra.mxu0 %v1716
      %v3176 = vpop.f32.mrf.mxu0
      %v3177 = vadd.f32 %v2528, %v3176
      %v3178 = vpop.f32.mrf.mxu0
      %v3179 = vadd.f32 %v2530, %v3178
      %3180 = vmatmul.bf16.gmra.mxu0 %v1718
      %v3181 = vpop.f32.mrf.mxu0
      %v3182 = vadd.f32 %v2533, %v3181
      %v3183 = vpop.f32.mrf.mxu0
      %v3184 = vadd.f32 %v2535, %v3183
      %3185 = vmatmul.bf16.gmra.mxu0 %v1720
      %v3186 = vpop.f32.mrf.mxu0
      %v3187 = vadd.f32 %v2538, %v3186
      %v3188 = vpop.f32.mrf.mxu0
      %v3189 = vadd.f32 %v2540, %v3188
      %3190 = vmatmul.bf16.gmra.mxu0 %v1722
      %v3191 = vpop.f32.mrf.mxu0
      %v3192 = vadd.f32 %v2543, %v3191
      %v3193 = vpop.f32.mrf.mxu0
      %v3194 = vadd.f32 %v2545, %v3193
      %3195 = vmatmul.bf16.gmra.mxu0 %v1724
      %v3196 = vpop.f32.mrf.mxu0
      %v3197 = vadd.f32 %v2548, %v3196
      %v3198 = vpop.f32.mrf.mxu0
      %v3199 = vadd.f32 %v2550, %v3198
      %3200 = vmatmul.bf16.gmra.mxu0 %v1726
      %v3201 = vpop.f32.mrf.mxu0
      %v3202 = vadd.f32 %v2553, %v3201
      %v3203 = vpop.f32.mrf.mxu0
      %v3204 = vadd.f32 %v2555, %v3203
      %3205 = vmatmul.bf16.gmra.mxu0 %v1728
      %v3206 = vpop.f32.mrf.mxu0
      %v3207 = vadd.f32 %v2558, %v3206
      %v3208 = vpop.f32.mrf.mxu0
      %v3209 = vadd.f32 %v2560, %v3208
      %3210 = vmatmul.bf16.gmra.mxu0 %v1730
      %v3211 = vpop.f32.mrf.mxu0
      %v3212 = vadd.f32 %v2563, %v3211
      %v3213 = vpop.f32.mrf.mxu0
      %v3214 = vadd.f32 %v2565, %v3213
      %3215 = vmatmul.bf16.gmra.mxu0 %v1732
      %v3216 = vpop.f32.mrf.mxu0
      %v3217 = vadd.f32 %v2568, %v3216
      %v3218 = vpop.f32.mrf.mxu0
      %v3219 = vadd.f32 %v2570, %v3218
      %3220 = vmatmul.bf16.gmra.mxu0 %v1734
      %v3221 = vpop.f32.mrf.mxu0
      %v3222 = vadd.f32 %v2573, %v3221
      %v3223 = vpop.f32.mrf.mxu0
      %v3224 = vadd.f32 %v2575, %v3223
      %3225 = vmatmul.bf16.gmra.mxu0 %v1736
      %v3226 = vpop.f32.mrf.mxu0
      %v3227 = vadd.f32 %v2578, %v3226
      %v3228 = vpop.f32.mrf.mxu0
      %v3229 = vadd.f32 %v2580, %v3228
      %3230 = vmatmul.bf16.gmra.mxu0 %v1738
      %v3231 = vpop.f32.mrf.mxu0
      %v3232 = vadd.f32 %v2583, %v3231
      %v3233 = vpop.f32.mrf.mxu0
      %v3234 = vadd.f32 %v2585, %v3233
      %3235 = vmatmul.bf16.gmra.mxu0 %v1740
      %v3236 = vpop.f32.mrf.mxu0
      %v3237 = vadd.f32 %v2588, %v3236
      %v3238 = vpop.f32.mrf.mxu0
      %v3239 = vadd.f32 %v2590, %v3238
      %3240 = vmatmul.bf16.gmra.mxu0 %v1742
      %v3241 = vpop.f32.mrf.mxu0
      %v3242 = vadd.f32 %v2593, %v3241
      %v3243 = vpop.f32.mrf.mxu0
      %v3244 = vadd.f32 %v2595, %v3243
      %3245 = vmatmul.bf16.gmra.mxu0 %v1744
      %v3246 = vpop.f32.mrf.mxu0
      %v3247 = vadd.f32 %v2598, %v3246
      %v3248 = vpop.f32.mrf.mxu0
      %v3249 = vadd.f32 %v2600, %v3248
      %3250 = vmatmul.bf16.gmra.mxu0 %v1746
      %v3251 = vpop.f32.mrf.mxu0
      %v3252 = vadd.f32 %v2603, %v3251
      %v3253 = vpop.f32.mrf.mxu0
      %v3254 = vadd.f32 %v2605, %v3253
      %3255 = vmatmul.bf16.gmra.mxu0 %v1748
      %v3256 = vpop.f32.mrf.mxu0
      %v3257 = vadd.f32 %v2608, %v3256
      %v3258 = vpop.f32.mrf.mxu0
      %v3259 = vadd.f32 %v2610, %v3258
      %3260 = vmatmul.bf16.gmra.mxu0 %v1750
      %v3261 = vpop.f32.mrf.mxu0
      %v3262 = vadd.f32 %v2613, %v3261
      %v3263 = vpop.f32.mrf.mxu0
      %v3264 = vadd.f32 %v2615, %v3263
      %3265 = vmatmul.bf16.gmra.mxu0 %v1752
      %v3266 = vpop.f32.mrf.mxu0
      %v3267 = vadd.f32 %v2618, %v3266
      %v3268 = vpop.f32.mrf.mxu0
      %v3269 = vadd.f32 %v2620, %v3268
      %3270 = vmatmul.bf16.gmra.mxu0 %v1754
      %v3271 = vpop.f32.mrf.mxu0
      %v3272 = vadd.f32 %v2623, %v3271
      %v3273 = vpop.f32.mrf.mxu0
      %v3274 = vadd.f32 %v2625, %v3273
      %3275 = vmatmul.bf16.gmra.mxu0 %v1756
      %v3276 = vpop.f32.mrf.mxu0
      %v3277 = vadd.f32 %v2628, %v3276
      %v3278 = vpop.f32.mrf.mxu0
      %v3279 = vadd.f32 %v2630, %v3278
      %3280 = vmatmul.bf16.gmra.mxu0 %v1758
      %v3281 = vpop.f32.mrf.mxu0
      %v3282 = vadd.f32 %v2633, %v3281
      %v3283 = vpop.f32.mrf.mxu0
      %v3284 = vadd.f32 %v2635, %v3283
      %3285 = vmatmul.bf16.gmra.mxu0 %v1760
      %v3286 = vpop.f32.mrf.mxu0
      %v3287 = vadd.f32 %v2638, %v3286
      %v3288 = vpop.f32.mrf.mxu0
      %v3289 = vadd.f32 %v2640, %v3288
      %3290 = vmatmul.bf16.gmra.mxu0 %v1762
      %v3291 = vpop.f32.mrf.mxu0
      %v3292 = vadd.f32 %v2643, %v3291
      %v3293 = vpop.f32.mrf.mxu0
      %v3294 = vadd.f32 %v2645, %v3293
      %3295 = vmatmul.bf16.gmra.mxu0 %v1764
      %v3296 = vpop.f32.mrf.mxu0
      %v3297 = vadd.f32 %v2648, %v3296
      %v3298 = vpop.f32.mrf.mxu0
      %v3299 = vadd.f32 %v2650, %v3298
      %3300 = vmatmul.bf16.gmra.mxu0 %v1766
      %v3301 = vpop.f32.mrf.mxu0
      %v3302 = vadd.f32 %v2653, %v3301
      %v3303 = vpop.f32.mrf.mxu0
      %v3304 = vadd.f32 %v2655, %v3303
      %3305 = vmatmul.bf16.gmra.mxu0 %v1768
      %v3306 = vpop.f32.mrf.mxu0
      %v3307 = vadd.f32 %v2658, %v3306
      %v3308 = vpop.f32.mrf.mxu0
      %v3309 = vadd.f32 %v2660, %v3308
      %3310 = vmatmul.bf16.gmra.mxu0 %v1770
      %v3311 = vpop.f32.mrf.mxu0
      %v3312 = vadd.f32 %v2663, %v3311
      %v3313 = vpop.f32.mrf.mxu0
      %v3314 = vadd.f32 %v2665, %v3313
      %3315 = vmatmul.bf16.gmra.mxu0 %v1772
      %v3316 = vpop.f32.mrf.mxu0
      %v3317 = vadd.f32 %v2668, %v3316
      %v3318 = vpop.f32.mrf.mxu0
      %v3319 = vadd.f32 %v2670, %v3318
      %3320 = vmatmul.bf16.gmra.mxu0 %v1774
      %v3321 = vpop.f32.mrf.mxu0
      %v3322 = vadd.f32 %v2673, %v3321
      %v3323 = vpop.f32.mrf.mxu0
      %v3324 = vadd.f32 %v2675, %v3323
      %3325 = vmatmul.bf16.gmra.mxu0 %v1776
      %v3326 = vpop.f32.mrf.mxu0
      %v3327 = vadd.f32 %v2678, %v3326
      %v3328 = vpop.f32.mrf.mxu0
      %v3329 = vadd.f32 %v2680, %v3328
      %3330 = vmatmul.bf16.gmra.mxu0 %v1778
      %v3331 = vpop.f32.mrf.mxu0
      %v3332 = vadd.f32 %v2683, %v3331
      %v3333 = vpop.f32.mrf.mxu0
      %v3334 = vadd.f32 %v2685, %v3333
      %3335 = vmatmul.bf16.gmra.mxu0 %v1780
      %v3336 = vpop.f32.mrf.mxu0
      %v3337 = vadd.f32 %v2688, %v3336
      %v3338 = vpop.f32.mrf.mxu0
      %v3339 = vadd.f32 %v2690, %v3338
      %3340 = vmatmul.bf16.gmra.mxu0 %v1782
      %v3341 = vpop.f32.mrf.mxu0
      %v3342 = vadd.f32 %v2693, %v3341
      %v3343 = vpop.f32.mrf.mxu0
      %v3344 = vadd.f32 %v2695, %v3343
      %3345 = vmatmul.bf16.gmra.mxu0 %v1784
      %v3346 = vpop.f32.mrf.mxu0
      %v3347 = vadd.f32 %v2698, %v3346
      %v3348 = vpop.f32.mrf.mxu0
      %v3349 = vadd.f32 %v2700, %v3348
      %3350 = vmatmul.bf16.gmra.mxu0 %v1786
      %v3351 = vpop.f32.mrf.mxu0
      %v3352 = vadd.f32 %v2703, %v3351
      %v3353 = vpop.f32.mrf.mxu0
      %v3354 = vadd.f32 %v2705, %v3353
      %3355 = vmatmul.bf16.gmra.mxu0 %v1788
      %v3356 = vpop.f32.mrf.mxu0
      %v3357 = vadd.f32 %v2708, %v3356
      %v3358 = vpop.f32.mrf.mxu0
      %v3359 = vadd.f32 %v2710, %v3358
      %3360 = vmatmul.bf16.gmra.mxu0 %v1790
      %v3361 = vpop.f32.mrf.mxu0
      %v3362 = vadd.f32 %v2713, %v3361
      %v3363 = vpop.f32.mrf.mxu0
      %v3364 = vadd.f32 %v2715, %v3363
      %3365 = vmatmul.bf16.gmra.mxu0 %v1792
      %v3366 = vpop.f32.mrf.mxu0
      %v3367 = vadd.f32 %v2718, %v3366
      %v3368 = vpop.f32.mrf.mxu0
      %v3369 = vadd.f32 %v2720, %v3368
      %3370 = vmatmul.bf16.gmra.mxu0 %v1794
      %v3371 = vpop.f32.mrf.mxu0
      %v3372 = vadd.f32 %v2723, %v3371
      %v3373 = vpop.f32.mrf.mxu0
      %v3374 = vadd.f32 %v2725, %v3373
      %3375 = vmatmul.bf16.gmra.mxu0 %v1796
      %v3376 = vpop.f32.mrf.mxu0
      %v3377 = vadd.f32 %v2728, %v3376
      %v3378 = vpop.f32.mrf.mxu0
      %v3379 = vadd.f32 %v2730, %v3378
      %3380 = vmatmul.bf16.gmra.mxu0 %v1798
      %v3381 = vpop.f32.mrf.mxu0
      %v3382 = vadd.f32 %v2733, %v3381
      %v3383 = vpop.f32.mrf.mxu0
      %v3384 = vadd.f32 %v2735, %v3383
      %3385 = vmatmul.bf16.gmra.mxu0 %v1800
      %v3386 = vpop.f32.mrf.mxu0
      %v3387 = vadd.f32 %v2738, %v3386
      %v3388 = vpop.f32.mrf.mxu0
      %v3389 = vadd.f32 %v2740, %v3388
      %3390 = vmatmul.bf16.gmra.mxu0 %v1802
      %v3391 = vpop.f32.mrf.mxu0
      %v3392 = vadd.f32 %v2743, %v3391
      %v3393 = vpop.f32.mrf.mxu0
      %v3394 = vadd.f32 %v2745, %v3393
      %3395 = vmatmul.bf16.gmra.mxu0 %v1804
      %v3396 = vpop.f32.mrf.mxu0
      %v3397 = vadd.f32 %v2748, %v3396
      %v3398 = vpop.f32.mrf.mxu0
      %v3399 = vadd.f32 %v2750, %v3398
      %3400 = vmatmul.bf16.gmra.mxu0 %v1806
      %v3401 = vpop.f32.mrf.mxu0
      %v3402 = vadd.f32 %v2753, %v3401
      %v3403 = vpop.f32.mrf.mxu0
      %v3404 = vadd.f32 %v2755, %v3403
      %3405 = vmatmul.bf16.gmra.mxu0 %v1808
      %v3406 = vpop.f32.mrf.mxu0
      %v3407 = vadd.f32 %v2758, %v3406
      %v3408 = vpop.f32.mrf.mxu0
      %v3409 = vadd.f32 %v2760, %v3408
      %3410 = vmatmul.bf16.gmra.mxu0 %v1810
      %v3411 = vpop.f32.mrf.mxu0
      %v3412 = vadd.f32 %v2763, %v3411
      %v3413 = vpop.f32.mrf.mxu0
      %v3414 = vadd.f32 %v2765, %v3413
      %3415 = vmatmul.bf16.gmra.mxu0 %v1812
      %v3416 = vpop.f32.mrf.mxu0
      %v3417 = vadd.f32 %v2768, %v3416
      %v3418 = vpop.f32.mrf.mxu0
      %v3419 = vadd.f32 %v2770, %v3418
      %3420 = vmatmul.bf16.gmra.mxu0 %v1814
      %v3421 = vpop.f32.mrf.mxu0
      %v3422 = vadd.f32 %v2773, %v3421
      %v3423 = vpop.f32.mrf.mxu0
      %v3424 = vadd.f32 %v2775, %v3423
      %3425 = vmatmul.bf16.gmra.mxu0 %v1816
      %v3426 = vpop.f32.mrf.mxu0
      %v3427 = vadd.f32 %v2778, %v3426
      %v3428 = vpop.f32.mrf.mxu0
      %v3429 = vadd.f32 %v2780, %v3428
      %3430 = vmatmul.bf16.gmra.mxu0 %v1818
      %v3431 = vpop.f32.mrf.mxu0
      %v3432 = vadd.f32 %v2783, %v3431
      %v3433 = vpop.f32.mrf.mxu0
      %v3434 = vadd.f32 %v2785, %v3433
      %3435 = vmatmul.bf16.gmra.mxu0 %v1820
      %v3436 = vpop.f32.mrf.mxu0
      %v3437 = vadd.f32 %v2788, %v3436
      %v3438 = vpop.f32.mrf.mxu0
      %v3439 = vadd.f32 %v2790, %v3438
      %3440 = vmatmul.bf16.gmra.mxu0 %v1822
      %v3441 = vpop.f32.mrf.mxu0
      %v3442 = vadd.f32 %v2793, %v3441
      %v3443 = vpop.f32.mrf.mxu0
      %v3444 = vadd.f32 %v2795, %v3443
      %3445 = vmatmul.bf16.gmra.mxu0 %v1824
      %v3446 = vpop.f32.mrf.mxu0
      %v3447 = vadd.f32 %v2798, %v3446
      %v3448 = vpop.f32.mrf.mxu0
      %v3449 = vadd.f32 %v2800, %v3448
      %3450 = vmatmul.bf16.gmra.mxu0 %v1826
      %v3451 = vpop.f32.mrf.mxu0
      %v3452 = vadd.f32 %v2803, %v3451
      %v3453 = vpop.f32.mrf.mxu0
      %v3454 = vadd.f32 %v2805, %v3453
      %3455 = vmatmul.bf16.gmra.mxu0 %v1828
      %v3456 = vpop.f32.mrf.mxu0
      %v3457 = vadd.f32 %v2808, %v3456
      %v3458 = vpop.f32.mrf.mxu0
      %v3459 = vadd.f32 %v2810, %v3458
      %3460 = vmatmul.bf16.gmra.mxu0 %v1830
      %v3461 = vpop.f32.mrf.mxu0
      %v3462 = vadd.f32 %v2813, %v3461
      %v3463 = vpop.f32.mrf.mxu0
      %v3464 = vadd.f32 %v2815, %v3463
      %3465 = vmatmul.bf16.gmra.mxu0 %v1832
      %v3466 = vpop.f32.mrf.mxu0
      %v3467 = vadd.f32 %v2818, %v3466
      %v3468 = vpop.f32.mrf.mxu0
      %v3469 = vadd.f32 %v2820, %v3468
      %3470 = vmatmul.bf16.gmra.mxu0 %v1834
      %v3471 = vpop.f32.mrf.mxu0
      %v3472 = vadd.f32 %v2823, %v3471
      %v3473 = vpop.f32.mrf.mxu0
      %v3474 = vadd.f32 %v2825, %v3473
      %3475 = vmatmul.bf16.gmra.mxu0 %v1836
      %v3476 = vpop.f32.mrf.mxu0
      %v3477 = vadd.f32 %v2828, %v3476
      %v3478 = vpop.f32.mrf.mxu0
      %v3479 = vadd.f32 %v2830, %v3478
      %3480 = vmatmul.bf16.gmra.mxu0 %v1838
      %v3481 = vpop.f32.mrf.mxu0
      %v3482 = vadd.f32 %v2833, %v3481
      %v3483 = vpop.f32.mrf.mxu0
      %v3484 = vadd.f32 %v2835, %v3483
      %3485 = vmatmul.bf16.gmra.mxu0 %v1840
      %v3486 = vpop.f32.mrf.mxu0
      %v3487 = vadd.f32 %v2838, %v3486
      %v3488 = vpop.f32.mrf.mxu0
      %v3489 = vadd.f32 %v2840, %v3488
      %3490 = vdwg.mxu0
      %v3491 = vlaneseq
      %v3492 = vshrl.u32 %v3491, 7
      %v3493 = vadd.s32 %v3492, 8
      %vm3494 = vcmp.eq.s32.totalorder %v3492, 0
      %vm3495 = vcmp.eq.s32.totalorder %v3493, 0
      %v3496 = vrot.slane %v3012, 7
      %v3497 = vrot.slane %v3017, 7
      %v3498 = vrot.slane %v3022, 7
      %v3499 = vrot.slane %v3027, 7
      %v3500 = vrot.slane %v3032, 7
      %v3501 = vrot.slane %v3037, 7
      %v3502 = vrot.slane %v3042, 7
      %v3503 = vrot.slane %v3047, 7
      %v3504 = vrot.slane %v3052, 7
      %v3505 = vrot.slane %v3057, 7
      %v3506 = vrot.slane %v3062, 7
      %v3507 = vrot.slane %v3067, 7
      %v3508 = vrot.slane %v3072, 7
      %v3509 = vrot.slane %v3077, 7
      %v3510 = vrot.slane %v3082, 7
      %v3511 = vrot.slane %v3087, 7
      %v3512 = vrot.slane %v3092, 7
      %v3513 = vrot.slane %v3097, 7
      %v3514 = vrot.slane %v3102, 7
      %v3515 = vrot.slane %v3107, 7
      %v3516 = vrot.slane %v3112, 7
      %v3517 = vrot.slane %v3117, 7
      %v3518 = vrot.slane %v3122, 7
      %v3519 = vrot.slane %v3127, 7
      %v3520 = vrot.slane %v3132, 7
      %v3521 = vrot.slane %v3137, 7
      %v3522 = vrot.slane %v3142, 7
      %v3523 = vrot.slane %v3147, 7
      %v3524 = vrot.slane %v3152, 7
      %v3525 = vrot.slane %v3157, 7
      %v3526 = vrot.slane %v3162, 7
      %v3527 = vrot.slane %v3167, 7
      %v3528 = vrot.slane %v3014, 7
      %v3529 = vrot.slane %v3019, 7
      %v3530 = vrot.slane %v3024, 7
      %v3531 = vrot.slane %v3029, 7
      %v3532 = vrot.slane %v3034, 7
      %v3533 = vrot.slane %v3039, 7
      %v3534 = vrot.slane %v3044, 7
      %v3535 = vrot.slane %v3049, 7
      %v3536 = vrot.slane %v3054, 7
      %v3537 = vrot.slane %v3059, 7
      %v3538 = vrot.slane %v3064, 7
      %v3539 = vrot.slane %v3069, 7
      %v3540 = vrot.slane %v3074, 7
      %v3541 = vrot.slane %v3079, 7
      %v3542 = vrot.slane %v3084, 7
      %v3543 = vrot.slane %v3089, 7
      %v3544 = vrot.slane %v3094, 7
      %v3545 = vrot.slane %v3099, 7
      %v3546 = vrot.slane %v3104, 7
      %v3547 = vrot.slane %v3109, 7
      %v3548 = vrot.slane %v3114, 7
      %v3549 = vrot.slane %v3119, 7
      %v3550 = vrot.slane %v3124, 7
      %v3551 = vrot.slane %v3129, 7
      %v3552 = vrot.slane %v3134, 7
      %v3553 = vrot.slane %v3139, 7
      %v3554 = vrot.slane %v3144, 7
      %v3555 = vrot.slane %v3149, 7
      %v3556 = vrot.slane %v3154, 7
      %v3557 = vrot.slane %v3159, 7
      %v3558 = vrot.slane %v3164, 7
      %v3559 = vrot.slane %v3169, 7
      %vm3560 = vcmp.lt.s32.totalorder %v3492, 1
      %v3561 = vsel %vm3560, %v3496, %v3528
      %v3562 = vsel %vm3560, %v3497, %v3529
      %v3563 = vsel %vm3560, %v3498, %v3530
      %v3564 = vsel %vm3560, %v3499, %v3531
      %v3565 = vsel %vm3560, %v3500, %v3532
      %v3566 = vsel %vm3560, %v3501, %v3533
      %v3567 = vsel %vm3560, %v3502, %v3534
      %v3568 = vsel %vm3560, %v3503, %v3535
      %v3569 = vsel %vm3560, %v3504, %v3536
      %v3570 = vsel %vm3560, %v3505, %v3537
      %v3571 = vsel %vm3560, %v3506, %v3538
      %v3572 = vsel %vm3560, %v3507, %v3539
      %v3573 = vsel %vm3560, %v3508, %v3540
      %v3574 = vsel %vm3560, %v3509, %v3541
      %v3575 = vsel %vm3560, %v3510, %v3542
      %v3576 = vsel %vm3560, %v3511, %v3543
      %v3577 = vsel %vm3560, %v3512, %v3544
      %v3578 = vsel %vm3560, %v3513, %v3545
      %v3579 = vsel %vm3560, %v3514, %v3546
      %v3580 = vsel %vm3560, %v3515, %v3547
      %v3581 = vsel %vm3560, %v3516, %v3548
      %v3582 = vsel %vm3560, %v3517, %v3549
      %v3583 = vsel %vm3560, %v3518, %v3550
      %v3584 = vsel %vm3560, %v3519, %v3551
      %v3585 = vsel %vm3560, %v3520, %v3552
      %v3586 = vsel %vm3560, %v3521, %v3553
      %v3587 = vsel %vm3560, %v3522, %v3554
      %v3588 = vsel %vm3560, %v3523, %v3555
      %v3589 = vsel %vm3560, %v3524, %v3556
      %v3590 = vsel %vm3560, %v3525, %v3557
      %v3591 = vsel %vm3560, %v3526, %v3558
      %v3592 = vsel %vm3560, %v3527, %v3559
      %v3593 = vsel %vm3560, %v3528, %v3496
      %v3594 = vsel %vm3560, %v3529, %v3497
      %v3595 = vsel %vm3560, %v3530, %v3498
      %v3596 = vsel %vm3560, %v3531, %v3499
      %v3597 = vsel %vm3560, %v3532, %v3500
      %v3598 = vsel %vm3560, %v3533, %v3501
      %v3599 = vsel %vm3560, %v3534, %v3502
      %v3600 = vsel %vm3560, %v3535, %v3503
      %v3601 = vsel %vm3560, %v3536, %v3504
      %v3602 = vsel %vm3560, %v3537, %v3505
      %v3603 = vsel %vm3560, %v3538, %v3506
      %v3604 = vsel %vm3560, %v3539, %v3507
      %v3605 = vsel %vm3560, %v3540, %v3508
      %v3606 = vsel %vm3560, %v3541, %v3509
      %v3607 = vsel %vm3560, %v3542, %v3510
      %v3608 = vsel %vm3560, %v3543, %v3511
      %v3609 = vsel %vm3560, %v3544, %v3512
      %v3610 = vsel %vm3560, %v3545, %v3513
      %v3611 = vsel %vm3560, %v3546, %v3514
      %v3612 = vsel %vm3560, %v3547, %v3515
      %v3613 = vsel %vm3560, %v3548, %v3516
      %v3614 = vsel %vm3560, %v3549, %v3517
      %v3615 = vsel %vm3560, %v3550, %v3518
      %v3616 = vsel %vm3560, %v3551, %v3519
      %v3617 = vsel %vm3560, %v3552, %v3520
      %v3618 = vsel %vm3560, %v3553, %v3521
      %v3619 = vsel %vm3560, %v3554, %v3522
      %v3620 = vsel %vm3560, %v3555, %v3523
      %v3621 = vsel %vm3560, %v3556, %v3524
      %v3622 = vsel %vm3560, %v3557, %v3525
      %v3623 = vsel %vm3560, %v3558, %v3526
      %v3624 = vsel %vm3560, %v3559, %v3527
      %v3625 = vsel %vm3494, %v3012, %v3593
      %v3626 = vsel %vm3495, %v3014, %v3561
      %v3627 = vsel %vm3494, %v3017, %v3594
      %v3628 = vsel %vm3495, %v3019, %v3562
      %v3629 = vsel %vm3494, %v3022, %v3595
      %v3630 = vsel %vm3495, %v3024, %v3563
      %v3631 = vsel %vm3494, %v3027, %v3596
      %v3632 = vsel %vm3495, %v3029, %v3564
      %v3633 = vsel %vm3494, %v3032, %v3597
      %v3634 = vsel %vm3495, %v3034, %v3565
      %v3635 = vsel %vm3494, %v3037, %v3598
      %v3636 = vsel %vm3495, %v3039, %v3566
      %v3637 = vsel %vm3494, %v3042, %v3599
      %v3638 = vsel %vm3495, %v3044, %v3567
      %v3639 = vsel %vm3494, %v3047, %v3600
      %v3640 = vsel %vm3495, %v3049, %v3568
      %v3641 = vsel %vm3494, %v3052, %v3601
      %v3642 = vsel %vm3495, %v3054, %v3569
      %v3643 = vsel %vm3494, %v3057, %v3602
      %v3644 = vsel %vm3495, %v3059, %v3570
      %v3645 = vsel %vm3494, %v3062, %v3603
      %v3646 = vsel %vm3495, %v3064, %v3571
      %v3647 = vsel %vm3494, %v3067, %v3604
      %v3648 = vsel %vm3495, %v3069, %v3572
      %v3649 = vsel %vm3494, %v3072, %v3605
      %v3650 = vsel %vm3495, %v3074, %v3573
      %v3651 = vsel %vm3494, %v3077, %v3606
      %v3652 = vsel %vm3495, %v3079, %v3574
      %v3653 = vsel %vm3494, %v3082, %v3607
      %v3654 = vsel %vm3495, %v3084, %v3575
      %v3655 = vsel %vm3494, %v3087, %v3608
      %v3656 = vsel %vm3495, %v3089, %v3576
      %v3657 = vsel %vm3494, %v3092, %v3609
      %v3658 = vsel %vm3495, %v3094, %v3577
      %v3659 = vsel %vm3494, %v3097, %v3610
      %v3660 = vsel %vm3495, %v3099, %v3578
      %v3661 = vsel %vm3494, %v3102, %v3611
      %v3662 = vsel %vm3495, %v3104, %v3579
      %v3663 = vsel %vm3494, %v3107, %v3612
      %v3664 = vsel %vm3495, %v3109, %v3580
      %v3665 = vsel %vm3494, %v3112, %v3613
      %v3666 = vsel %vm3495, %v3114, %v3581
      %v3667 = vsel %vm3494, %v3117, %v3614
      %v3668 = vsel %vm3495, %v3119, %v3582
      %v3669 = vsel %vm3494, %v3122, %v3615
      %v3670 = vsel %vm3495, %v3124, %v3583
      %v3671 = vsel %vm3494, %v3127, %v3616
      %v3672 = vsel %vm3495, %v3129, %v3584
      %v3673 = vsel %vm3494, %v3132, %v3617
      %v3674 = vsel %vm3495, %v3134, %v3585
      %v3675 = vsel %vm3494, %v3137, %v3618
      %v3676 = vsel %vm3495, %v3139, %v3586
      %v3677 = vsel %vm3494, %v3142, %v3619
      %v3678 = vsel %vm3495, %v3144, %v3587
      %v3679 = vsel %vm3494, %v3147, %v3620
      %v3680 = vsel %vm3495, %v3149, %v3588
      %v3681 = vsel %vm3494, %v3152, %v3621
      %v3682 = vsel %vm3495, %v3154, %v3589
      %v3683 = vsel %vm3494, %v3157, %v3622
      %v3684 = vsel %vm3495, %v3159, %v3590
      %v3685 = vsel %vm3494, %v3162, %v3623
      %v3686 = vsel %vm3495, %v3164, %v3591
      %v3687 = vsel %vm3494, %v3167, %v3624
      %v3688 = vsel %vm3495, %v3169, %v3592
      %v3689 = vmax.f32 %v2852, %v3012
      %v3690 = vmax.f32 %v2854, %v3014
      %v3691 = vmax.f32 %v2857, %v3017
      %v3692 = vmax.f32 %v2859, %v3019
      %v3693 = vmax.f32 %v2862, %v3022
      %v3694 = vmax.f32 %v2864, %v3024
      %v3695 = vmax.f32 %v2867, %v3027
      %v3696 = vmax.f32 %v2869, %v3029
      %v3697 = vmax.f32 %v2872, %v3032
      %v3698 = vmax.f32 %v2874, %v3034
      %v3699 = vmax.f32 %v2877, %v3037
      %v3700 = vmax.f32 %v2879, %v3039
      %v3701 = vmax.f32 %v2882, %v3042
      %v3702 = vmax.f32 %v2884, %v3044
      %v3703 = vmax.f32 %v2887, %v3047
      %v3704 = vmax.f32 %v2889, %v3049
      %v3705 = vmax.f32 %v2892, %v3052
      %v3706 = vmax.f32 %v2894, %v3054
      %v3707 = vmax.f32 %v2897, %v3057
      %v3708 = vmax.f32 %v2899, %v3059
      %v3709 = vmax.f32 %v2902, %v3062
      %v3710 = vmax.f32 %v2904, %v3064
      %v3711 = vmax.f32 %v2907, %v3067
      %v3712 = vmax.f32 %v2909, %v3069
      %v3713 = vmax.f32 %v2912, %v3072
      %v3714 = vmax.f32 %v2914, %v3074
      %v3715 = vmax.f32 %v2917, %v3077
      %v3716 = vmax.f32 %v2919, %v3079
      %v3717 = vmax.f32 %v2922, %v3082
      %v3718 = vmax.f32 %v2924, %v3084
      %v3719 = vmax.f32 %v2927, %v3087
      %v3720 = vmax.f32 %v2929, %v3089
      %v3721 = vmax.f32 %v2932, %v3092
      %v3722 = vmax.f32 %v2934, %v3094
      %v3723 = vmax.f32 %v2937, %v3097
      %v3724 = vmax.f32 %v2939, %v3099
      %v3725 = vmax.f32 %v2942, %v3102
      %v3726 = vmax.f32 %v2944, %v3104
      %v3727 = vmax.f32 %v2947, %v3107
      %v3728 = vmax.f32 %v2949, %v3109
      %v3729 = vmax.f32 %v2952, %v3112
      %v3730 = vmax.f32 %v2954, %v3114
      %v3731 = vmax.f32 %v2957, %v3117
      %v3732 = vmax.f32 %v2959, %v3119
      %v3733 = vmax.f32 %v2962, %v3122
      %v3734 = vmax.f32 %v2964, %v3124
      %v3735 = vmax.f32 %v2967, %v3127
      %v3736 = vmax.f32 %v2969, %v3129
      %v3737 = vmax.f32 %v2972, %v3132
      %v3738 = vmax.f32 %v2974, %v3134
      %v3739 = vmax.f32 %v2977, %v3137
      %v3740 = vmax.f32 %v2979, %v3139
      %v3741 = vmax.f32 %v2982, %v3142
      %v3742 = vmax.f32 %v2984, %v3144
      %v3743 = vmax.f32 %v2987, %v3147
      %v3744 = vmax.f32 %v2989, %v3149
      %v3745 = vmax.f32 %v2992, %v3152
      %v3746 = vmax.f32 %v2994, %v3154
      %v3747 = vmax.f32 %v2997, %v3157
      %v3748 = vmax.f32 %v2999, %v3159
      %v3749 = vmax.f32 %v3002, %v3162
      %v3750 = vmax.f32 %v3004, %v3164
      %v3751 = vmax.f32 %v3007, %v3167
      %v3752 = vmax.f32 %v3009, %v3169
      %v3753 = vmax.f32 %v3689, %v3625
      %v3754 = vmax.f32 %v3690, %v3626
      %v3755 = vmax.f32 %v3691, %v3627
      %v3756 = vmax.f32 %v3692, %v3628
      %v3757 = vmax.f32 %v3693, %v3629
      %v3758 = vmax.f32 %v3694, %v3630
      %v3759 = vmax.f32 %v3695, %v3631
      %v3760 = vmax.f32 %v3696, %v3632
      %v3761 = vmax.f32 %v3697, %v3633
      %v3762 = vmax.f32 %v3698, %v3634
      %v3763 = vmax.f32 %v3699, %v3635
      %v3764 = vmax.f32 %v3700, %v3636
      %v3765 = vmax.f32 %v3701, %v3637
      %v3766 = vmax.f32 %v3702, %v3638
      %v3767 = vmax.f32 %v3703, %v3639
      %v3768 = vmax.f32 %v3704, %v3640
      %v3769 = vmax.f32 %v3705, %v3641
      %v3770 = vmax.f32 %v3706, %v3642
      %v3771 = vmax.f32 %v3707, %v3643
      %v3772 = vmax.f32 %v3708, %v3644
      %v3773 = vmax.f32 %v3709, %v3645
      %v3774 = vmax.f32 %v3710, %v3646
      %v3775 = vmax.f32 %v3711, %v3647
      %v3776 = vmax.f32 %v3712, %v3648
      %v3777 = vmax.f32 %v3713, %v3649
      %v3778 = vmax.f32 %v3714, %v3650
      %v3779 = vmax.f32 %v3715, %v3651
      %v3780 = vmax.f32 %v3716, %v3652
      %v3781 = vmax.f32 %v3717, %v3653
      %v3782 = vmax.f32 %v3718, %v3654
      %v3783 = vmax.f32 %v3719, %v3655
      %v3784 = vmax.f32 %v3720, %v3656
      %v3785 = vmax.f32 %v3721, %v3657
      %v3786 = vmax.f32 %v3722, %v3658
      %v3787 = vmax.f32 %v3723, %v3659
      %v3788 = vmax.f32 %v3724, %v3660
      %v3789 = vmax.f32 %v3725, %v3661
      %v3790 = vmax.f32 %v3726, %v3662
      %v3791 = vmax.f32 %v3727, %v3663
      %v3792 = vmax.f32 %v3728, %v3664
      %v3793 = vmax.f32 %v3729, %v3665
      %v3794 = vmax.f32 %v3730, %v3666
      %v3795 = vmax.f32 %v3731, %v3667
      %v3796 = vmax.f32 %v3732, %v3668
      %v3797 = vmax.f32 %v3733, %v3669
      %v3798 = vmax.f32 %v3734, %v3670
      %v3799 = vmax.f32 %v3735, %v3671
      %v3800 = vmax.f32 %v3736, %v3672
      %v3801 = vmax.f32 %v3737, %v3673
      %v3802 = vmax.f32 %v3738, %v3674
      %v3803 = vmax.f32 %v3739, %v3675
      %v3804 = vmax.f32 %v3740, %v3676
      %v3805 = vmax.f32 %v3741, %v3677
      %v3806 = vmax.f32 %v3742, %v3678
      %v3807 = vmax.f32 %v3743, %v3679
      %v3808 = vmax.f32 %v3744, %v3680
      %v3809 = vmax.f32 %v3745, %v3681
      %v3810 = vmax.f32 %v3746, %v3682
      %v3811 = vmax.f32 %v3747, %v3683
      %v3812 = vmax.f32 %v3748, %v3684
      %v3813 = vmax.f32 %v3749, %v3685
      %v3814 = vmax.f32 %v3750, %v3686
      %v3815 = vmax.f32 %v3751, %v3687
      %v3816 = vmax.f32 %v3752, %v3688
      %v3817 = vmax.f32 %v3753, %v3755
      %v3818 = vmax.f32 %v3754, %v3756
      %v3819 = vmax.f32 %v3757, %v3759
      %v3820 = vmax.f32 %v3758, %v3760
      %v3821 = vmax.f32 %v3761, %v3763
      %v3822 = vmax.f32 %v3762, %v3764
      %v3823 = vmax.f32 %v3765, %v3767
      %v3824 = vmax.f32 %v3766, %v3768
      %v3825 = vmax.f32 %v3769, %v3771
      %v3826 = vmax.f32 %v3770, %v3772
      %v3827 = vmax.f32 %v3773, %v3775
      %v3828 = vmax.f32 %v3774, %v3776
      %v3829 = vmax.f32 %v3777, %v3779
      %v3830 = vmax.f32 %v3778, %v3780
      %v3831 = vmax.f32 %v3781, %v3783
      %v3832 = vmax.f32 %v3782, %v3784
      %v3833 = vmax.f32 %v3785, %v3787
      %v3834 = vmax.f32 %v3786, %v3788
      %v3835 = vmax.f32 %v3789, %v3791
      %v3836 = vmax.f32 %v3790, %v3792
      %v3837 = vmax.f32 %v3793, %v3795
      %v3838 = vmax.f32 %v3794, %v3796
      %v3839 = vmax.f32 %v3797, %v3799
      %v3840 = vmax.f32 %v3798, %v3800
      %v3841 = vmax.f32 %v3801, %v3803
      %v3842 = vmax.f32 %v3802, %v3804
      %v3843 = vmax.f32 %v3805, %v3807
      %v3844 = vmax.f32 %v3806, %v3808
      %v3845 = vmax.f32 %v3809, %v3811
      %v3846 = vmax.f32 %v3810, %v3812
      %v3847 = vmax.f32 %v3813, %v3815
      %v3848 = vmax.f32 %v3814, %v3816
      %v3849 = vmax.f32 %v3817, %v3755
      %v3850 = vmax.f32 %v3818, %v3756
      %v3851 = vmax.f32 %v3819, %v3755
      %v3852 = vmax.f32 %v3820, %v3756
      %v3853 = vmax.f32 %v3821, %v3759
      %v3854 = vmax.f32 %v3822, %v3760
      %v3855 = vmax.f32 %v3823, %v3763
      %v3856 = vmax.f32 %v3824, %v3764
      %v3857 = vmax.f32 %v3825, %v3767
      %v3858 = vmax.f32 %v3826, %v3768
      %v3859 = vmax.f32 %v3827, %v3771
      %v3860 = vmax.f32 %v3828, %v3772
      %v3861 = vmax.f32 %v3829, %v3775
      %v3862 = vmax.f32 %v3830, %v3776
      %v3863 = vmax.f32 %v3831, %v3779
      %v3864 = vmax.f32 %v3832, %v3780
      %v3865 = vmax.f32 %v3833, %v3783
      %v3866 = vmax.f32 %v3834, %v3784
      %v3867 = vmax.f32 %v3835, %v3787
      %v3868 = vmax.f32 %v3836, %v3788
      %v3869 = vmax.f32 %v3837, %v3791
      %v3870 = vmax.f32 %v3838, %v3792
      %v3871 = vmax.f32 %v3839, %v3795
      %v3872 = vmax.f32 %v3840, %v3796
      %v3873 = vmax.f32 %v3841, %v3799
      %v3874 = vmax.f32 %v3842, %v3800
      %v3875 = vmax.f32 %v3843, %v3803
      %v3876 = vmax.f32 %v3844, %v3804
      %v3877 = vmax.f32 %v3845, %v3807
      %v3878 = vmax.f32 %v3846, %v3808
      %v3879 = vmax.f32 %v3847, %v3811
      %v3880 = vmax.f32 %v3848, %v3812
      %v3881 = vrot.slane %v3332, 7
      %v3882 = vrot.slane %v3337, 7
      %v3883 = vrot.slane %v3342, 7
      %v3884 = vrot.slane %v3347, 7
      %v3885 = vrot.slane %v3352, 7
      %v3886 = vrot.slane %v3357, 7
      %v3887 = vrot.slane %v3362, 7
      %v3888 = vrot.slane %v3367, 7
      %v3889 = vrot.slane %v3372, 7
      %v3890 = vrot.slane %v3377, 7
      %v3891 = vrot.slane %v3382, 7
      %v3892 = vrot.slane %v3387, 7
      %v3893 = vrot.slane %v3392, 7
      %v3894 = vrot.slane %v3397, 7
      %v3895 = vrot.slane %v3402, 7
      %v3896 = vrot.slane %v3407, 7
      %v3897 = vrot.slane %v3412, 7
      %v3898 = vrot.slane %v3417, 7
      %v3899 = vrot.slane %v3422, 7
      %v3900 = vrot.slane %v3427, 7
      %v3901 = vrot.slane %v3432, 7
      %v3902 = vrot.slane %v3437, 7
      %v3903 = vrot.slane %v3442, 7
      %v3904 = vrot.slane %v3447, 7
      %v3905 = vrot.slane %v3452, 7
      %v3906 = vrot.slane %v3457, 7
      %v3907 = vrot.slane %v3462, 7
      %v3908 = vrot.slane %v3467, 7
      %v3909 = vrot.slane %v3472, 7
      %v3910 = vrot.slane %v3477, 7
      %v3911 = vrot.slane %v3482, 7
      %v3912 = vrot.slane %v3487, 7
      %v3913 = vrot.slane %v3334, 7
      %v3914 = vrot.slane %v3339, 7
      %v3915 = vrot.slane %v3344, 7
      %v3916 = vrot.slane %v3349, 7
      %v3917 = vrot.slane %v3354, 7
      %v3918 = vrot.slane %v3359, 7
      %v3919 = vrot.slane %v3364, 7
      %v3920 = vrot.slane %v3369, 7
      %v3921 = vrot.slane %v3374, 7
      %v3922 = vrot.slane %v3379, 7
      %v3923 = vrot.slane %v3384, 7
      %v3924 = vrot.slane %v3389, 7
      %v3925 = vrot.slane %v3394, 7
      %v3926 = vrot.slane %v3399, 7
      %v3927 = vrot.slane %v3404, 7
      %v3928 = vrot.slane %v3409, 7
      %v3929 = vrot.slane %v3414, 7
      %v3930 = vrot.slane %v3419, 7
      %v3931 = vrot.slane %v3424, 7
      %v3932 = vrot.slane %v3429, 7
      %v3933 = vrot.slane %v3434, 7
      %v3934 = vrot.slane %v3439, 7
      %v3935 = vrot.slane %v3444, 7
      %v3936 = vrot.slane %v3449, 7
      %v3937 = vrot.slane %v3454, 7
      %v3938 = vrot.slane %v3459, 7
      %v3939 = vrot.slane %v3464, 7
      %v3940 = vrot.slane %v3469, 7
      %v3941 = vrot.slane %v3474, 7
      %v3942 = vrot.slane %v3479, 7
      %v3943 = vrot.slane %v3484, 7
      %v3944 = vrot.slane %v3489, 7
      %v3945 = vsel %vm3560, %v3881, %v3913
      %v3946 = vsel %vm3560, %v3882, %v3914
      %v3947 = vsel %vm3560, %v3883, %v3915
      %v3948 = vsel %vm3560, %v3884, %v3916
      %v3949 = vsel %vm3560, %v3885, %v3917
      %v3950 = vsel %vm3560, %v3886, %v3918
      %v3951 = vsel %vm3560, %v3887, %v3919
      %v3952 = vsel %vm3560, %v3888, %v3920
      %v3953 = vsel %vm3560, %v3889, %v3921
      %v3954 = vsel %vm3560, %v3890, %v3922
      %v3955 = vsel %vm3560, %v3891, %v3923
      %v3956 = vsel %vm3560, %v3892, %v3924
      %v3957 = vsel %vm3560, %v3893, %v3925
      %v3958 = vsel %vm3560, %v3894, %v3926
      %v3959 = vsel %vm3560, %v3895, %v3927
      %v3960 = vsel %vm3560, %v3896, %v3928
      %v3961 = vsel %vm3560, %v3897, %v3929
      %v3962 = vsel %vm3560, %v3898, %v3930
      %v3963 = vsel %vm3560, %v3899, %v3931
      %v3964 = vsel %vm3560, %v3900, %v3932
      %v3965 = vsel %vm3560, %v3901, %v3933
      %v3966 = vsel %vm3560, %v3902, %v3934
      %v3967 = vsel %vm3560, %v3903, %v3935
      %v3968 = vsel %vm3560, %v3904, %v3936
      %v3969 = vsel %vm3560, %v3905, %v3937
      %v3970 = vsel %vm3560, %v3906, %v3938
      %v3971 = vsel %vm3560, %v3907, %v3939
      %v3972 = vsel %vm3560, %v3908, %v3940
      %v3973 = vsel %vm3560, %v3909, %v3941
      %v3974 = vsel %vm3560, %v3910, %v3942
      %v3975 = vsel %vm3560, %v3911, %v3943
      %v3976 = vsel %vm3560, %v3912, %v3944
      %v3977 = vsel %vm3560, %v3913, %v3881
      %v3978 = vsel %vm3560, %v3914, %v3882
      %v3979 = vsel %vm3560, %v3915, %v3883
      %v3980 = vsel %vm3560, %v3916, %v3884
      %v3981 = vsel %vm3560, %v3917, %v3885
      %v3982 = vsel %vm3560, %v3918, %v3886
      %v3983 = vsel %vm3560, %v3919, %v3887
      %v3984 = vsel %vm3560, %v3920, %v3888
      %v3985 = vsel %vm3560, %v3921, %v3889
      %v3986 = vsel %vm3560, %v3922, %v3890
      %v3987 = vsel %vm3560, %v3923, %v3891
      %v3988 = vsel %vm3560, %v3924, %v3892
      %v3989 = vsel %vm3560, %v3925, %v3893
      %v3990 = vsel %vm3560, %v3926, %v3894
      %v3991 = vsel %vm3560, %v3927, %v3895
      %v3992 = vsel %vm3560, %v3928, %v3896
      %v3993 = vsel %vm3560, %v3929, %v3897
      %v3994 = vsel %vm3560, %v3930, %v3898
      %v3995 = vsel %vm3560, %v3931, %v3899
      %v3996 = vsel %vm3560, %v3932, %v3900
      %v3997 = vsel %vm3560, %v3933, %v3901
      %v3998 = vsel %vm3560, %v3934, %v3902
      %v3999 = vsel %vm3560, %v3935, %v3903
      %v4000 = vsel %vm3560, %v3936, %v3904
      %v4001 = vsel %vm3560, %v3937, %v3905
      %v4002 = vsel %vm3560, %v3938, %v3906
      %v4003 = vsel %vm3560, %v3939, %v3907
      %v4004 = vsel %vm3560, %v3940, %v3908
      %v4005 = vsel %vm3560, %v3941, %v3909
      %v4006 = vsel %vm3560, %v3942, %v3910
      %v4007 = vsel %vm3560, %v3943, %v3911
      %v4008 = vsel %vm3560, %v3944, %v3912
      %v4009 = vsel %vm3494, %v3332, %v3977
      %v4010 = vsel %vm3495, %v3334, %v3945
      %v4011 = vsel %vm3494, %v3337, %v3978
      %v4012 = vsel %vm3495, %v3339, %v3946
      %v4013 = vsel %vm3494, %v3342, %v3979
      %v4014 = vsel %vm3495, %v3344, %v3947
      %v4015 = vsel %vm3494, %v3347, %v3980
      %v4016 = vsel %vm3495, %v3349, %v3948
      %v4017 = vsel %vm3494, %v3352, %v3981
      %v4018 = vsel %vm3495, %v3354, %v3949
      %v4019 = vsel %vm3494, %v3357, %v3982
      %v4020 = vsel %vm3495, %v3359, %v3950
      %v4021 = vsel %vm3494, %v3362, %v3983
      %v4022 = vsel %vm3495, %v3364, %v3951
      %v4023 = vsel %vm3494, %v3367, %v3984
      %v4024 = vsel %vm3495, %v3369, %v3952
      %v4025 = vsel %vm3494, %v3372, %v3985
      %v4026 = vsel %vm3495, %v3374, %v3953
      %v4027 = vsel %vm3494, %v3377, %v3986
      %v4028 = vsel %vm3495, %v3379, %v3954
      %v4029 = vsel %vm3494, %v3382, %v3987
      %v4030 = vsel %vm3495, %v3384, %v3955
      %v4031 = vsel %vm3494, %v3387, %v3988
      %v4032 = vsel %vm3495, %v3389, %v3956
      %v4033 = vsel %vm3494, %v3392, %v3989
      %v4034 = vsel %vm3495, %v3394, %v3957
      %v4035 = vsel %vm3494, %v3397, %v3990
      %v4036 = vsel %vm3495, %v3399, %v3958
      %v4037 = vsel %vm3494, %v3402, %v3991
      %v4038 = vsel %vm3495, %v3404, %v3959
      %v4039 = vsel %vm3494, %v3407, %v3992
      %v4040 = vsel %vm3495, %v3409, %v3960
      %v4041 = vsel %vm3494, %v3412, %v3993
      %v4042 = vsel %vm3495, %v3414, %v3961
      %v4043 = vsel %vm3494, %v3417, %v3994
      %v4044 = vsel %vm3495, %v3419, %v3962
      %v4045 = vsel %vm3494, %v3422, %v3995
      %v4046 = vsel %vm3495, %v3424, %v3963
      %v4047 = vsel %vm3494, %v3427, %v3996
      %v4048 = vsel %vm3495, %v3429, %v3964
      %v4049 = vsel %vm3494, %v3432, %v3997
      %v4050 = vsel %vm3495, %v3434, %v3965
      %v4051 = vsel %vm3494, %v3437, %v3998
      %v4052 = vsel %vm3495, %v3439, %v3966
      %v4053 = vsel %vm3494, %v3442, %v3999
      %v4054 = vsel %vm3495, %v3444, %v3967
      %v4055 = vsel %vm3494, %v3447, %v4000
      %v4056 = vsel %vm3495, %v3449, %v3968
      %v4057 = vsel %vm3494, %v3452, %v4001
      %v4058 = vsel %vm3495, %v3454, %v3969
      %v4059 = vsel %vm3494, %v3457, %v4002
      %v4060 = vsel %vm3495, %v3459, %v3970
      %v4061 = vsel %vm3494, %v3462, %v4003
      %v4062 = vsel %vm3495, %v3464, %v3971
      %v4063 = vsel %vm3494, %v3467, %v4004
      %v4064 = vsel %vm3495, %v3469, %v3972
      %v4065 = vsel %vm3494, %v3472, %v4005
      %v4066 = vsel %vm3495, %v3474, %v3973
      %v4067 = vsel %vm3494, %v3477, %v4006
      %v4068 = vsel %vm3495, %v3479, %v3974
      %v4069 = vsel %vm3494, %v3482, %v4007
      %v4070 = vsel %vm3495, %v3484, %v3975
      %v4071 = vsel %vm3494, %v3487, %v4008
      %v4072 = vsel %vm3495, %v3489, %v3976
      %v4073 = vmax.f32 %v3172, %v3332
      %v4074 = vmax.f32 %v3174, %v3334
      %v4075 = vmax.f32 %v3177, %v3337
      %v4076 = vmax.f32 %v3179, %v3339
      %v4077 = vmax.f32 %v3182, %v3342
      %v4078 = vmax.f32 %v3184, %v3344
      %v4079 = vmax.f32 %v3187, %v3347
      %v4080 = vmax.f32 %v3189, %v3349
      %v4081 = vmax.f32 %v3192, %v3352
      %v4082 = vmax.f32 %v3194, %v3354
      %v4083 = vmax.f32 %v3197, %v3357
      %v4084 = vmax.f32 %v3199, %v3359
      %v4085 = vmax.f32 %v3202, %v3362
      %v4086 = vmax.f32 %v3204, %v3364
      %v4087 = vmax.f32 %v3207, %v3367
      %v4088 = vmax.f32 %v3209, %v3369
      %v4089 = vmax.f32 %v3212, %v3372
      %v4090 = vmax.f32 %v3214, %v3374
      %v4091 = vmax.f32 %v3217, %v3377
      %v4092 = vmax.f32 %v3219, %v3379
      %v4093 = vmax.f32 %v3222, %v3382
      %v4094 = vmax.f32 %v3224, %v3384
      %v4095 = vmax.f32 %v3227, %v3387
      %v4096 = vmax.f32 %v3229, %v3389
      %v4097 = vmax.f32 %v3232, %v3392
      %v4098 = vmax.f32 %v3234, %v3394
      %v4099 = vmax.f32 %v3237, %v3397
      %v4100 = vmax.f32 %v3239, %v3399
      %v4101 = vmax.f32 %v3242, %v3402
      %v4102 = vmax.f32 %v3244, %v3404
      %v4103 = vmax.f32 %v3247, %v3407
      %v4104 = vmax.f32 %v3249, %v3409
      %v4105 = vmax.f32 %v3252, %v3412
      %v4106 = vmax.f32 %v3254, %v3414
      %v4107 = vmax.f32 %v3257, %v3417
      %v4108 = vmax.f32 %v3259, %v3419
      %v4109 = vmax.f32 %v3262, %v3422
      %v4110 = vmax.f32 %v3264, %v3424
      %v4111 = vmax.f32 %v3267, %v3427
      %v4112 = vmax.f32 %v3269, %v3429
      %v4113 = vmax.f32 %v3272, %v3432
      %v4114 = vmax.f32 %v3274, %v3434
      %v4115 = vmax.f32 %v3277, %v3437
      %v4116 = vmax.f32 %v3279, %v3439
      %v4117 = vmax.f32 %v3282, %v3442
      %v4118 = vmax.f32 %v3284, %v3444
      %v4119 = vmax.f32 %v3287, %v3447
      %v4120 = vmax.f32 %v3289, %v3449
      %v4121 = vmax.f32 %v3292, %v3452
      %v4122 = vmax.f32 %v3294, %v3454
      %v4123 = vmax.f32 %v3297, %v3457
      %v4124 = vmax.f32 %v3299, %v3459
      %v4125 = vmax.f32 %v3302, %v3462
      %v4126 = vmax.f32 %v3304, %v3464
      %v4127 = vmax.f32 %v3307, %v3467
      %v4128 = vmax.f32 %v3309, %v3469
      %v4129 = vmax.f32 %v3312, %v3472
      %v4130 = vmax.f32 %v3314, %v3474
      %v4131 = vmax.f32 %v3317, %v3477
      %v4132 = vmax.f32 %v3319, %v3479
      %v4133 = vmax.f32 %v3322, %v3482
      %v4134 = vmax.f32 %v3324, %v3484
      %v4135 = vmax.f32 %v3327, %v3487
      %v4136 = vmax.f32 %v3329, %v3489
      %v4137 = vmax.f32 %v4073, %v4009
      %v4138 = vmax.f32 %v4074, %v4010
      %v4139 = vmax.f32 %v4075, %v4011
      %v4140 = vmax.f32 %v4076, %v4012
      %v4141 = vmax.f32 %v4077, %v4013
      %v4142 = vmax.f32 %v4078, %v4014
      %v4143 = vmax.f32 %v4079, %v4015
      %v4144 = vmax.f32 %v4080, %v4016
      %v4145 = vmax.f32 %v4081, %v4017
      %v4146 = vmax.f32 %v4082, %v4018
      %v4147 = vmax.f32 %v4083, %v4019
      %v4148 = vmax.f32 %v4084, %v4020
      %v4149 = vmax.f32 %v4085, %v4021
      %v4150 = vmax.f32 %v4086, %v4022
      %v4151 = vmax.f32 %v4087, %v4023
      %v4152 = vmax.f32 %v4088, %v4024
      %v4153 = vmax.f32 %v4089, %v4025
      %v4154 = vmax.f32 %v4090, %v4026
      %v4155 = vmax.f32 %v4091, %v4027
      %v4156 = vmax.f32 %v4092, %v4028
      %v4157 = vmax.f32 %v4093, %v4029
      %v4158 = vmax.f32 %v4094, %v4030
      %v4159 = vmax.f32 %v4095, %v4031
      %v4160 = vmax.f32 %v4096, %v4032
      %v4161 = vmax.f32 %v4097, %v4033
      %v4162 = vmax.f32 %v4098, %v4034
      %v4163 = vmax.f32 %v4099, %v4035
      %v4164 = vmax.f32 %v4100, %v4036
      %v4165 = vmax.f32 %v4101, %v4037
      %v4166 = vmax.f32 %v4102, %v4038
      %v4167 = vmax.f32 %v4103, %v4039
      %v4168 = vmax.f32 %v4104, %v4040
      %v4169 = vmax.f32 %v4105, %v4041
      %v4170 = vmax.f32 %v4106, %v4042
      %v4171 = vmax.f32 %v4107, %v4043
      %v4172 = vmax.f32 %v4108, %v4044
      %v4173 = vmax.f32 %v4109, %v4045
      %v4174 = vmax.f32 %v4110, %v4046
      %v4175 = vmax.f32 %v4111, %v4047
      %v4176 = vmax.f32 %v4112, %v4048
      %v4177 = vmax.f32 %v4113, %v4049
      %v4178 = vmax.f32 %v4114, %v4050
      %v4179 = vmax.f32 %v4115, %v4051
      %v4180 = vmax.f32 %v4116, %v4052
      %v4181 = vmax.f32 %v4117, %v4053
      %v4182 = vmax.f32 %v4118, %v4054
      %v4183 = vmax.f32 %v4119, %v4055
      %v4184 = vmax.f32 %v4120, %v4056
      %v4185 = vmax.f32 %v4121, %v4057
      %v4186 = vmax.f32 %v4122, %v4058
      %v4187 = vmax.f32 %v4123, %v4059
      %v4188 = vmax.f32 %v4124, %v4060
      %v4189 = vmax.f32 %v4125, %v4061
      %v4190 = vmax.f32 %v4126, %v4062
      %v4191 = vmax.f32 %v4127, %v4063
      %v4192 = vmax.f32 %v4128, %v4064
      %v4193 = vmax.f32 %v4129, %v4065
      %v4194 = vmax.f32 %v4130, %v4066
      %v4195 = vmax.f32 %v4131, %v4067
      %v4196 = vmax.f32 %v4132, %v4068
      %v4197 = vmax.f32 %v4133, %v4069
      %v4198 = vmax.f32 %v4134, %v4070
      %v4199 = vmax.f32 %v4135, %v4071
      %v4200 = vmax.f32 %v4136, %v4072
      %v4201 = vmax.f32 %v4137, %v4139
      %v4202 = vmax.f32 %v4138, %v4140
      %v4203 = vmax.f32 %v4141, %v4143
      %v4204 = vmax.f32 %v4142, %v4144
      %v4205 = vmax.f32 %v4145, %v4147
      %v4206 = vmax.f32 %v4146, %v4148
      %v4207 = vmax.f32 %v4149, %v4151
      %v4208 = vmax.f32 %v4150, %v4152
      %v4209 = vmax.f32 %v4153, %v4155
      %v4210 = vmax.f32 %v4154, %v4156
      %v4211 = vmax.f32 %v4157, %v4159
      %v4212 = vmax.f32 %v4158, %v4160
      %v4213 = vmax.f32 %v4161, %v4163
      %v4214 = vmax.f32 %v4162, %v4164
      %v4215 = vmax.f32 %v4165, %v4167
      %v4216 = vmax.f32 %v4166, %v4168
      %v4217 = vmax.f32 %v4169, %v4171
      %v4218 = vmax.f32 %v4170, %v4172
      %v4219 = vmax.f32 %v4173, %v4175
      %v4220 = vmax.f32 %v4174, %v4176
      %v4221 = vmax.f32 %v4177, %v4179
      %v4222 = vmax.f32 %v4178, %v4180
      %v4223 = vmax.f32 %v4181, %v4183
      %v4224 = vmax.f32 %v4182, %v4184
      %v4225 = vmax.f32 %v4185, %v4187
      %v4226 = vmax.f32 %v4186, %v4188
      %v4227 = vmax.f32 %v4189, %v4191
      %v4228 = vmax.f32 %v4190, %v4192
      %v4229 = vmax.f32 %v4193, %v4195
      %v4230 = vmax.f32 %v4194, %v4196
      %v4231 = vmax.f32 %v4197, %v4199
      %v4232 = vmax.f32 %v4198, %v4200
      %v4233 = vmax.f32 %v4201, %v4139
      %v4234 = vmax.f32 %v4202, %v4140
      %v4235 = vmax.f32 %v4203, %v4139
      %v4236 = vmax.f32 %v4204, %v4140
      %v4237 = vmax.f32 %v4205, %v4143
      %v4238 = vmax.f32 %v4206, %v4144
      %v4239 = vmax.f32 %v4207, %v4147
      %v4240 = vmax.f32 %v4208, %v4148
      %v4241 = vmax.f32 %v4209, %v4151
      %v4242 = vmax.f32 %v4210, %v4152
      %v4243 = vmax.f32 %v4211, %v4155
      %v4244 = vmax.f32 %v4212, %v4156
      %v4245 = vmax.f32 %v4213, %v4159
      %v4246 = vmax.f32 %v4214, %v4160
      %v4247 = vmax.f32 %v4215, %v4163
      %v4248 = vmax.f32 %v4216, %v4164
      %v4249 = vmax.f32 %v4217, %v4167
      %v4250 = vmax.f32 %v4218, %v4168
      %v4251 = vmax.f32 %v4219, %v4171
      %v4252 = vmax.f32 %v4220, %v4172
      %v4253 = vmax.f32 %v4221, %v4175
      %v4254 = vmax.f32 %v4222, %v4176
      %v4255 = vmax.f32 %v4223, %v4179
      %v4256 = vmax.f32 %v4224, %v4180
      %v4257 = vmax.f32 %v4225, %v4183
      %v4258 = vmax.f32 %v4226, %v4184
      %v4259 = vmax.f32 %v4227, %v4187
      %v4260 = vmax.f32 %v4228, %v4188
      %v4261 = vmax.f32 %v4229, %v4191
      %v4262 = vmax.f32 %v4230, %v4192
      %v4263 = vmax.f32 %v4231, %v4195
      %v4264 = vmax.f32 %v4232, %v4196
      %v4265 = vld [vmem:[%s2] sm:$0x1]
      %v4267 = vperm.slane %v4265, 0
      %v4269 = vadd.f32 %v3849, %v4267
      %v4270 = vadd.f32 %v3850, %v4267
      %v4271 = vadd.f32 %v3851, %v4267
      %v4272 = vadd.f32 %v3852, %v4267
      %v4273 = vadd.f32 %v3853, %v4267
      %v4274 = vadd.f32 %v3854, %v4267
      %v4275 = vadd.f32 %v3855, %v4267
      %v4276 = vadd.f32 %v3856, %v4267
      %v4277 = vadd.f32 %v3857, %v4267
      %v4278 = vadd.f32 %v3858, %v4267
      %v4279 = vadd.f32 %v3859, %v4267
      %v4280 = vadd.f32 %v3860, %v4267
      %v4281 = vadd.f32 %v3861, %v4267
      %v4282 = vadd.f32 %v3862, %v4267
      %v4283 = vadd.f32 %v3863, %v4267
      %v4284 = vadd.f32 %v3864, %v4267
      %v4285 = vadd.f32 %v3865, %v4267
      %v4286 = vadd.f32 %v3866, %v4267
      %v4287 = vadd.f32 %v3867, %v4267
      %v4288 = vadd.f32 %v3868, %v4267
      %v4289 = vadd.f32 %v3869, %v4267
      %v4290 = vadd.f32 %v3870, %v4267
      %v4291 = vadd.f32 %v3871, %v4267
      %v4292 = vadd.f32 %v3872, %v4267
      %v4293 = vadd.f32 %v3873, %v4267
      %v4294 = vadd.f32 %v3874, %v4267
      %v4295 = vadd.f32 %v3875, %v4267
      %v4296 = vadd.f32 %v3876, %v4267
      %v4297 = vadd.f32 %v3877, %v4267
      %v4298 = vadd.f32 %v3878, %v4267
      %v4299 = vadd.f32 %v3879, %v4267
      %v4300 = vadd.f32 %v3880, %v4267
      %v4301 = vadd.f32 %v4233, %v4267
      %v4302 = vadd.f32 %v4234, %v4267
      %v4303 = vadd.f32 %v4235, %v4267
      %v4304 = vadd.f32 %v4236, %v4267
      %v4305 = vadd.f32 %v4237, %v4267
      %v4306 = vadd.f32 %v4238, %v4267
      %v4307 = vadd.f32 %v4239, %v4267
      %v4308 = vadd.f32 %v4240, %v4267
      %v4309 = vadd.f32 %v4241, %v4267
      %v4310 = vadd.f32 %v4242, %v4267
      %v4311 = vadd.f32 %v4243, %v4267
      %v4312 = vadd.f32 %v4244, %v4267
      %v4313 = vadd.f32 %v4245, %v4267
      %v4314 = vadd.f32 %v4246, %v4267
      %v4315 = vadd.f32 %v4247, %v4267
      %v4316 = vadd.f32 %v4248, %v4267
      %v4317 = vadd.f32 %v4249, %v4267
      %v4318 = vadd.f32 %v4250, %v4267
      %v4319 = vadd.f32 %v4251, %v4267
      %v4320 = vadd.f32 %v4252, %v4267
      %v4321 = vadd.f32 %v4253, %v4267
      %v4322 = vadd.f32 %v4254, %v4267
      %v4323 = vadd.f32 %v4255, %v4267
      %v4324 = vadd.f32 %v4256, %v4267
      %v4325 = vadd.f32 %v4257, %v4267
      %v4326 = vadd.f32 %v4258, %v4267
      %v4327 = vadd.f32 %v4259, %v4267
      %v4328 = vadd.f32 %v4260, %v4267
      %v4329 = vadd.f32 %v4261, %v4267
      %v4330 = vadd.f32 %v4262, %v4267
      %v4331 = vadd.f32 %v4263, %v4267
      %v4332 = vadd.f32 %v4264, %v4267
      %v4333 = vmax.f32 %v4269, 0.0
      %v4334 = vmax.f32 %v4270, 0.0
      %v4335 = vmax.f32 %v4271, 0.0
      %v4336 = vmax.f32 %v4272, 0.0
      %v4337 = vmax.f32 %v4273, 0.0
      %v4338 = vmax.f32 %v4274, 0.0
      %v4339 = vmax.f32 %v4275, 0.0
      %v4340 = vmax.f32 %v4276, 0.0
      %v4341 = vmax.f32 %v4277, 0.0
      %v4342 = vmax.f32 %v4278, 0.0
      %v4343 = vmax.f32 %v4279, 0.0
      %v4344 = vmax.f32 %v4280, 0.0
      %v4345 = vmax.f32 %v4281, 0.0
      %v4346 = vmax.f32 %v4282, 0.0
      %v4347 = vmax.f32 %v4283, 0.0
      %v4348 = vmax.f32 %v4284, 0.0
      %v4349 = vmax.f32 %v4285, 0.0
      %v4350 = vmax.f32 %v4286, 0.0
      %v4351 = vmax.f32 %v4287, 0.0
      %v4352 = vmax.f32 %v4288, 0.0
      %v4353 = vmax.f32 %v4289, 0.0
      %v4354 = vmax.f32 %v4290, 0.0
      %v4355 = vmax.f32 %v4291, 0.0
      %v4356 = vmax.f32 %v4292, 0.0
      %v4357 = vmax.f32 %v4293, 0.0
      %v4358 = vmax.f32 %v4294, 0.0
      %v4359 = vmax.f32 %v4295, 0.0
      %v4360 = vmax.f32 %v4296, 0.0
      %v4361 = vmax.f32 %v4297, 0.0
      %v4362 = vmax.f32 %v4298, 0.0
      %v4363 = vmax.f32 %v4299, 0.0
      %v4364 = vmax.f32 %v4300, 0.0
      %v4365 = vmax.f32 %v4301, 0.0
      %v4366 = vmax.f32 %v4302, 0.0
      %v4367 = vmax.f32 %v4303, 0.0
      %v4368 = vmax.f32 %v4304, 0.0
      %v4369 = vmax.f32 %v4305, 0.0
      %v4370 = vmax.f32 %v4306, 0.0
      %v4371 = vmax.f32 %v4307, 0.0
      %v4372 = vmax.f32 %v4308, 0.0
      %v4373 = vmax.f32 %v4309, 0.0
      %v4374 = vmax.f32 %v4310, 0.0
      %v4375 = vmax.f32 %v4311, 0.0
      %v4376 = vmax.f32 %v4312, 0.0
      %v4377 = vmax.f32 %v4313, 0.0
      %v4378 = vmax.f32 %v4314, 0.0
      %v4379 = vmax.f32 %v4315, 0.0
      %v4380 = vmax.f32 %v4316, 0.0
      %v4381 = vmax.f32 %v4317, 0.0
      %v4382 = vmax.f32 %v4318, 0.0
      %v4383 = vmax.f32 %v4319, 0.0
      %v4384 = vmax.f32 %v4320, 0.0
      %v4385 = vmax.f32 %v4321, 0.0
      %v4386 = vmax.f32 %v4322, 0.0
      %v4387 = vmax.f32 %v4323, 0.0
      %v4388 = vmax.f32 %v4324, 0.0
      %v4389 = vmax.f32 %v4325, 0.0
      %v4390 = vmax.f32 %v4326, 0.0
      %v4391 = vmax.f32 %v4327, 0.0
      %v4392 = vmax.f32 %v4328, 0.0
      %v4393 = vmax.f32 %v4329, 0.0
      %v4394 = vmax.f32 %v4330, 0.0
      %v4395 = vmax.f32 %v4331, 0.0
      %v4396 = vmax.f32 %v4332, 0.0
      %v4397 = vpack.c.bf16 %v4333, %v4333
      %v4398 = vpack.c.bf16 %v4334, %v4334
      %v4399 = vpack.c.bf16 %v4335, %v4335
      %v4400 = vpack.c.bf16 %v4336, %v4336
      %v4401 = vpack.c.bf16 %v4337, %v4337
      %v4402 = vpack.c.bf16 %v4338, %v4338
      %v4403 = vpack.c.bf16 %v4339, %v4339
      %v4404 = vpack.c.bf16 %v4340, %v4340
      %v4405 = vpack.c.bf16 %v4341, %v4341
      %v4406 = vpack.c.bf16 %v4342, %v4342
      %v4407 = vpack.c.bf16 %v4343, %v4343
      %v4408 = vpack.c.bf16 %v4344, %v4344
      %v4409 = vpack.c.bf16 %v4345, %v4345
      %v4410 = vpack.c.bf16 %v4346, %v4346
      %v4411 = vpack.c.bf16 %v4347, %v4347
      %v4412 = vpack.c.bf16 %v4348, %v4348
      %v4413 = vpack.c.bf16 %v4349, %v4349
      %v4414 = vpack.c.bf16 %v4350, %v4350
      %v4415 = vpack.c.bf16 %v4351, %v4351
      %v4416 = vpack.c.bf16 %v4352, %v4352
      %v4417 = vpack.c.bf16 %v4353, %v4353
      %v4418 = vpack.c.bf16 %v4354, %v4354
      %v4419 = vpack.c.bf16 %v4355, %v4355
      %v4420 = vpack.c.bf16 %v4356, %v4356
      %v4421 = vpack.c.bf16 %v4357, %v4357
      %v4422 = vpack.c.bf16 %v4358, %v4358
      %v4423 = vpack.c.bf16 %v4359, %v4359
      %v4424 = vpack.c.bf16 %v4360, %v4360
      %v4425 = vpack.c.bf16 %v4361, %v4361
      %v4426 = vpack.c.bf16 %v4362, %v4362
      %v4427 = vpack.c.bf16 %v4363, %v4363
      %v4428 = vpack.c.bf16 %v4364, %v4364
      %v4429 = vpack.c.bf16 %v4365, %v4365
      %v4430 = vpack.c.bf16 %v4366, %v4366
      %v4431 = vpack.c.bf16 %v4367, %v4367
      %v4432 = vpack.c.bf16 %v4368, %v4368
      %v4433 = vpack.c.bf16 %v4369, %v4369
      %v4434 = vpack.c.bf16 %v4370, %v4370
      %v4435 = vpack.c.bf16 %v4371, %v4371
      %v4436 = vpack.c.bf16 %v4372, %v4372
      %v4437 = vpack.c.bf16 %v4373, %v4373
      %v4438 = vpack.c.bf16 %v4374, %v4374
      %v4439 = vpack.c.bf16 %v4375, %v4375
      %v4440 = vpack.c.bf16 %v4376, %v4376
      %v4441 = vpack.c.bf16 %v4377, %v4377
      %v4442 = vpack.c.bf16 %v4378, %v4378
      %v4443 = vpack.c.bf16 %v4379, %v4379
      %v4444 = vpack.c.bf16 %v4380, %v4380
      %v4445 = vpack.c.bf16 %v4381, %v4381
      %v4446 = vpack.c.bf16 %v4382, %v4382
      %v4447 = vpack.c.bf16 %v4383, %v4383
      %v4448 = vpack.c.bf16 %v4384, %v4384
      %v4449 = vpack.c.bf16 %v4385, %v4385
      %v4450 = vpack.c.bf16 %v4386, %v4386
      %v4451 = vpack.c.bf16 %v4387, %v4387
      %v4452 = vpack.c.bf16 %v4388, %v4388
      %v4453 = vpack.c.bf16 %v4389, %v4389
      %v4454 = vpack.c.bf16 %v4390, %v4390
      %v4455 = vpack.c.bf16 %v4391, %v4391
      %v4456 = vpack.c.bf16 %v4392, %v4392
      %v4457 = vpack.c.bf16 %v4393, %v4393
      %v4458 = vpack.c.bf16 %v4394, %v4394
      %v4459 = vpack.c.bf16 %v4395, %v4395
      %v4460 = vpack.c.bf16 %v4396, %v4396
      %v4461 = vld [vmem:[%s3] sm:$0xff]
      %v4462 = vld [vmem:[%s3 + $0x8] sm:$0xff]
      %v4463 = vld [vmem:[%s3 + $0x10] sm:$0xff]
      %v4464 = vld [vmem:[%s3 + $0x18] sm:$0xff]
      %v4465 = vld [vmem:[%s3 + $0x20] sm:$0xff]
      %v4466 = vld [vmem:[%s3 + $0x28] sm:$0xff]
      %v4467 = vld [vmem:[%s3 + $0x30] sm:$0xff]
      %v4468 = vld [vmem:[%s3 + $0x38] sm:$0xff]
      %v4469 = vld [vmem:[%s3 + $0x40] sm:$0xff]
      %v4470 = vld [vmem:[%s3 + $0x48] sm:$0xff]
      %v4471 = vld [vmem:[%s3 + $0x50] sm:$0xff]
      %v4472 = vld [vmem:[%s3 + $0x58] sm:$0xff]
      %v4473 = vld [vmem:[%s3 + $0x60] sm:$0xff]
      %v4474 = vld [vmem:[%s3 + $0x68] sm:$0xff]
      %v4475 = vld [vmem:[%s3 + $0x70] sm:$0xff]
      %v4476 = vld [vmem:[%s3 + $0x78] sm:$0xff]
      %v4477 = vld [vmem:[%s3 + $0x80] sm:$0xff]
      %v4478 = vld [vmem:[%s3 + $0x88] sm:$0xff]
      %v4479 = vld [vmem:[%s3 + $0x90] sm:$0xff]
      %v4480 = vld [vmem:[%s3 + $0x98] sm:$0xff]
      %v4481 = vld [vmem:[%s3 + $0xa0] sm:$0xff]
      %v4482 = vld [vmem:[%s3 + $0xa8] sm:$0xff]
      %v4483 = vld [vmem:[%s3 + $0xb0] sm:$0xff]
      %v4484 = vld [vmem:[%s3 + $0xb8] sm:$0xff]
      %v4485 = vld [vmem:[%s3 + $0xc0] sm:$0xff]
      %v4486 = vld [vmem:[%s3 + $0xc8] sm:$0xff]
      %v4487 = vld [vmem:[%s3 + $0xd0] sm:$0xff]
      %v4488 = vld [vmem:[%s3 + $0xd8] sm:$0xff]
      %v4489 = vld [vmem:[%s3 + $0xe0] sm:$0xff]
      %v4490 = vld [vmem:[%s3 + $0xe8] sm:$0xff]
      %v4491 = vld [vmem:[%s3 + $0xf0] sm:$0xff]
      %v4492 = vld [vmem:[%s3 + $0xf8] sm:$0xff]
      %v4493 = vld [vmem:[%s3 + $0x100] sm:$0xff]
      %v4494 = vld [vmem:[%s3 + $0x108] sm:$0xff]
      %v4495 = vld [vmem:[%s3 + $0x110] sm:$0xff]
      %v4496 = vld [vmem:[%s3 + $0x118] sm:$0xff]
      %v4497 = vld [vmem:[%s3 + $0x120] sm:$0xff]
      %v4498 = vld [vmem:[%s3 + $0x128] sm:$0xff]
      %v4499 = vld [vmem:[%s3 + $0x130] sm:$0xff]
      %v4500 = vld [vmem:[%s3 + $0x138] sm:$0xff]
      %v4501 = vld [vmem:[%s3 + $0x140] sm:$0xff]
      %v4502 = vld [vmem:[%s3 + $0x148] sm:$0xff]
      %v4503 = vld [vmem:[%s3 + $0x150] sm:$0xff]
      %v4504 = vld [vmem:[%s3 + $0x158] sm:$0xff]
      %v4505 = vld [vmem:[%s3 + $0x160] sm:$0xff]
      %v4506 = vld [vmem:[%s3 + $0x168] sm:$0xff]
      %v4507 = vld [vmem:[%s3 + $0x170] sm:$0xff]
      %v4508 = vld [vmem:[%s3 + $0x178] sm:$0xff]
      %v4509 = vld [vmem:[%s3 + $0x180] sm:$0xff]
      %v4510 = vld [vmem:[%s3 + $0x188] sm:$0xff]
      %v4511 = vld [vmem:[%s3 + $0x190] sm:$0xff]
      %v4512 = vld [vmem:[%s3 + $0x198] sm:$0xff]
      %v4513 = vld [vmem:[%s3 + $0x1a0] sm:$0xff]
      %v4514 = vld [vmem:[%s3 + $0x1a8] sm:$0xff]
      %v4515 = vld [vmem:[%s3 + $0x1b0] sm:$0xff]
      %v4516 = vld [vmem:[%s3 + $0x1b8] sm:$0xff]
      %v4517 = vld [vmem:[%s3 + $0x1c0] sm:$0xff]
      %v4518 = vld [vmem:[%s3 + $0x1c8] sm:$0xff]
      %v4519 = vld [vmem:[%s3 + $0x1d0] sm:$0xff]
      %v4520 = vld [vmem:[%s3 + $0x1d8] sm:$0xff]
      %v4521 = vld [vmem:[%s3 + $0x1e0] sm:$0xff]
      %v4522 = vld [vmem:[%s3 + $0x1e8] sm:$0xff]
      %v4523 = vld [vmem:[%s3 + $0x1f0] sm:$0xff]
      %v4524 = vld [vmem:[%s3 + $0x1f8] sm:$0xff]
      %v4525 = vld [vmem:[%s3 + $0x200] sm:$0xff]
      %v4526 = vld [vmem:[%s3 + $0x208] sm:$0xff]
      %v4527 = vld [vmem:[%s3 + $0x210] sm:$0xff]
      %v4528 = vld [vmem:[%s3 + $0x218] sm:$0xff]
      %v4529 = vld [vmem:[%s3 + $0x220] sm:$0xff]
      %v4530 = vld [vmem:[%s3 + $0x228] sm:$0xff]
      %v4531 = vld [vmem:[%s3 + $0x230] sm:$0xff]
      %v4532 = vld [vmem:[%s3 + $0x238] sm:$0xff]
      %v4605 = vunpack.c.l.b16 %v4461
      %v4606 = vunpack.c.h.b16 %v4461
      %v4607 = vunpack.c.l.b16 %v4462
      %v4608 = vunpack.c.h.b16 %v4462
      %v4609 = vunpack.c.l.b16 %v4463
      %v4610 = vunpack.c.h.b16 %v4463
      %v4611 = vunpack.c.l.b16 %v4464
      %v4612 = vunpack.c.h.b16 %v4464
      %v4613 = vunpack.c.l.b16 %v4465
      %v4614 = vunpack.c.h.b16 %v4465
      %v4615 = vunpack.c.l.b16 %v4466
      %v4616 = vunpack.c.h.b16 %v4466
      %v4617 = vunpack.c.l.b16 %v4467
      %v4618 = vunpack.c.h.b16 %v4467
      %v4619 = vunpack.c.l.b16 %v4468
      %v4620 = vunpack.c.h.b16 %v4468
      %v4621 = vunpack.c.l.b16 %v4469
      %v4622 = vunpack.c.h.b16 %v4469
      %v4623 = vunpack.c.l.b16 %v4470
      %v4624 = vunpack.c.h.b16 %v4470
      %v4625 = vunpack.c.l.b16 %v4471
      %v4626 = vunpack.c.h.b16 %v4471
      %v4627 = vunpack.c.l.b16 %v4472
      %v4628 = vunpack.c.h.b16 %v4472
      %v4629 = vunpack.c.l.b16 %v4473
      %v4630 = vunpack.c.h.b16 %v4473
      %v4631 = vunpack.c.l.b16 %v4474
      %v4632 = vunpack.c.h.b16 %v4474
      %v4633 = vunpack.c.l.b16 %v4475
      %v4634 = vunpack.c.h.b16 %v4475
      %v4635 = vunpack.c.l.b16 %v4476
      %v4636 = vunpack.c.h.b16 %v4476
      %v4637 = vunpack.c.l.b16 %v4477
      %v4638 = vunpack.c.h.b16 %v4477
      %v4639 = vunpack.c.l.b16 %v4478
      %v4640 = vunpack.c.h.b16 %v4478
      %v4641 = vunpack.c.l.b16 %v4479
      %v4642 = vunpack.c.h.b16 %v4479
      %v4643 = vunpack.c.l.b16 %v4480
      %v4644 = vunpack.c.h.b16 %v4480
      %v4645 = vunpack.c.l.b16 %v4481
      %v4646 = vunpack.c.h.b16 %v4481
      %v4647 = vunpack.c.l.b16 %v4482
      %v4648 = vunpack.c.h.b16 %v4482
      %v4649 = vunpack.c.l.b16 %v4483
      %v4650 = vunpack.c.h.b16 %v4483
      %v4651 = vunpack.c.l.b16 %v4484
      %v4652 = vunpack.c.h.b16 %v4484
      %v4653 = vunpack.c.l.b16 %v4485
      %v4654 = vunpack.c.h.b16 %v4485
      %v4655 = vunpack.c.l.b16 %v4486
      %v4656 = vunpack.c.h.b16 %v4486
      %v4657 = vunpack.c.l.b16 %v4487
      %v4658 = vunpack.c.h.b16 %v4487
      %v4659 = vunpack.c.l.b16 %v4488
      %v4660 = vunpack.c.h.b16 %v4488
      %v4661 = vunpack.c.l.b16 %v4489
      %v4662 = vunpack.c.h.b16 %v4489
      %v4663 = vunpack.c.l.b16 %v4490
      %v4664 = vunpack.c.h.b16 %v4490
      %v4665 = vunpack.c.l.b16 %v4491
      %v4666 = vunpack.c.h.b16 %v4491
      %v4667 = vunpack.c.l.b16 %v4492
      %v4668 = vunpack.c.h.b16 %v4492
      %v4669 = vunpack.c.l.b16 %v4493
      %v4670 = vunpack.c.h.b16 %v4493
      %v4671 = vunpack.c.l.b16 %v4494
      %v4672 = vunpack.c.h.b16 %v4494
      %v4673 = vunpack.c.l.b16 %v4495
      %v4674 = vunpack.c.h.b16 %v4495
      %v4675 = vunpack.c.l.b16 %v4496
      %v4676 = vunpack.c.h.b16 %v4496
      %v4677 = vunpack.c.l.b16 %v4497
      %v4678 = vunpack.c.h.b16 %v4497
      %v4679 = vunpack.c.l.b16 %v4498
      %v4680 = vunpack.c.h.b16 %v4498
      %v4681 = vunpack.c.l.b16 %v4499
      %v4682 = vunpack.c.h.b16 %v4499
      %v4683 = vunpack.c.l.b16 %v4500
      %v4684 = vunpack.c.h.b16 %v4500
      %v4685 = vunpack.c.l.b16 %v4501
      %v4686 = vunpack.c.h.b16 %v4501
      %v4687 = vunpack.c.l.b16 %v4502
      %v4688 = vunpack.c.h.b16 %v4502
      %v4689 = vunpack.c.l.b16 %v4503
      %v4690 = vunpack.c.h.b16 %v4503
      %v4691 = vunpack.c.l.b16 %v4504
      %v4692 = vunpack.c.h.b16 %v4504
      %v4693 = vunpack.c.l.b16 %v4505
      %v4694 = vunpack.c.h.b16 %v4505
      %v4695 = vunpack.c.l.b16 %v4506
      %v4696 = vunpack.c.h.b16 %v4506
      %v4697 = vunpack.c.l.b16 %v4507
      %v4698 = vunpack.c.h.b16 %v4507
      %v4699 = vunpack.c.l.b16 %v4508
      %v4700 = vunpack.c.h.b16 %v4508
      %v4701 = vunpack.c.l.b16 %v4509
      %v4702 = vunpack.c.h.b16 %v4509
      %v4703 = vunpack.c.l.b16 %v4510
      %v4704 = vunpack.c.h.b16 %v4510
      %v4705 = vunpack.c.l.b16 %v4511
      %v4706 = vunpack.c.h.b16 %v4511
      %v4707 = vunpack.c.l.b16 %v4512
      %v4708 = vunpack.c.h.b16 %v4512
      %v4709 = vunpack.c.l.b16 %v4513
      %v4710 = vunpack.c.h.b16 %v4513
      %v4711 = vunpack.c.l.b16 %v4514
      %v4712 = vunpack.c.h.b16 %v4514
      %v4713 = vunpack.c.l.b16 %v4515
      %v4714 = vunpack.c.h.b16 %v4515
      %v4715 = vunpack.c.l.b16 %v4516
      %v4716 = vunpack.c.h.b16 %v4516
      %v4717 = vunpack.c.l.b16 %v4517
      %v4718 = vunpack.c.h.b16 %v4517
      %v4719 = vunpack.c.l.b16 %v4518
      %v4720 = vunpack.c.h.b16 %v4518
      %v4721 = vunpack.c.l.b16 %v4519
      %v4722 = vunpack.c.h.b16 %v4519
      %v4723 = vunpack.c.l.b16 %v4520
      %v4724 = vunpack.c.h.b16 %v4520
      %v4725 = vunpack.c.l.b16 %v4521
      %v4726 = vunpack.c.h.b16 %v4521
      %v4727 = vunpack.c.l.b16 %v4522
      %v4728 = vunpack.c.h.b16 %v4522
      %v4729 = vunpack.c.l.b16 %v4523
      %v4730 = vunpack.c.h.b16 %v4523
      %v4731 = vunpack.c.l.b16 %v4524
      %v4732 = vunpack.c.h.b16 %v4524
      %v4733 = vunpack.c.l.b16 %v4525
      %v4734 = vunpack.c.h.b16 %v4525
      %v4735 = vunpack.c.l.b16 %v4526
      %v4736 = vunpack.c.h.b16 %v4526
      %v4737 = vunpack.c.l.b16 %v4527
      %v4738 = vunpack.c.h.b16 %v4527
      %v4739 = vunpack.c.l.b16 %v4528
      %v4740 = vunpack.c.h.b16 %v4528
      %v4741 = vunpack.c.l.b16 %v4529
      %v4742 = vunpack.c.h.b16 %v4529
      %v4743 = vunpack.c.l.b16 %v4530
      %v4744 = vunpack.c.h.b16 %v4530
      %v4745 = vunpack.c.l.b16 %v4531
      %v4746 = vunpack.c.h.b16 %v4531
      %v4747 = vunpack.c.l.b16 %v4532
      %v4748 = vunpack.c.h.b16 %v4532
      %v4749 = vpack.c.b16 %v4607, %v4605
      %v4750 = vpack.c.b16 %v4608, %v4606
      %v4751 = vpack.c.b16 %v4611, %v4609
      %v4752 = vpack.c.b16 %v4612, %v4610
      %v4753 = vpack.c.b16 %v4615, %v4613
      %v4754 = vpack.c.b16 %v4616, %v4614
      %v4755 = vpack.c.b16 %v4619, %v4617
      %v4756 = vpack.c.b16 %v4620, %v4618
      %v4757 = vpack.c.b16 %v4623, %v4621
      %v4758 = vpack.c.b16 %v4624, %v4622
      %v4759 = vpack.c.b16 %v4627, %v4625
      %v4760 = vpack.c.b16 %v4628, %v4626
      %v4761 = vpack.c.b16 %v4631, %v4629
      %v4762 = vpack.c.b16 %v4632, %v4630
      %v4763 = vpack.c.b16 %v4635, %v4633
      %v4764 = vpack.c.b16 %v4636, %v4634
      %v4765 = vpack.c.b16 %v4639, %v4637
      %v4766 = vpack.c.b16 %v4640, %v4638
      %v4767 = vpack.c.b16 %v4643, %v4641
      %v4768 = vpack.c.b16 %v4644, %v4642
      %v4769 = vpack.c.b16 %v4647, %v4645
      %v4770 = vpack.c.b16 %v4648, %v4646
      %v4771 = vpack.c.b16 %v4651, %v4649
      %v4772 = vpack.c.b16 %v4652, %v4650
      %v4773 = vpack.c.b16 %v4655, %v4653
      %v4774 = vpack.c.b16 %v4656, %v4654
      %v4775 = vpack.c.b16 %v4659, %v4657
      %v4776 = vpack.c.b16 %v4660, %v4658
      %v4777 = vpack.c.b16 %v4663, %v4661
      %v4778 = vpack.c.b16 %v4664, %v4662
      %v4779 = vpack.c.b16 %v4667, %v4665
      %v4780 = vpack.c.b16 %v4668, %v4666
      %v4781 = vpack.c.b16 %v4671, %v4669
      %v4782 = vpack.c.b16 %v4672, %v4670
      %v4783 = vpack.c.b16 %v4675, %v4673
      %v4784 = vpack.c.b16 %v4676, %v4674
      %v4785 = vpack.c.b16 %v4679, %v4677
      %v4786 = vpack.c.b16 %v4680, %v4678
      %v4787 = vpack.c.b16 %v4683, %v4681
      %v4788 = vpack.c.b16 %v4684, %v4682
      %v4789 = vpack.c.b16 %v4687, %v4685
      %v4790 = vpack.c.b16 %v4688, %v4686
      %v4791 = vpack.c.b16 %v4691, %v4689
      %v4792 = vpack.c.b16 %v4692, %v4690
      %v4793 = vpack.c.b16 %v4695, %v4693
      %v4794 = vpack.c.b16 %v4696, %v4694
      %v4795 = vpack.c.b16 %v4699, %v4697
      %v4796 = vpack.c.b16 %v4700, %v4698
      %v4797 = vpack.c.b16 %v4703, %v4701
      %v4798 = vpack.c.b16 %v4704, %v4702
      %v4799 = vpack.c.b16 %v4707, %v4705
      %v4800 = vpack.c.b16 %v4708, %v4706
      %v4801 = vpack.c.b16 %v4711, %v4709
      %v4802 = vpack.c.b16 %v4712, %v4710
      %v4803 = vpack.c.b16 %v4715, %v4713
      %v4804 = vpack.c.b16 %v4716, %v4714
      %v4805 = vpack.c.b16 %v4719, %v4717
      %v4806 = vpack.c.b16 %v4720, %v4718
      %v4807 = vpack.c.b16 %v4723, %v4721
      %v4808 = vpack.c.b16 %v4724, %v4722
      %v4809 = vpack.c.b16 %v4727, %v4725
      %v4810 = vpack.c.b16 %v4728, %v4726
      %v4811 = vpack.c.b16 %v4731, %v4729
      %v4812 = vpack.c.b16 %v4732, %v4730
      %v4813 = vpack.c.b16 %v4735, %v4733
      %v4814 = vpack.c.b16 %v4736, %v4734
      %v4815 = vpack.c.b16 %v4739, %v4737
      %v4816 = vpack.c.b16 %v4740, %v4738
      %v4817 = vpack.c.b16 %v4743, %v4741
      %v4818 = vpack.c.b16 %v4744, %v4742
      %v4819 = vpack.c.b16 %v4747, %v4745
      %v4820 = vpack.c.b16 %v4748, %v4746
      %v4925 = vunpack.c.l.b16 %v4397
      %v4926 = vunpack.c.l.b16 %v4398
      %v4927 = vunpack.c.l.b16 %v4399
      %v4928 = vunpack.c.l.b16 %v4400
      %v4929 = vunpack.c.l.b16 %v4401
      %v4930 = vunpack.c.l.b16 %v4402
      %v4931 = vunpack.c.l.b16 %v4403
      %v4932 = vunpack.c.l.b16 %v4404
      %v4933 = vunpack.c.l.b16 %v4405
      %v4934 = vunpack.c.l.b16 %v4406
      %v4935 = vunpack.c.l.b16 %v4407
      %v4936 = vunpack.c.l.b16 %v4408
      %v4937 = vunpack.c.l.b16 %v4409
      %v4938 = vunpack.c.l.b16 %v4410
      %v4939 = vunpack.c.l.b16 %v4411
      %v4940 = vunpack.c.l.b16 %v4412
      %v4941 = vunpack.c.l.b16 %v4413
      %v4942 = vunpack.c.l.b16 %v4414
      %v4943 = vunpack.c.l.b16 %v4415
      %v4944 = vunpack.c.l.b16 %v4416
      %v4945 = vunpack.c.l.b16 %v4417
      %v4946 = vunpack.c.l.b16 %v4418
      %v4947 = vunpack.c.l.b16 %v4419
      %v4948 = vunpack.c.l.b16 %v4420
      %v4949 = vunpack.c.l.b16 %v4421
      %v4950 = vunpack.c.l.b16 %v4422
      %v4951 = vunpack.c.l.b16 %v4423
      %v4952 = vunpack.c.l.b16 %v4424
      %v4953 = vunpack.c.l.b16 %v4425
      %v4954 = vunpack.c.l.b16 %v4426
      %v4955 = vunpack.c.l.b16 %v4427
      %v4956 = vunpack.c.l.b16 %v4428
      %v4957 = vpack.c.b16 %v4926, %v4925
      %v4958 = vpack.c.b16 %v4928, %v4927
      %v4959 = vpack.c.b16 %v4930, %v4929
      %v4960 = vpack.c.b16 %v4932, %v4931
      %v4961 = vpack.c.b16 %v4934, %v4933
      %v4962 = vpack.c.b16 %v4936, %v4935
      %v4963 = vpack.c.b16 %v4938, %v4937
      %v4964 = vpack.c.b16 %v4940, %v4939
      %v4965 = vpack.c.b16 %v4942, %v4941
      %v4966 = vpack.c.b16 %v4944, %v4943
      %v4967 = vpack.c.b16 %v4946, %v4945
      %v4968 = vpack.c.b16 %v4948, %v4947
      %v4969 = vpack.c.b16 %v4950, %v4949
      %v4970 = vpack.c.b16 %v4952, %v4951
      %v4971 = vpack.c.b16 %v4954, %v4953
      %v4972 = vpack.c.b16 %v4956, %v4955
      %4989 = vmatpush.bf16.msra.mxu0 %v4964
      %4990 = vmatpush.bf16.msra.mxu0 %v4963
      %4991 = vmatpush.bf16.msra.mxu0 %v4962
      %4992 = vmatpush.bf16.msra.mxu0 %v4961
      %4993 = vmatpush.bf16.msra.mxu0 %v4960
      %4994 = vmatpush.bf16.msra.mxu0 %v4959
      %4995 = vmatpush.bf16.msra.mxu0 %v4958
      %4996 = vmatpush.bf16.msra.mxu0 %v4957
      %4997 = vmatmul.bf16.gmra.mxu0 %v4749
      %v4998 = vpop.f32.mrf.mxu0
      %v4999 = vadd.f32 0.0, %v4998
      %v5000 = vpop.f32.mrf.mxu0
      %v5001 = vadd.f32 0.0, %v5000
      %5002 = vmatmul.bf16.gmra.mxu0 %v4751
      %v5003 = vpop.f32.mrf.mxu0
      %v5004 = vadd.f32 0.0, %v5003
      %v5005 = vpop.f32.mrf.mxu0
      %v5006 = vadd.f32 0.0, %v5005
      %5007 = vmatmul.bf16.gmra.mxu0 %v4753
      %v5008 = vpop.f32.mrf.mxu0
      %v5009 = vadd.f32 0.0, %v5008
      %v5010 = vpop.f32.mrf.mxu0
      %v5011 = vadd.f32 0.0, %v5010
      %5012 = vmatmul.bf16.gmra.mxu0 %v4755
      %v5013 = vpop.f32.mrf.mxu0
      %v5014 = vadd.f32 0.0, %v5013
      %v5015 = vpop.f32.mrf.mxu0
      %v5016 = vadd.f32 0.0, %v5015
      %5017 = vmatmul.bf16.gmra.mxu0 %v4757
      %v5018 = vpop.f32.mrf.mxu0
      %v5019 = vadd.f32 0.0, %v5018
      %v5020 = vpop.f32.mrf.mxu0
      %v5021 = vadd.f32 0.0, %v5020
      %5022 = vmatmul.bf16.gmra.mxu0 %v4759
      %v5023 = vpop.f32.mrf.mxu0
      %v5024 = vadd.f32 0.0, %v5023
      %v5025 = vpop.f32.mrf.mxu0
      %v5026 = vadd.f32 0.0, %v5025
      %5027 = vmatmul.bf16.gmra.mxu0 %v4761
      %v5028 = vpop.f32.mrf.mxu0
      %v5029 = vadd.f32 0.0, %v5028
      %v5030 = vpop.f32.mrf.mxu0
      %v5031 = vadd.f32 0.0, %v5030
      %5032 = vmatmul.bf16.gmra.mxu0 %v4763
      %v5033 = vpop.f32.mrf.mxu0
      %v5034 = vadd.f32 0.0, %v5033
      %v5035 = vpop.f32.mrf.mxu0
      %v5036 = vadd.f32 0.0, %v5035
      %5037 = vmatmul.bf16.gmra.mxu0 %v4765
      %v5038 = vpop.f32.mrf.mxu0
      %v5039 = vadd.f32 0.0, %v5038
      %v5040 = vpop.f32.mrf.mxu0
      %v5041 = vadd.f32 0.0, %v5040
      %5042 = vmatmul.bf16.gmra.mxu0 %v4767
      %v5043 = vpop.f32.mrf.mxu0
      %v5044 = vadd.f32 0.0, %v5043
      %v5045 = vpop.f32.mrf.mxu0
      %v5046 = vadd.f32 0.0, %v5045
      %5047 = vmatmul.bf16.gmra.mxu0 %v4769
      %v5048 = vpop.f32.mrf.mxu0
      %v5049 = vadd.f32 0.0, %v5048
      %v5050 = vpop.f32.mrf.mxu0
      %v5051 = vadd.f32 0.0, %v5050
      %5052 = vmatmul.bf16.gmra.mxu0 %v4771
      %v5053 = vpop.f32.mrf.mxu0
      %v5054 = vadd.f32 0.0, %v5053
      %v5055 = vpop.f32.mrf.mxu0
      %v5056 = vadd.f32 0.0, %v5055
      %5057 = vmatmul.bf16.gmra.mxu0 %v4773
      %v5058 = vpop.f32.mrf.mxu0
      %v5059 = vadd.f32 0.0, %v5058
      %v5060 = vpop.f32.mrf.mxu0
      %v5061 = vadd.f32 0.0, %v5060
      %5062 = vmatmul.bf16.gmra.mxu0 %v4775
      %v5063 = vpop.f32.mrf.mxu0
      %v5064 = vadd.f32 0.0, %v5063
      %v5065 = vpop.f32.mrf.mxu0
      %v5066 = vadd.f32 0.0, %v5065
      %5067 = vmatmul.bf16.gmra.mxu0 %v4777
      %v5068 = vpop.f32.mrf.mxu0
      %v5069 = vadd.f32 0.0, %v5068
      %v5070 = vpop.f32.mrf.mxu0
      %v5071 = vadd.f32 0.0, %v5070
      %5072 = vmatmul.bf16.gmra.mxu0 %v4779
      %v5073 = vpop.f32.mrf.mxu0
      %v5074 = vadd.f32 0.0, %v5073
      %v5075 = vpop.f32.mrf.mxu0
      %v5076 = vadd.f32 0.0, %v5075
      %5077 = vmatmul.bf16.gmra.mxu0 %v4781
      %v5078 = vpop.f32.mrf.mxu0
      %v5079 = vadd.f32 0.0, %v5078
      %v5080 = vpop.f32.mrf.mxu0
      %v5081 = vadd.f32 0.0, %v5080
      %5082 = vmatmul.bf16.gmra.mxu0 %v4783
      %v5083 = vpop.f32.mrf.mxu0
      %v5084 = vadd.f32 0.0, %v5083
      %v5085 = vpop.f32.mrf.mxu0
      %v5086 = vadd.f32 0.0, %v5085
      %5087 = vmatmul.bf16.gmra.mxu0 %v4785
      %v5088 = vpop.f32.mrf.mxu0
      %v5089 = vadd.f32 0.0, %v5088
      %v5090 = vpop.f32.mrf.mxu0
      %v5091 = vadd.f32 0.0, %v5090
      %5092 = vmatmul.bf16.gmra.mxu0 %v4787
      %v5093 = vpop.f32.mrf.mxu0
      %v5094 = vadd.f32 0.0, %v5093
      %v5095 = vpop.f32.mrf.mxu0
      %v5096 = vadd.f32 0.0, %v5095
      %5097 = vmatmul.bf16.gmra.mxu0 %v4789
      %v5098 = vpop.f32.mrf.mxu0
      %v5099 = vadd.f32 0.0, %v5098
      %v5100 = vpop.f32.mrf.mxu0
      %v5101 = vadd.f32 0.0, %v5100
      %5102 = vmatmul.bf16.gmra.mxu0 %v4791
      %v5103 = vpop.f32.mrf.mxu0
      %v5104 = vadd.f32 0.0, %v5103
      %v5105 = vpop.f32.mrf.mxu0
      %v5106 = vadd.f32 0.0, %v5105
      %5107 = vmatmul.bf16.gmra.mxu0 %v4793
      %v5108 = vpop.f32.mrf.mxu0
      %v5109 = vadd.f32 0.0, %v5108
      %v5110 = vpop.f32.mrf.mxu0
      %v5111 = vadd.f32 0.0, %v5110
      %5112 = vmatmul.bf16.gmra.mxu0 %v4795
      %v5113 = vpop.f32.mrf.mxu0
      %v5114 = vadd.f32 0.0, %v5113
      %v5115 = vpop.f32.mrf.mxu0
      %v5116 = vadd.f32 0.0, %v5115
      %5117 = vmatmul.bf16.gmra.mxu0 %v4797
      %v5118 = vpop.f32.mrf.mxu0
      %v5119 = vadd.f32 0.0, %v5118
      %v5120 = vpop.f32.mrf.mxu0
      %v5121 = vadd.f32 0.0, %v5120
      %5122 = vmatmul.bf16.gmra.mxu0 %v4799
      %v5123 = vpop.f32.mrf.mxu0
      %v5124 = vadd.f32 0.0, %v5123
      %v5125 = vpop.f32.mrf.mxu0
      %v5126 = vadd.f32 0.0, %v5125
      %5127 = vmatmul.bf16.gmra.mxu0 %v4801
      %v5128 = vpop.f32.mrf.mxu0
      %v5129 = vadd.f32 0.0, %v5128
      %v5130 = vpop.f32.mrf.mxu0
      %v5131 = vadd.f32 0.0, %v5130
      %5132 = vmatmul.bf16.gmra.mxu0 %v4803
      %v5133 = vpop.f32.mrf.mxu0
      %v5134 = vadd.f32 0.0, %v5133
      %v5135 = vpop.f32.mrf.mxu0
      %v5136 = vadd.f32 0.0, %v5135
      %5137 = vmatmul.bf16.gmra.mxu0 %v4805
      %v5138 = vpop.f32.mrf.mxu0
      %v5139 = vadd.f32 0.0, %v5138
      %v5140 = vpop.f32.mrf.mxu0
      %v5141 = vadd.f32 0.0, %v5140
      %5142 = vmatmul.bf16.gmra.mxu0 %v4807
      %v5143 = vpop.f32.mrf.mxu0
      %v5144 = vadd.f32 0.0, %v5143
      %v5145 = vpop.f32.mrf.mxu0
      %v5146 = vadd.f32 0.0, %v5145
      %5147 = vmatmul.bf16.gmra.mxu0 %v4809
      %v5148 = vpop.f32.mrf.mxu0
      %v5149 = vadd.f32 0.0, %v5148
      %v5150 = vpop.f32.mrf.mxu0
      %v5151 = vadd.f32 0.0, %v5150
      %5152 = vmatmul.bf16.gmra.mxu0 %v4811
      %v5153 = vpop.f32.mrf.mxu0
      %v5154 = vadd.f32 0.0, %v5153
      %v5155 = vpop.f32.mrf.mxu0
      %v5156 = vadd.f32 0.0, %v5155
      %5157 = vmatmul.bf16.gmra.mxu0 %v4813
      %v5158 = vpop.f32.mrf.mxu0
      %v5159 = vadd.f32 0.0, %v5158
      %v5160 = vpop.f32.mrf.mxu0
      %v5161 = vadd.f32 0.0, %v5160
      %5162 = vmatmul.bf16.gmra.mxu0 %v4815
      %v5163 = vpop.f32.mrf.mxu0
      %v5164 = vadd.f32 0.0, %v5163
      %v5165 = vpop.f32.mrf.mxu0
      %v5166 = vadd.f32 0.0, %v5165
      %5167 = vmatmul.bf16.gmra.mxu0 %v4817
      %v5168 = vpop.f32.mrf.mxu0
      %v5169 = vadd.f32 0.0, %v5168
      %v5170 = vpop.f32.mrf.mxu0
      %v5171 = vadd.f32 0.0, %v5170
      %5172 = vmatmul.bf16.gmra.mxu0 %v4819
      %v5173 = vpop.f32.mrf.mxu0
      %v5174 = vadd.f32 0.0, %v5173
      %v5175 = vpop.f32.mrf.mxu0
      %v5176 = vadd.f32 0.0, %v5175
      %5177 = vdwg.mxu0
      %5178 = vmatpush.bf16.msra.mxu0 %v4972
      %5179 = vmatpush.bf16.msra.mxu0 %v4971
      %5180 = vmatpush.bf16.msra.mxu0 %v4970
      %5181 = vmatpush.bf16.msra.mxu0 %v4969
      %5182 = vmatpush.bf16.msra.mxu0 %v4968
      %5183 = vmatpush.bf16.msra.mxu0 %v4967
      %5184 = vmatpush.bf16.msra.mxu0 %v4966
      %5185 = vmatpush.bf16.msra.mxu0 %v4965
      %5186 = vmatmul.bf16.gmra.mxu0 %v4750
      %v5187 = vpop.f32.mrf.mxu0
      %v5188 = vadd.f32 %v4999, %v5187
      %v5189 = vpop.f32.mrf.mxu0
      %v5190 = vadd.f32 %v5001, %v5189
      %5191 = vmatmul.bf16.gmra.mxu0 %v4752
      %v5192 = vpop.f32.mrf.mxu0
      %v5193 = vadd.f32 %v5004, %v5192
      %v5194 = vpop.f32.mrf.mxu0
      %v5195 = vadd.f32 %v5006, %v5194
      %5196 = vmatmul.bf16.gmra.mxu0 %v4754
      %v5197 = vpop.f32.mrf.mxu0
      %v5198 = vadd.f32 %v5009, %v5197
      %v5199 = vpop.f32.mrf.mxu0
      %v5200 = vadd.f32 %v5011, %v5199
      %5201 = vmatmul.bf16.gmra.mxu0 %v4756
      %v5202 = vpop.f32.mrf.mxu0
      %v5203 = vadd.f32 %v5014, %v5202
      %v5204 = vpop.f32.mrf.mxu0
      %v5205 = vadd.f32 %v5016, %v5204
      %5206 = vmatmul.bf16.gmra.mxu0 %v4758
      %v5207 = vpop.f32.mrf.mxu0
      %v5208 = vadd.f32 %v5019, %v5207
      %v5209 = vpop.f32.mrf.mxu0
      %v5210 = vadd.f32 %v5021, %v5209
      %5211 = vmatmul.bf16.gmra.mxu0 %v4760
      %v5212 = vpop.f32.mrf.mxu0
      %v5213 = vadd.f32 %v5024, %v5212
      %v5214 = vpop.f32.mrf.mxu0
      %v5215 = vadd.f32 %v5026, %v5214
      %5216 = vmatmul.bf16.gmra.mxu0 %v4762
      %v5217 = vpop.f32.mrf.mxu0
      %v5218 = vadd.f32 %v5029, %v5217
      %v5219 = vpop.f32.mrf.mxu0
      %v5220 = vadd.f32 %v5031, %v5219
      %5221 = vmatmul.bf16.gmra.mxu0 %v4764
      %v5222 = vpop.f32.mrf.mxu0
      %v5223 = vadd.f32 %v5034, %v5222
      %v5224 = vpop.f32.mrf.mxu0
      %v5225 = vadd.f32 %v5036, %v5224
      %5226 = vmatmul.bf16.gmra.mxu0 %v4766
      %v5227 = vpop.f32.mrf.mxu0
      %v5228 = vadd.f32 %v5039, %v5227
      %v5229 = vpop.f32.mrf.mxu0
      %v5230 = vadd.f32 %v5041, %v5229
      %5231 = vmatmul.bf16.gmra.mxu0 %v4768
      %v5232 = vpop.f32.mrf.mxu0
      %v5233 = vadd.f32 %v5044, %v5232
      %v5234 = vpop.f32.mrf.mxu0
      %v5235 = vadd.f32 %v5046, %v5234
      %5236 = vmatmul.bf16.gmra.mxu0 %v4770
      %v5237 = vpop.f32.mrf.mxu0
      %v5238 = vadd.f32 %v5049, %v5237
      %v5239 = vpop.f32.mrf.mxu0
      %v5240 = vadd.f32 %v5051, %v5239
      %5241 = vmatmul.bf16.gmra.mxu0 %v4772
      %v5242 = vpop.f32.mrf.mxu0
      %v5243 = vadd.f32 %v5054, %v5242
      %v5244 = vpop.f32.mrf.mxu0
      %v5245 = vadd.f32 %v5056, %v5244
      %5246 = vmatmul.bf16.gmra.mxu0 %v4774
      %v5247 = vpop.f32.mrf.mxu0
      %v5248 = vadd.f32 %v5059, %v5247
      %v5249 = vpop.f32.mrf.mxu0
      %v5250 = vadd.f32 %v5061, %v5249
      %5251 = vmatmul.bf16.gmra.mxu0 %v4776
      %v5252 = vpop.f32.mrf.mxu0
      %v5253 = vadd.f32 %v5064, %v5252
      %v5254 = vpop.f32.mrf.mxu0
      %v5255 = vadd.f32 %v5066, %v5254
      %5256 = vmatmul.bf16.gmra.mxu0 %v4778
      %v5257 = vpop.f32.mrf.mxu0
      %v5258 = vadd.f32 %v5069, %v5257
      %v5259 = vpop.f32.mrf.mxu0
      %v5260 = vadd.f32 %v5071, %v5259
      %5261 = vmatmul.bf16.gmra.mxu0 %v4780
      %v5262 = vpop.f32.mrf.mxu0
      %v5263 = vadd.f32 %v5074, %v5262
      %v5264 = vpop.f32.mrf.mxu0
      %v5265 = vadd.f32 %v5076, %v5264
      %5266 = vmatmul.bf16.gmra.mxu0 %v4782
      %v5267 = vpop.f32.mrf.mxu0
      %v5268 = vadd.f32 %v5079, %v5267
      %v5269 = vpop.f32.mrf.mxu0
      %v5270 = vadd.f32 %v5081, %v5269
      %5271 = vmatmul.bf16.gmra.mxu0 %v4784
      %v5272 = vpop.f32.mrf.mxu0
      %v5273 = vadd.f32 %v5084, %v5272
      %v5274 = vpop.f32.mrf.mxu0
      %v5275 = vadd.f32 %v5086, %v5274
      %5276 = vmatmul.bf16.gmra.mxu0 %v4786
      %v5277 = vpop.f32.mrf.mxu0
      %v5278 = vadd.f32 %v5089, %v5277
      %v5279 = vpop.f32.mrf.mxu0
      %v5280 = vadd.f32 %v5091, %v5279
      %5281 = vmatmul.bf16.gmra.mxu0 %v4788
      %v5282 = vpop.f32.mrf.mxu0
      %v5283 = vadd.f32 %v5094, %v5282
      %v5284 = vpop.f32.mrf.mxu0
      %v5285 = vadd.f32 %v5096, %v5284
      %5286 = vmatmul.bf16.gmra.mxu0 %v4790
      %v5287 = vpop.f32.mrf.mxu0
      %v5288 = vadd.f32 %v5099, %v5287
      %v5289 = vpop.f32.mrf.mxu0
      %v5290 = vadd.f32 %v5101, %v5289
      %5291 = vmatmul.bf16.gmra.mxu0 %v4792
      %v5292 = vpop.f32.mrf.mxu0
      %v5293 = vadd.f32 %v5104, %v5292
      %v5294 = vpop.f32.mrf.mxu0
      %v5295 = vadd.f32 %v5106, %v5294
      %5296 = vmatmul.bf16.gmra.mxu0 %v4794
      %v5297 = vpop.f32.mrf.mxu0
      %v5298 = vadd.f32 %v5109, %v5297
      %v5299 = vpop.f32.mrf.mxu0
      %v5300 = vadd.f32 %v5111, %v5299
      %5301 = vmatmul.bf16.gmra.mxu0 %v4796
      %v5302 = vpop.f32.mrf.mxu0
      %v5303 = vadd.f32 %v5114, %v5302
      %v5304 = vpop.f32.mrf.mxu0
      %v5305 = vadd.f32 %v5116, %v5304
      %5306 = vmatmul.bf16.gmra.mxu0 %v4798
      %v5307 = vpop.f32.mrf.mxu0
      %v5308 = vadd.f32 %v5119, %v5307
      %v5309 = vpop.f32.mrf.mxu0
      %v5310 = vadd.f32 %v5121, %v5309
      %5311 = vmatmul.bf16.gmra.mxu0 %v4800
      %v5312 = vpop.f32.mrf.mxu0
      %v5313 = vadd.f32 %v5124, %v5312
      %v5314 = vpop.f32.mrf.mxu0
      %v5315 = vadd.f32 %v5126, %v5314
      %5316 = vmatmul.bf16.gmra.mxu0 %v4802
      %v5317 = vpop.f32.mrf.mxu0
      %v5318 = vadd.f32 %v5129, %v5317
      %v5319 = vpop.f32.mrf.mxu0
      %v5320 = vadd.f32 %v5131, %v5319
      %5321 = vmatmul.bf16.gmra.mxu0 %v4804
      %v5322 = vpop.f32.mrf.mxu0
      %v5323 = vadd.f32 %v5134, %v5322
      %v5324 = vpop.f32.mrf.mxu0
      %v5325 = vadd.f32 %v5136, %v5324
      %5326 = vmatmul.bf16.gmra.mxu0 %v4806
      %v5327 = vpop.f32.mrf.mxu0
      %v5328 = vadd.f32 %v5139, %v5327
      %v5329 = vpop.f32.mrf.mxu0
      %v5330 = vadd.f32 %v5141, %v5329
      %5331 = vmatmul.bf16.gmra.mxu0 %v4808
      %v5332 = vpop.f32.mrf.mxu0
      %v5333 = vadd.f32 %v5144, %v5332
      %v5334 = vpop.f32.mrf.mxu0
      %v5335 = vadd.f32 %v5146, %v5334
      %5336 = vmatmul.bf16.gmra.mxu0 %v4810
      %v5337 = vpop.f32.mrf.mxu0
      %v5338 = vadd.f32 %v5149, %v5337
      %v5339 = vpop.f32.mrf.mxu0
      %v5340 = vadd.f32 %v5151, %v5339
      %5341 = vmatmul.bf16.gmra.mxu0 %v4812
      %v5342 = vpop.f32.mrf.mxu0
      %v5343 = vadd.f32 %v5154, %v5342
      %v5344 = vpop.f32.mrf.mxu0
      %v5345 = vadd.f32 %v5156, %v5344
      %5346 = vmatmul.bf16.gmra.mxu0 %v4814
      %v5347 = vpop.f32.mrf.mxu0
      %v5348 = vadd.f32 %v5159, %v5347
      %v5349 = vpop.f32.mrf.mxu0
      %v5350 = vadd.f32 %v5161, %v5349
      %5351 = vmatmul.bf16.gmra.mxu0 %v4816
      %v5352 = vpop.f32.mrf.mxu0
      %v5353 = vadd.f32 %v5164, %v5352
      %v5354 = vpop.f32.mrf.mxu0
      %v5355 = vadd.f32 %v5166, %v5354
      %5356 = vmatmul.bf16.gmra.mxu0 %v4818
      %v5357 = vpop.f32.mrf.mxu0
      %v5358 = vadd.f32 %v5169, %v5357
      %v5359 = vpop.f32.mrf.mxu0
      %v5360 = vadd.f32 %v5171, %v5359
      %5361 = vmatmul.bf16.gmra.mxu0 %v4820
      %v5362 = vpop.f32.mrf.mxu0
      %v5363 = vadd.f32 %v5174, %v5362
      %v5364 = vpop.f32.mrf.mxu0
      %v5365 = vadd.f32 %v5176, %v5364
      %5366 = vdwg.mxu0
      %v5399 = vunpack.c.l.b16 %v4429
      %v5400 = vunpack.c.l.b16 %v4430
      %v5401 = vunpack.c.l.b16 %v4431
      %v5402 = vunpack.c.l.b16 %v4432
      %v5403 = vunpack.c.l.b16 %v4433
      %v5404 = vunpack.c.l.b16 %v4434
      %v5405 = vunpack.c.l.b16 %v4435
      %v5406 = vunpack.c.l.b16 %v4436
      %v5407 = vunpack.c.l.b16 %v4437
      %v5408 = vunpack.c.l.b16 %v4438
      %v5409 = vunpack.c.l.b16 %v4439
      %v5410 = vunpack.c.l.b16 %v4440
      %v5411 = vunpack.c.l.b16 %v4441
      %v5412 = vunpack.c.l.b16 %v4442
      %v5413 = vunpack.c.l.b16 %v4443
      %v5414 = vunpack.c.l.b16 %v4444
      %v5415 = vunpack.c.l.b16 %v4445
      %v5416 = vunpack.c.l.b16 %v4446
      %v5417 = vunpack.c.l.b16 %v4447
      %v5418 = vunpack.c.l.b16 %v4448
      %v5419 = vunpack.c.l.b16 %v4449
      %v5420 = vunpack.c.l.b16 %v4450
      %v5421 = vunpack.c.l.b16 %v4451
      %v5422 = vunpack.c.l.b16 %v4452
      %v5423 = vunpack.c.l.b16 %v4453
      %v5424 = vunpack.c.l.b16 %v4454
      %v5425 = vunpack.c.l.b16 %v4455
      %v5426 = vunpack.c.l.b16 %v4456
      %v5427 = vunpack.c.l.b16 %v4457
      %v5428 = vunpack.c.l.b16 %v4458
      %v5429 = vunpack.c.l.b16 %v4459
      %v5430 = vunpack.c.l.b16 %v4460
      %v5431 = vpack.c.b16 %v5400, %v5399
      %v5432 = vpack.c.b16 %v5402, %v5401
      %v5433 = vpack.c.b16 %v5404, %v5403
      %v5434 = vpack.c.b16 %v5406, %v5405
      %v5435 = vpack.c.b16 %v5408, %v5407
      %v5436 = vpack.c.b16 %v5410, %v5409
      %v5437 = vpack.c.b16 %v5412, %v5411
      %v5438 = vpack.c.b16 %v5414, %v5413
      %v5439 = vpack.c.b16 %v5416, %v5415
      %v5440 = vpack.c.b16 %v5418, %v5417
      %v5441 = vpack.c.b16 %v5420, %v5419
      %v5442 = vpack.c.b16 %v5422, %v5421
      %v5443 = vpack.c.b16 %v5424, %v5423
      %v5444 = vpack.c.b16 %v5426, %v5425
      %v5445 = vpack.c.b16 %v5428, %v5427
      %v5446 = vpack.c.b16 %v5430, %v5429
      %5463 = vmatpush.bf16.msra.mxu0 %v5438
      %5464 = vmatpush.bf16.msra.mxu0 %v5437
      %5465 = vmatpush.bf16.msra.mxu0 %v5436
      %5466 = vmatpush.bf16.msra.mxu0 %v5435
      %5467 = vmatpush.bf16.msra.mxu0 %v5434
      %5468 = vmatpush.bf16.msra.mxu0 %v5433
      %5469 = vmatpush.bf16.msra.mxu0 %v5432
      %5470 = vmatpush.bf16.msra.mxu0 %v5431
      %5471 = vmatmul.bf16.gmra.mxu0 %v4749
      %v5472 = vpop.f32.mrf.mxu0
      %v5473 = vadd.f32 0.0, %v5472
      %v5474 = vpop.f32.mrf.mxu0
      %v5475 = vadd.f32 0.0, %v5474
      %5476 = vmatmul.bf16.gmra.mxu0 %v4751
      %v5477 = vpop.f32.mrf.mxu0
      %v5478 = vadd.f32 0.0, %v5477
      %v5479 = vpop.f32.mrf.mxu0
      %v5480 = vadd.f32 0.0, %v5479
      %5481 = vmatmul.bf16.gmra.mxu0 %v4753
      %v5482 = vpop.f32.mrf.mxu0
      %v5483 = vadd.f32 0.0, %v5482
      %v5484 = vpop.f32.mrf.mxu0
      %v5485 = vadd.f32 0.0, %v5484
      %5486 = vmatmul.bf16.gmra.mxu0 %v4755
      %v5487 = vpop.f32.mrf.mxu0
      %v5488 = vadd.f32 0.0, %v5487
      %v5489 = vpop.f32.mrf.mxu0
      %v5490 = vadd.f32 0.0, %v5489
      %5491 = vmatmul.bf16.gmra.mxu0 %v4757
      %v5492 = vpop.f32.mrf.mxu0
      %v5493 = vadd.f32 0.0, %v5492
      %v5494 = vpop.f32.mrf.mxu0
      %v5495 = vadd.f32 0.0, %v5494
      %5496 = vmatmul.bf16.gmra.mxu0 %v4759
      %v5497 = vpop.f32.mrf.mxu0
      %v5498 = vadd.f32 0.0, %v5497
      %v5499 = vpop.f32.mrf.mxu0
      %v5500 = vadd.f32 0.0, %v5499
      %5501 = vmatmul.bf16.gmra.mxu0 %v4761
      %v5502 = vpop.f32.mrf.mxu0
      %v5503 = vadd.f32 0.0, %v5502
      %v5504 = vpop.f32.mrf.mxu0
      %v5505 = vadd.f32 0.0, %v5504
      %5506 = vmatmul.bf16.gmra.mxu0 %v4763
      %v5507 = vpop.f32.mrf.mxu0
      %v5508 = vadd.f32 0.0, %v5507
      %v5509 = vpop.f32.mrf.mxu0
      %v5510 = vadd.f32 0.0, %v5509
      %5511 = vmatmul.bf16.gmra.mxu0 %v4765
      %v5512 = vpop.f32.mrf.mxu0
      %v5513 = vadd.f32 0.0, %v5512
      %v5514 = vpop.f32.mrf.mxu0
      %v5515 = vadd.f32 0.0, %v5514
      %5516 = vmatmul.bf16.gmra.mxu0 %v4767
      %v5517 = vpop.f32.mrf.mxu0
      %v5518 = vadd.f32 0.0, %v5517
      %v5519 = vpop.f32.mrf.mxu0
      %v5520 = vadd.f32 0.0, %v5519
      %5521 = vmatmul.bf16.gmra.mxu0 %v4769
      %v5522 = vpop.f32.mrf.mxu0
      %v5523 = vadd.f32 0.0, %v5522
      %v5524 = vpop.f32.mrf.mxu0
      %v5525 = vadd.f32 0.0, %v5524
      %5526 = vmatmul.bf16.gmra.mxu0 %v4771
      %v5527 = vpop.f32.mrf.mxu0
      %v5528 = vadd.f32 0.0, %v5527
      %v5529 = vpop.f32.mrf.mxu0
      %v5530 = vadd.f32 0.0, %v5529
      %5531 = vmatmul.bf16.gmra.mxu0 %v4773
      %v5532 = vpop.f32.mrf.mxu0
      %v5533 = vadd.f32 0.0, %v5532
      %v5534 = vpop.f32.mrf.mxu0
      %v5535 = vadd.f32 0.0, %v5534
      %5536 = vmatmul.bf16.gmra.mxu0 %v4775
      %v5537 = vpop.f32.mrf.mxu0
      %v5538 = vadd.f32 0.0, %v5537
      %v5539 = vpop.f32.mrf.mxu0
      %v5540 = vadd.f32 0.0, %v5539
      %5541 = vmatmul.bf16.gmra.mxu0 %v4777
      %v5542 = vpop.f32.mrf.mxu0
      %v5543 = vadd.f32 0.0, %v5542
      %v5544 = vpop.f32.mrf.mxu0
      %v5545 = vadd.f32 0.0, %v5544
      %5546 = vmatmul.bf16.gmra.mxu0 %v4779
      %v5547 = vpop.f32.mrf.mxu0
      %v5548 = vadd.f32 0.0, %v5547
      %v5549 = vpop.f32.mrf.mxu0
      %v5550 = vadd.f32 0.0, %v5549
      %5551 = vmatmul.bf16.gmra.mxu0 %v4781
      %v5552 = vpop.f32.mrf.mxu0
      %v5553 = vadd.f32 0.0, %v5552
      %v5554 = vpop.f32.mrf.mxu0
      %v5555 = vadd.f32 0.0, %v5554
      %5556 = vmatmul.bf16.gmra.mxu0 %v4783
      %v5557 = vpop.f32.mrf.mxu0
      %v5558 = vadd.f32 0.0, %v5557
      %v5559 = vpop.f32.mrf.mxu0
      %v5560 = vadd.f32 0.0, %v5559
      %5561 = vmatmul.bf16.gmra.mxu0 %v4785
      %v5562 = vpop.f32.mrf.mxu0
      %v5563 = vadd.f32 0.0, %v5562
      %v5564 = vpop.f32.mrf.mxu0
      %v5565 = vadd.f32 0.0, %v5564
      %5566 = vmatmul.bf16.gmra.mxu0 %v4787
      %v5567 = vpop.f32.mrf.mxu0
      %v5568 = vadd.f32 0.0, %v5567
      %v5569 = vpop.f32.mrf.mxu0
      %v5570 = vadd.f32 0.0, %v5569
      %5571 = vmatmul.bf16.gmra.mxu0 %v4789
      %v5572 = vpop.f32.mrf.mxu0
      %v5573 = vadd.f32 0.0, %v5572
      %v5574 = vpop.f32.mrf.mxu0
      %v5575 = vadd.f32 0.0, %v5574
      %5576 = vmatmul.bf16.gmra.mxu0 %v4791
      %v5577 = vpop.f32.mrf.mxu0
      %v5578 = vadd.f32 0.0, %v5577
      %v5579 = vpop.f32.mrf.mxu0
      %v5580 = vadd.f32 0.0, %v5579
      %5581 = vmatmul.bf16.gmra.mxu0 %v4793
      %v5582 = vpop.f32.mrf.mxu0
      %v5583 = vadd.f32 0.0, %v5582
      %v5584 = vpop.f32.mrf.mxu0
      %v5585 = vadd.f32 0.0, %v5584
      %5586 = vmatmul.bf16.gmra.mxu0 %v4795
      %v5587 = vpop.f32.mrf.mxu0
      %v5588 = vadd.f32 0.0, %v5587
      %v5589 = vpop.f32.mrf.mxu0
      %v5590 = vadd.f32 0.0, %v5589
      %5591 = vmatmul.bf16.gmra.mxu0 %v4797
      %v5592 = vpop.f32.mrf.mxu0
      %v5593 = vadd.f32 0.0, %v5592
      %v5594 = vpop.f32.mrf.mxu0
      %v5595 = vadd.f32 0.0, %v5594
      %5596 = vmatmul.bf16.gmra.mxu0 %v4799
      %v5597 = vpop.f32.mrf.mxu0
      %v5598 = vadd.f32 0.0, %v5597
      %v5599 = vpop.f32.mrf.mxu0
      %v5600 = vadd.f32 0.0, %v5599
      %5601 = vmatmul.bf16.gmra.mxu0 %v4801
      %v5602 = vpop.f32.mrf.mxu0
      %v5603 = vadd.f32 0.0, %v5602
      %v5604 = vpop.f32.mrf.mxu0
      %v5605 = vadd.f32 0.0, %v5604
      %5606 = vmatmul.bf16.gmra.mxu0 %v4803
      %v5607 = vpop.f32.mrf.mxu0
      %v5608 = vadd.f32 0.0, %v5607
      %v5609 = vpop.f32.mrf.mxu0
      %v5610 = vadd.f32 0.0, %v5609
      %5611 = vmatmul.bf16.gmra.mxu0 %v4805
      %v5612 = vpop.f32.mrf.mxu0
      %v5613 = vadd.f32 0.0, %v5612
      %v5614 = vpop.f32.mrf.mxu0
      %v5615 = vadd.f32 0.0, %v5614
      %5616 = vmatmul.bf16.gmra.mxu0 %v4807
      %v5617 = vpop.f32.mrf.mxu0
      %v5618 = vadd.f32 0.0, %v5617
      %v5619 = vpop.f32.mrf.mxu0
      %v5620 = vadd.f32 0.0, %v5619
      %5621 = vmatmul.bf16.gmra.mxu0 %v4809
      %v5622 = vpop.f32.mrf.mxu0
      %v5623 = vadd.f32 0.0, %v5622
      %v5624 = vpop.f32.mrf.mxu0
      %v5625 = vadd.f32 0.0, %v5624
      %5626 = vmatmul.bf16.gmra.mxu0 %v4811
      %v5627 = vpop.f32.mrf.mxu0
      %v5628 = vadd.f32 0.0, %v5627
      %v5629 = vpop.f32.mrf.mxu0
      %v5630 = vadd.f32 0.0, %v5629
      %5631 = vmatmul.bf16.gmra.mxu0 %v4813
      %v5632 = vpop.f32.mrf.mxu0
      %v5633 = vadd.f32 0.0, %v5632
      %v5634 = vpop.f32.mrf.mxu0
      %v5635 = vadd.f32 0.0, %v5634
      %5636 = vmatmul.bf16.gmra.mxu0 %v4815
      %v5637 = vpop.f32.mrf.mxu0
      %v5638 = vadd.f32 0.0, %v5637
      %v5639 = vpop.f32.mrf.mxu0
      %v5640 = vadd.f32 0.0, %v5639
      %5641 = vmatmul.bf16.gmra.mxu0 %v4817
      %v5642 = vpop.f32.mrf.mxu0
      %v5643 = vadd.f32 0.0, %v5642
      %v5644 = vpop.f32.mrf.mxu0
      %v5645 = vadd.f32 0.0, %v5644
      %5646 = vmatmul.bf16.gmra.mxu0 %v4819
      %v5647 = vpop.f32.mrf.mxu0
      %v5648 = vadd.f32 0.0, %v5647
      %v5649 = vpop.f32.mrf.mxu0
      %v5650 = vadd.f32 0.0, %v5649
      %5651 = vdwg.mxu0
      %5652 = vmatpush.bf16.msra.mxu0 %v5446
      %5653 = vmatpush.bf16.msra.mxu0 %v5445
      %5654 = vmatpush.bf16.msra.mxu0 %v5444
      %5655 = vmatpush.bf16.msra.mxu0 %v5443
      %5656 = vmatpush.bf16.msra.mxu0 %v5442
      %5657 = vmatpush.bf16.msra.mxu0 %v5441
      %5658 = vmatpush.bf16.msra.mxu0 %v5440
      %5659 = vmatpush.bf16.msra.mxu0 %v5439
      %5660 = vmatmul.bf16.gmra.mxu0 %v4750
      %v5661 = vpop.f32.mrf.mxu0
      %v5662 = vadd.f32 %v5473, %v5661
      %v5663 = vpop.f32.mrf.mxu0
      %v5664 = vadd.f32 %v5475, %v5663
      %5665 = vmatmul.bf16.gmra.mxu0 %v4752
      %v5666 = vpop.f32.mrf.mxu0
      %v5667 = vadd.f32 %v5478, %v5666
      %v5668 = vpop.f32.mrf.mxu0
      %v5669 = vadd.f32 %v5480, %v5668
      %5670 = vmatmul.bf16.gmra.mxu0 %v4754
      %v5671 = vpop.f32.mrf.mxu0
      %v5672 = vadd.f32 %v5483, %v5671
      %v5673 = vpop.f32.mrf.mxu0
      %v5674 = vadd.f32 %v5485, %v5673
      %5675 = vmatmul.bf16.gmra.mxu0 %v4756
      %v5676 = vpop.f32.mrf.mxu0
      %v5677 = vadd.f32 %v5488, %v5676
      %v5678 = vpop.f32.mrf.mxu0
      %v5679 = vadd.f32 %v5490, %v5678
      %5680 = vmatmul.bf16.gmra.mxu0 %v4758
      %v5681 = vpop.f32.mrf.mxu0
      %v5682 = vadd.f32 %v5493, %v5681
      %v5683 = vpop.f32.mrf.mxu0
      %v5684 = vadd.f32 %v5495, %v5683
      %5685 = vmatmul.bf16.gmra.mxu0 %v4760
      %v5686 = vpop.f32.mrf.mxu0
      %v5687 = vadd.f32 %v5498, %v5686
      %v5688 = vpop.f32.mrf.mxu0
      %v5689 = vadd.f32 %v5500, %v5688
      %5690 = vmatmul.bf16.gmra.mxu0 %v4762
      %v5691 = vpop.f32.mrf.mxu0
      %v5692 = vadd.f32 %v5503, %v5691
      %v5693 = vpop.f32.mrf.mxu0
      %v5694 = vadd.f32 %v5505, %v5693
      %5695 = vmatmul.bf16.gmra.mxu0 %v4764
      %v5696 = vpop.f32.mrf.mxu0
      %v5697 = vadd.f32 %v5508, %v5696
      %v5698 = vpop.f32.mrf.mxu0
      %v5699 = vadd.f32 %v5510, %v5698
      %5700 = vmatmul.bf16.gmra.mxu0 %v4766
      %v5701 = vpop.f32.mrf.mxu0
      %v5702 = vadd.f32 %v5513, %v5701
      %v5703 = vpop.f32.mrf.mxu0
      %v5704 = vadd.f32 %v5515, %v5703
      %5705 = vmatmul.bf16.gmra.mxu0 %v4768
      %v5706 = vpop.f32.mrf.mxu0
      %v5707 = vadd.f32 %v5518, %v5706
      %v5708 = vpop.f32.mrf.mxu0
      %v5709 = vadd.f32 %v5520, %v5708
      %5710 = vmatmul.bf16.gmra.mxu0 %v4770
      %v5711 = vpop.f32.mrf.mxu0
      %v5712 = vadd.f32 %v5523, %v5711
      %v5713 = vpop.f32.mrf.mxu0
      %v5714 = vadd.f32 %v5525, %v5713
      %5715 = vmatmul.bf16.gmra.mxu0 %v4772
      %v5716 = vpop.f32.mrf.mxu0
      %v5717 = vadd.f32 %v5528, %v5716
      %v5718 = vpop.f32.mrf.mxu0
      %v5719 = vadd.f32 %v5530, %v5718
      %5720 = vmatmul.bf16.gmra.mxu0 %v4774
      %v5721 = vpop.f32.mrf.mxu0
      %v5722 = vadd.f32 %v5533, %v5721
      %v5723 = vpop.f32.mrf.mxu0
      %v5724 = vadd.f32 %v5535, %v5723
      %5725 = vmatmul.bf16.gmra.mxu0 %v4776
      %v5726 = vpop.f32.mrf.mxu0
      %v5727 = vadd.f32 %v5538, %v5726
      %v5728 = vpop.f32.mrf.mxu0
      %v5729 = vadd.f32 %v5540, %v5728
      %5730 = vmatmul.bf16.gmra.mxu0 %v4778
      %v5731 = vpop.f32.mrf.mxu0
      %v5732 = vadd.f32 %v5543, %v5731
      %v5733 = vpop.f32.mrf.mxu0
      %v5734 = vadd.f32 %v5545, %v5733
      %5735 = vmatmul.bf16.gmra.mxu0 %v4780
      %v5736 = vpop.f32.mrf.mxu0
      %v5737 = vadd.f32 %v5548, %v5736
      %v5738 = vpop.f32.mrf.mxu0
      %v5739 = vadd.f32 %v5550, %v5738
      %5740 = vmatmul.bf16.gmra.mxu0 %v4782
      %v5741 = vpop.f32.mrf.mxu0
      %v5742 = vadd.f32 %v5553, %v5741
      %v5743 = vpop.f32.mrf.mxu0
      %v5744 = vadd.f32 %v5555, %v5743
      %5745 = vmatmul.bf16.gmra.mxu0 %v4784
      %v5746 = vpop.f32.mrf.mxu0
      %v5747 = vadd.f32 %v5558, %v5746
      %v5748 = vpop.f32.mrf.mxu0
      %v5749 = vadd.f32 %v5560, %v5748
      %5750 = vmatmul.bf16.gmra.mxu0 %v4786
      %v5751 = vpop.f32.mrf.mxu0
      %v5752 = vadd.f32 %v5563, %v5751
      %v5753 = vpop.f32.mrf.mxu0
      %v5754 = vadd.f32 %v5565, %v5753
      %5755 = vmatmul.bf16.gmra.mxu0 %v4788
      %v5756 = vpop.f32.mrf.mxu0
      %v5757 = vadd.f32 %v5568, %v5756
      %v5758 = vpop.f32.mrf.mxu0
      %v5759 = vadd.f32 %v5570, %v5758
      %5760 = vmatmul.bf16.gmra.mxu0 %v4790
      %v5761 = vpop.f32.mrf.mxu0
      %v5762 = vadd.f32 %v5573, %v5761
      %v5763 = vpop.f32.mrf.mxu0
      %v5764 = vadd.f32 %v5575, %v5763
      %5765 = vmatmul.bf16.gmra.mxu0 %v4792
      %v5766 = vpop.f32.mrf.mxu0
      %v5767 = vadd.f32 %v5578, %v5766
      %v5768 = vpop.f32.mrf.mxu0
      %v5769 = vadd.f32 %v5580, %v5768
      %5770 = vmatmul.bf16.gmra.mxu0 %v4794
      %v5771 = vpop.f32.mrf.mxu0
      %v5772 = vadd.f32 %v5583, %v5771
      %v5773 = vpop.f32.mrf.mxu0
      %v5774 = vadd.f32 %v5585, %v5773
      %5775 = vmatmul.bf16.gmra.mxu0 %v4796
      %v5776 = vpop.f32.mrf.mxu0
      %v5777 = vadd.f32 %v5588, %v5776
      %v5778 = vpop.f32.mrf.mxu0
      %v5779 = vadd.f32 %v5590, %v5778
      %5780 = vmatmul.bf16.gmra.mxu0 %v4798
      %v5781 = vpop.f32.mrf.mxu0
      %v5782 = vadd.f32 %v5593, %v5781
      %v5783 = vpop.f32.mrf.mxu0
      %v5784 = vadd.f32 %v5595, %v5783
      %5785 = vmatmul.bf16.gmra.mxu0 %v4800
      %v5786 = vpop.f32.mrf.mxu0
      %v5787 = vadd.f32 %v5598, %v5786
      %v5788 = vpop.f32.mrf.mxu0
      %v5789 = vadd.f32 %v5600, %v5788
      %5790 = vmatmul.bf16.gmra.mxu0 %v4802
      %v5791 = vpop.f32.mrf.mxu0
      %v5792 = vadd.f32 %v5603, %v5791
      %v5793 = vpop.f32.mrf.mxu0
      %v5794 = vadd.f32 %v5605, %v5793
      %5795 = vmatmul.bf16.gmra.mxu0 %v4804
      %v5796 = vpop.f32.mrf.mxu0
      %v5797 = vadd.f32 %v5608, %v5796
      %v5798 = vpop.f32.mrf.mxu0
      %v5799 = vadd.f32 %v5610, %v5798
      %5800 = vmatmul.bf16.gmra.mxu0 %v4806
      %v5801 = vpop.f32.mrf.mxu0
      %v5802 = vadd.f32 %v5613, %v5801
      %v5803 = vpop.f32.mrf.mxu0
      %v5804 = vadd.f32 %v5615, %v5803
      %5805 = vmatmul.bf16.gmra.mxu0 %v4808
      %v5806 = vpop.f32.mrf.mxu0
      %v5807 = vadd.f32 %v5618, %v5806
      %v5808 = vpop.f32.mrf.mxu0
      %v5809 = vadd.f32 %v5620, %v5808
      %5810 = vmatmul.bf16.gmra.mxu0 %v4810
      %v5811 = vpop.f32.mrf.mxu0
      %v5812 = vadd.f32 %v5623, %v5811
      %v5813 = vpop.f32.mrf.mxu0
      %v5814 = vadd.f32 %v5625, %v5813
      %5815 = vmatmul.bf16.gmra.mxu0 %v4812
      %v5816 = vpop.f32.mrf.mxu0
      %v5817 = vadd.f32 %v5628, %v5816
      %v5818 = vpop.f32.mrf.mxu0
      %v5819 = vadd.f32 %v5630, %v5818
      %5820 = vmatmul.bf16.gmra.mxu0 %v4814
      %v5821 = vpop.f32.mrf.mxu0
      %v5822 = vadd.f32 %v5633, %v5821
      %v5823 = vpop.f32.mrf.mxu0
      %v5824 = vadd.f32 %v5635, %v5823
      %5825 = vmatmul.bf16.gmra.mxu0 %v4816
      %v5826 = vpop.f32.mrf.mxu0
      %v5827 = vadd.f32 %v5638, %v5826
      %v5828 = vpop.f32.mrf.mxu0
      %v5829 = vadd.f32 %v5640, %v5828
      %5830 = vmatmul.bf16.gmra.mxu0 %v4818
      %v5831 = vpop.f32.mrf.mxu0
      %v5832 = vadd.f32 %v5643, %v5831
      %v5833 = vpop.f32.mrf.mxu0
      %v5834 = vadd.f32 %v5645, %v5833
      %5835 = vmatmul.bf16.gmra.mxu0 %v4820
      %v5836 = vpop.f32.mrf.mxu0
      %v5837 = vadd.f32 %v5648, %v5836
      %v5838 = vpop.f32.mrf.mxu0
      %v5839 = vadd.f32 %v5650, %v5838
      %5840 = vdwg.mxu0
      %v5841 = vpack.c.bf16 %v5188, %v5188
      %v5842 = vpack.c.bf16 %v5190, %v5190
      %v5843 = vpack.c.bf16 %v5193, %v5193
      %v5844 = vpack.c.bf16 %v5195, %v5195
      %v5845 = vpack.c.bf16 %v5198, %v5198
      %v5846 = vpack.c.bf16 %v5200, %v5200
      %v5847 = vpack.c.bf16 %v5203, %v5203
      %v5848 = vpack.c.bf16 %v5205, %v5205
      %v5849 = vpack.c.bf16 %v5208, %v5208
      %v5850 = vpack.c.bf16 %v5210, %v5210
      %v5851 = vpack.c.bf16 %v5213, %v5213
      %v5852 = vpack.c.bf16 %v5215, %v5215
      %v5853 = vpack.c.bf16 %v5218, %v5218
      %v5854 = vpack.c.bf16 %v5220, %v5220
      %v5855 = vpack.c.bf16 %v5223, %v5223
      %v5856 = vpack.c.bf16 %v5225, %v5225
      %v5857 = vpack.c.bf16 %v5228, %v5228
      %v5858 = vpack.c.bf16 %v5230, %v5230
      %v5859 = vpack.c.bf16 %v5233, %v5233
      %v5860 = vpack.c.bf16 %v5235, %v5235
      %v5861 = vpack.c.bf16 %v5238, %v5238
      %v5862 = vpack.c.bf16 %v5240, %v5240
      %v5863 = vpack.c.bf16 %v5243, %v5243
      %v5864 = vpack.c.bf16 %v5245, %v5245
      %v5865 = vpack.c.bf16 %v5248, %v5248
      %v5866 = vpack.c.bf16 %v5250, %v5250
      %v5867 = vpack.c.bf16 %v5253, %v5253
      %v5868 = vpack.c.bf16 %v5255, %v5255
      %v5869 = vpack.c.bf16 %v5258, %v5258
      %v5870 = vpack.c.bf16 %v5260, %v5260
      %v5871 = vpack.c.bf16 %v5263, %v5263
      %v5872 = vpack.c.bf16 %v5265, %v5265
      %v5873 = vpack.c.bf16 %v5268, %v5268
      %v5874 = vpack.c.bf16 %v5270, %v5270
      %v5875 = vpack.c.bf16 %v5273, %v5273
      %v5876 = vpack.c.bf16 %v5275, %v5275
      %v5877 = vpack.c.bf16 %v5278, %v5278
      %v5878 = vpack.c.bf16 %v5280, %v5280
      %v5879 = vpack.c.bf16 %v5283, %v5283
      %v5880 = vpack.c.bf16 %v5285, %v5285
      %v5881 = vpack.c.bf16 %v5288, %v5288
      %v5882 = vpack.c.bf16 %v5290, %v5290
      %v5883 = vpack.c.bf16 %v5293, %v5293
      %v5884 = vpack.c.bf16 %v5295, %v5295
      %v5885 = vpack.c.bf16 %v5298, %v5298
      %v5886 = vpack.c.bf16 %v5300, %v5300
      %v5887 = vpack.c.bf16 %v5303, %v5303
      %v5888 = vpack.c.bf16 %v5305, %v5305
      %v5889 = vpack.c.bf16 %v5308, %v5308
      %v5890 = vpack.c.bf16 %v5310, %v5310
      %v5891 = vpack.c.bf16 %v5313, %v5313
      %v5892 = vpack.c.bf16 %v5315, %v5315
      %v5893 = vpack.c.bf16 %v5318, %v5318
      %v5894 = vpack.c.bf16 %v5320, %v5320
      %v5895 = vpack.c.bf16 %v5323, %v5323
      %v5896 = vpack.c.bf16 %v5325, %v5325
      %v5897 = vpack.c.bf16 %v5328, %v5328
      %v5898 = vpack.c.bf16 %v5330, %v5330
      %v5899 = vpack.c.bf16 %v5333, %v5333
      %v5900 = vpack.c.bf16 %v5335, %v5335
      %v5901 = vpack.c.bf16 %v5338, %v5338
      %v5902 = vpack.c.bf16 %v5340, %v5340
      %v5903 = vpack.c.bf16 %v5343, %v5343
      %v5904 = vpack.c.bf16 %v5345, %v5345
      %v5905 = vpack.c.bf16 %v5348, %v5348
      %v5906 = vpack.c.bf16 %v5350, %v5350
      %v5907 = vpack.c.bf16 %v5353, %v5353
      %v5908 = vpack.c.bf16 %v5355, %v5355
      %v5909 = vpack.c.bf16 %v5358, %v5358
      %v5910 = vpack.c.bf16 %v5360, %v5360
      %v5911 = vpack.c.bf16 %v5363, %v5363
      %v5912 = vpack.c.bf16 %v5365, %v5365
      %v5913 = vpack.c.bf16 %v5662, %v5662
      %v5914 = vpack.c.bf16 %v5664, %v5664
      %v5915 = vpack.c.bf16 %v5667, %v5667
      %v5916 = vpack.c.bf16 %v5669, %v5669
      %v5917 = vpack.c.bf16 %v5672, %v5672
      %v5918 = vpack.c.bf16 %v5674, %v5674
      %v5919 = vpack.c.bf16 %v5677, %v5677
      %v5920 = vpack.c.bf16 %v5679, %v5679
      %v5921 = vpack.c.bf16 %v5682, %v5682
      %v5922 = vpack.c.bf16 %v5684, %v5684
      %v5923 = vpack.c.bf16 %v5687, %v5687
      %v5924 = vpack.c.bf16 %v5689, %v5689
      %v5925 = vpack.c.bf16 %v5692, %v5692
      %v5926 = vpack.c.bf16 %v5694, %v5694
      %v5927 = vpack.c.bf16 %v5697, %v5697
      %v5928 = vpack.c.bf16 %v5699, %v5699
      %v5929 = vpack.c.bf16 %v5702, %v5702
      %v5930 = vpack.c.bf16 %v5704, %v5704
      %v5931 = vpack.c.bf16 %v5707, %v5707
      %v5932 = vpack.c.bf16 %v5709, %v5709
      %v5933 = vpack.c.bf16 %v5712, %v5712
      %v5934 = vpack.c.bf16 %v5714, %v5714
      %v5935 = vpack.c.bf16 %v5717, %v5717
      %v5936 = vpack.c.bf16 %v5719, %v5719
      %v5937 = vpack.c.bf16 %v5722, %v5722
      %v5938 = vpack.c.bf16 %v5724, %v5724
      %v5939 = vpack.c.bf16 %v5727, %v5727
      %v5940 = vpack.c.bf16 %v5729, %v5729
      %v5941 = vpack.c.bf16 %v5732, %v5732
      %v5942 = vpack.c.bf16 %v5734, %v5734
      %v5943 = vpack.c.bf16 %v5737, %v5737
      %v5944 = vpack.c.bf16 %v5739, %v5739
      %v5945 = vpack.c.bf16 %v5742, %v5742
      %v5946 = vpack.c.bf16 %v5744, %v5744
      %v5947 = vpack.c.bf16 %v5747, %v5747
      %v5948 = vpack.c.bf16 %v5749, %v5749
      %v5949 = vpack.c.bf16 %v5752, %v5752
      %v5950 = vpack.c.bf16 %v5754, %v5754
      %v5951 = vpack.c.bf16 %v5757, %v5757
      %v5952 = vpack.c.bf16 %v5759, %v5759
      %v5953 = vpack.c.bf16 %v5762, %v5762
      %v5954 = vpack.c.bf16 %v5764, %v5764
      %v5955 = vpack.c.bf16 %v5767, %v5767
      %v5956 = vpack.c.bf16 %v5769, %v5769
      %v5957 = vpack.c.bf16 %v5772, %v5772
      %v5958 = vpack.c.bf16 %v5774, %v5774
      %v5959 = vpack.c.bf16 %v5777, %v5777
      %v5960 = vpack.c.bf16 %v5779, %v5779
      %v5961 = vpack.c.bf16 %v5782, %v5782
      %v5962 = vpack.c.bf16 %v5784, %v5784
      %v5963 = vpack.c.bf16 %v5787, %v5787
      %v5964 = vpack.c.bf16 %v5789, %v5789
      %v5965 = vpack.c.bf16 %v5792, %v5792
      %v5966 = vpack.c.bf16 %v5794, %v5794
      %v5967 = vpack.c.bf16 %v5797, %v5797
      %v5968 = vpack.c.bf16 %v5799, %v5799
      %v5969 = vpack.c.bf16 %v5802, %v5802
      %v5970 = vpack.c.bf16 %v5804, %v5804
      %v5971 = vpack.c.bf16 %v5807, %v5807
      %v5972 = vpack.c.bf16 %v5809, %v5809
      %v5973 = vpack.c.bf16 %v5812, %v5812
      %v5974 = vpack.c.bf16 %v5814, %v5814
      %v5975 = vpack.c.bf16 %v5817, %v5817
      %v5976 = vpack.c.bf16 %v5819, %v5819
      %v5977 = vpack.c.bf16 %v5822, %v5822
      %v5978 = vpack.c.bf16 %v5824, %v5824
      %v5979 = vpack.c.bf16 %v5827, %v5827
      %v5980 = vpack.c.bf16 %v5829, %v5829
      %v5981 = vpack.c.bf16 %v5832, %v5832
      %v5982 = vpack.c.bf16 %v5834, %v5834
      %v5983 = vpack.c.bf16 %v5837, %v5837
      %v5984 = vpack.c.bf16 %v5839, %v5839
      %v5985 = vld [vmem:[%s4] sm:$0xf]
      %v5986 = vld [vmem:[%s4 + $0x4] sm:$0xf]
      %v5987 = vld [vmem:[%s4 + $0x8] sm:$0xf]
      %v5988 = vld [vmem:[%s4 + $0xc] sm:$0xf]
      %v5989 = vld [vmem:[%s4 + $0x10] sm:$0xf]
      %v5990 = vld [vmem:[%s4 + $0x14] sm:$0xf]
      %v5991 = vld [vmem:[%s4 + $0x18] sm:$0xf]
      %v5992 = vld [vmem:[%s4 + $0x1c] sm:$0xf]
      %s5993 = scalar_lea.vmem %s4, 32
      %v5994 = vld [vmem:[%s5993] sm:$0xf]
      %v5995 = vld [vmem:[%s5993 + $0x4] sm:$0xf]
      %v5996 = vld [vmem:[%s5993 + $0x8] sm:$0xf]
      %v5997 = vld [vmem:[%s5993 + $0xc] sm:$0xf]
      %v5998 = vld [vmem:[%s5993 + $0x10] sm:$0xf]
      %v5999 = vld [vmem:[%s5993 + $0x14] sm:$0xf]
      %v6000 = vld [vmem:[%s5993 + $0x18] sm:$0xf]
      %v6001 = vld [vmem:[%s5993 + $0x1c] sm:$0xf]
      %v6018 = vunpack.c.l.b16 %v5849
      %v6019 = vunpack.c.l.b16 %v5850
      %v6020 = vunpack.c.l.b16 %v5851
      %v6021 = vunpack.c.l.b16 %v5852
      %v6022 = vunpack.c.l.b16 %v5853
      %v6023 = vunpack.c.l.b16 %v5854
      %v6024 = vunpack.c.l.b16 %v5855
      %v6025 = vunpack.c.l.b16 %v5856
      %v6026 = vunpack.c.l.b16 %v5921
      %v6027 = vunpack.c.l.b16 %v5922
      %v6028 = vunpack.c.l.b16 %v5923
      %v6029 = vunpack.c.l.b16 %v5924
      %v6030 = vunpack.c.l.b16 %v5925
      %v6031 = vunpack.c.l.b16 %v5926
      %v6032 = vunpack.c.l.b16 %v5927
      %v6033 = vunpack.c.l.b16 %v5928
      %v6034 = vpack.c.b16 %v6019, %v6018
      %v6035 = vpack.c.b16 %v6021, %v6020
      %v6036 = vpack.c.b16 %v6023, %v6022
      %v6037 = vpack.c.b16 %v6025, %v6024
      %v6038 = vpack.c.b16 %v6027, %v6026
      %v6039 = vpack.c.b16 %v6029, %v6028
      %v6040 = vpack.c.b16 %v6031, %v6030
      %v6041 = vpack.c.b16 %v6033, %v6032
      %v6050 = vunpack.c.l.b16 %v5994
      %v6051 = vunpack.c.l.b16 %v5995
      %v6052 = vunpack.c.l.b16 %v5996
      %v6053 = vunpack.c.l.b16 %v5997
      %v6054 = vunpack.c.l.b16 %v5998
      %v6055 = vunpack.c.l.b16 %v5999
      %v6056 = vunpack.c.l.b16 %v6000
      %v6057 = vunpack.c.l.b16 %v6001
      %v6058 = vpack.c.b16 %v6051, %v6050
      %v6059 = vpack.c.b16 %v6053, %v6052
      %v6060 = vpack.c.b16 %v6055, %v6054
      %v6061 = vpack.c.b16 %v6057, %v6056
      %vm6066 = vcmask 523264
      %v6068 = vsel %vm6066, %v6034, 0
      %v6071 = vsel %vm6066, %v6035, 0
      %v6074 = vsel %vm6066, %v6036, 0
      %v6077 = vsel %vm6066, %v6037, 0
      %v6080 = vsel %vm6066, %v6038, 0
      %v6083 = vsel %vm6066, %v6039, 0
      %v6086 = vsel %vm6066, %v6040, 0
      %v6089 = vsel %vm6066, %v6041, 0
      %6091 = vmatpush.bf16.msra.mxu0 0
      %6092 = vmatpush.bf16.msra.mxu0 0
      %6093 = vmatpush.bf16.msra.mxu0 0
      %6094 = vmatpush.bf16.msra.mxu0 0
      %6095 = vmatpush.bf16.msra.mxu0 %v6061
      %6096 = vmatpush.bf16.msra.mxu0 %v6060
      %6097 = vmatpush.bf16.msra.mxu0 %v6059
      %6098 = vmatpush.bf16.msra.mxu0 %v6058
      %6099 = vmatmul.bf16.gmra.mxu0 %v6068
      %v6100 = vpop.f32.mrf.mxu0
      %v6101 = vadd.f32 0.0, %v6100
      %v6102 = vpop.f32.mrf.mxu0
      %v6103 = vadd.f32 0.0, %v6102
      %6104 = vmatmul.bf16.gmra.mxu0 %v6071
      %v6105 = vpop.f32.mrf.mxu0
      %v6106 = vadd.f32 0.0, %v6105
      %v6107 = vpop.f32.mrf.mxu0
      %v6108 = vadd.f32 0.0, %v6107
      %6109 = vmatmul.bf16.gmra.mxu0 %v6074
      %v6110 = vpop.f32.mrf.mxu0
      %v6111 = vadd.f32 0.0, %v6110
      %v6112 = vpop.f32.mrf.mxu0
      %v6113 = vadd.f32 0.0, %v6112
      %6114 = vmatmul.bf16.gmra.mxu0 %v6077
      %v6115 = vpop.f32.mrf.mxu0
      %v6116 = vadd.f32 0.0, %v6115
      %v6117 = vpop.f32.mrf.mxu0
      %v6118 = vadd.f32 0.0, %v6117
      %6119 = vmatmul.bf16.gmra.mxu0 %v6080
      %v6120 = vpop.f32.mrf.mxu0
      %v6121 = vadd.f32 0.0, %v6120
      %v6122 = vpop.f32.mrf.mxu0
      %v6123 = vadd.f32 0.0, %v6122
      %6124 = vmatmul.bf16.gmra.mxu0 %v6083
      %v6125 = vpop.f32.mrf.mxu0
      %v6126 = vadd.f32 0.0, %v6125
      %v6127 = vpop.f32.mrf.mxu0
      %v6128 = vadd.f32 0.0, %v6127
      %6129 = vmatmul.bf16.gmra.mxu0 %v6086
      %v6130 = vpop.f32.mrf.mxu0
      %v6131 = vadd.f32 0.0, %v6130
      %v6132 = vpop.f32.mrf.mxu0
      %v6133 = vadd.f32 0.0, %v6132
      %6134 = vmatmul.bf16.gmra.mxu0 %v6089
      %v6135 = vpop.f32.mrf.mxu0
      %v6136 = vadd.f32 0.0, %v6135
      %v6137 = vpop.f32.mrf.mxu0
      %v6138 = vadd.f32 0.0, %v6137
      %6139 = vdwg.mxu0
      %v6156 = vunpack.c.l.b16 %v5841
      %v6157 = vunpack.c.l.b16 %v5842
      %v6158 = vunpack.c.l.b16 %v5843
      %v6159 = vunpack.c.l.b16 %v5844
      %v6160 = vunpack.c.l.b16 %v5845
      %v6161 = vunpack.c.l.b16 %v5846
      %v6162 = vunpack.c.l.b16 %v5847
      %v6163 = vunpack.c.l.b16 %v5848
      %v6164 = vunpack.c.l.b16 %v5913
      %v6165 = vunpack.c.l.b16 %v5914
      %v6166 = vunpack.c.l.b16 %v5915
      %v6167 = vunpack.c.l.b16 %v5916
      %v6168 = vunpack.c.l.b16 %v5917
      %v6169 = vunpack.c.l.b16 %v5918
      %v6170 = vunpack.c.l.b16 %v5919
      %v6171 = vunpack.c.l.b16 %v5920
      %v6172 = vpack.c.b16 %v6157, %v6156
      %v6173 = vpack.c.b16 %v6159, %v6158
      %v6174 = vpack.c.b16 %v6161, %v6160
      %v6175 = vpack.c.b16 %v6163, %v6162
      %v6176 = vpack.c.b16 %v6165, %v6164
      %v6177 = vpack.c.b16 %v6167, %v6166
      %v6178 = vpack.c.b16 %v6169, %v6168
      %v6179 = vpack.c.b16 %v6171, %v6170
      %v6188 = vunpack.c.l.b16 %v5985
      %v6189 = vunpack.c.l.b16 %v5986
      %v6190 = vunpack.c.l.b16 %v5987
      %v6191 = vunpack.c.l.b16 %v5988
      %v6192 = vunpack.c.l.b16 %v5989
      %v6193 = vunpack.c.l.b16 %v5990
      %v6194 = vunpack.c.l.b16 %v5991
      %v6195 = vunpack.c.l.b16 %v5992
      %v6196 = vpack.c.b16 %v6189, %v6188
      %v6197 = vpack.c.b16 %v6191, %v6190
      %v6198 = vpack.c.b16 %v6193, %v6192
      %v6199 = vpack.c.b16 %v6195, %v6194
      %v6205 = vsel %vm6066, %v6172, 0
      %v6208 = vsel %vm6066, %v6173, 0
      %v6211 = vsel %vm6066, %v6174, 0
      %v6214 = vsel %vm6066, %v6175, 0
      %v6217 = vsel %vm6066, %v6176, 0
      %v6220 = vsel %vm6066, %v6177, 0
      %v6223 = vsel %vm6066, %v6178, 0
      %v6226 = vsel %vm6066, %v6179, 0
      %6228 = vmatpush.bf16.msra.mxu0 0
      %6229 = vmatpush.bf16.msra.mxu0 0
      %6230 = vmatpush.bf16.msra.mxu0 0
      %6231 = vmatpush.bf16.msra.mxu0 0
      %6232 = vmatpush.bf16.msra.mxu0 %v6199
      %6233 = vmatpush.bf16.msra.mxu0 %v6198
      %6234 = vmatpush.bf16.msra.mxu0 %v6197
      %6235 = vmatpush.bf16.msra.mxu0 %v6196
      %6236 = vmatmul.bf16.gmra.mxu0 %v6205
      %v6237 = vpop.f32.mrf.mxu0
      %v6238 = vadd.f32 %v6101, %v6237
      %v6239 = vpop.f32.mrf.mxu0
      %v6240 = vadd.f32 %v6103, %v6239
      %6241 = vmatmul.bf16.gmra.mxu0 %v6208
      %v6242 = vpop.f32.mrf.mxu0
      %v6243 = vadd.f32 %v6106, %v6242
      %v6244 = vpop.f32.mrf.mxu0
      %v6245 = vadd.f32 %v6108, %v6244
      %6246 = vmatmul.bf16.gmra.mxu0 %v6211
      %v6247 = vpop.f32.mrf.mxu0
      %v6248 = vadd.f32 %v6111, %v6247
      %v6249 = vpop.f32.mrf.mxu0
      %v6250 = vadd.f32 %v6113, %v6249
      %6251 = vmatmul.bf16.gmra.mxu0 %v6214
      %v6252 = vpop.f32.mrf.mxu0
      %v6253 = vadd.f32 %v6116, %v6252
      %v6254 = vpop.f32.mrf.mxu0
      %v6255 = vadd.f32 %v6118, %v6254
      %6256 = vmatmul.bf16.gmra.mxu0 %v6217
      %v6257 = vpop.f32.mrf.mxu0
      %v6258 = vadd.f32 %v6121, %v6257
      %v6259 = vpop.f32.mrf.mxu0
      %v6260 = vadd.f32 %v6123, %v6259
      %6261 = vmatmul.bf16.gmra.mxu0 %v6220
      %v6262 = vpop.f32.mrf.mxu0
      %v6263 = vadd.f32 %v6126, %v6262
      %v6264 = vpop.f32.mrf.mxu0
      %v6265 = vadd.f32 %v6128, %v6264
      %6266 = vmatmul.bf16.gmra.mxu0 %v6223
      %v6267 = vpop.f32.mrf.mxu0
      %v6268 = vadd.f32 %v6131, %v6267
      %v6269 = vpop.f32.mrf.mxu0
      %v6270 = vadd.f32 %v6133, %v6269
      %6271 = vmatmul.bf16.gmra.mxu0 %v6226
      %v6272 = vpop.f32.mrf.mxu0
      %v6273 = vadd.f32 %v6136, %v6272
      %v6274 = vpop.f32.mrf.mxu0
      %v6275 = vadd.f32 %v6138, %v6274
      %6276 = vdwg.mxu0
      %s6277 = scalar_lea.vmem %s4, 64
      %v6278 = vld [vmem:[%s6277] sm:$0xf]
      %v6279 = vld [vmem:[%s6277 + $0x4] sm:$0xf]
      %v6280 = vld [vmem:[%s6277 + $0x8] sm:$0xf]
      %v6281 = vld [vmem:[%s6277 + $0xc] sm:$0xf]
      %v6282 = vld [vmem:[%s6277 + $0x10] sm:$0xf]
      %v6283 = vld [vmem:[%s6277 + $0x14] sm:$0xf]
      %v6284 = vld [vmem:[%s6277 + $0x18] sm:$0xf]
      %v6285 = vld [vmem:[%s6277 + $0x1c] sm:$0xf]
      %v6302 = vunpack.c.l.b16 %v5857
      %v6303 = vunpack.c.l.b16 %v5858
      %v6304 = vunpack.c.l.b16 %v5859
      %v6305 = vunpack.c.l.b16 %v5860
      %v6306 = vunpack.c.l.b16 %v5861
      %v6307 = vunpack.c.l.b16 %v5862
      %v6308 = vunpack.c.l.b16 %v5863
      %v6309 = vunpack.c.l.b16 %v5864
      %v6310 = vunpack.c.l.b16 %v5929
      %v6311 = vunpack.c.l.b16 %v5930
      %v6312 = vunpack.c.l.b16 %v5931
      %v6313 = vunpack.c.l.b16 %v5932
      %v6314 = vunpack.c.l.b16 %v5933
      %v6315 = vunpack.c.l.b16 %v5934
      %v6316 = vunpack.c.l.b16 %v5935
      %v6317 = vunpack.c.l.b16 %v5936
      %v6318 = vpack.c.b16 %v6303, %v6302
      %v6319 = vpack.c.b16 %v6305, %v6304
      %v6320 = vpack.c.b16 %v6307, %v6306
      %v6321 = vpack.c.b16 %v6309, %v6308
      %v6322 = vpack.c.b16 %v6311, %v6310
      %v6323 = vpack.c.b16 %v6313, %v6312
      %v6324 = vpack.c.b16 %v6315, %v6314
      %v6325 = vpack.c.b16 %v6317, %v6316
      %v6334 = vunpack.c.l.b16 %v6278
      %v6335 = vunpack.c.l.b16 %v6279
      %v6336 = vunpack.c.l.b16 %v6280
      %v6337 = vunpack.c.l.b16 %v6281
      %v6338 = vunpack.c.l.b16 %v6282
      %v6339 = vunpack.c.l.b16 %v6283
      %v6340 = vunpack.c.l.b16 %v6284
      %v6341 = vunpack.c.l.b16 %v6285
      %v6342 = vpack.c.b16 %v6335, %v6334
      %v6343 = vpack.c.b16 %v6337, %v6336
      %v6344 = vpack.c.b16 %v6339, %v6338
      %v6345 = vpack.c.b16 %v6341, %v6340
      %v6351 = vsel %vm6066, %v6318, 0
      %v6354 = vsel %vm6066, %v6319, 0
      %v6357 = vsel %vm6066, %v6320, 0
      %v6360 = vsel %vm6066, %v6321, 0
      %v6363 = vsel %vm6066, %v6322, 0
      %v6366 = vsel %vm6066, %v6323, 0
      %v6369 = vsel %vm6066, %v6324, 0
      %v6372 = vsel %vm6066, %v6325, 0
      %6374 = vmatpush.bf16.msra.mxu0 0
      %6375 = vmatpush.bf16.msra.mxu0 0
      %6376 = vmatpush.bf16.msra.mxu0 0
      %6377 = vmatpush.bf16.msra.mxu0 0
      %6378 = vmatpush.bf16.msra.mxu0 %v6345
      %6379 = vmatpush.bf16.msra.mxu0 %v6344
      %6380 = vmatpush.bf16.msra.mxu0 %v6343
      %6381 = vmatpush.bf16.msra.mxu0 %v6342
      %6382 = vmatmul.bf16.gmra.mxu0 %v6351
      %v6383 = vpop.f32.mrf.mxu0
      %v6384 = vadd.f32 0.0, %v6383
      %v6385 = vpop.f32.mrf.mxu0
      %v6386 = vadd.f32 0.0, %v6385
      %6387 = vmatmul.bf16.gmra.mxu0 %v6354
      %v6388 = vpop.f32.mrf.mxu0
      %v6389 = vadd.f32 0.0, %v6388
      %v6390 = vpop.f32.mrf.mxu0
      %v6391 = vadd.f32 0.0, %v6390
      %6392 = vmatmul.bf16.gmra.mxu0 %v6357
      %v6393 = vpop.f32.mrf.mxu0
      %v6394 = vadd.f32 0.0, %v6393
      %v6395 = vpop.f32.mrf.mxu0
      %v6396 = vadd.f32 0.0, %v6395
      %6397 = vmatmul.bf16.gmra.mxu0 %v6360
      %v6398 = vpop.f32.mrf.mxu0
      %v6399 = vadd.f32 0.0, %v6398
      %v6400 = vpop.f32.mrf.mxu0
      %v6401 = vadd.f32 0.0, %v6400
      %6402 = vmatmul.bf16.gmra.mxu0 %v6363
      %v6403 = vpop.f32.mrf.mxu0
      %v6404 = vadd.f32 0.0, %v6403
      %v6405 = vpop.f32.mrf.mxu0
      %v6406 = vadd.f32 0.0, %v6405
      %6407 = vmatmul.bf16.gmra.mxu0 %v6366
      %v6408 = vpop.f32.mrf.mxu0
      %v6409 = vadd.f32 0.0, %v6408
      %v6410 = vpop.f32.mrf.mxu0
      %v6411 = vadd.f32 0.0, %v6410
      %6412 = vmatmul.bf16.gmra.mxu0 %v6369
      %v6413 = vpop.f32.mrf.mxu0
      %v6414 = vadd.f32 0.0, %v6413
      %v6415 = vpop.f32.mrf.mxu0
      %v6416 = vadd.f32 0.0, %v6415
      %6417 = vmatmul.bf16.gmra.mxu0 %v6372
      %v6418 = vpop.f32.mrf.mxu0
      %v6419 = vadd.f32 0.0, %v6418
      %v6420 = vpop.f32.mrf.mxu0
      %v6421 = vadd.f32 0.0, %v6420
      %6422 = vdwg.mxu0
      %v6423 = vadd.f32 %v6238, %v6384
      %v6424 = vadd.f32 %v6240, %v6386
      %v6425 = vadd.f32 %v6243, %v6389
      %v6426 = vadd.f32 %v6245, %v6391
      %v6427 = vadd.f32 %v6248, %v6394
      %v6428 = vadd.f32 %v6250, %v6396
      %v6429 = vadd.f32 %v6253, %v6399
      %v6430 = vadd.f32 %v6255, %v6401
      %v6431 = vadd.f32 %v6258, %v6404
      %v6432 = vadd.f32 %v6260, %v6406
      %v6433 = vadd.f32 %v6263, %v6409
      %v6434 = vadd.f32 %v6265, %v6411
      %v6435 = vadd.f32 %v6268, %v6414
      %v6436 = vadd.f32 %v6270, %v6416
      %v6437 = vadd.f32 %v6273, %v6419
      %v6438 = vadd.f32 %v6275, %v6421
      %s6439 = scalar_lea.vmem %s4, 96
      %v6440 = vld [vmem:[%s6439] sm:$0xf]
      %v6441 = vld [vmem:[%s6439 + $0x4] sm:$0xf]
      %v6442 = vld [vmem:[%s6439 + $0x8] sm:$0xf]
      %v6443 = vld [vmem:[%s6439 + $0xc] sm:$0xf]
      %v6444 = vld [vmem:[%s6439 + $0x10] sm:$0xf]
      %v6445 = vld [vmem:[%s6439 + $0x14] sm:$0xf]
      %v6446 = vld [vmem:[%s6439 + $0x18] sm:$0xf]
      %v6447 = vld [vmem:[%s6439 + $0x1c] sm:$0xf]
      %v6464 = vunpack.c.l.b16 %v5865
      %v6465 = vunpack.c.l.b16 %v5866
      %v6466 = vunpack.c.l.b16 %v5867
      %v6467 = vunpack.c.l.b16 %v5868
      %v6468 = vunpack.c.l.b16 %v5869
      %v6469 = vunpack.c.l.b16 %v5870
      %v6470 = vunpack.c.l.b16 %v5871
      %v6471 = vunpack.c.l.b16 %v5872
      %v6472 = vunpack.c.l.b16 %v5937
      %v6473 = vunpack.c.l.b16 %v5938
      %v6474 = vunpack.c.l.b16 %v5939
      %v6475 = vunpack.c.l.b16 %v5940
      %v6476 = vunpack.c.l.b16 %v5941
      %v6477 = vunpack.c.l.b16 %v5942
      %v6478 = vunpack.c.l.b16 %v5943
      %v6479 = vunpack.c.l.b16 %v5944
      %v6480 = vpack.c.b16 %v6465, %v6464
      %v6481 = vpack.c.b16 %v6467, %v6466
      %v6482 = vpack.c.b16 %v6469, %v6468
      %v6483 = vpack.c.b16 %v6471, %v6470
      %v6484 = vpack.c.b16 %v6473, %v6472
      %v6485 = vpack.c.b16 %v6475, %v6474
      %v6486 = vpack.c.b16 %v6477, %v6476
      %v6487 = vpack.c.b16 %v6479, %v6478
      %v6496 = vunpack.c.l.b16 %v6440
      %v6497 = vunpack.c.l.b16 %v6441
      %v6498 = vunpack.c.l.b16 %v6442
      %v6499 = vunpack.c.l.b16 %v6443
      %v6500 = vunpack.c.l.b16 %v6444
      %v6501 = vunpack.c.l.b16 %v6445
      %v6502 = vunpack.c.l.b16 %v6446
      %v6503 = vunpack.c.l.b16 %v6447
      %v6504 = vpack.c.b16 %v6497, %v6496
      %v6505 = vpack.c.b16 %v6499, %v6498
      %v6506 = vpack.c.b16 %v6501, %v6500
      %v6507 = vpack.c.b16 %v6503, %v6502
      %v6513 = vsel %vm6066, %v6480, 0
      %v6516 = vsel %vm6066, %v6481, 0
      %v6519 = vsel %vm6066, %v6482, 0
      %v6522 = vsel %vm6066, %v6483, 0
      %v6525 = vsel %vm6066, %v6484, 0
      %v6528 = vsel %vm6066, %v6485, 0
      %v6531 = vsel %vm6066, %v6486, 0
      %v6534 = vsel %vm6066, %v6487, 0
      %6536 = vmatpush.bf16.msra.mxu0 0
      %6537 = vmatpush.bf16.msra.mxu0 0
      %6538 = vmatpush.bf16.msra.mxu0 0
      %6539 = vmatpush.bf16.msra.mxu0 0
      %6540 = vmatpush.bf16.msra.mxu0 %v6507
      %6541 = vmatpush.bf16.msra.mxu0 %v6506
      %6542 = vmatpush.bf16.msra.mxu0 %v6505
      %6543 = vmatpush.bf16.msra.mxu0 %v6504
      %6544 = vmatmul.bf16.gmra.mxu0 %v6513
      %v6545 = vpop.f32.mrf.mxu0
      %v6546 = vadd.f32 0.0, %v6545
      %v6547 = vpop.f32.mrf.mxu0
      %v6548 = vadd.f32 0.0, %v6547
      %6549 = vmatmul.bf16.gmra.mxu0 %v6516
      %v6550 = vpop.f32.mrf.mxu0
      %v6551 = vadd.f32 0.0, %v6550
      %v6552 = vpop.f32.mrf.mxu0
      %v6553 = vadd.f32 0.0, %v6552
      %6554 = vmatmul.bf16.gmra.mxu0 %v6519
      %v6555 = vpop.f32.mrf.mxu0
      %v6556 = vadd.f32 0.0, %v6555
      %v6557 = vpop.f32.mrf.mxu0
      %v6558 = vadd.f32 0.0, %v6557
      %6559 = vmatmul.bf16.gmra.mxu0 %v6522
      %v6560 = vpop.f32.mrf.mxu0
      %v6561 = vadd.f32 0.0, %v6560
      %v6562 = vpop.f32.mrf.mxu0
      %v6563 = vadd.f32 0.0, %v6562
      %6564 = vmatmul.bf16.gmra.mxu0 %v6525
      %v6565 = vpop.f32.mrf.mxu0
      %v6566 = vadd.f32 0.0, %v6565
      %v6567 = vpop.f32.mrf.mxu0
      %v6568 = vadd.f32 0.0, %v6567
      %6569 = vmatmul.bf16.gmra.mxu0 %v6528
      %v6570 = vpop.f32.mrf.mxu0
      %v6571 = vadd.f32 0.0, %v6570
      %v6572 = vpop.f32.mrf.mxu0
      %v6573 = vadd.f32 0.0, %v6572
      %6574 = vmatmul.bf16.gmra.mxu0 %v6531
      %v6575 = vpop.f32.mrf.mxu0
      %v6576 = vadd.f32 0.0, %v6575
      %v6577 = vpop.f32.mrf.mxu0
      %v6578 = vadd.f32 0.0, %v6577
      %6579 = vmatmul.bf16.gmra.mxu0 %v6534
      %v6580 = vpop.f32.mrf.mxu0
      %v6581 = vadd.f32 0.0, %v6580
      %v6582 = vpop.f32.mrf.mxu0
      %v6583 = vadd.f32 0.0, %v6582
      %6584 = vdwg.mxu0
      %v6585 = vadd.f32 %v6423, %v6546
      %v6586 = vadd.f32 %v6424, %v6548
      %v6587 = vadd.f32 %v6425, %v6551
      %v6588 = vadd.f32 %v6426, %v6553
      %v6589 = vadd.f32 %v6427, %v6556
      %v6590 = vadd.f32 %v6428, %v6558
      %v6591 = vadd.f32 %v6429, %v6561
      %v6592 = vadd.f32 %v6430, %v6563
      %v6593 = vadd.f32 %v6431, %v6566
      %v6594 = vadd.f32 %v6432, %v6568
      %v6595 = vadd.f32 %v6433, %v6571
      %v6596 = vadd.f32 %v6434, %v6573
      %v6597 = vadd.f32 %v6435, %v6576
      %v6598 = vadd.f32 %v6436, %v6578
      %v6599 = vadd.f32 %v6437, %v6581
      %v6600 = vadd.f32 %v6438, %v6583
      %s6601 = scalar_lea.vmem %s4, 128
      %v6602 = vld [vmem:[%s6601] sm:$0xf]
      %v6603 = vld [vmem:[%s6601 + $0x4] sm:$0xf]
      %v6604 = vld [vmem:[%s6601 + $0x8] sm:$0xf]
      %v6605 = vld [vmem:[%s6601 + $0xc] sm:$0xf]
      %v6606 = vld [vmem:[%s6601 + $0x10] sm:$0xf]
      %v6607 = vld [vmem:[%s6601 + $0x14] sm:$0xf]
      %v6608 = vld [vmem:[%s6601 + $0x18] sm:$0xf]
      %v6609 = vld [vmem:[%s6601 + $0x1c] sm:$0xf]
      %v6626 = vunpack.c.l.b16 %v5873
      %v6627 = vunpack.c.l.b16 %v5874
      %v6628 = vunpack.c.l.b16 %v5875
      %v6629 = vunpack.c.l.b16 %v5876
      %v6630 = vunpack.c.l.b16 %v5877
      %v6631 = vunpack.c.l.b16 %v5878
      %v6632 = vunpack.c.l.b16 %v5879
      %v6633 = vunpack.c.l.b16 %v5880
      %v6634 = vunpack.c.l.b16 %v5945
      %v6635 = vunpack.c.l.b16 %v5946
      %v6636 = vunpack.c.l.b16 %v5947
      %v6637 = vunpack.c.l.b16 %v5948
      %v6638 = vunpack.c.l.b16 %v5949
      %v6639 = vunpack.c.l.b16 %v5950
      %v6640 = vunpack.c.l.b16 %v5951
      %v6641 = vunpack.c.l.b16 %v5952
      %v6642 = vpack.c.b16 %v6627, %v6626
      %v6643 = vpack.c.b16 %v6629, %v6628
      %v6644 = vpack.c.b16 %v6631, %v6630
      %v6645 = vpack.c.b16 %v6633, %v6632
      %v6646 = vpack.c.b16 %v6635, %v6634
      %v6647 = vpack.c.b16 %v6637, %v6636
      %v6648 = vpack.c.b16 %v6639, %v6638
      %v6649 = vpack.c.b16 %v6641, %v6640
      %v6658 = vunpack.c.l.b16 %v6602
      %v6659 = vunpack.c.l.b16 %v6603
      %v6660 = vunpack.c.l.b16 %v6604
      %v6661 = vunpack.c.l.b16 %v6605
      %v6662 = vunpack.c.l.b16 %v6606
      %v6663 = vunpack.c.l.b16 %v6607
      %v6664 = vunpack.c.l.b16 %v6608
      %v6665 = vunpack.c.l.b16 %v6609
      %v6666 = vpack.c.b16 %v6659, %v6658
      %v6667 = vpack.c.b16 %v6661, %v6660
      %v6668 = vpack.c.b16 %v6663, %v6662
      %v6669 = vpack.c.b16 %v6665, %v6664
      %v6675 = vsel %vm6066, %v6642, 0
      %v6678 = vsel %vm6066, %v6643, 0
      %v6681 = vsel %vm6066, %v6644, 0
      %v6684 = vsel %vm6066, %v6645, 0
      %v6687 = vsel %vm6066, %v6646, 0
      %v6690 = vsel %vm6066, %v6647, 0
      %v6693 = vsel %vm6066, %v6648, 0
      %v6696 = vsel %vm6066, %v6649, 0
      %6698 = vmatpush.bf16.msra.mxu0 0
      %6699 = vmatpush.bf16.msra.mxu0 0
      %6700 = vmatpush.bf16.msra.mxu0 0
      %6701 = vmatpush.bf16.msra.mxu0 0
      %6702 = vmatpush.bf16.msra.mxu0 %v6669
      %6703 = vmatpush.bf16.msra.mxu0 %v6668
      %6704 = vmatpush.bf16.msra.mxu0 %v6667
      %6705 = vmatpush.bf16.msra.mxu0 %v6666
      %6706 = vmatmul.bf16.gmra.mxu0 %v6675
      %v6707 = vpop.f32.mrf.mxu0
      %v6708 = vadd.f32 0.0, %v6707
      %v6709 = vpop.f32.mrf.mxu0
      %v6710 = vadd.f32 0.0, %v6709
      %6711 = vmatmul.bf16.gmra.mxu0 %v6678
      %v6712 = vpop.f32.mrf.mxu0
      %v6713 = vadd.f32 0.0, %v6712
      %v6714 = vpop.f32.mrf.mxu0
      %v6715 = vadd.f32 0.0, %v6714
      %6716 = vmatmul.bf16.gmra.mxu0 %v6681
      %v6717 = vpop.f32.mrf.mxu0
      %v6718 = vadd.f32 0.0, %v6717
      %v6719 = vpop.f32.mrf.mxu0
      %v6720 = vadd.f32 0.0, %v6719
      %6721 = vmatmul.bf16.gmra.mxu0 %v6684
      %v6722 = vpop.f32.mrf.mxu0
      %v6723 = vadd.f32 0.0, %v6722
      %v6724 = vpop.f32.mrf.mxu0
      %v6725 = vadd.f32 0.0, %v6724
      %6726 = vmatmul.bf16.gmra.mxu0 %v6687
      %v6727 = vpop.f32.mrf.mxu0
      %v6728 = vadd.f32 0.0, %v6727
      %v6729 = vpop.f32.mrf.mxu0
      %v6730 = vadd.f32 0.0, %v6729
      %6731 = vmatmul.bf16.gmra.mxu0 %v6690
      %v6732 = vpop.f32.mrf.mxu0
      %v6733 = vadd.f32 0.0, %v6732
      %v6734 = vpop.f32.mrf.mxu0
      %v6735 = vadd.f32 0.0, %v6734
      %6736 = vmatmul.bf16.gmra.mxu0 %v6693
      %v6737 = vpop.f32.mrf.mxu0
      %v6738 = vadd.f32 0.0, %v6737
      %v6739 = vpop.f32.mrf.mxu0
      %v6740 = vadd.f32 0.0, %v6739
      %6741 = vmatmul.bf16.gmra.mxu0 %v6696
      %v6742 = vpop.f32.mrf.mxu0
      %v6743 = vadd.f32 0.0, %v6742
      %v6744 = vpop.f32.mrf.mxu0
      %v6745 = vadd.f32 0.0, %v6744
      %6746 = vdwg.mxu0
      %v6747 = vadd.f32 %v6585, %v6708
      %v6748 = vadd.f32 %v6586, %v6710
      %v6749 = vadd.f32 %v6587, %v6713
      %v6750 = vadd.f32 %v6588, %v6715
      %v6751 = vadd.f32 %v6589, %v6718
      %v6752 = vadd.f32 %v6590, %v6720
      %v6753 = vadd.f32 %v6591, %v6723
      %v6754 = vadd.f32 %v6592, %v6725
      %v6755 = vadd.f32 %v6593, %v6728
      %v6756 = vadd.f32 %v6594, %v6730
      %v6757 = vadd.f32 %v6595, %v6733
      %v6758 = vadd.f32 %v6596, %v6735
      %v6759 = vadd.f32 %v6597, %v6738
      %v6760 = vadd.f32 %v6598, %v6740
      %v6761 = vadd.f32 %v6599, %v6743
      %v6762 = vadd.f32 %v6600, %v6745
      %s6763 = scalar_lea.vmem %s4, 160
      %v6764 = vld [vmem:[%s6763] sm:$0xf]
      %v6765 = vld [vmem:[%s6763 + $0x4] sm:$0xf]
      %v6766 = vld [vmem:[%s6763 + $0x8] sm:$0xf]
      %v6767 = vld [vmem:[%s6763 + $0xc] sm:$0xf]
      %v6768 = vld [vmem:[%s6763 + $0x10] sm:$0xf]
      %v6769 = vld [vmem:[%s6763 + $0x14] sm:$0xf]
      %v6770 = vld [vmem:[%s6763 + $0x18] sm:$0xf]
      %v6771 = vld [vmem:[%s6763 + $0x1c] sm:$0xf]
      %v6788 = vunpack.c.l.b16 %v5881
      %v6789 = vunpack.c.l.b16 %v5882
      %v6790 = vunpack.c.l.b16 %v5883
      %v6791 = vunpack.c.l.b16 %v5884
      %v6792 = vunpack.c.l.b16 %v5885
      %v6793 = vunpack.c.l.b16 %v5886
      %v6794 = vunpack.c.l.b16 %v5887
      %v6795 = vunpack.c.l.b16 %v5888
      %v6796 = vunpack.c.l.b16 %v5953
      %v6797 = vunpack.c.l.b16 %v5954
      %v6798 = vunpack.c.l.b16 %v5955
      %v6799 = vunpack.c.l.b16 %v5956
      %v6800 = vunpack.c.l.b16 %v5957
      %v6801 = vunpack.c.l.b16 %v5958
      %v6802 = vunpack.c.l.b16 %v5959
      %v6803 = vunpack.c.l.b16 %v5960
      %v6804 = vpack.c.b16 %v6789, %v6788
      %v6805 = vpack.c.b16 %v6791, %v6790
      %v6806 = vpack.c.b16 %v6793, %v6792
      %v6807 = vpack.c.b16 %v6795, %v6794
      %v6808 = vpack.c.b16 %v6797, %v6796
      %v6809 = vpack.c.b16 %v6799, %v6798
      %v6810 = vpack.c.b16 %v6801, %v6800
      %v6811 = vpack.c.b16 %v6803, %v6802
      %v6820 = vunpack.c.l.b16 %v6764
      %v6821 = vunpack.c.l.b16 %v6765
      %v6822 = vunpack.c.l.b16 %v6766
      %v6823 = vunpack.c.l.b16 %v6767
      %v6824 = vunpack.c.l.b16 %v6768
      %v6825 = vunpack.c.l.b16 %v6769
      %v6826 = vunpack.c.l.b16 %v6770
      %v6827 = vunpack.c.l.b16 %v6771
      %v6828 = vpack.c.b16 %v6821, %v6820
      %v6829 = vpack.c.b16 %v6823, %v6822
      %v6830 = vpack.c.b16 %v6825, %v6824
      %v6831 = vpack.c.b16 %v6827, %v6826
      %v6837 = vsel %vm6066, %v6804, 0
      %v6840 = vsel %vm6066, %v6805, 0
      %v6843 = vsel %vm6066, %v6806, 0
      %v6846 = vsel %vm6066, %v6807, 0
      %v6849 = vsel %vm6066, %v6808, 0
      %v6852 = vsel %vm6066, %v6809, 0
      %v6855 = vsel %vm6066, %v6810, 0
      %v6858 = vsel %vm6066, %v6811, 0
      %6860 = vmatpush.bf16.msra.mxu0 0
      %6861 = vmatpush.bf16.msra.mxu0 0
      %6862 = vmatpush.bf16.msra.mxu0 0
      %6863 = vmatpush.bf16.msra.mxu0 0
      %6864 = vmatpush.bf16.msra.mxu0 %v6831
      %6865 = vmatpush.bf16.msra.mxu0 %v6830
      %6866 = vmatpush.bf16.msra.mxu0 %v6829
      %6867 = vmatpush.bf16.msra.mxu0 %v6828
      %6868 = vmatmul.bf16.gmra.mxu0 %v6837
      %v6869 = vpop.f32.mrf.mxu0
      %v6870 = vadd.f32 0.0, %v6869
      %v6871 = vpop.f32.mrf.mxu0
      %v6872 = vadd.f32 0.0, %v6871
      %6873 = vmatmul.bf16.gmra.mxu0 %v6840
      %v6874 = vpop.f32.mrf.mxu0
      %v6875 = vadd.f32 0.0, %v6874
      %v6876 = vpop.f32.mrf.mxu0
      %v6877 = vadd.f32 0.0, %v6876
      %6878 = vmatmul.bf16.gmra.mxu0 %v6843
      %v6879 = vpop.f32.mrf.mxu0
      %v6880 = vadd.f32 0.0, %v6879
      %v6881 = vpop.f32.mrf.mxu0
      %v6882 = vadd.f32 0.0, %v6881
      %6883 = vmatmul.bf16.gmra.mxu0 %v6846
      %v6884 = vpop.f32.mrf.mxu0
      %v6885 = vadd.f32 0.0, %v6884
      %v6886 = vpop.f32.mrf.mxu0
      %v6887 = vadd.f32 0.0, %v6886
      %6888 = vmatmul.bf16.gmra.mxu0 %v6849
      %v6889 = vpop.f32.mrf.mxu0
      %v6890 = vadd.f32 0.0, %v6889
      %v6891 = vpop.f32.mrf.mxu0
      %v6892 = vadd.f32 0.0, %v6891
      %6893 = vmatmul.bf16.gmra.mxu0 %v6852
      %v6894 = vpop.f32.mrf.mxu0
      %v6895 = vadd.f32 0.0, %v6894
      %v6896 = vpop.f32.mrf.mxu0
      %v6897 = vadd.f32 0.0, %v6896
      %6898 = vmatmul.bf16.gmra.mxu0 %v6855
      %v6899 = vpop.f32.mrf.mxu0
      %v6900 = vadd.f32 0.0, %v6899
      %v6901 = vpop.f32.mrf.mxu0
      %v6902 = vadd.f32 0.0, %v6901
      %6903 = vmatmul.bf16.gmra.mxu0 %v6858
      %v6904 = vpop.f32.mrf.mxu0
      %v6905 = vadd.f32 0.0, %v6904
      %v6906 = vpop.f32.mrf.mxu0
      %v6907 = vadd.f32 0.0, %v6906
      %6908 = vdwg.mxu0
      %v6909 = vadd.f32 %v6747, %v6870
      %v6910 = vadd.f32 %v6748, %v6872
      %v6911 = vadd.f32 %v6749, %v6875
      %v6912 = vadd.f32 %v6750, %v6877
      %v6913 = vadd.f32 %v6751, %v6880
      %v6914 = vadd.f32 %v6752, %v6882
      %v6915 = vadd.f32 %v6753, %v6885
      %v6916 = vadd.f32 %v6754, %v6887
      %v6917 = vadd.f32 %v6755, %v6890
      %v6918 = vadd.f32 %v6756, %v6892
      %v6919 = vadd.f32 %v6757, %v6895
      %v6920 = vadd.f32 %v6758, %v6897
      %v6921 = vadd.f32 %v6759, %v6900
      %v6922 = vadd.f32 %v6760, %v6902
      %v6923 = vadd.f32 %v6761, %v6905
      %v6924 = vadd.f32 %v6762, %v6907
      %s6925 = scalar_lea.vmem %s4, 192
      %v6926 = vld [vmem:[%s6925] sm:$0xf]
      %v6927 = vld [vmem:[%s6925 + $0x4] sm:$0xf]
      %v6928 = vld [vmem:[%s6925 + $0x8] sm:$0xf]
      %v6929 = vld [vmem:[%s6925 + $0xc] sm:$0xf]
      %v6930 = vld [vmem:[%s6925 + $0x10] sm:$0xf]
      %v6931 = vld [vmem:[%s6925 + $0x14] sm:$0xf]
      %v6932 = vld [vmem:[%s6925 + $0x18] sm:$0xf]
      %v6933 = vld [vmem:[%s6925 + $0x1c] sm:$0xf]
      %v6950 = vunpack.c.l.b16 %v5889
      %v6951 = vunpack.c.l.b16 %v5890
      %v6952 = vunpack.c.l.b16 %v5891
      %v6953 = vunpack.c.l.b16 %v5892
      %v6954 = vunpack.c.l.b16 %v5893
      %v6955 = vunpack.c.l.b16 %v5894
      %v6956 = vunpack.c.l.b16 %v5895
      %v6957 = vunpack.c.l.b16 %v5896
      %v6958 = vunpack.c.l.b16 %v5961
      %v6959 = vunpack.c.l.b16 %v5962
      %v6960 = vunpack.c.l.b16 %v5963
      %v6961 = vunpack.c.l.b16 %v5964
      %v6962 = vunpack.c.l.b16 %v5965
      %v6963 = vunpack.c.l.b16 %v5966
      %v6964 = vunpack.c.l.b16 %v5967
      %v6965 = vunpack.c.l.b16 %v5968
      %v6966 = vpack.c.b16 %v6951, %v6950
      %v6967 = vpack.c.b16 %v6953, %v6952
      %v6968 = vpack.c.b16 %v6955, %v6954
      %v6969 = vpack.c.b16 %v6957, %v6956
      %v6970 = vpack.c.b16 %v6959, %v6958
      %v6971 = vpack.c.b16 %v6961, %v6960
      %v6972 = vpack.c.b16 %v6963, %v6962
      %v6973 = vpack.c.b16 %v6965, %v6964
      %v6982 = vunpack.c.l.b16 %v6926
      %v6983 = vunpack.c.l.b16 %v6927
      %v6984 = vunpack.c.l.b16 %v6928
      %v6985 = vunpack.c.l.b16 %v6929
      %v6986 = vunpack.c.l.b16 %v6930
      %v6987 = vunpack.c.l.b16 %v6931
      %v6988 = vunpack.c.l.b16 %v6932
      %v6989 = vunpack.c.l.b16 %v6933
      %v6990 = vpack.c.b16 %v6983, %v6982
      %v6991 = vpack.c.b16 %v6985, %v6984
      %v6992 = vpack.c.b16 %v6987, %v6986
      %v6993 = vpack.c.b16 %v6989, %v6988
      %v6999 = vsel %vm6066, %v6966, 0
      %v7002 = vsel %vm6066, %v6967, 0
      %v7005 = vsel %vm6066, %v6968, 0
      %v7008 = vsel %vm6066, %v6969, 0
      %v7011 = vsel %vm6066, %v6970, 0
      %v7014 = vsel %vm6066, %v6971, 0
      %v7017 = vsel %vm6066, %v6972, 0
      %v7020 = vsel %vm6066, %v6973, 0
      %7022 = vmatpush.bf16.msra.mxu0 0
      %7023 = vmatpush.bf16.msra.mxu0 0
      %7024 = vmatpush.bf16.msra.mxu0 0
      %7025 = vmatpush.bf16.msra.mxu0 0
      %7026 = vmatpush.bf16.msra.mxu0 %v6993
      %7027 = vmatpush.bf16.msra.mxu0 %v6992
      %7028 = vmatpush.bf16.msra.mxu0 %v6991
      %7029 = vmatpush.bf16.msra.mxu0 %v6990
      %7030 = vmatmul.bf16.gmra.mxu0 %v6999
      %v7031 = vpop.f32.mrf.mxu0
      %v7032 = vadd.f32 0.0, %v7031
      %v7033 = vpop.f32.mrf.mxu0
      %v7034 = vadd.f32 0.0, %v7033
      %7035 = vmatmul.bf16.gmra.mxu0 %v7002
      %v7036 = vpop.f32.mrf.mxu0
      %v7037 = vadd.f32 0.0, %v7036
      %v7038 = vpop.f32.mrf.mxu0
      %v7039 = vadd.f32 0.0, %v7038
      %7040 = vmatmul.bf16.gmra.mxu0 %v7005
      %v7041 = vpop.f32.mrf.mxu0
      %v7042 = vadd.f32 0.0, %v7041
      %v7043 = vpop.f32.mrf.mxu0
      %v7044 = vadd.f32 0.0, %v7043
      %7045 = vmatmul.bf16.gmra.mxu0 %v7008
      %v7046 = vpop.f32.mrf.mxu0
      %v7047 = vadd.f32 0.0, %v7046
      %v7048 = vpop.f32.mrf.mxu0
      %v7049 = vadd.f32 0.0, %v7048
      %7050 = vmatmul.bf16.gmra.mxu0 %v7011
      %v7051 = vpop.f32.mrf.mxu0
      %v7052 = vadd.f32 0.0, %v7051
      %v7053 = vpop.f32.mrf.mxu0
      %v7054 = vadd.f32 0.0, %v7053
      %7055 = vmatmul.bf16.gmra.mxu0 %v7014
      %v7056 = vpop.f32.mrf.mxu0
      %v7057 = vadd.f32 0.0, %v7056
      %v7058 = vpop.f32.mrf.mxu0
      %v7059 = vadd.f32 0.0, %v7058
      %7060 = vmatmul.bf16.gmra.mxu0 %v7017
      %v7061 = vpop.f32.mrf.mxu0
      %v7062 = vadd.f32 0.0, %v7061
      %v7063 = vpop.f32.mrf.mxu0
      %v7064 = vadd.f32 0.0, %v7063
      %7065 = vmatmul.bf16.gmra.mxu0 %v7020
      %v7066 = vpop.f32.mrf.mxu0
      %v7067 = vadd.f32 0.0, %v7066
      %v7068 = vpop.f32.mrf.mxu0
      %v7069 = vadd.f32 0.0, %v7068
      %7070 = vdwg.mxu0
      %v7071 = vadd.f32 %v6909, %v7032
      %v7072 = vadd.f32 %v6910, %v7034
      %v7073 = vadd.f32 %v6911, %v7037
      %v7074 = vadd.f32 %v6912, %v7039
      %v7075 = vadd.f32 %v6913, %v7042
      %v7076 = vadd.f32 %v6914, %v7044
      %v7077 = vadd.f32 %v6915, %v7047
      %v7078 = vadd.f32 %v6916, %v7049
      %v7079 = vadd.f32 %v6917, %v7052
      %v7080 = vadd.f32 %v6918, %v7054
      %v7081 = vadd.f32 %v6919, %v7057
      %v7082 = vadd.f32 %v6920, %v7059
      %v7083 = vadd.f32 %v6921, %v7062
      %v7084 = vadd.f32 %v6922, %v7064
      %v7085 = vadd.f32 %v6923, %v7067
      %v7086 = vadd.f32 %v6924, %v7069
      %s7087 = scalar_lea.vmem %s4, 224
      %v7088 = vld [vmem:[%s7087] sm:$0xf]
      %v7089 = vld [vmem:[%s7087 + $0x4] sm:$0xf]
      %v7090 = vld [vmem:[%s7087 + $0x8] sm:$0xf]
      %v7091 = vld [vmem:[%s7087 + $0xc] sm:$0xf]
      %v7092 = vld [vmem:[%s7087 + $0x10] sm:$0xf]
      %v7093 = vld [vmem:[%s7087 + $0x14] sm:$0xf]
      %v7094 = vld [vmem:[%s7087 + $0x18] sm:$0xf]
      %v7095 = vld [vmem:[%s7087 + $0x1c] sm:$0xf]
      %v7112 = vunpack.c.l.b16 %v5897
      %v7113 = vunpack.c.l.b16 %v5898
      %v7114 = vunpack.c.l.b16 %v5899
      %v7115 = vunpack.c.l.b16 %v5900
      %v7116 = vunpack.c.l.b16 %v5901
      %v7117 = vunpack.c.l.b16 %v5902
      %v7118 = vunpack.c.l.b16 %v5903
      %v7119 = vunpack.c.l.b16 %v5904
      %v7120 = vunpack.c.l.b16 %v5969
      %v7121 = vunpack.c.l.b16 %v5970
      %v7122 = vunpack.c.l.b16 %v5971
      %v7123 = vunpack.c.l.b16 %v5972
      %v7124 = vunpack.c.l.b16 %v5973
      %v7125 = vunpack.c.l.b16 %v5974
      %v7126 = vunpack.c.l.b16 %v5975
      %v7127 = vunpack.c.l.b16 %v5976
      %v7128 = vpack.c.b16 %v7113, %v7112
      %v7129 = vpack.c.b16 %v7115, %v7114
      %v7130 = vpack.c.b16 %v7117, %v7116
      %v7131 = vpack.c.b16 %v7119, %v7118
      %v7132 = vpack.c.b16 %v7121, %v7120
      %v7133 = vpack.c.b16 %v7123, %v7122
      %v7134 = vpack.c.b16 %v7125, %v7124
      %v7135 = vpack.c.b16 %v7127, %v7126
      %v7144 = vunpack.c.l.b16 %v7088
      %v7145 = vunpack.c.l.b16 %v7089
      %v7146 = vunpack.c.l.b16 %v7090
      %v7147 = vunpack.c.l.b16 %v7091
      %v7148 = vunpack.c.l.b16 %v7092
      %v7149 = vunpack.c.l.b16 %v7093
      %v7150 = vunpack.c.l.b16 %v7094
      %v7151 = vunpack.c.l.b16 %v7095
      %v7152 = vpack.c.b16 %v7145, %v7144
      %v7153 = vpack.c.b16 %v7147, %v7146
      %v7154 = vpack.c.b16 %v7149, %v7148
      %v7155 = vpack.c.b16 %v7151, %v7150
      %v7161 = vsel %vm6066, %v7128, 0
      %v7164 = vsel %vm6066, %v7129, 0
      %v7167 = vsel %vm6066, %v7130, 0
      %v7170 = vsel %vm6066, %v7131, 0
      %v7173 = vsel %vm6066, %v7132, 0
      %v7176 = vsel %vm6066, %v7133, 0
      %v7179 = vsel %vm6066, %v7134, 0
      %v7182 = vsel %vm6066, %v7135, 0
      %7184 = vmatpush.bf16.msra.mxu0 0
      %7185 = vmatpush.bf16.msra.mxu0 0
      %7186 = vmatpush.bf16.msra.mxu0 0
      %7187 = vmatpush.bf16.msra.mxu0 0
      %7188 = vmatpush.bf16.msra.mxu0 %v7155
      %7189 = vmatpush.bf16.msra.mxu0 %v7154
      %7190 = vmatpush.bf16.msra.mxu0 %v7153
      %7191 = vmatpush.bf16.msra.mxu0 %v7152
      %7192 = vmatmul.bf16.gmra.mxu0 %v7161
      %v7193 = vpop.f32.mrf.mxu0
      %v7194 = vadd.f32 0.0, %v7193
      %v7195 = vpop.f32.mrf.mxu0
      %v7196 = vadd.f32 0.0, %v7195
      %7197 = vmatmul.bf16.gmra.mxu0 %v7164
      %v7198 = vpop.f32.mrf.mxu0
      %v7199 = vadd.f32 0.0, %v7198
      %v7200 = vpop.f32.mrf.mxu0
      %v7201 = vadd.f32 0.0, %v7200
      %7202 = vmatmul.bf16.gmra.mxu0 %v7167
      %v7203 = vpop.f32.mrf.mxu0
      %v7204 = vadd.f32 0.0, %v7203
      %v7205 = vpop.f32.mrf.mxu0
      %v7206 = vadd.f32 0.0, %v7205
      %7207 = vmatmul.bf16.gmra.mxu0 %v7170
      %v7208 = vpop.f32.mrf.mxu0
      %v7209 = vadd.f32 0.0, %v7208
      %v7210 = vpop.f32.mrf.mxu0
      %v7211 = vadd.f32 0.0, %v7210
      %7212 = vmatmul.bf16.gmra.mxu0 %v7173
      %v7213 = vpop.f32.mrf.mxu0
      %v7214 = vadd.f32 0.0, %v7213
      %v7215 = vpop.f32.mrf.mxu0
      %v7216 = vadd.f32 0.0, %v7215
      %7217 = vmatmul.bf16.gmra.mxu0 %v7176
      %v7218 = vpop.f32.mrf.mxu0
      %v7219 = vadd.f32 0.0, %v7218
      %v7220 = vpop.f32.mrf.mxu0
      %v7221 = vadd.f32 0.0, %v7220
      %7222 = vmatmul.bf16.gmra.mxu0 %v7179
      %v7223 = vpop.f32.mrf.mxu0
      %v7224 = vadd.f32 0.0, %v7223
      %v7225 = vpop.f32.mrf.mxu0
      %v7226 = vadd.f32 0.0, %v7225
      %7227 = vmatmul.bf16.gmra.mxu0 %v7182
      %v7228 = vpop.f32.mrf.mxu0
      %v7229 = vadd.f32 0.0, %v7228
      %v7230 = vpop.f32.mrf.mxu0
      %v7231 = vadd.f32 0.0, %v7230
      %7232 = vdwg.mxu0
      %v7233 = vadd.f32 %v7071, %v7194
      %v7234 = vadd.f32 %v7072, %v7196
      %v7235 = vadd.f32 %v7073, %v7199
      %v7236 = vadd.f32 %v7074, %v7201
      %v7237 = vadd.f32 %v7075, %v7204
      %v7238 = vadd.f32 %v7076, %v7206
      %v7239 = vadd.f32 %v7077, %v7209
      %v7240 = vadd.f32 %v7078, %v7211
      %v7241 = vadd.f32 %v7079, %v7214
      %v7242 = vadd.f32 %v7080, %v7216
      %v7243 = vadd.f32 %v7081, %v7219
      %v7244 = vadd.f32 %v7082, %v7221
      %v7245 = vadd.f32 %v7083, %v7224
      %v7246 = vadd.f32 %v7084, %v7226
      %v7247 = vadd.f32 %v7085, %v7229
      %v7248 = vadd.f32 %v7086, %v7231
      %s7249 = scalar_lea.vmem %s4, 256
      %v7250 = vld [vmem:[%s7249] sm:$0xf]
      %v7251 = vld [vmem:[%s7249 + $0x4] sm:$0xf]
      %v7252 = vld [vmem:[%s7249 + $0x8] sm:$0xf]
      %v7253 = vld [vmem:[%s7249 + $0xc] sm:$0xf]
      %v7254 = vld [vmem:[%s7249 + $0x10] sm:$0xf]
      %v7255 = vld [vmem:[%s7249 + $0x14] sm:$0xf]
      %v7256 = vld [vmem:[%s7249 + $0x18] sm:$0xf]
      %v7257 = vld [vmem:[%s7249 + $0x1c] sm:$0xf]
      %v7274 = vunpack.c.l.b16 %v5905
      %v7275 = vunpack.c.l.b16 %v5906
      %v7276 = vunpack.c.l.b16 %v5907
      %v7277 = vunpack.c.l.b16 %v5908
      %v7278 = vunpack.c.l.b16 %v5909
      %v7279 = vunpack.c.l.b16 %v5910
      %v7280 = vunpack.c.l.b16 %v5911
      %v7281 = vunpack.c.l.b16 %v5912
      %v7282 = vunpack.c.l.b16 %v5977
      %v7283 = vunpack.c.l.b16 %v5978
      %v7284 = vunpack.c.l.b16 %v5979
      %v7285 = vunpack.c.l.b16 %v5980
      %v7286 = vunpack.c.l.b16 %v5981
      %v7287 = vunpack.c.l.b16 %v5982
      %v7288 = vunpack.c.l.b16 %v5983
      %v7289 = vunpack.c.l.b16 %v5984
      %v7290 = vpack.c.b16 %v7275, %v7274
      %v7291 = vpack.c.b16 %v7277, %v7276
      %v7292 = vpack.c.b16 %v7279, %v7278
      %v7293 = vpack.c.b16 %v7281, %v7280
      %v7294 = vpack.c.b16 %v7283, %v7282
      %v7295 = vpack.c.b16 %v7285, %v7284
      %v7296 = vpack.c.b16 %v7287, %v7286
      %v7297 = vpack.c.b16 %v7289, %v7288
      %v7306 = vunpack.c.l.b16 %v7250
      %v7307 = vunpack.c.l.b16 %v7251
      %v7308 = vunpack.c.l.b16 %v7252
      %v7309 = vunpack.c.l.b16 %v7253
      %v7310 = vunpack.c.l.b16 %v7254
      %v7311 = vunpack.c.l.b16 %v7255
      %v7312 = vunpack.c.l.b16 %v7256
      %v7313 = vunpack.c.l.b16 %v7257
      %v7314 = vpack.c.b16 %v7307, %v7306
      %v7315 = vpack.c.b16 %v7309, %v7308
      %v7316 = vpack.c.b16 %v7311, %v7310
      %v7317 = vpack.c.b16 %v7313, %v7312
      %v7323 = vsel %vm6066, %v7290, 0
      %v7326 = vsel %vm6066, %v7291, 0
      %v7329 = vsel %vm6066, %v7292, 0
      %v7332 = vsel %vm6066, %v7293, 0
      %v7335 = vsel %vm6066, %v7294, 0
      %v7338 = vsel %vm6066, %v7295, 0
      %v7341 = vsel %vm6066, %v7296, 0
      %v7344 = vsel %vm6066, %v7297, 0
      %7346 = vmatpush.bf16.msra.mxu0 0
      %7347 = vmatpush.bf16.msra.mxu0 0
      %7348 = vmatpush.bf16.msra.mxu0 0
      %7349 = vmatpush.bf16.msra.mxu0 0
      %7350 = vmatpush.bf16.msra.mxu0 %v7317
      %7351 = vmatpush.bf16.msra.mxu0 %v7316
      %7352 = vmatpush.bf16.msra.mxu0 %v7315
      %7353 = vmatpush.bf16.msra.mxu0 %v7314
      %7354 = vmatmul.bf16.gmra.mxu0 %v7323
      %v7355 = vpop.f32.mrf.mxu0
      %v7356 = vadd.f32 0.0, %v7355
      %v7357 = vpop.f32.mrf.mxu0
      %v7358 = vadd.f32 0.0, %v7357
      %7359 = vmatmul.bf16.gmra.mxu0 %v7326
      %v7360 = vpop.f32.mrf.mxu0
      %v7361 = vadd.f32 0.0, %v7360
      %v7362 = vpop.f32.mrf.mxu0
      %v7363 = vadd.f32 0.0, %v7362
      %7364 = vmatmul.bf16.gmra.mxu0 %v7329
      %v7365 = vpop.f32.mrf.mxu0
      %v7366 = vadd.f32 0.0, %v7365
      %v7367 = vpop.f32.mrf.mxu0
      %v7368 = vadd.f32 0.0, %v7367
      %7369 = vmatmul.bf16.gmra.mxu0 %v7332
      %v7370 = vpop.f32.mrf.mxu0
      %v7371 = vadd.f32 0.0, %v7370
      %v7372 = vpop.f32.mrf.mxu0
      %v7373 = vadd.f32 0.0, %v7372
      %7374 = vmatmul.bf16.gmra.mxu0 %v7335
      %v7375 = vpop.f32.mrf.mxu0
      %v7376 = vadd.f32 0.0, %v7375
      %v7377 = vpop.f32.mrf.mxu0
      %v7378 = vadd.f32 0.0, %v7377
      %7379 = vmatmul.bf16.gmra.mxu0 %v7338
      %v7380 = vpop.f32.mrf.mxu0
      %v7381 = vadd.f32 0.0, %v7380
      %v7382 = vpop.f32.mrf.mxu0
      %v7383 = vadd.f32 0.0, %v7382
      %7384 = vmatmul.bf16.gmra.mxu0 %v7341
      %v7385 = vpop.f32.mrf.mxu0
      %v7386 = vadd.f32 0.0, %v7385
      %v7387 = vpop.f32.mrf.mxu0
      %v7388 = vadd.f32 0.0, %v7387
      %7389 = vmatmul.bf16.gmra.mxu0 %v7344
      %v7390 = vpop.f32.mrf.mxu0
      %v7391 = vadd.f32 0.0, %v7390
      %v7392 = vpop.f32.mrf.mxu0
      %v7393 = vadd.f32 0.0, %v7392
      %7394 = vdwg.mxu0
      %v7395 = vadd.f32 %v7233, %v7356
      %v7396 = vadd.f32 %v7234, %v7358
      %v7397 = vadd.f32 %v7235, %v7361
      %v7398 = vadd.f32 %v7236, %v7363
      %v7399 = vadd.f32 %v7237, %v7366
      %v7400 = vadd.f32 %v7238, %v7368
      %v7401 = vadd.f32 %v7239, %v7371
      %v7402 = vadd.f32 %v7240, %v7373
      %v7403 = vadd.f32 %v7241, %v7376
      %v7404 = vadd.f32 %v7242, %v7378
      %v7405 = vadd.f32 %v7243, %v7381
      %v7406 = vadd.f32 %v7244, %v7383
      %v7407 = vadd.f32 %v7245, %v7386
      %v7408 = vadd.f32 %v7246, %v7388
      %v7409 = vadd.f32 %v7247, %v7391
      %v7410 = vadd.f32 %v7248, %v7393
      %v7411 = vld [vmem:[%s5] sm:$0x1]
      %v7413 = vperm.slane %v7411, 0
      %v7415 = vadd.f32 %v7395, %v7413
      %v7416 = vadd.f32 %v7396, %v7413
      %v7417 = vadd.f32 %v7397, %v7413
      %v7418 = vadd.f32 %v7398, %v7413
      %v7419 = vadd.f32 %v7399, %v7413
      %v7420 = vadd.f32 %v7400, %v7413
      %v7421 = vadd.f32 %v7401, %v7413
      %v7422 = vadd.f32 %v7402, %v7413
      %v7423 = vadd.f32 %v7403, %v7413
      %v7424 = vadd.f32 %v7404, %v7413
      %v7425 = vadd.f32 %v7405, %v7413
      %v7426 = vadd.f32 %v7406, %v7413
      %v7427 = vadd.f32 %v7407, %v7413
      %v7428 = vadd.f32 %v7408, %v7413
      %v7429 = vadd.f32 %v7409, %v7413
      %v7430 = vadd.f32 %v7410, %v7413
      %v7431 = vmax.f32 %v7415, 0.0
      %v7432 = vmax.f32 %v7416, 0.0
      %v7433 = vmax.f32 %v7417, 0.0
      %v7434 = vmax.f32 %v7418, 0.0
      %v7435 = vmax.f32 %v7419, 0.0
      %v7436 = vmax.f32 %v7420, 0.0
      %v7437 = vmax.f32 %v7421, 0.0
      %v7438 = vmax.f32 %v7422, 0.0
      %v7439 = vmax.f32 %v7423, 0.0
      %v7440 = vmax.f32 %v7424, 0.0
      %v7441 = vmax.f32 %v7425, 0.0
      %v7442 = vmax.f32 %v7426, 0.0
      %v7443 = vmax.f32 %v7427, 0.0
      %v7444 = vmax.f32 %v7428, 0.0
      %v7445 = vmax.f32 %v7429, 0.0
      %v7446 = vmax.f32 %v7430, 0.0
      %v7447 = vpack.c.bf16 %v7431, %v7431
      %v7448 = vpack.c.bf16 %v7432, %v7432
      %v7449 = vpack.c.bf16 %v7433, %v7433
      %v7450 = vpack.c.bf16 %v7434, %v7434
      %v7451 = vpack.c.bf16 %v7435, %v7435
      %v7452 = vpack.c.bf16 %v7436, %v7436
      %v7453 = vpack.c.bf16 %v7437, %v7437
      %v7454 = vpack.c.bf16 %v7438, %v7438
      %v7455 = vpack.c.bf16 %v7439, %v7439
      %v7456 = vpack.c.bf16 %v7440, %v7440
      %v7457 = vpack.c.bf16 %v7441, %v7441
      %v7458 = vpack.c.bf16 %v7442, %v7442
      %v7459 = vpack.c.bf16 %v7443, %v7443
      %v7460 = vpack.c.bf16 %v7444, %v7444
      %v7461 = vpack.c.bf16 %v7445, %v7445
      %v7462 = vpack.c.bf16 %v7446, %v7446
      %v7463 = vld [vmem:[%s6] sm:$0xf]
      %v7464 = vld [vmem:[%s6 + $0x4] sm:$0xf]
      %v7465 = vld [vmem:[%s6 + $0x8] sm:$0xf]
      %v7466 = vld [vmem:[%s6 + $0xc] sm:$0xf]
      %v7467 = vld [vmem:[%s6 + $0x10] sm:$0xf]
      %v7468 = vld [vmem:[%s6 + $0x14] sm:$0xf]
      %v7469 = vld [vmem:[%s6 + $0x18] sm:$0xf]
      %v7470 = vld [vmem:[%s6 + $0x1c] sm:$0xf]
      %v7471 = vld [vmem:[%s6 + $0x20] sm:$0xf]
      %v7472 = vld [vmem:[%s6 + $0x24] sm:$0xf]
      %v7473 = vld [vmem:[%s6 + $0x28] sm:$0xf]
      %v7474 = vld [vmem:[%s6 + $0x2c] sm:$0xf]
      %v7475 = vld [vmem:[%s6 + $0x30] sm:$0xf]
      %v7476 = vld [vmem:[%s6 + $0x34] sm:$0xf]
      %v7477 = vld [vmem:[%s6 + $0x38] sm:$0xf]
      %v7478 = vld [vmem:[%s6 + $0x3c] sm:$0xf]
      %v7479 = vld [vmem:[%s6 + $0x40] sm:$0xf]
      %v7480 = vld [vmem:[%s6 + $0x44] sm:$0xf]
      %v7499 = vunpack.c.l.b16 %v7463
      %v7500 = vunpack.c.l.b16 %v7464
      %v7501 = vunpack.c.l.b16 %v7465
      %v7502 = vunpack.c.l.b16 %v7466
      %v7503 = vunpack.c.l.b16 %v7467
      %v7504 = vunpack.c.l.b16 %v7468
      %v7505 = vunpack.c.l.b16 %v7469
      %v7506 = vunpack.c.l.b16 %v7470
      %v7507 = vunpack.c.l.b16 %v7471
      %v7508 = vunpack.c.l.b16 %v7472
      %v7509 = vunpack.c.l.b16 %v7473
      %v7510 = vunpack.c.l.b16 %v7474
      %v7511 = vunpack.c.l.b16 %v7475
      %v7512 = vunpack.c.l.b16 %v7476
      %v7513 = vunpack.c.l.b16 %v7477
      %v7514 = vunpack.c.l.b16 %v7478
      %v7515 = vunpack.c.l.b16 %v7479
      %v7516 = vunpack.c.l.b16 %v7480
      %v7517 = vpack.c.b16 %v7500, %v7499
      %v7518 = vpack.c.b16 %v7502, %v7501
      %v7519 = vpack.c.b16 %v7504, %v7503
      %v7520 = vpack.c.b16 %v7506, %v7505
      %v7521 = vpack.c.b16 %v7508, %v7507
      %v7522 = vpack.c.b16 %v7510, %v7509
      %v7523 = vpack.c.b16 %v7512, %v7511
      %v7524 = vpack.c.b16 %v7514, %v7513
      %v7525 = vpack.c.b16 %v7516, %v7515
      %v7534 = vunpack.c.l.b16 %v7447
      %v7535 = vunpack.c.l.b16 %v7448
      %v7536 = vunpack.c.l.b16 %v7449
      %v7537 = vunpack.c.l.b16 %v7450
      %v7538 = vunpack.c.l.b16 %v7451
      %v7539 = vunpack.c.l.b16 %v7452
      %v7540 = vunpack.c.l.b16 %v7453
      %v7541 = vunpack.c.l.b16 %v7454
      %v7542 = vpack.c.b16 %v7535, %v7534
      %v7543 = vpack.c.b16 %v7537, %v7536
      %v7544 = vpack.c.b16 %v7539, %v7538
      %v7545 = vpack.c.b16 %v7541, %v7540
      %v7551 = vsel %vm6066, %v7517, 0
      %v7554 = vsel %vm6066, %v7518, 0
      %v7557 = vsel %vm6066, %v7519, 0
      %v7560 = vsel %vm6066, %v7520, 0
      %v7563 = vsel %vm6066, %v7521, 0
      %v7566 = vsel %vm6066, %v7522, 0
      %v7569 = vsel %vm6066, %v7523, 0
      %v7572 = vsel %vm6066, %v7524, 0
      %v7575 = vsel %vm6066, %v7525, 0
      %7577 = vmatpush.bf16.msra.mxu0 0
      %7578 = vmatpush.bf16.msra.mxu0 0
      %7579 = vmatpush.bf16.msra.mxu0 0
      %7580 = vmatpush.bf16.msra.mxu0 0
      %7581 = vmatpush.bf16.msra.mxu0 %v7545
      %7582 = vmatpush.bf16.msra.mxu0 %v7544
      %7583 = vmatpush.bf16.msra.mxu0 %v7543
      %7584 = vmatpush.bf16.msra.mxu0 %v7542
      %7585 = vmatmul.bf16.gmra.mxu0 %v7551
      %v7586 = vpop.f32.mrf.mxu0
      %v7587 = vadd.f32 0.0, %v7586
      %v7588 = vpop.f32.mrf.mxu0
      %v7589 = vadd.f32 0.0, %v7588
      %7590 = vmatmul.bf16.gmra.mxu0 %v7554
      %v7591 = vpop.f32.mrf.mxu0
      %v7592 = vadd.f32 0.0, %v7591
      %v7593 = vpop.f32.mrf.mxu0
      %v7594 = vadd.f32 0.0, %v7593
      %7595 = vmatmul.bf16.gmra.mxu0 %v7557
      %v7596 = vpop.f32.mrf.mxu0
      %v7597 = vadd.f32 0.0, %v7596
      %v7598 = vpop.f32.mrf.mxu0
      %v7599 = vadd.f32 0.0, %v7598
      %7600 = vmatmul.bf16.gmra.mxu0 %v7560
      %v7601 = vpop.f32.mrf.mxu0
      %v7602 = vadd.f32 0.0, %v7601
      %v7603 = vpop.f32.mrf.mxu0
      %v7604 = vadd.f32 0.0, %v7603
      %7605 = vmatmul.bf16.gmra.mxu0 %v7563
      %v7606 = vpop.f32.mrf.mxu0
      %v7607 = vadd.f32 0.0, %v7606
      %v7608 = vpop.f32.mrf.mxu0
      %v7609 = vadd.f32 0.0, %v7608
      %7610 = vmatmul.bf16.gmra.mxu0 %v7566
      %v7611 = vpop.f32.mrf.mxu0
      %v7612 = vadd.f32 0.0, %v7611
      %v7613 = vpop.f32.mrf.mxu0
      %v7614 = vadd.f32 0.0, %v7613
      %7615 = vmatmul.bf16.gmra.mxu0 %v7569
      %v7616 = vpop.f32.mrf.mxu0
      %v7617 = vadd.f32 0.0, %v7616
      %v7618 = vpop.f32.mrf.mxu0
      %v7619 = vadd.f32 0.0, %v7618
      %7620 = vmatmul.bf16.gmra.mxu0 %v7572
      %v7621 = vpop.f32.mrf.mxu0
      %v7622 = vadd.f32 0.0, %v7621
      %v7623 = vpop.f32.mrf.mxu0
      %v7624 = vadd.f32 0.0, %v7623
      %7625 = vmatmul.bf16.gmra.mxu0 %v7575
      %v7626 = vpop.f32.mrf.mxu0
      %v7627 = vadd.f32 0.0, %v7626
      %v7628 = vpop.f32.mrf.mxu0
      %v7629 = vadd.f32 0.0, %v7628
      %7630 = vdwg.mxu0
      %v7639 = vunpack.c.l.b16 %v7455
      %v7640 = vunpack.c.l.b16 %v7456
      %v7641 = vunpack.c.l.b16 %v7457
      %v7642 = vunpack.c.l.b16 %v7458
      %v7643 = vunpack.c.l.b16 %v7459
      %v7644 = vunpack.c.l.b16 %v7460
      %v7645 = vunpack.c.l.b16 %v7461
      %v7646 = vunpack.c.l.b16 %v7462
      %v7647 = vpack.c.b16 %v7640, %v7639
      %v7648 = vpack.c.b16 %v7642, %v7641
      %v7649 = vpack.c.b16 %v7644, %v7643
      %v7650 = vpack.c.b16 %v7646, %v7645
      %7655 = vmatpush.bf16.msra.mxu0 0
      %7656 = vmatpush.bf16.msra.mxu0 0
      %7657 = vmatpush.bf16.msra.mxu0 0
      %7658 = vmatpush.bf16.msra.mxu0 0
      %7659 = vmatpush.bf16.msra.mxu0 %v7650
      %7660 = vmatpush.bf16.msra.mxu0 %v7649
      %7661 = vmatpush.bf16.msra.mxu0 %v7648
      %7662 = vmatpush.bf16.msra.mxu0 %v7647
      %7663 = vmatmul.bf16.gmra.mxu0 %v7551
      %v7664 = vpop.f32.mrf.mxu0
      %v7665 = vadd.f32 0.0, %v7664
      %v7666 = vpop.f32.mrf.mxu0
      %v7667 = vadd.f32 0.0, %v7666
      %7668 = vmatmul.bf16.gmra.mxu0 %v7554
      %v7669 = vpop.f32.mrf.mxu0
      %v7670 = vadd.f32 0.0, %v7669
      %v7671 = vpop.f32.mrf.mxu0
      %v7672 = vadd.f32 0.0, %v7671
      %7673 = vmatmul.bf16.gmra.mxu0 %v7557
      %v7674 = vpop.f32.mrf.mxu0
      %v7675 = vadd.f32 0.0, %v7674
      %v7676 = vpop.f32.mrf.mxu0
      %v7677 = vadd.f32 0.0, %v7676
      %7678 = vmatmul.bf16.gmra.mxu0 %v7560
      %v7679 = vpop.f32.mrf.mxu0
      %v7680 = vadd.f32 0.0, %v7679
      %v7681 = vpop.f32.mrf.mxu0
      %v7682 = vadd.f32 0.0, %v7681
      %7683 = vmatmul.bf16.gmra.mxu0 %v7563
      %v7684 = vpop.f32.mrf.mxu0
      %v7685 = vadd.f32 0.0, %v7684
      %v7686 = vpop.f32.mrf.mxu0
      %v7687 = vadd.f32 0.0, %v7686
      %7688 = vmatmul.bf16.gmra.mxu0 %v7566
      %v7689 = vpop.f32.mrf.mxu0
      %v7690 = vadd.f32 0.0, %v7689
      %v7691 = vpop.f32.mrf.mxu0
      %v7692 = vadd.f32 0.0, %v7691
      %7693 = vmatmul.bf16.gmra.mxu0 %v7569
      %v7694 = vpop.f32.mrf.mxu0
      %v7695 = vadd.f32 0.0, %v7694
      %v7696 = vpop.f32.mrf.mxu0
      %v7697 = vadd.f32 0.0, %v7696
      %7698 = vmatmul.bf16.gmra.mxu0 %v7572
      %v7699 = vpop.f32.mrf.mxu0
      %v7700 = vadd.f32 0.0, %v7699
      %v7701 = vpop.f32.mrf.mxu0
      %v7702 = vadd.f32 0.0, %v7701
      %7703 = vmatmul.bf16.gmra.mxu0 %v7575
      %v7704 = vpop.f32.mrf.mxu0
      %v7705 = vadd.f32 0.0, %v7704
      %v7706 = vpop.f32.mrf.mxu0
      %v7707 = vadd.f32 0.0, %v7706
      %7708 = vdwg.mxu0
      %v7709 = vpack.c.bf16 %v7587, %v7587
      %v7710 = vpack.c.bf16 %v7589, %v7589
      %v7711 = vpack.c.bf16 %v7592, %v7592
      %v7712 = vpack.c.bf16 %v7594, %v7594
      %v7713 = vpack.c.bf16 %v7597, %v7597
      %v7714 = vpack.c.bf16 %v7599, %v7599
      %v7715 = vpack.c.bf16 %v7602, %v7602
      %v7716 = vpack.c.bf16 %v7604, %v7604
      %v7717 = vpack.c.bf16 %v7607, %v7607
      %v7718 = vpack.c.bf16 %v7609, %v7609
      %v7719 = vpack.c.bf16 %v7612, %v7612
      %v7720 = vpack.c.bf16 %v7614, %v7614
      %v7721 = vpack.c.bf16 %v7617, %v7617
      %v7722 = vpack.c.bf16 %v7619, %v7619
      %v7723 = vpack.c.bf16 %v7622, %v7622
      %v7724 = vpack.c.bf16 %v7624, %v7624
      %v7725 = vpack.c.bf16 %v7627, %v7627
      %v7726 = vpack.c.bf16 %v7629, %v7629
      %v7727 = vpack.c.bf16 %v7665, %v7665
      %v7728 = vpack.c.bf16 %v7667, %v7667
      %v7729 = vpack.c.bf16 %v7670, %v7670
      %v7730 = vpack.c.bf16 %v7672, %v7672
      %v7731 = vpack.c.bf16 %v7675, %v7675
      %v7732 = vpack.c.bf16 %v7677, %v7677
      %v7733 = vpack.c.bf16 %v7680, %v7680
      %v7734 = vpack.c.bf16 %v7682, %v7682
      %v7735 = vpack.c.bf16 %v7685, %v7685
      %v7736 = vpack.c.bf16 %v7687, %v7687
      %v7737 = vpack.c.bf16 %v7690, %v7690
      %v7738 = vpack.c.bf16 %v7692, %v7692
      %v7739 = vpack.c.bf16 %v7695, %v7695
      %v7740 = vpack.c.bf16 %v7697, %v7697
      %v7741 = vpack.c.bf16 %v7700, %v7700
      %v7742 = vpack.c.bf16 %v7702, %v7702
      %v7743 = vpack.c.bf16 %v7705, %v7705
      %v7744 = vpack.c.bf16 %v7707, %v7707
      %v7745 = vld [vmem:[%s7] sm:$0xff]
      %v7746 = vld [vmem:[%s7 + $0x8] sm:$0xff]
      %v7747 = vld [vmem:[%s7 + $0x10] sm:$0xff]
      %v7748 = vld [vmem:[%s7 + $0x18] sm:$0xff]
      %v7749 = vld [vmem:[%s7 + $0x20] sm:$0xff]
      %v7750 = vld [vmem:[%s7 + $0x28] sm:$0xff]
      %v7751 = vld [vmem:[%s7 + $0x30] sm:$0xff]
      %v7752 = vld [vmem:[%s7 + $0x38] sm:$0xff]
      %v7753 = vld [vmem:[%s7 + $0x40] sm:$0xff]
      %v7754 = vld [vmem:[%s7 + $0x48] sm:$0xff]
      %v7755 = vld [vmem:[%s7 + $0x50] sm:$0xff]
      %v7756 = vld [vmem:[%s7 + $0x58] sm:$0xff]
      %v7757 = vld [vmem:[%s7 + $0x60] sm:$0xff]
      %v7758 = vld [vmem:[%s7 + $0x68] sm:$0xff]
      %v7759 = vld [vmem:[%s7 + $0x70] sm:$0xff]
      %v7760 = vld [vmem:[%s7 + $0x78] sm:$0xff]
      %s7761 = scalar_lea.vmem %s7, 128
      %v7762 = vld [vmem:[%s7761] sm:$0xff]
      %v7763 = vld [vmem:[%s7761 + $0x8] sm:$0xff]
      %v7764 = vld [vmem:[%s7761 + $0x10] sm:$0xff]
      %v7765 = vld [vmem:[%s7761 + $0x18] sm:$0xff]
      %v7766 = vld [vmem:[%s7761 + $0x20] sm:$0xff]
      %v7767 = vld [vmem:[%s7761 + $0x28] sm:$0xff]
      %v7768 = vld [vmem:[%s7761 + $0x30] sm:$0xff]
      %v7769 = vld [vmem:[%s7761 + $0x38] sm:$0xff]
      %v7770 = vld [vmem:[%s7761 + $0x40] sm:$0xff]
      %v7771 = vld [vmem:[%s7761 + $0x48] sm:$0xff]
      %v7772 = vld [vmem:[%s7761 + $0x50] sm:$0xff]
      %v7773 = vld [vmem:[%s7761 + $0x58] sm:$0xff]
      %v7774 = vld [vmem:[%s7761 + $0x60] sm:$0xff]
      %v7775 = vld [vmem:[%s7761 + $0x68] sm:$0xff]
      %v7776 = vld [vmem:[%s7761 + $0x70] sm:$0xff]
      %v7777 = vld [vmem:[%s7761 + $0x78] sm:$0xff]
      %v7782 = vunpack.c.l.b16 %v7711
      %v7783 = vunpack.c.l.b16 %v7712
      %v7784 = vunpack.c.l.b16 %v7729
      %v7785 = vunpack.c.l.b16 %v7730
      %v7786 = vpack.c.b16 %v7783, %v7782
      %v7787 = vpack.c.b16 %v7785, %v7784
      %v7806 = vunpack.c.l.b16 %v7762
      %v7807 = vunpack.c.h.b16 %v7762
      %v7808 = vunpack.c.l.b16 %v7763
      %v7809 = vunpack.c.h.b16 %v7763
      %v7810 = vunpack.c.l.b16 %v7764
      %v7811 = vunpack.c.h.b16 %v7764
      %v7812 = vunpack.c.l.b16 %v7765
      %v7813 = vunpack.c.h.b16 %v7765
      %v7814 = vunpack.c.l.b16 %v7766
      %v7815 = vunpack.c.h.b16 %v7766
      %v7816 = vunpack.c.l.b16 %v7767
      %v7817 = vunpack.c.h.b16 %v7767
      %v7818 = vunpack.c.l.b16 %v7768
      %v7819 = vunpack.c.h.b16 %v7768
      %v7820 = vunpack.c.l.b16 %v7769
      %v7821 = vunpack.c.h.b16 %v7769
      %v7822 = vunpack.c.l.b16 %v7770
      %v7823 = vunpack.c.h.b16 %v7770
      %v7824 = vunpack.c.l.b16 %v7771
      %v7825 = vunpack.c.h.b16 %v7771
      %v7826 = vunpack.c.l.b16 %v7772
      %v7827 = vunpack.c.h.b16 %v7772
      %v7828 = vunpack.c.l.b16 %v7773
      %v7829 = vunpack.c.h.b16 %v7773
      %v7830 = vunpack.c.l.b16 %v7774
      %v7831 = vunpack.c.h.b16 %v7774
      %v7832 = vunpack.c.l.b16 %v7775
      %v7833 = vunpack.c.h.b16 %v7775
      %v7834 = vunpack.c.l.b16 %v7776
      %v7835 = vunpack.c.h.b16 %v7776
      %v7836 = vunpack.c.l.b16 %v7777
      %v7837 = vunpack.c.h.b16 %v7777
      %v7838 = vpack.c.b16 %v7808, %v7806
      %v7839 = vpack.c.b16 %v7809, %v7807
      %v7840 = vpack.c.b16 %v7812, %v7810
      %v7841 = vpack.c.b16 %v7813, %v7811
      %v7842 = vpack.c.b16 %v7816, %v7814
      %v7843 = vpack.c.b16 %v7817, %v7815
      %v7844 = vpack.c.b16 %v7820, %v7818
      %v7845 = vpack.c.b16 %v7821, %v7819
      %v7846 = vpack.c.b16 %v7824, %v7822
      %v7847 = vpack.c.b16 %v7825, %v7823
      %v7848 = vpack.c.b16 %v7828, %v7826
      %v7849 = vpack.c.b16 %v7829, %v7827
      %v7850 = vpack.c.b16 %v7832, %v7830
      %v7851 = vpack.c.b16 %v7833, %v7831
      %v7852 = vpack.c.b16 %v7836, %v7834
      %v7853 = vpack.c.b16 %v7837, %v7835
      %7870 = vmatpush.bf16.msra.mxu0 %v7852
      %7871 = vmatpush.bf16.msra.mxu0 %v7850
      %7872 = vmatpush.bf16.msra.mxu0 %v7848
      %7873 = vmatpush.bf16.msra.mxu0 %v7846
      %7874 = vmatpush.bf16.msra.mxu0 %v7844
      %7875 = vmatpush.bf16.msra.mxu0 %v7842
      %7876 = vmatpush.bf16.msra.mxu0 %v7840
      %7877 = vmatpush.bf16.msra.mxu0 %v7838
      %7878 = vmatmul.bf16.gmra.mxu0 %v7786
      %v7879 = vpop.f32.mrf.mxu0
      %v7880 = vadd.f32 0.0, %v7879
      %v7881 = vpop.f32.mrf.mxu0
      %v7882 = vadd.f32 0.0, %v7881
      %7883 = vmatmul.bf16.gmra.mxu0 %v7787
      %v7884 = vpop.f32.mrf.mxu0
      %v7885 = vadd.f32 0.0, %v7884
      %v7886 = vpop.f32.mrf.mxu0
      %v7887 = vadd.f32 0.0, %v7886
      %7888 = vdwg.mxu0
      %7889 = vmatpush.bf16.msra.mxu0 %v7853
      %7890 = vmatpush.bf16.msra.mxu0 %v7851
      %7891 = vmatpush.bf16.msra.mxu0 %v7849
      %7892 = vmatpush.bf16.msra.mxu0 %v7847
      %7893 = vmatpush.bf16.msra.mxu0 %v7845
      %7894 = vmatpush.bf16.msra.mxu0 %v7843
      %7895 = vmatpush.bf16.msra.mxu0 %v7841
      %7896 = vmatpush.bf16.msra.mxu0 %v7839
      %7897 = vmatmul.bf16.gmra.mxu0 %v7786
      %v7898 = vpop.f32.mrf.mxu0
      %v7899 = vadd.f32 0.0, %v7898
      %v7900 = vpop.f32.mrf.mxu0
      %v7901 = vadd.f32 0.0, %v7900
      %7902 = vmatmul.bf16.gmra.mxu0 %v7787
      %v7903 = vpop.f32.mrf.mxu0
      %v7904 = vadd.f32 0.0, %v7903
      %v7905 = vpop.f32.mrf.mxu0
      %v7906 = vadd.f32 0.0, %v7905
      %7907 = vdwg.mxu0
      %v7912 = vunpack.c.l.b16 %v7709
      %v7913 = vunpack.c.l.b16 %v7710
      %v7914 = vunpack.c.l.b16 %v7727
      %v7915 = vunpack.c.l.b16 %v7728
      %v7916 = vpack.c.b16 %v7913, %v7912
      %v7917 = vpack.c.b16 %v7915, %v7914
      %v7936 = vunpack.c.l.b16 %v7745
      %v7937 = vunpack.c.h.b16 %v7745
      %v7938 = vunpack.c.l.b16 %v7746
      %v7939 = vunpack.c.h.b16 %v7746
      %v7940 = vunpack.c.l.b16 %v7747
      %v7941 = vunpack.c.h.b16 %v7747
      %v7942 = vunpack.c.l.b16 %v7748
      %v7943 = vunpack.c.h.b16 %v7748
      %v7944 = vunpack.c.l.b16 %v7749
      %v7945 = vunpack.c.h.b16 %v7749
      %v7946 = vunpack.c.l.b16 %v7750
      %v7947 = vunpack.c.h.b16 %v7750
      %v7948 = vunpack.c.l.b16 %v7751
      %v7949 = vunpack.c.h.b16 %v7751
      %v7950 = vunpack.c.l.b16 %v7752
      %v7951 = vunpack.c.h.b16 %v7752
      %v7952 = vunpack.c.l.b16 %v7753
      %v7953 = vunpack.c.h.b16 %v7753
      %v7954 = vunpack.c.l.b16 %v7754
      %v7955 = vunpack.c.h.b16 %v7754
      %v7956 = vunpack.c.l.b16 %v7755
      %v7957 = vunpack.c.h.b16 %v7755
      %v7958 = vunpack.c.l.b16 %v7756
      %v7959 = vunpack.c.h.b16 %v7756
      %v7960 = vunpack.c.l.b16 %v7757
      %v7961 = vunpack.c.h.b16 %v7757
      %v7962 = vunpack.c.l.b16 %v7758
      %v7963 = vunpack.c.h.b16 %v7758
      %v7964 = vunpack.c.l.b16 %v7759
      %v7965 = vunpack.c.h.b16 %v7759
      %v7966 = vunpack.c.l.b16 %v7760
      %v7967 = vunpack.c.h.b16 %v7760
      %v7968 = vpack.c.b16 %v7938, %v7936
      %v7969 = vpack.c.b16 %v7939, %v7937
      %v7970 = vpack.c.b16 %v7942, %v7940
      %v7971 = vpack.c.b16 %v7943, %v7941
      %v7972 = vpack.c.b16 %v7946, %v7944
      %v7973 = vpack.c.b16 %v7947, %v7945
      %v7974 = vpack.c.b16 %v7950, %v7948
      %v7975 = vpack.c.b16 %v7951, %v7949
      %v7976 = vpack.c.b16 %v7954, %v7952
      %v7977 = vpack.c.b16 %v7955, %v7953
      %v7978 = vpack.c.b16 %v7958, %v7956
      %v7979 = vpack.c.b16 %v7959, %v7957
      %v7980 = vpack.c.b16 %v7962, %v7960
      %v7981 = vpack.c.b16 %v7963, %v7961
      %v7982 = vpack.c.b16 %v7966, %v7964
      %v7983 = vpack.c.b16 %v7967, %v7965
      %8000 = vmatpush.bf16.msra.mxu0 %v7982
      %8001 = vmatpush.bf16.msra.mxu0 %v7980
      %8002 = vmatpush.bf16.msra.mxu0 %v7978
      %8003 = vmatpush.bf16.msra.mxu0 %v7976
      %8004 = vmatpush.bf16.msra.mxu0 %v7974
      %8005 = vmatpush.bf16.msra.mxu0 %v7972
      %8006 = vmatpush.bf16.msra.mxu0 %v7970
      %8007 = vmatpush.bf16.msra.mxu0 %v7968
      %8008 = vmatmul.bf16.gmra.mxu0 %v7916
      %v8009 = vpop.f32.mrf.mxu0
      %v8010 = vadd.f32 %v7880, %v8009
      %v8011 = vpop.f32.mrf.mxu0
      %v8012 = vadd.f32 %v7882, %v8011
      %8013 = vmatmul.bf16.gmra.mxu0 %v7917
      %v8014 = vpop.f32.mrf.mxu0
      %v8015 = vadd.f32 %v7885, %v8014
      %v8016 = vpop.f32.mrf.mxu0
      %v8017 = vadd.f32 %v7887, %v8016
      %8018 = vdwg.mxu0
      %8019 = vmatpush.bf16.msra.mxu0 %v7983
      %8020 = vmatpush.bf16.msra.mxu0 %v7981
      %8021 = vmatpush.bf16.msra.mxu0 %v7979
      %8022 = vmatpush.bf16.msra.mxu0 %v7977
      %8023 = vmatpush.bf16.msra.mxu0 %v7975
      %8024 = vmatpush.bf16.msra.mxu0 %v7973
      %8025 = vmatpush.bf16.msra.mxu0 %v7971
      %8026 = vmatpush.bf16.msra.mxu0 %v7969
      %8027 = vmatmul.bf16.gmra.mxu0 %v7916
      %v8028 = vpop.f32.mrf.mxu0
      %v8029 = vadd.f32 %v7899, %v8028
      %v8030 = vpop.f32.mrf.mxu0
      %v8031 = vadd.f32 %v7901, %v8030
      %8032 = vmatmul.bf16.gmra.mxu0 %v7917
      %v8033 = vpop.f32.mrf.mxu0
      %v8034 = vadd.f32 %v7904, %v8033
      %v8035 = vpop.f32.mrf.mxu0
      %v8036 = vadd.f32 %v7906, %v8035
      %8037 = vdwg.mxu0
      %s8038 = scalar_lea.vmem %s7, 256
      %v8039 = vld [vmem:[%s8038] sm:$0xff]
      %v8040 = vld [vmem:[%s8038 + $0x8] sm:$0xff]
      %v8041 = vld [vmem:[%s8038 + $0x10] sm:$0xff]
      %v8042 = vld [vmem:[%s8038 + $0x18] sm:$0xff]
      %v8043 = vld [vmem:[%s8038 + $0x20] sm:$0xff]
      %v8044 = vld [vmem:[%s8038 + $0x28] sm:$0xff]
      %v8045 = vld [vmem:[%s8038 + $0x30] sm:$0xff]
      %v8046 = vld [vmem:[%s8038 + $0x38] sm:$0xff]
      %v8047 = vld [vmem:[%s8038 + $0x40] sm:$0xff]
      %v8048 = vld [vmem:[%s8038 + $0x48] sm:$0xff]
      %v8049 = vld [vmem:[%s8038 + $0x50] sm:$0xff]
      %v8050 = vld [vmem:[%s8038 + $0x58] sm:$0xff]
      %v8051 = vld [vmem:[%s8038 + $0x60] sm:$0xff]
      %v8052 = vld [vmem:[%s8038 + $0x68] sm:$0xff]
      %v8053 = vld [vmem:[%s8038 + $0x70] sm:$0xff]
      %v8054 = vld [vmem:[%s8038 + $0x78] sm:$0xff]
      %v8059 = vunpack.c.l.b16 %v7713
      %v8060 = vunpack.c.l.b16 %v7714
      %v8061 = vunpack.c.l.b16 %v7731
      %v8062 = vunpack.c.l.b16 %v7732
      %v8063 = vpack.c.b16 %v8060, %v8059
      %v8064 = vpack.c.b16 %v8062, %v8061
      %v8083 = vunpack.c.l.b16 %v8039
      %v8084 = vunpack.c.h.b16 %v8039
      %v8085 = vunpack.c.l.b16 %v8040
      %v8086 = vunpack.c.h.b16 %v8040
      %v8087 = vunpack.c.l.b16 %v8041
      %v8088 = vunpack.c.h.b16 %v8041
      %v8089 = vunpack.c.l.b16 %v8042
      %v8090 = vunpack.c.h.b16 %v8042
      %v8091 = vunpack.c.l.b16 %v8043
      %v8092 = vunpack.c.h.b16 %v8043
      %v8093 = vunpack.c.l.b16 %v8044
      %v8094 = vunpack.c.h.b16 %v8044
      %v8095 = vunpack.c.l.b16 %v8045
      %v8096 = vunpack.c.h.b16 %v8045
      %v8097 = vunpack.c.l.b16 %v8046
      %v8098 = vunpack.c.h.b16 %v8046
      %v8099 = vunpack.c.l.b16 %v8047
      %v8100 = vunpack.c.h.b16 %v8047
      %v8101 = vunpack.c.l.b16 %v8048
      %v8102 = vunpack.c.h.b16 %v8048
      %v8103 = vunpack.c.l.b16 %v8049
      %v8104 = vunpack.c.h.b16 %v8049
      %v8105 = vunpack.c.l.b16 %v8050
      %v8106 = vunpack.c.h.b16 %v8050
      %v8107 = vunpack.c.l.b16 %v8051
      %v8108 = vunpack.c.h.b16 %v8051
      %v8109 = vunpack.c.l.b16 %v8052
      %v8110 = vunpack.c.h.b16 %v8052
      %v8111 = vunpack.c.l.b16 %v8053
      %v8112 = vunpack.c.h.b16 %v8053
      %v8113 = vunpack.c.l.b16 %v8054
      %v8114 = vunpack.c.h.b16 %v8054
      %v8115 = vpack.c.b16 %v8085, %v8083
      %v8116 = vpack.c.b16 %v8086, %v8084
      %v8117 = vpack.c.b16 %v8089, %v8087
      %v8118 = vpack.c.b16 %v8090, %v8088
      %v8119 = vpack.c.b16 %v8093, %v8091
      %v8120 = vpack.c.b16 %v8094, %v8092
      %v8121 = vpack.c.b16 %v8097, %v8095
      %v8122 = vpack.c.b16 %v8098, %v8096
      %v8123 = vpack.c.b16 %v8101, %v8099
      %v8124 = vpack.c.b16 %v8102, %v8100
      %v8125 = vpack.c.b16 %v8105, %v8103
      %v8126 = vpack.c.b16 %v8106, %v8104
      %v8127 = vpack.c.b16 %v8109, %v8107
      %v8128 = vpack.c.b16 %v8110, %v8108
      %v8129 = vpack.c.b16 %v8113, %v8111
      %v8130 = vpack.c.b16 %v8114, %v8112
      %8147 = vmatpush.bf16.msra.mxu0 %v8129
      %8148 = vmatpush.bf16.msra.mxu0 %v8127
      %8149 = vmatpush.bf16.msra.mxu0 %v8125
      %8150 = vmatpush.bf16.msra.mxu0 %v8123
      %8151 = vmatpush.bf16.msra.mxu0 %v8121
      %8152 = vmatpush.bf16.msra.mxu0 %v8119
      %8153 = vmatpush.bf16.msra.mxu0 %v8117
      %8154 = vmatpush.bf16.msra.mxu0 %v8115
      %8155 = vmatmul.bf16.gmra.mxu0 %v8063
      %v8156 = vpop.f32.mrf.mxu0
      %v8157 = vadd.f32 0.0, %v8156
      %v8158 = vpop.f32.mrf.mxu0
      %v8159 = vadd.f32 0.0, %v8158
      %8160 = vmatmul.bf16.gmra.mxu0 %v8064
      %v8161 = vpop.f32.mrf.mxu0
      %v8162 = vadd.f32 0.0, %v8161
      %v8163 = vpop.f32.mrf.mxu0
      %v8164 = vadd.f32 0.0, %v8163
      %8165 = vdwg.mxu0
      %8166 = vmatpush.bf16.msra.mxu0 %v8130
      %8167 = vmatpush.bf16.msra.mxu0 %v8128
      %8168 = vmatpush.bf16.msra.mxu0 %v8126
      %8169 = vmatpush.bf16.msra.mxu0 %v8124
      %8170 = vmatpush.bf16.msra.mxu0 %v8122
      %8171 = vmatpush.bf16.msra.mxu0 %v8120
      %8172 = vmatpush.bf16.msra.mxu0 %v8118
      %8173 = vmatpush.bf16.msra.mxu0 %v8116
      %8174 = vmatmul.bf16.gmra.mxu0 %v8063
      %v8175 = vpop.f32.mrf.mxu0
      %v8176 = vadd.f32 0.0, %v8175
      %v8177 = vpop.f32.mrf.mxu0
      %v8178 = vadd.f32 0.0, %v8177
      %8179 = vmatmul.bf16.gmra.mxu0 %v8064
      %v8180 = vpop.f32.mrf.mxu0
      %v8181 = vadd.f32 0.0, %v8180
      %v8182 = vpop.f32.mrf.mxu0
      %v8183 = vadd.f32 0.0, %v8182
      %8184 = vdwg.mxu0
      %v8185 = vadd.f32 %v8010, %v8157
      %v8186 = vadd.f32 %v8029, %v8176
      %v8187 = vadd.f32 %v8012, %v8159
      %v8188 = vadd.f32 %v8031, %v8178
      %v8189 = vadd.f32 %v8015, %v8162
      %v8190 = vadd.f32 %v8034, %v8181
      %v8191 = vadd.f32 %v8017, %v8164
      %v8192 = vadd.f32 %v8036, %v8183
      %s8193 = scalar_lea.vmem %s7, 384
      %v8194 = vld [vmem:[%s8193] sm:$0xff]
      %v8195 = vld [vmem:[%s8193 + $0x8] sm:$0xff]
      %v8196 = vld [vmem:[%s8193 + $0x10] sm:$0xff]
      %v8197 = vld [vmem:[%s8193 + $0x18] sm:$0xff]
      %v8198 = vld [vmem:[%s8193 + $0x20] sm:$0xff]
      %v8199 = vld [vmem:[%s8193 + $0x28] sm:$0xff]
      %v8200 = vld [vmem:[%s8193 + $0x30] sm:$0xff]
      %v8201 = vld [vmem:[%s8193 + $0x38] sm:$0xff]
      %v8202 = vld [vmem:[%s8193 + $0x40] sm:$0xff]
      %v8203 = vld [vmem:[%s8193 + $0x48] sm:$0xff]
      %v8204 = vld [vmem:[%s8193 + $0x50] sm:$0xff]
      %v8205 = vld [vmem:[%s8193 + $0x58] sm:$0xff]
      %v8206 = vld [vmem:[%s8193 + $0x60] sm:$0xff]
      %v8207 = vld [vmem:[%s8193 + $0x68] sm:$0xff]
      %v8208 = vld [vmem:[%s8193 + $0x70] sm:$0xff]
      %v8209 = vld [vmem:[%s8193 + $0x78] sm:$0xff]
      %v8214 = vunpack.c.l.b16 %v7715
      %v8215 = vunpack.c.l.b16 %v7716
      %v8216 = vunpack.c.l.b16 %v7733
      %v8217 = vunpack.c.l.b16 %v7734
      %v8218 = vpack.c.b16 %v8215, %v8214
      %v8219 = vpack.c.b16 %v8217, %v8216
      %v8238 = vunpack.c.l.b16 %v8194
      %v8239 = vunpack.c.h.b16 %v8194
      %v8240 = vunpack.c.l.b16 %v8195
      %v8241 = vunpack.c.h.b16 %v8195
      %v8242 = vunpack.c.l.b16 %v8196
      %v8243 = vunpack.c.h.b16 %v8196
      %v8244 = vunpack.c.l.b16 %v8197
      %v8245 = vunpack.c.h.b16 %v8197
      %v8246 = vunpack.c.l.b16 %v8198
      %v8247 = vunpack.c.h.b16 %v8198
      %v8248 = vunpack.c.l.b16 %v8199
      %v8249 = vunpack.c.h.b16 %v8199
      %v8250 = vunpack.c.l.b16 %v8200
      %v8251 = vunpack.c.h.b16 %v8200
      %v8252 = vunpack.c.l.b16 %v8201
      %v8253 = vunpack.c.h.b16 %v8201
      %v8254 = vunpack.c.l.b16 %v8202
      %v8255 = vunpack.c.h.b16 %v8202
      %v8256 = vunpack.c.l.b16 %v8203
      %v8257 = vunpack.c.h.b16 %v8203
      %v8258 = vunpack.c.l.b16 %v8204
      %v8259 = vunpack.c.h.b16 %v8204
      %v8260 = vunpack.c.l.b16 %v8205
      %v8261 = vunpack.c.h.b16 %v8205
      %v8262 = vunpack.c.l.b16 %v8206
      %v8263 = vunpack.c.h.b16 %v8206
      %v8264 = vunpack.c.l.b16 %v8207
      %v8265 = vunpack.c.h.b16 %v8207
      %v8266 = vunpack.c.l.b16 %v8208
      %v8267 = vunpack.c.h.b16 %v8208
      %v8268 = vunpack.c.l.b16 %v8209
      %v8269 = vunpack.c.h.b16 %v8209
      %v8270 = vpack.c.b16 %v8240, %v8238
      %v8271 = vpack.c.b16 %v8241, %v8239
      %v8272 = vpack.c.b16 %v8244, %v8242
      %v8273 = vpack.c.b16 %v8245, %v8243
      %v8274 = vpack.c.b16 %v8248, %v8246
      %v8275 = vpack.c.b16 %v8249, %v8247
      %v8276 = vpack.c.b16 %v8252, %v8250
      %v8277 = vpack.c.b16 %v8253, %v8251
      %v8278 = vpack.c.b16 %v8256, %v8254
      %v8279 = vpack.c.b16 %v8257, %v8255
      %v8280 = vpack.c.b16 %v8260, %v8258
      %v8281 = vpack.c.b16 %v8261, %v8259
      %v8282 = vpack.c.b16 %v8264, %v8262
      %v8283 = vpack.c.b16 %v8265, %v8263
      %v8284 = vpack.c.b16 %v8268, %v8266
      %v8285 = vpack.c.b16 %v8269, %v8267
      %8302 = vmatpush.bf16.msra.mxu0 %v8284
      %8303 = vmatpush.bf16.msra.mxu0 %v8282
      %8304 = vmatpush.bf16.msra.mxu0 %v8280
      %8305 = vmatpush.bf16.msra.mxu0 %v8278
      %8306 = vmatpush.bf16.msra.mxu0 %v8276
      %8307 = vmatpush.bf16.msra.mxu0 %v8274
      %8308 = vmatpush.bf16.msra.mxu0 %v8272
      %8309 = vmatpush.bf16.msra.mxu0 %v8270
      %8310 = vmatmul.bf16.gmra.mxu0 %v8218
      %v8311 = vpop.f32.mrf.mxu0
      %v8312 = vadd.f32 0.0, %v8311
      %v8313 = vpop.f32.mrf.mxu0
      %v8314 = vadd.f32 0.0, %v8313
      %8315 = vmatmul.bf16.gmra.mxu0 %v8219
      %v8316 = vpop.f32.mrf.mxu0
      %v8317 = vadd.f32 0.0, %v8316
      %v8318 = vpop.f32.mrf.mxu0
      %v8319 = vadd.f32 0.0, %v8318
      %8320 = vdwg.mxu0
      %8321 = vmatpush.bf16.msra.mxu0 %v8285
      %8322 = vmatpush.bf16.msra.mxu0 %v8283
      %8323 = vmatpush.bf16.msra.mxu0 %v8281
      %8324 = vmatpush.bf16.msra.mxu0 %v8279
      %8325 = vmatpush.bf16.msra.mxu0 %v8277
      %8326 = vmatpush.bf16.msra.mxu0 %v8275
      %8327 = vmatpush.bf16.msra.mxu0 %v8273
      %8328 = vmatpush.bf16.msra.mxu0 %v8271
      %8329 = vmatmul.bf16.gmra.mxu0 %v8218
      %v8330 = vpop.f32.mrf.mxu0
      %v8331 = vadd.f32 0.0, %v8330
      %v8332 = vpop.f32.mrf.mxu0
      %v8333 = vadd.f32 0.0, %v8332
      %8334 = vmatmul.bf16.gmra.mxu0 %v8219
      %v8335 = vpop.f32.mrf.mxu0
      %v8336 = vadd.f32 0.0, %v8335
      %v8337 = vpop.f32.mrf.mxu0
      %v8338 = vadd.f32 0.0, %v8337
      %8339 = vdwg.mxu0
      %v8340 = vadd.f32 %v8185, %v8312
      %v8341 = vadd.f32 %v8186, %v8331
      %v8342 = vadd.f32 %v8187, %v8314
      %v8343 = vadd.f32 %v8188, %v8333
      %v8344 = vadd.f32 %v8189, %v8317
      %v8345 = vadd.f32 %v8190, %v8336
      %v8346 = vadd.f32 %v8191, %v8319
      %v8347 = vadd.f32 %v8192, %v8338
      %s8348 = scalar_lea.vmem %s7, 512
      %v8349 = vld [vmem:[%s8348] sm:$0xff]
      %v8350 = vld [vmem:[%s8348 + $0x8] sm:$0xff]
      %v8351 = vld [vmem:[%s8348 + $0x10] sm:$0xff]
      %v8352 = vld [vmem:[%s8348 + $0x18] sm:$0xff]
      %v8353 = vld [vmem:[%s8348 + $0x20] sm:$0xff]
      %v8354 = vld [vmem:[%s8348 + $0x28] sm:$0xff]
      %v8355 = vld [vmem:[%s8348 + $0x30] sm:$0xff]
      %v8356 = vld [vmem:[%s8348 + $0x38] sm:$0xff]
      %v8357 = vld [vmem:[%s8348 + $0x40] sm:$0xff]
      %v8358 = vld [vmem:[%s8348 + $0x48] sm:$0xff]
      %v8359 = vld [vmem:[%s8348 + $0x50] sm:$0xff]
      %v8360 = vld [vmem:[%s8348 + $0x58] sm:$0xff]
      %v8361 = vld [vmem:[%s8348 + $0x60] sm:$0xff]
      %v8362 = vld [vmem:[%s8348 + $0x68] sm:$0xff]
      %v8363 = vld [vmem:[%s8348 + $0x70] sm:$0xff]
      %v8364 = vld [vmem:[%s8348 + $0x78] sm:$0xff]
      %v8369 = vunpack.c.l.b16 %v7717
      %v8370 = vunpack.c.l.b16 %v7718
      %v8371 = vunpack.c.l.b16 %v7735
      %v8372 = vunpack.c.l.b16 %v7736
      %v8373 = vpack.c.b16 %v8370, %v8369
      %v8374 = vpack.c.b16 %v8372, %v8371
      %v8393 = vunpack.c.l.b16 %v8349
      %v8394 = vunpack.c.h.b16 %v8349
      %v8395 = vunpack.c.l.b16 %v8350
      %v8396 = vunpack.c.h.b16 %v8350
      %v8397 = vunpack.c.l.b16 %v8351
      %v8398 = vunpack.c.h.b16 %v8351
      %v8399 = vunpack.c.l.b16 %v8352
      %v8400 = vunpack.c.h.b16 %v8352
      %v8401 = vunpack.c.l.b16 %v8353
      %v8402 = vunpack.c.h.b16 %v8353
      %v8403 = vunpack.c.l.b16 %v8354
      %v8404 = vunpack.c.h.b16 %v8354
      %v8405 = vunpack.c.l.b16 %v8355
      %v8406 = vunpack.c.h.b16 %v8355
      %v8407 = vunpack.c.l.b16 %v8356
      %v8408 = vunpack.c.h.b16 %v8356
      %v8409 = vunpack.c.l.b16 %v8357
      %v8410 = vunpack.c.h.b16 %v8357
      %v8411 = vunpack.c.l.b16 %v8358
      %v8412 = vunpack.c.h.b16 %v8358
      %v8413 = vunpack.c.l.b16 %v8359
      %v8414 = vunpack.c.h.b16 %v8359
      %v8415 = vunpack.c.l.b16 %v8360
      %v8416 = vunpack.c.h.b16 %v8360
      %v8417 = vunpack.c.l.b16 %v8361
      %v8418 = vunpack.c.h.b16 %v8361
      %v8419 = vunpack.c.l.b16 %v8362
      %v8420 = vunpack.c.h.b16 %v8362
      %v8421 = vunpack.c.l.b16 %v8363
      %v8422 = vunpack.c.h.b16 %v8363
      %v8423 = vunpack.c.l.b16 %v8364
      %v8424 = vunpack.c.h.b16 %v8364
      %v8425 = vpack.c.b16 %v8395, %v8393
      %v8426 = vpack.c.b16 %v8396, %v8394
      %v8427 = vpack.c.b16 %v8399, %v8397
      %v8428 = vpack.c.b16 %v8400, %v8398
      %v8429 = vpack.c.b16 %v8403, %v8401
      %v8430 = vpack.c.b16 %v8404, %v8402
      %v8431 = vpack.c.b16 %v8407, %v8405
      %v8432 = vpack.c.b16 %v8408, %v8406
      %v8433 = vpack.c.b16 %v8411, %v8409
      %v8434 = vpack.c.b16 %v8412, %v8410
      %v8435 = vpack.c.b16 %v8415, %v8413
      %v8436 = vpack.c.b16 %v8416, %v8414
      %v8437 = vpack.c.b16 %v8419, %v8417
      %v8438 = vpack.c.b16 %v8420, %v8418
      %v8439 = vpack.c.b16 %v8423, %v8421
      %v8440 = vpack.c.b16 %v8424, %v8422
      %8457 = vmatpush.bf16.msra.mxu0 %v8439
      %8458 = vmatpush.bf16.msra.mxu0 %v8437
      %8459 = vmatpush.bf16.msra.mxu0 %v8435
      %8460 = vmatpush.bf16.msra.mxu0 %v8433
      %8461 = vmatpush.bf16.msra.mxu0 %v8431
      %8462 = vmatpush.bf16.msra.mxu0 %v8429
      %8463 = vmatpush.bf16.msra.mxu0 %v8427
      %8464 = vmatpush.bf16.msra.mxu0 %v8425
      %8465 = vmatmul.bf16.gmra.mxu0 %v8373
      %v8466 = vpop.f32.mrf.mxu0
      %v8467 = vadd.f32 0.0, %v8466
      %v8468 = vpop.f32.mrf.mxu0
      %v8469 = vadd.f32 0.0, %v8468
      %8470 = vmatmul.bf16.gmra.mxu0 %v8374
      %v8471 = vpop.f32.mrf.mxu0
      %v8472 = vadd.f32 0.0, %v8471
      %v8473 = vpop.f32.mrf.mxu0
      %v8474 = vadd.f32 0.0, %v8473
      %8475 = vdwg.mxu0
      %8476 = vmatpush.bf16.msra.mxu0 %v8440
      %8477 = vmatpush.bf16.msra.mxu0 %v8438
      %8478 = vmatpush.bf16.msra.mxu0 %v8436
      %8479 = vmatpush.bf16.msra.mxu0 %v8434
      %8480 = vmatpush.bf16.msra.mxu0 %v8432
      %8481 = vmatpush.bf16.msra.mxu0 %v8430
      %8482 = vmatpush.bf16.msra.mxu0 %v8428
      %8483 = vmatpush.bf16.msra.mxu0 %v8426
      %8484 = vmatmul.bf16.gmra.mxu0 %v8373
      %v8485 = vpop.f32.mrf.mxu0
      %v8486 = vadd.f32 0.0, %v8485
      %v8487 = vpop.f32.mrf.mxu0
      %v8488 = vadd.f32 0.0, %v8487
      %8489 = vmatmul.bf16.gmra.mxu0 %v8374
      %v8490 = vpop.f32.mrf.mxu0
      %v8491 = vadd.f32 0.0, %v8490
      %v8492 = vpop.f32.mrf.mxu0
      %v8493 = vadd.f32 0.0, %v8492
      %8494 = vdwg.mxu0
      %v8495 = vadd.f32 %v8340, %v8467
      %v8496 = vadd.f32 %v8341, %v8486
      %v8497 = vadd.f32 %v8342, %v8469
      %v8498 = vadd.f32 %v8343, %v8488
      %v8499 = vadd.f32 %v8344, %v8472
      %v8500 = vadd.f32 %v8345, %v8491
      %v8501 = vadd.f32 %v8346, %v8474
      %v8502 = vadd.f32 %v8347, %v8493
      %s8503 = scalar_lea.vmem %s7, 640
      %v8504 = vld [vmem:[%s8503] sm:$0xff]
      %v8505 = vld [vmem:[%s8503 + $0x8] sm:$0xff]
      %v8506 = vld [vmem:[%s8503 + $0x10] sm:$0xff]
      %v8507 = vld [vmem:[%s8503 + $0x18] sm:$0xff]
      %v8508 = vld [vmem:[%s8503 + $0x20] sm:$0xff]
      %v8509 = vld [vmem:[%s8503 + $0x28] sm:$0xff]
      %v8510 = vld [vmem:[%s8503 + $0x30] sm:$0xff]
      %v8511 = vld [vmem:[%s8503 + $0x38] sm:$0xff]
      %v8512 = vld [vmem:[%s8503 + $0x40] sm:$0xff]
      %v8513 = vld [vmem:[%s8503 + $0x48] sm:$0xff]
      %v8514 = vld [vmem:[%s8503 + $0x50] sm:$0xff]
      %v8515 = vld [vmem:[%s8503 + $0x58] sm:$0xff]
      %v8516 = vld [vmem:[%s8503 + $0x60] sm:$0xff]
      %v8517 = vld [vmem:[%s8503 + $0x68] sm:$0xff]
      %v8518 = vld [vmem:[%s8503 + $0x70] sm:$0xff]
      %v8519 = vld [vmem:[%s8503 + $0x78] sm:$0xff]
      %v8524 = vunpack.c.l.b16 %v7719
      %v8525 = vunpack.c.l.b16 %v7720
      %v8526 = vunpack.c.l.b16 %v7737
      %v8527 = vunpack.c.l.b16 %v7738
      %v8528 = vpack.c.b16 %v8525, %v8524
      %v8529 = vpack.c.b16 %v8527, %v8526
      %v8548 = vunpack.c.l.b16 %v8504
      %v8549 = vunpack.c.h.b16 %v8504
      %v8550 = vunpack.c.l.b16 %v8505
      %v8551 = vunpack.c.h.b16 %v8505
      %v8552 = vunpack.c.l.b16 %v8506
      %v8553 = vunpack.c.h.b16 %v8506
      %v8554 = vunpack.c.l.b16 %v8507
      %v8555 = vunpack.c.h.b16 %v8507
      %v8556 = vunpack.c.l.b16 %v8508
      %v8557 = vunpack.c.h.b16 %v8508
      %v8558 = vunpack.c.l.b16 %v8509
      %v8559 = vunpack.c.h.b16 %v8509
      %v8560 = vunpack.c.l.b16 %v8510
      %v8561 = vunpack.c.h.b16 %v8510
      %v8562 = vunpack.c.l.b16 %v8511
      %v8563 = vunpack.c.h.b16 %v8511
      %v8564 = vunpack.c.l.b16 %v8512
      %v8565 = vunpack.c.h.b16 %v8512
      %v8566 = vunpack.c.l.b16 %v8513
      %v8567 = vunpack.c.h.b16 %v8513
      %v8568 = vunpack.c.l.b16 %v8514
      %v8569 = vunpack.c.h.b16 %v8514
      %v8570 = vunpack.c.l.b16 %v8515
      %v8571 = vunpack.c.h.b16 %v8515
      %v8572 = vunpack.c.l.b16 %v8516
      %v8573 = vunpack.c.h.b16 %v8516
      %v8574 = vunpack.c.l.b16 %v8517
      %v8575 = vunpack.c.h.b16 %v8517
      %v8576 = vunpack.c.l.b16 %v8518
      %v8577 = vunpack.c.h.b16 %v8518
      %v8578 = vunpack.c.l.b16 %v8519
      %v8579 = vunpack.c.h.b16 %v8519
      %v8580 = vpack.c.b16 %v8550, %v8548
      %v8581 = vpack.c.b16 %v8551, %v8549
      %v8582 = vpack.c.b16 %v8554, %v8552
      %v8583 = vpack.c.b16 %v8555, %v8553
      %v8584 = vpack.c.b16 %v8558, %v8556
      %v8585 = vpack.c.b16 %v8559, %v8557
      %v8586 = vpack.c.b16 %v8562, %v8560
      %v8587 = vpack.c.b16 %v8563, %v8561
      %v8588 = vpack.c.b16 %v8566, %v8564
      %v8589 = vpack.c.b16 %v8567, %v8565
      %v8590 = vpack.c.b16 %v8570, %v8568
      %v8591 = vpack.c.b16 %v8571, %v8569
      %v8592 = vpack.c.b16 %v8574, %v8572
      %v8593 = vpack.c.b16 %v8575, %v8573
      %v8594 = vpack.c.b16 %v8578, %v8576
      %v8595 = vpack.c.b16 %v8579, %v8577
      %8612 = vmatpush.bf16.msra.mxu0 %v8594
      %8613 = vmatpush.bf16.msra.mxu0 %v8592
      %8614 = vmatpush.bf16.msra.mxu0 %v8590
      %8615 = vmatpush.bf16.msra.mxu0 %v8588
      %8616 = vmatpush.bf16.msra.mxu0 %v8586
      %8617 = vmatpush.bf16.msra.mxu0 %v8584
      %8618 = vmatpush.bf16.msra.mxu0 %v8582
      %8619 = vmatpush.bf16.msra.mxu0 %v8580
      %8620 = vmatmul.bf16.gmra.mxu0 %v8528
      %v8621 = vpop.f32.mrf.mxu0
      %v8622 = vadd.f32 0.0, %v8621
      %v8623 = vpop.f32.mrf.mxu0
      %v8624 = vadd.f32 0.0, %v8623
      %8625 = vmatmul.bf16.gmra.mxu0 %v8529
      %v8626 = vpop.f32.mrf.mxu0
      %v8627 = vadd.f32 0.0, %v8626
      %v8628 = vpop.f32.mrf.mxu0
      %v8629 = vadd.f32 0.0, %v8628
      %8630 = vdwg.mxu0
      %8631 = vmatpush.bf16.msra.mxu0 %v8595
      %8632 = vmatpush.bf16.msra.mxu0 %v8593
      %8633 = vmatpush.bf16.msra.mxu0 %v8591
      %8634 = vmatpush.bf16.msra.mxu0 %v8589
      %8635 = vmatpush.bf16.msra.mxu0 %v8587
      %8636 = vmatpush.bf16.msra.mxu0 %v8585
      %8637 = vmatpush.bf16.msra.mxu0 %v8583
      %8638 = vmatpush.bf16.msra.mxu0 %v8581
      %8639 = vmatmul.bf16.gmra.mxu0 %v8528
      %v8640 = vpop.f32.mrf.mxu0
      %v8641 = vadd.f32 0.0, %v8640
      %v8642 = vpop.f32.mrf.mxu0
      %v8643 = vadd.f32 0.0, %v8642
      %8644 = vmatmul.bf16.gmra.mxu0 %v8529
      %v8645 = vpop.f32.mrf.mxu0
      %v8646 = vadd.f32 0.0, %v8645
      %v8647 = vpop.f32.mrf.mxu0
      %v8648 = vadd.f32 0.0, %v8647
      %8649 = vdwg.mxu0
      %v8650 = vadd.f32 %v8495, %v8622
      %v8651 = vadd.f32 %v8496, %v8641
      %v8652 = vadd.f32 %v8497, %v8624
      %v8653 = vadd.f32 %v8498, %v8643
      %v8654 = vadd.f32 %v8499, %v8627
      %v8655 = vadd.f32 %v8500, %v8646
      %v8656 = vadd.f32 %v8501, %v8629
      %v8657 = vadd.f32 %v8502, %v8648
      %s8658 = scalar_lea.vmem %s7, 768
      %v8659 = vld [vmem:[%s8658] sm:$0xff]
      %v8660 = vld [vmem:[%s8658 + $0x8] sm:$0xff]
      %v8661 = vld [vmem:[%s8658 + $0x10] sm:$0xff]
      %v8662 = vld [vmem:[%s8658 + $0x18] sm:$0xff]
      %v8663 = vld [vmem:[%s8658 + $0x20] sm:$0xff]
      %v8664 = vld [vmem:[%s8658 + $0x28] sm:$0xff]
      %v8665 = vld [vmem:[%s8658 + $0x30] sm:$0xff]
      %v8666 = vld [vmem:[%s8658 + $0x38] sm:$0xff]
      %v8667 = vld [vmem:[%s8658 + $0x40] sm:$0xff]
      %v8668 = vld [vmem:[%s8658 + $0x48] sm:$0xff]
      %v8669 = vld [vmem:[%s8658 + $0x50] sm:$0xff]
      %v8670 = vld [vmem:[%s8658 + $0x58] sm:$0xff]
      %v8671 = vld [vmem:[%s8658 + $0x60] sm:$0xff]
      %v8672 = vld [vmem:[%s8658 + $0x68] sm:$0xff]
      %v8673 = vld [vmem:[%s8658 + $0x70] sm:$0xff]
      %v8674 = vld [vmem:[%s8658 + $0x78] sm:$0xff]
      %v8679 = vunpack.c.l.b16 %v7721
      %v8680 = vunpack.c.l.b16 %v7722
      %v8681 = vunpack.c.l.b16 %v7739
      %v8682 = vunpack.c.l.b16 %v7740
      %v8683 = vpack.c.b16 %v8680, %v8679
      %v8684 = vpack.c.b16 %v8682, %v8681
      %v8703 = vunpack.c.l.b16 %v8659
      %v8704 = vunpack.c.h.b16 %v8659
      %v8705 = vunpack.c.l.b16 %v8660
      %v8706 = vunpack.c.h.b16 %v8660
      %v8707 = vunpack.c.l.b16 %v8661
      %v8708 = vunpack.c.h.b16 %v8661
      %v8709 = vunpack.c.l.b16 %v8662
      %v8710 = vunpack.c.h.b16 %v8662
      %v8711 = vunpack.c.l.b16 %v8663
      %v8712 = vunpack.c.h.b16 %v8663
      %v8713 = vunpack.c.l.b16 %v8664
      %v8714 = vunpack.c.h.b16 %v8664
      %v8715 = vunpack.c.l.b16 %v8665
      %v8716 = vunpack.c.h.b16 %v8665
      %v8717 = vunpack.c.l.b16 %v8666
      %v8718 = vunpack.c.h.b16 %v8666
      %v8719 = vunpack.c.l.b16 %v8667
      %v8720 = vunpack.c.h.b16 %v8667
      %v8721 = vunpack.c.l.b16 %v8668
      %v8722 = vunpack.c.h.b16 %v8668
      %v8723 = vunpack.c.l.b16 %v8669
      %v8724 = vunpack.c.h.b16 %v8669
      %v8725 = vunpack.c.l.b16 %v8670
      %v8726 = vunpack.c.h.b16 %v8670
      %v8727 = vunpack.c.l.b16 %v8671
      %v8728 = vunpack.c.h.b16 %v8671
      %v8729 = vunpack.c.l.b16 %v8672
      %v8730 = vunpack.c.h.b16 %v8672
      %v8731 = vunpack.c.l.b16 %v8673
      %v8732 = vunpack.c.h.b16 %v8673
      %v8733 = vunpack.c.l.b16 %v8674
      %v8734 = vunpack.c.h.b16 %v8674
      %v8735 = vpack.c.b16 %v8705, %v8703
      %v8736 = vpack.c.b16 %v8706, %v8704
      %v8737 = vpack.c.b16 %v8709, %v8707
      %v8738 = vpack.c.b16 %v8710, %v8708
      %v8739 = vpack.c.b16 %v8713, %v8711
      %v8740 = vpack.c.b16 %v8714, %v8712
      %v8741 = vpack.c.b16 %v8717, %v8715
      %v8742 = vpack.c.b16 %v8718, %v8716
      %v8743 = vpack.c.b16 %v8721, %v8719
      %v8744 = vpack.c.b16 %v8722, %v8720
      %v8745 = vpack.c.b16 %v8725, %v8723
      %v8746 = vpack.c.b16 %v8726, %v8724
      %v8747 = vpack.c.b16 %v8729, %v8727
      %v8748 = vpack.c.b16 %v8730, %v8728
      %v8749 = vpack.c.b16 %v8733, %v8731
      %v8750 = vpack.c.b16 %v8734, %v8732
      %8767 = vmatpush.bf16.msra.mxu0 %v8749
      %8768 = vmatpush.bf16.msra.mxu0 %v8747
      %8769 = vmatpush.bf16.msra.mxu0 %v8745
      %8770 = vmatpush.bf16.msra.mxu0 %v8743
      %8771 = vmatpush.bf16.msra.mxu0 %v8741
      %8772 = vmatpush.bf16.msra.mxu0 %v8739
      %8773 = vmatpush.bf16.msra.mxu0 %v8737
      %8774 = vmatpush.bf16.msra.mxu0 %v8735
      %8775 = vmatmul.bf16.gmra.mxu0 %v8683
      %v8776 = vpop.f32.mrf.mxu0
      %v8777 = vadd.f32 0.0, %v8776
      %v8778 = vpop.f32.mrf.mxu0
      %v8779 = vadd.f32 0.0, %v8778
      %8780 = vmatmul.bf16.gmra.mxu0 %v8684
      %v8781 = vpop.f32.mrf.mxu0
      %v8782 = vadd.f32 0.0, %v8781
      %v8783 = vpop.f32.mrf.mxu0
      %v8784 = vadd.f32 0.0, %v8783
      %8785 = vdwg.mxu0
      %8786 = vmatpush.bf16.msra.mxu0 %v8750
      %8787 = vmatpush.bf16.msra.mxu0 %v8748
      %8788 = vmatpush.bf16.msra.mxu0 %v8746
      %8789 = vmatpush.bf16.msra.mxu0 %v8744
      %8790 = vmatpush.bf16.msra.mxu0 %v8742
      %8791 = vmatpush.bf16.msra.mxu0 %v8740
      %8792 = vmatpush.bf16.msra.mxu0 %v8738
      %8793 = vmatpush.bf16.msra.mxu0 %v8736
      %8794 = vmatmul.bf16.gmra.mxu0 %v8683
      %v8795 = vpop.f32.mrf.mxu0
      %v8796 = vadd.f32 0.0, %v8795
      %v8797 = vpop.f32.mrf.mxu0
      %v8798 = vadd.f32 0.0, %v8797
      %8799 = vmatmul.bf16.gmra.mxu0 %v8684
      %v8800 = vpop.f32.mrf.mxu0
      %v8801 = vadd.f32 0.0, %v8800
      %v8802 = vpop.f32.mrf.mxu0
      %v8803 = vadd.f32 0.0, %v8802
      %8804 = vdwg.mxu0
      %v8805 = vadd.f32 %v8650, %v8777
      %v8806 = vadd.f32 %v8651, %v8796
      %v8807 = vadd.f32 %v8652, %v8779
      %v8808 = vadd.f32 %v8653, %v8798
      %v8809 = vadd.f32 %v8654, %v8782
      %v8810 = vadd.f32 %v8655, %v8801
      %v8811 = vadd.f32 %v8656, %v8784
      %v8812 = vadd.f32 %v8657, %v8803
      %s8813 = scalar_lea.vmem %s7, 896
      %v8814 = vld [vmem:[%s8813] sm:$0xff]
      %v8815 = vld [vmem:[%s8813 + $0x8] sm:$0xff]
      %v8816 = vld [vmem:[%s8813 + $0x10] sm:$0xff]
      %v8817 = vld [vmem:[%s8813 + $0x18] sm:$0xff]
      %v8818 = vld [vmem:[%s8813 + $0x20] sm:$0xff]
      %v8819 = vld [vmem:[%s8813 + $0x28] sm:$0xff]
      %v8820 = vld [vmem:[%s8813 + $0x30] sm:$0xff]
      %v8821 = vld [vmem:[%s8813 + $0x38] sm:$0xff]
      %v8822 = vld [vmem:[%s8813 + $0x40] sm:$0xff]
      %v8823 = vld [vmem:[%s8813 + $0x48] sm:$0xff]
      %v8824 = vld [vmem:[%s8813 + $0x50] sm:$0xff]
      %v8825 = vld [vmem:[%s8813 + $0x58] sm:$0xff]
      %v8826 = vld [vmem:[%s8813 + $0x60] sm:$0xff]
      %v8827 = vld [vmem:[%s8813 + $0x68] sm:$0xff]
      %v8828 = vld [vmem:[%s8813 + $0x70] sm:$0xff]
      %v8829 = vld [vmem:[%s8813 + $0x78] sm:$0xff]
      %v8834 = vunpack.c.l.b16 %v7723
      %v8835 = vunpack.c.l.b16 %v7724
      %v8836 = vunpack.c.l.b16 %v7741
      %v8837 = vunpack.c.l.b16 %v7742
      %v8838 = vpack.c.b16 %v8835, %v8834
      %v8839 = vpack.c.b16 %v8837, %v8836
      %v8858 = vunpack.c.l.b16 %v8814
      %v8859 = vunpack.c.h.b16 %v8814
      %v8860 = vunpack.c.l.b16 %v8815
      %v8861 = vunpack.c.h.b16 %v8815
      %v8862 = vunpack.c.l.b16 %v8816
      %v8863 = vunpack.c.h.b16 %v8816
      %v8864 = vunpack.c.l.b16 %v8817
      %v8865 = vunpack.c.h.b16 %v8817
      %v8866 = vunpack.c.l.b16 %v8818
      %v8867 = vunpack.c.h.b16 %v8818
      %v8868 = vunpack.c.l.b16 %v8819
      %v8869 = vunpack.c.h.b16 %v8819
      %v8870 = vunpack.c.l.b16 %v8820
      %v8871 = vunpack.c.h.b16 %v8820
      %v8872 = vunpack.c.l.b16 %v8821
      %v8873 = vunpack.c.h.b16 %v8821
      %v8874 = vunpack.c.l.b16 %v8822
      %v8875 = vunpack.c.h.b16 %v8822
      %v8876 = vunpack.c.l.b16 %v8823
      %v8877 = vunpack.c.h.b16 %v8823
      %v8878 = vunpack.c.l.b16 %v8824
      %v8879 = vunpack.c.h.b16 %v8824
      %v8880 = vunpack.c.l.b16 %v8825
      %v8881 = vunpack.c.h.b16 %v8825
      %v8882 = vunpack.c.l.b16 %v8826
      %v8883 = vunpack.c.h.b16 %v8826
      %v8884 = vunpack.c.l.b16 %v8827
      %v8885 = vunpack.c.h.b16 %v8827
      %v8886 = vunpack.c.l.b16 %v8828
      %v8887 = vunpack.c.h.b16 %v8828
      %v8888 = vunpack.c.l.b16 %v8829
      %v8889 = vunpack.c.h.b16 %v8829
      %v8890 = vpack.c.b16 %v8860, %v8858
      %v8891 = vpack.c.b16 %v8861, %v8859
      %v8892 = vpack.c.b16 %v8864, %v8862
      %v8893 = vpack.c.b16 %v8865, %v8863
      %v8894 = vpack.c.b16 %v8868, %v8866
      %v8895 = vpack.c.b16 %v8869, %v8867
      %v8896 = vpack.c.b16 %v8872, %v8870
      %v8897 = vpack.c.b16 %v8873, %v8871
      %v8898 = vpack.c.b16 %v8876, %v8874
      %v8899 = vpack.c.b16 %v8877, %v8875
      %v8900 = vpack.c.b16 %v8880, %v8878
      %v8901 = vpack.c.b16 %v8881, %v8879
      %v8902 = vpack.c.b16 %v8884, %v8882
      %v8903 = vpack.c.b16 %v8885, %v8883
      %v8904 = vpack.c.b16 %v8888, %v8886
      %v8905 = vpack.c.b16 %v8889, %v8887
      %8922 = vmatpush.bf16.msra.mxu0 %v8904
      %8923 = vmatpush.bf16.msra.mxu0 %v8902
      %8924 = vmatpush.bf16.msra.mxu0 %v8900
      %8925 = vmatpush.bf16.msra.mxu0 %v8898
      %8926 = vmatpush.bf16.msra.mxu0 %v8896
      %8927 = vmatpush.bf16.msra.mxu0 %v8894
      %8928 = vmatpush.bf16.msra.mxu0 %v8892
      %8929 = vmatpush.bf16.msra.mxu0 %v8890
      %8930 = vmatmul.bf16.gmra.mxu0 %v8838
      %v8931 = vpop.f32.mrf.mxu0
      %v8932 = vadd.f32 0.0, %v8931
      %v8933 = vpop.f32.mrf.mxu0
      %v8934 = vadd.f32 0.0, %v8933
      %8935 = vmatmul.bf16.gmra.mxu0 %v8839
      %v8936 = vpop.f32.mrf.mxu0
      %v8937 = vadd.f32 0.0, %v8936
      %v8938 = vpop.f32.mrf.mxu0
      %v8939 = vadd.f32 0.0, %v8938
      %8940 = vdwg.mxu0
      %8941 = vmatpush.bf16.msra.mxu0 %v8905
      %8942 = vmatpush.bf16.msra.mxu0 %v8903
      %8943 = vmatpush.bf16.msra.mxu0 %v8901
      %8944 = vmatpush.bf16.msra.mxu0 %v8899
      %8945 = vmatpush.bf16.msra.mxu0 %v8897
      %8946 = vmatpush.bf16.msra.mxu0 %v8895
      %8947 = vmatpush.bf16.msra.mxu0 %v8893
      %8948 = vmatpush.bf16.msra.mxu0 %v8891
      %8949 = vmatmul.bf16.gmra.mxu0 %v8838
      %v8950 = vpop.f32.mrf.mxu0
      %v8951 = vadd.f32 0.0, %v8950
      %v8952 = vpop.f32.mrf.mxu0
      %v8953 = vadd.f32 0.0, %v8952
      %8954 = vmatmul.bf16.gmra.mxu0 %v8839
      %v8955 = vpop.f32.mrf.mxu0
      %v8956 = vadd.f32 0.0, %v8955
      %v8957 = vpop.f32.mrf.mxu0
      %v8958 = vadd.f32 0.0, %v8957
      %8959 = vdwg.mxu0
      %v8960 = vadd.f32 %v8805, %v8932
      %v8961 = vadd.f32 %v8806, %v8951
      %v8962 = vadd.f32 %v8807, %v8934
      %v8963 = vadd.f32 %v8808, %v8953
      %v8964 = vadd.f32 %v8809, %v8937
      %v8965 = vadd.f32 %v8810, %v8956
      %v8966 = vadd.f32 %v8811, %v8939
      %v8967 = vadd.f32 %v8812, %v8958
      %s8968 = scalar_lea.vmem %s7, 1024
      %v8969 = vld [vmem:[%s8968] sm:$0xff]
      %v8970 = vld [vmem:[%s8968 + $0x8] sm:$0xff]
      %v8971 = vld [vmem:[%s8968 + $0x10] sm:$0xff]
      %v8972 = vld [vmem:[%s8968 + $0x18] sm:$0xff]
      %v8973 = vld [vmem:[%s8968 + $0x20] sm:$0xff]
      %v8974 = vld [vmem:[%s8968 + $0x28] sm:$0xff]
      %v8975 = vld [vmem:[%s8968 + $0x30] sm:$0xff]
      %v8976 = vld [vmem:[%s8968 + $0x38] sm:$0xff]
      %v8977 = vld [vmem:[%s8968 + $0x40] sm:$0xff]
      %v8978 = vld [vmem:[%s8968 + $0x48] sm:$0xff]
      %v8979 = vld [vmem:[%s8968 + $0x50] sm:$0xff]
      %v8980 = vld [vmem:[%s8968 + $0x58] sm:$0xff]
      %v8981 = vld [vmem:[%s8968 + $0x60] sm:$0xff]
      %v8982 = vld [vmem:[%s8968 + $0x68] sm:$0xff]
      %v8983 = vld [vmem:[%s8968 + $0x70] sm:$0xff]
      %v8984 = vld [vmem:[%s8968 + $0x78] sm:$0xff]
      %v8989 = vunpack.c.l.b16 %v7725
      %v8990 = vunpack.c.l.b16 %v7726
      %v8991 = vunpack.c.l.b16 %v7743
      %v8992 = vunpack.c.l.b16 %v7744
      %v8993 = vpack.c.b16 %v8990, %v8989
      %v8994 = vpack.c.b16 %v8992, %v8991
      %v9013 = vunpack.c.l.b16 %v8969
      %v9014 = vunpack.c.h.b16 %v8969
      %v9015 = vunpack.c.l.b16 %v8970
      %v9016 = vunpack.c.h.b16 %v8970
      %v9017 = vunpack.c.l.b16 %v8971
      %v9018 = vunpack.c.h.b16 %v8971
      %v9019 = vunpack.c.l.b16 %v8972
      %v9020 = vunpack.c.h.b16 %v8972
      %v9021 = vunpack.c.l.b16 %v8973
      %v9022 = vunpack.c.h.b16 %v8973
      %v9023 = vunpack.c.l.b16 %v8974
      %v9024 = vunpack.c.h.b16 %v8974
      %v9025 = vunpack.c.l.b16 %v8975
      %v9026 = vunpack.c.h.b16 %v8975
      %v9027 = vunpack.c.l.b16 %v8976
      %v9028 = vunpack.c.h.b16 %v8976
      %v9029 = vunpack.c.l.b16 %v8977
      %v9030 = vunpack.c.h.b16 %v8977
      %v9031 = vunpack.c.l.b16 %v8978
      %v9032 = vunpack.c.h.b16 %v8978
      %v9033 = vunpack.c.l.b16 %v8979
      %v9034 = vunpack.c.h.b16 %v8979
      %v9035 = vunpack.c.l.b16 %v8980
      %v9036 = vunpack.c.h.b16 %v8980
      %v9037 = vunpack.c.l.b16 %v8981
      %v9038 = vunpack.c.h.b16 %v8981
      %v9039 = vunpack.c.l.b16 %v8982
      %v9040 = vunpack.c.h.b16 %v8982
      %v9041 = vunpack.c.l.b16 %v8983
      %v9042 = vunpack.c.h.b16 %v8983
      %v9043 = vunpack.c.l.b16 %v8984
      %v9044 = vunpack.c.h.b16 %v8984
      %v9045 = vpack.c.b16 %v9015, %v9013
      %v9046 = vpack.c.b16 %v9016, %v9014
      %v9047 = vpack.c.b16 %v9019, %v9017
      %v9048 = vpack.c.b16 %v9020, %v9018
      %v9049 = vpack.c.b16 %v9023, %v9021
      %v9050 = vpack.c.b16 %v9024, %v9022
      %v9051 = vpack.c.b16 %v9027, %v9025
      %v9052 = vpack.c.b16 %v9028, %v9026
      %v9053 = vpack.c.b16 %v9031, %v9029
      %v9054 = vpack.c.b16 %v9032, %v9030
      %v9055 = vpack.c.b16 %v9035, %v9033
      %v9056 = vpack.c.b16 %v9036, %v9034
      %v9057 = vpack.c.b16 %v9039, %v9037
      %v9058 = vpack.c.b16 %v9040, %v9038
      %v9059 = vpack.c.b16 %v9043, %v9041
      %v9060 = vpack.c.b16 %v9044, %v9042
      %9077 = vmatpush.bf16.msra.mxu0 %v9059
      %9078 = vmatpush.bf16.msra.mxu0 %v9057
      %9079 = vmatpush.bf16.msra.mxu0 %v9055
      %9080 = vmatpush.bf16.msra.mxu0 %v9053
      %9081 = vmatpush.bf16.msra.mxu0 %v9051
      %9082 = vmatpush.bf16.msra.mxu0 %v9049
      %9083 = vmatpush.bf16.msra.mxu0 %v9047
      %9084 = vmatpush.bf16.msra.mxu0 %v9045
      %9085 = vmatmul.bf16.gmra.mxu0 %v8993
      %v9086 = vpop.f32.mrf.mxu0
      %v9087 = vadd.f32 0.0, %v9086
      %v9088 = vpop.f32.mrf.mxu0
      %v9089 = vadd.f32 0.0, %v9088
      %9090 = vmatmul.bf16.gmra.mxu0 %v8994
      %v9091 = vpop.f32.mrf.mxu0
      %v9092 = vadd.f32 0.0, %v9091
      %v9093 = vpop.f32.mrf.mxu0
      %v9094 = vadd.f32 0.0, %v9093
      %9095 = vdwg.mxu0
      %9096 = vmatpush.bf16.msra.mxu0 %v9060
      %9097 = vmatpush.bf16.msra.mxu0 %v9058
      %9098 = vmatpush.bf16.msra.mxu0 %v9056
      %9099 = vmatpush.bf16.msra.mxu0 %v9054
      %9100 = vmatpush.bf16.msra.mxu0 %v9052
      %9101 = vmatpush.bf16.msra.mxu0 %v9050
      %9102 = vmatpush.bf16.msra.mxu0 %v9048
      %9103 = vmatpush.bf16.msra.mxu0 %v9046
      %9104 = vmatmul.bf16.gmra.mxu0 %v8993
      %v9105 = vpop.f32.mrf.mxu0
      %v9106 = vadd.f32 0.0, %v9105
      %v9107 = vpop.f32.mrf.mxu0
      %v9108 = vadd.f32 0.0, %v9107
      %9109 = vmatmul.bf16.gmra.mxu0 %v8994
      %v9110 = vpop.f32.mrf.mxu0
      %v9111 = vadd.f32 0.0, %v9110
      %v9112 = vpop.f32.mrf.mxu0
      %v9113 = vadd.f32 0.0, %v9112
      %9114 = vdwg.mxu0
      %v9115 = vadd.f32 %v8960, %v9087
      %v9116 = vadd.f32 %v8961, %v9106
      %v9117 = vadd.f32 %v8962, %v9089
      %v9118 = vadd.f32 %v8963, %v9108
      %v9119 = vadd.f32 %v8964, %v9092
      %v9120 = vadd.f32 %v8965, %v9111
      %v9121 = vadd.f32 %v8966, %v9094
      %v9122 = vadd.f32 %v8967, %v9113
      %v9123 = vld [vmem:[%s8] sm:$0x3]
      %v9125 = vperm.slane %v9123, 0
      %v9126 = vperm.slane %v9123, 1
      %v9129 = vadd.f32 %v9115, %v9125
      %v9130 = vadd.f32 %v9116, %v9126
      %v9131 = vadd.f32 %v9117, %v9125
      %v9132 = vadd.f32 %v9118, %v9126
      %v9133 = vadd.f32 %v9119, %v9125
      %v9134 = vadd.f32 %v9120, %v9126
      %v9135 = vadd.f32 %v9121, %v9125
      %v9136 = vadd.f32 %v9122, %v9126
      %v9137 = vmax.f32 %v9129, 0.0
      %v9138 = vmax.f32 %v9130, 0.0
      %v9139 = vmax.f32 %v9131, 0.0
      %v9140 = vmax.f32 %v9132, 0.0
      %v9141 = vmax.f32 %v9133, 0.0
      %v9142 = vmax.f32 %v9134, 0.0
      %v9143 = vmax.f32 %v9135, 0.0
      %v9144 = vmax.f32 %v9136, 0.0
      %v9145 = vpack.c.bf16 %v9138, %v9137
      %v9146 = vpack.c.bf16 %v9140, %v9139
      %v9147 = vpack.c.bf16 %v9142, %v9141
      %v9148 = vpack.c.bf16 %v9144, %v9143
      %v9149 = vld [vmem:[%s9] sm:$0xf]
      %v9150 = vld [vmem:[%s9 + $0x4] sm:$0xf]
      %v9151 = vld [vmem:[%s9 + $0x8] sm:$0xf]
      %v9152 = vld [vmem:[%s9 + $0xc] sm:$0xf]
      %v9153 = vld [vmem:[%s9 + $0x10] sm:$0xf]
      %v9154 = vld [vmem:[%s9 + $0x14] sm:$0xf]
      %v9155 = vld [vmem:[%s9 + $0x18] sm:$0xf]
      %v9156 = vld [vmem:[%s9 + $0x1c] sm:$0xf]
      %v9157 = vld [vmem:[%s9 + $0x20] sm:$0xf]
      %v9158 = vld [vmem:[%s9 + $0x24] sm:$0xf]
      %v9159 = vld [vmem:[%s9 + $0x28] sm:$0xf]
      %v9160 = vld [vmem:[%s9 + $0x2c] sm:$0xf]
      %v9161 = vld [vmem:[%s9 + $0x30] sm:$0xf]
      %v9162 = vld [vmem:[%s9 + $0x34] sm:$0xf]
      %v9163 = vld [vmem:[%s9 + $0x38] sm:$0xf]
      %v9164 = vld [vmem:[%s9 + $0x3c] sm:$0xf]
      %v9165 = vld [vmem:[%s9 + $0x40] sm:$0xf]
      %v9166 = vld [vmem:[%s9 + $0x44] sm:$0xf]
      %v9185 = vunpack.c.l.b16 %v9149
      %v9186 = vunpack.c.l.b16 %v9150
      %v9187 = vunpack.c.l.b16 %v9151
      %v9188 = vunpack.c.l.b16 %v9152
      %v9189 = vunpack.c.l.b16 %v9153
      %v9190 = vunpack.c.l.b16 %v9154
      %v9191 = vunpack.c.l.b16 %v9155
      %v9192 = vunpack.c.l.b16 %v9156
      %v9193 = vunpack.c.l.b16 %v9157
      %v9194 = vunpack.c.l.b16 %v9158
      %v9195 = vunpack.c.l.b16 %v9159
      %v9196 = vunpack.c.l.b16 %v9160
      %v9197 = vunpack.c.l.b16 %v9161
      %v9198 = vunpack.c.l.b16 %v9162
      %v9199 = vunpack.c.l.b16 %v9163
      %v9200 = vunpack.c.l.b16 %v9164
      %v9201 = vunpack.c.l.b16 %v9165
      %v9202 = vunpack.c.l.b16 %v9166
      %v9203 = vpack.c.b16 %v9186, %v9185
      %v9204 = vpack.c.b16 %v9188, %v9187
      %v9205 = vpack.c.b16 %v9190, %v9189
      %v9206 = vpack.c.b16 %v9192, %v9191
      %v9207 = vpack.c.b16 %v9194, %v9193
      %v9208 = vpack.c.b16 %v9196, %v9195
      %v9209 = vpack.c.b16 %v9198, %v9197
      %v9210 = vpack.c.b16 %v9200, %v9199
      %v9211 = vpack.c.b16 %v9202, %v9201
      %v9214 = vunpack.c.l.b16 %v9145
      %v9215 = vunpack.c.h.b16 %v9145
      %v9216 = vunpack.c.l.b16 %v9146
      %v9217 = vunpack.c.h.b16 %v9146
      %v9218 = vpack.c.b16 %v9216, %v9214
      %v9219 = vpack.c.b16 %v9217, %v9215
      %vm9222 = vcmask 130048
      %v9224 = vsel %vm9222, %v9203, 0
      %v9227 = vsel %vm9222, %v9204, 0
      %v9230 = vsel %vm9222, %v9205, 0
      %v9233 = vsel %vm9222, %v9206, 0
      %v9236 = vsel %vm9222, %v9207, 0
      %v9239 = vsel %vm9222, %v9208, 0
      %v9242 = vsel %vm9222, %v9209, 0
      %v9245 = vsel %vm9222, %v9210, 0
      %v9248 = vsel %vm9222, %v9211, 0
      %9250 = vmatpush.bf16.msra.mxu0 0
      %9251 = vmatpush.bf16.msra.mxu0 0
      %9252 = vmatpush.bf16.msra.mxu0 0
      %9253 = vmatpush.bf16.msra.mxu0 0
      %9254 = vmatpush.bf16.msra.mxu0 0
      %9255 = vmatpush.bf16.msra.mxu0 0
      %9256 = vmatpush.bf16.msra.mxu0 0
      %9257 = vmatpush.bf16.msra.mxu0 %v9218
      %9258 = vmatmul.bf16.gmra.mxu0 %v9224
      %v9259 = vpop.f32.mrf.mxu0
      %v9260 = vadd.f32 0.0, %v9259
      %v9261 = vpop.f32.mrf.mxu0
      %v9262 = vadd.f32 0.0, %v9261
      %9263 = vmatmul.bf16.gmra.mxu0 %v9227
      %v9264 = vpop.f32.mrf.mxu0
      %v9265 = vadd.f32 0.0, %v9264
      %v9266 = vpop.f32.mrf.mxu0
      %v9267 = vadd.f32 0.0, %v9266
      %9268 = vmatmul.bf16.gmra.mxu0 %v9230
      %v9269 = vpop.f32.mrf.mxu0
      %v9270 = vadd.f32 0.0, %v9269
      %v9271 = vpop.f32.mrf.mxu0
      %v9272 = vadd.f32 0.0, %v9271
      %9273 = vmatmul.bf16.gmra.mxu0 %v9233
      %v9274 = vpop.f32.mrf.mxu0
      %v9275 = vadd.f32 0.0, %v9274
      %v9276 = vpop.f32.mrf.mxu0
      %v9277 = vadd.f32 0.0, %v9276
      %9278 = vmatmul.bf16.gmra.mxu0 %v9236
      %v9279 = vpop.f32.mrf.mxu0
      %v9280 = vadd.f32 0.0, %v9279
      %v9281 = vpop.f32.mrf.mxu0
      %v9282 = vadd.f32 0.0, %v9281
      %9283 = vmatmul.bf16.gmra.mxu0 %v9239
      %v9284 = vpop.f32.mrf.mxu0
      %v9285 = vadd.f32 0.0, %v9284
      %v9286 = vpop.f32.mrf.mxu0
      %v9287 = vadd.f32 0.0, %v9286
      %9288 = vmatmul.bf16.gmra.mxu0 %v9242
      %v9289 = vpop.f32.mrf.mxu0
      %v9290 = vadd.f32 0.0, %v9289
      %v9291 = vpop.f32.mrf.mxu0
      %v9292 = vadd.f32 0.0, %v9291
      %9293 = vmatmul.bf16.gmra.mxu0 %v9245
      %v9294 = vpop.f32.mrf.mxu0
      %v9295 = vadd.f32 0.0, %v9294
      %v9296 = vpop.f32.mrf.mxu0
      %v9297 = vadd.f32 0.0, %v9296
      %9298 = vmatmul.bf16.gmra.mxu0 %v9248
      %v9299 = vpop.f32.mrf.mxu0
      %v9300 = vadd.f32 0.0, %v9299
      %v9301 = vpop.f32.mrf.mxu0
      %v9302 = vadd.f32 0.0, %v9301
      %9303 = vdwg.mxu0
      %9304 = vmatpush.bf16.msra.mxu0 0
      %9305 = vmatpush.bf16.msra.mxu0 0
      %9306 = vmatpush.bf16.msra.mxu0 0
      %9307 = vmatpush.bf16.msra.mxu0 0
      %9308 = vmatpush.bf16.msra.mxu0 0
      %9309 = vmatpush.bf16.msra.mxu0 0
      %9310 = vmatpush.bf16.msra.mxu0 0
      %9311 = vmatpush.bf16.msra.mxu0 %v9219
      %9312 = vmatmul.bf16.gmra.mxu0 %v9224
      %v9313 = vpop.f32.mrf.mxu0
      %v9314 = vadd.f32 0.0, %v9313
      %v9315 = vpop.f32.mrf.mxu0
      %v9316 = vadd.f32 0.0, %v9315
      %9317 = vmatmul.bf16.gmra.mxu0 %v9227
      %v9318 = vpop.f32.mrf.mxu0
      %v9319 = vadd.f32 0.0, %v9318
      %v9320 = vpop.f32.mrf.mxu0
      %v9321 = vadd.f32 0.0, %v9320
      %9322 = vmatmul.bf16.gmra.mxu0 %v9230
      %v9323 = vpop.f32.mrf.mxu0
      %v9324 = vadd.f32 0.0, %v9323
      %v9325 = vpop.f32.mrf.mxu0
      %v9326 = vadd.f32 0.0, %v9325
      %9327 = vmatmul.bf16.gmra.mxu0 %v9233
      %v9328 = vpop.f32.mrf.mxu0
      %v9329 = vadd.f32 0.0, %v9328
      %v9330 = vpop.f32.mrf.mxu0
      %v9331 = vadd.f32 0.0, %v9330
      %9332 = vmatmul.bf16.gmra.mxu0 %v9236
      %v9333 = vpop.f32.mrf.mxu0
      %v9334 = vadd.f32 0.0, %v9333
      %v9335 = vpop.f32.mrf.mxu0
      %v9336 = vadd.f32 0.0, %v9335
      %9337 = vmatmul.bf16.gmra.mxu0 %v9239
      %v9338 = vpop.f32.mrf.mxu0
      %v9339 = vadd.f32 0.0, %v9338
      %v9340 = vpop.f32.mrf.mxu0
      %v9341 = vadd.f32 0.0, %v9340
      %9342 = vmatmul.bf16.gmra.mxu0 %v9242
      %v9343 = vpop.f32.mrf.mxu0
      %v9344 = vadd.f32 0.0, %v9343
      %v9345 = vpop.f32.mrf.mxu0
      %v9346 = vadd.f32 0.0, %v9345
      %9347 = vmatmul.bf16.gmra.mxu0 %v9245
      %v9348 = vpop.f32.mrf.mxu0
      %v9349 = vadd.f32 0.0, %v9348
      %v9350 = vpop.f32.mrf.mxu0
      %v9351 = vadd.f32 0.0, %v9350
      %9352 = vmatmul.bf16.gmra.mxu0 %v9248
      %v9353 = vpop.f32.mrf.mxu0
      %v9354 = vadd.f32 0.0, %v9353
      %v9355 = vpop.f32.mrf.mxu0
      %v9356 = vadd.f32 0.0, %v9355
      %9357 = vdwg.mxu0
      %v9360 = vunpack.c.l.b16 %v9147
      %v9361 = vunpack.c.h.b16 %v9147
      %v9362 = vunpack.c.l.b16 %v9148
      %v9363 = vunpack.c.h.b16 %v9148
      %v9364 = vpack.c.b16 %v9362, %v9360
      %v9365 = vpack.c.b16 %v9363, %v9361
      %9368 = vmatpush.bf16.msra.mxu0 0
      %9369 = vmatpush.bf16.msra.mxu0 0
      %9370 = vmatpush.bf16.msra.mxu0 0
      %9371 = vmatpush.bf16.msra.mxu0 0
      %9372 = vmatpush.bf16.msra.mxu0 0
      %9373 = vmatpush.bf16.msra.mxu0 0
      %9374 = vmatpush.bf16.msra.mxu0 0
      %9375 = vmatpush.bf16.msra.mxu0 %v9364
      %9376 = vmatmul.bf16.gmra.mxu0 %v9224
      %v9377 = vpop.f32.mrf.mxu0
      %v9378 = vadd.f32 0.0, %v9377
      %v9379 = vpop.f32.mrf.mxu0
      %v9380 = vadd.f32 0.0, %v9379
      %9381 = vmatmul.bf16.gmra.mxu0 %v9227
      %v9382 = vpop.f32.mrf.mxu0
      %v9383 = vadd.f32 0.0, %v9382
      %v9384 = vpop.f32.mrf.mxu0
      %v9385 = vadd.f32 0.0, %v9384
      %9386 = vmatmul.bf16.gmra.mxu0 %v9230
      %v9387 = vpop.f32.mrf.mxu0
      %v9388 = vadd.f32 0.0, %v9387
      %v9389 = vpop.f32.mrf.mxu0
      %v9390 = vadd.f32 0.0, %v9389
      %9391 = vmatmul.bf16.gmra.mxu0 %v9233
      %v9392 = vpop.f32.mrf.mxu0
      %v9393 = vadd.f32 0.0, %v9392
      %v9394 = vpop.f32.mrf.mxu0
      %v9395 = vadd.f32 0.0, %v9394
      %9396 = vmatmul.bf16.gmra.mxu0 %v9236
      %v9397 = vpop.f32.mrf.mxu0
      %v9398 = vadd.f32 0.0, %v9397
      %v9399 = vpop.f32.mrf.mxu0
      %v9400 = vadd.f32 0.0, %v9399
      %9401 = vmatmul.bf16.gmra.mxu0 %v9239
      %v9402 = vpop.f32.mrf.mxu0
      %v9403 = vadd.f32 0.0, %v9402
      %v9404 = vpop.f32.mrf.mxu0
      %v9405 = vadd.f32 0.0, %v9404
      %9406 = vmatmul.bf16.gmra.mxu0 %v9242
      %v9407 = vpop.f32.mrf.mxu0
      %v9408 = vadd.f32 0.0, %v9407
      %v9409 = vpop.f32.mrf.mxu0
      %v9410 = vadd.f32 0.0, %v9409
      %9411 = vmatmul.bf16.gmra.mxu0 %v9245
      %v9412 = vpop.f32.mrf.mxu0
      %v9413 = vadd.f32 0.0, %v9412
      %v9414 = vpop.f32.mrf.mxu0
      %v9415 = vadd.f32 0.0, %v9414
      %9416 = vmatmul.bf16.gmra.mxu0 %v9248
      %v9417 = vpop.f32.mrf.mxu0
      %v9418 = vadd.f32 0.0, %v9417
      %v9419 = vpop.f32.mrf.mxu0
      %v9420 = vadd.f32 0.0, %v9419
      %9421 = vdwg.mxu0
      %9422 = vmatpush.bf16.msra.mxu0 0
      %9423 = vmatpush.bf16.msra.mxu0 0
      %9424 = vmatpush.bf16.msra.mxu0 0
      %9425 = vmatpush.bf16.msra.mxu0 0
      %9426 = vmatpush.bf16.msra.mxu0 0
      %9427 = vmatpush.bf16.msra.mxu0 0
      %9428 = vmatpush.bf16.msra.mxu0 0
      %9429 = vmatpush.bf16.msra.mxu0 %v9365
      %9430 = vmatmul.bf16.gmra.mxu0 %v9224
      %v9431 = vpop.f32.mrf.mxu0
      %v9432 = vadd.f32 0.0, %v9431
      %v9433 = vpop.f32.mrf.mxu0
      %v9434 = vadd.f32 0.0, %v9433
      %9435 = vmatmul.bf16.gmra.mxu0 %v9227
      %v9436 = vpop.f32.mrf.mxu0
      %v9437 = vadd.f32 0.0, %v9436
      %v9438 = vpop.f32.mrf.mxu0
      %v9439 = vadd.f32 0.0, %v9438
      %9440 = vmatmul.bf16.gmra.mxu0 %v9230
      %v9441 = vpop.f32.mrf.mxu0
      %v9442 = vadd.f32 0.0, %v9441
      %v9443 = vpop.f32.mrf.mxu0
      %v9444 = vadd.f32 0.0, %v9443
      %9445 = vmatmul.bf16.gmra.mxu0 %v9233
      %v9446 = vpop.f32.mrf.mxu0
      %v9447 = vadd.f32 0.0, %v9446
      %v9448 = vpop.f32.mrf.mxu0
      %v9449 = vadd.f32 0.0, %v9448
      %9450 = vmatmul.bf16.gmra.mxu0 %v9236
      %v9451 = vpop.f32.mrf.mxu0
      %v9452 = vadd.f32 0.0, %v9451
      %v9453 = vpop.f32.mrf.mxu0
      %v9454 = vadd.f32 0.0, %v9453
      %9455 = vmatmul.bf16.gmra.mxu0 %v9239
      %v9456 = vpop.f32.mrf.mxu0
      %v9457 = vadd.f32 0.0, %v9456
      %v9458 = vpop.f32.mrf.mxu0
      %v9459 = vadd.f32 0.0, %v9458
      %9460 = vmatmul.bf16.gmra.mxu0 %v9242
      %v9461 = vpop.f32.mrf.mxu0
      %v9462 = vadd.f32 0.0, %v9461
      %v9463 = vpop.f32.mrf.mxu0
      %v9464 = vadd.f32 0.0, %v9463
      %9465 = vmatmul.bf16.gmra.mxu0 %v9245
      %v9466 = vpop.f32.mrf.mxu0
      %v9467 = vadd.f32 0.0, %v9466
      %v9468 = vpop.f32.mrf.mxu0
      %v9469 = vadd.f32 0.0, %v9468
      %9470 = vmatmul.bf16.gmra.mxu0 %v9248
      %v9471 = vpop.f32.mrf.mxu0
      %v9472 = vadd.f32 0.0, %v9471
      %v9473 = vpop.f32.mrf.mxu0
      %v9474 = vadd.f32 0.0, %v9473
      %9475 = vdwg.mxu0
      %v9476 = vpack.c.bf16 %v9314, %v9260
      %v9477 = vpack.c.bf16 %v9316, %v9262
      %v9478 = vpack.c.bf16 %v9319, %v9265
      %v9479 = vpack.c.bf16 %v9321, %v9267
      %v9480 = vpack.c.bf16 %v9324, %v9270
      %v9481 = vpack.c.bf16 %v9326, %v9272
      %v9482 = vpack.c.bf16 %v9329, %v9275
      %v9483 = vpack.c.bf16 %v9331, %v9277
      %v9484 = vpack.c.bf16 %v9334, %v9280
      %v9485 = vpack.c.bf16 %v9336, %v9282
      %v9486 = vpack.c.bf16 %v9339, %v9285
      %v9487 = vpack.c.bf16 %v9341, %v9287
      %v9488 = vpack.c.bf16 %v9344, %v9290
      %v9489 = vpack.c.bf16 %v9346, %v9292
      %v9490 = vpack.c.bf16 %v9349, %v9295
      %v9491 = vpack.c.bf16 %v9351, %v9297
      %v9492 = vpack.c.bf16 %v9354, %v9300
      %v9493 = vpack.c.bf16 %v9356, %v9302
      %v9494 = vpack.c.bf16 %v9432, %v9378
      %v9495 = vpack.c.bf16 %v9434, %v9380
      %v9496 = vpack.c.bf16 %v9437, %v9383
      %v9497 = vpack.c.bf16 %v9439, %v9385
      %v9498 = vpack.c.bf16 %v9442, %v9388
      %v9499 = vpack.c.bf16 %v9444, %v9390
      %v9500 = vpack.c.bf16 %v9447, %v9393
      %v9501 = vpack.c.bf16 %v9449, %v9395
      %v9502 = vpack.c.bf16 %v9452, %v9398
      %v9503 = vpack.c.bf16 %v9454, %v9400
      %v9504 = vpack.c.bf16 %v9457, %v9403
      %v9505 = vpack.c.bf16 %v9459, %v9405
      %v9506 = vpack.c.bf16 %v9462, %v9408
      %v9507 = vpack.c.bf16 %v9464, %v9410
      %v9508 = vpack.c.bf16 %v9467, %v9413
      %v9509 = vpack.c.bf16 %v9469, %v9415
      %v9510 = vpack.c.bf16 %v9472, %v9418
      %v9511 = vpack.c.bf16 %v9474, %v9420
      %v9512 = vld [vmem:[%s10] sm:$0xf]
      %v9513 = vld [vmem:[%s10 + $0x4] sm:$0xf]
      %v9514 = vld [vmem:[%s10 + $0x8] sm:$0xf]
      %v9515 = vld [vmem:[%s10 + $0xc] sm:$0xf]
      %v9516 = vld [vmem:[%s10 + $0x10] sm:$0xf]
      %v9517 = vld [vmem:[%s10 + $0x14] sm:$0xf]
      %v9518 = vld [vmem:[%s10 + $0x18] sm:$0xf]
      %v9519 = vld [vmem:[%s10 + $0x1c] sm:$0xf]
      %v9520 = vld [vmem:[%s10 + $0x20] sm:$0xf]
      %v9521 = vld [vmem:[%s10 + $0x24] sm:$0xf]
      %v9522 = vld [vmem:[%s10 + $0x28] sm:$0xf]
      %v9523 = vld [vmem:[%s10 + $0x2c] sm:$0xf]
      %v9524 = vld [vmem:[%s10 + $0x30] sm:$0xf]
      %v9525 = vld [vmem:[%s10 + $0x34] sm:$0xf]
      %v9526 = vld [vmem:[%s10 + $0x38] sm:$0xf]
      %v9527 = vld [vmem:[%s10 + $0x3c] sm:$0xf]
      %v9528 = vld [vmem:[%s10 + $0x40] sm:$0xf]
      %v9529 = vld [vmem:[%s10 + $0x44] sm:$0xf]
      %v9530 = vld [vmem:[%s10 + $0x48] sm:$0xf]
      %v9531 = vld [vmem:[%s10 + $0x4c] sm:$0xf]
      %v9532 = vld [vmem:[%s10 + $0x50] sm:$0xf]
      %v9533 = vld [vmem:[%s10 + $0x54] sm:$0xf]
      %v9534 = vld [vmem:[%s10 + $0x58] sm:$0xf]
      %v9535 = vld [vmem:[%s10 + $0x5c] sm:$0xf]
      %v9536 = vld [vmem:[%s10 + $0x60] sm:$0xf]
      %v9537 = vld [vmem:[%s10 + $0x64] sm:$0xf]
      %v9538 = vld [vmem:[%s10 + $0x68] sm:$0xf]
      %v9539 = vld [vmem:[%s10 + $0x6c] sm:$0xf]
      %v9540 = vld [vmem:[%s10 + $0x70] sm:$0xf]
      %v9541 = vld [vmem:[%s10 + $0x74] sm:$0xf]
      %v9542 = vld [vmem:[%s10 + $0x78] sm:$0xf]
      %v9543 = vld [vmem:[%s10 + $0x7c] sm:$0xf]
      %s9544 = scalar_lea.vmem %s10, 128
      %v9545 = vld [vmem:[%s9544] sm:$0xf]
      %v9546 = vld [vmem:[%s9544 + $0x4] sm:$0xf]
      %v9547 = vld [vmem:[%s9544 + $0x8] sm:$0xf]
      %v9548 = vld [vmem:[%s9544 + $0xc] sm:$0xf]
      %v9549 = vld [vmem:[%s9544 + $0x10] sm:$0xf]
      %v9550 = vld [vmem:[%s9544 + $0x14] sm:$0xf]
      %v9551 = vld [vmem:[%s9544 + $0x18] sm:$0xf]
      %v9552 = vld [vmem:[%s9544 + $0x1c] sm:$0xf]
      %v9553 = vld [vmem:[%s9544 + $0x20] sm:$0xf]
      %v9554 = vld [vmem:[%s9544 + $0x24] sm:$0xf]
      %v9555 = vld [vmem:[%s9544 + $0x28] sm:$0xf]
      %v9556 = vld [vmem:[%s9544 + $0x2c] sm:$0xf]
      %v9557 = vld [vmem:[%s9544 + $0x30] sm:$0xf]
      %v9558 = vld [vmem:[%s9544 + $0x34] sm:$0xf]
      %v9559 = vld [vmem:[%s9544 + $0x38] sm:$0xf]
      %v9560 = vld [vmem:[%s9544 + $0x3c] sm:$0xf]
      %v9561 = vld [vmem:[%s9544 + $0x40] sm:$0xf]
      %v9562 = vld [vmem:[%s9544 + $0x44] sm:$0xf]
      %v9563 = vld [vmem:[%s9544 + $0x48] sm:$0xf]
      %v9564 = vld [vmem:[%s9544 + $0x4c] sm:$0xf]
      %v9565 = vld [vmem:[%s9544 + $0x50] sm:$0xf]
      %v9566 = vld [vmem:[%s9544 + $0x54] sm:$0xf]
      %v9567 = vld [vmem:[%s9544 + $0x58] sm:$0xf]
      %v9568 = vld [vmem:[%s9544 + $0x5c] sm:$0xf]
      %v9569 = vld [vmem:[%s9544 + $0x60] sm:$0xf]
      %v9570 = vld [vmem:[%s9544 + $0x64] sm:$0xf]
      %v9571 = vld [vmem:[%s9544 + $0x68] sm:$0xf]
      %v9572 = vld [vmem:[%s9544 + $0x6c] sm:$0xf]
      %v9573 = vld [vmem:[%s9544 + $0x70] sm:$0xf]
      %v9574 = vld [vmem:[%s9544 + $0x74] sm:$0xf]
      %v9575 = vld [vmem:[%s9544 + $0x78] sm:$0xf]
      %v9576 = vld [vmem:[%s9544 + $0x7c] sm:$0xf]
      %v9581 = vunpack.c.l.b16 %v9478
      %v9582 = vunpack.c.h.b16 %v9478
      %v9583 = vunpack.c.l.b16 %v9479
      %v9584 = vunpack.c.h.b16 %v9479
      %v9585 = vunpack.c.l.b16 %v9496
      %v9586 = vunpack.c.h.b16 %v9496
      %v9587 = vunpack.c.l.b16 %v9497
      %v9588 = vunpack.c.h.b16 %v9497
      %v9589 = vpack.c.b16 %v9583, %v9581
      %v9590 = vpack.c.b16 %v9584, %v9582
      %v9591 = vpack.c.b16 %v9587, %v9585
      %v9592 = vpack.c.b16 %v9588, %v9586
      %v9629 = vunpack.c.l.b16 %v9545
      %v9630 = vunpack.c.l.b16 %v9546
      %v9631 = vunpack.c.l.b16 %v9547
      %v9632 = vunpack.c.l.b16 %v9548
      %v9633 = vunpack.c.l.b16 %v9549
      %v9634 = vunpack.c.l.b16 %v9550
      %v9635 = vunpack.c.l.b16 %v9551
      %v9636 = vunpack.c.l.b16 %v9552
      %v9637 = vunpack.c.l.b16 %v9553
      %v9638 = vunpack.c.l.b16 %v9554
      %v9639 = vunpack.c.l.b16 %v9555
      %v9640 = vunpack.c.l.b16 %v9556
      %v9641 = vunpack.c.l.b16 %v9557
      %v9642 = vunpack.c.l.b16 %v9558
      %v9643 = vunpack.c.l.b16 %v9559
      %v9644 = vunpack.c.l.b16 %v9560
      %v9645 = vunpack.c.l.b16 %v9561
      %v9646 = vunpack.c.l.b16 %v9562
      %v9647 = vunpack.c.l.b16 %v9563
      %v9648 = vunpack.c.l.b16 %v9564
      %v9649 = vunpack.c.l.b16 %v9565
      %v9650 = vunpack.c.l.b16 %v9566
      %v9651 = vunpack.c.l.b16 %v9567
      %v9652 = vunpack.c.l.b16 %v9568
      %v9653 = vunpack.c.l.b16 %v9569
      %v9654 = vunpack.c.l.b16 %v9570
      %v9655 = vunpack.c.l.b16 %v9571
      %v9656 = vunpack.c.l.b16 %v9572
      %v9657 = vunpack.c.l.b16 %v9573
      %v9658 = vunpack.c.l.b16 %v9574
      %v9659 = vunpack.c.l.b16 %v9575
      %v9660 = vunpack.c.l.b16 %v9576
      %v9661 = vpack.c.b16 %v9630, %v9629
      %v9662 = vpack.c.b16 %v9632, %v9631
      %v9663 = vpack.c.b16 %v9634, %v9633
      %v9664 = vpack.c.b16 %v9636, %v9635
      %v9665 = vpack.c.b16 %v9638, %v9637
      %v9666 = vpack.c.b16 %v9640, %v9639
      %v9667 = vpack.c.b16 %v9642, %v9641
      %v9668 = vpack.c.b16 %v9644, %v9643
      %v9669 = vpack.c.b16 %v9646, %v9645
      %v9670 = vpack.c.b16 %v9648, %v9647
      %v9671 = vpack.c.b16 %v9650, %v9649
      %v9672 = vpack.c.b16 %v9652, %v9651
      %v9673 = vpack.c.b16 %v9654, %v9653
      %v9674 = vpack.c.b16 %v9656, %v9655
      %v9675 = vpack.c.b16 %v9658, %v9657
      %v9676 = vpack.c.b16 %v9660, %v9659
      %9693 = vmatpush.bf16.msra.mxu0 %v9668
      %9694 = vmatpush.bf16.msra.mxu0 %v9667
      %9695 = vmatpush.bf16.msra.mxu0 %v9666
      %9696 = vmatpush.bf16.msra.mxu0 %v9665
      %9697 = vmatpush.bf16.msra.mxu0 %v9664
      %9698 = vmatpush.bf16.msra.mxu0 %v9663
      %9699 = vmatpush.bf16.msra.mxu0 %v9662
      %9700 = vmatpush.bf16.msra.mxu0 %v9661
      %9701 = vmatmul.bf16.gmra.mxu0 %v9589
      %v9702 = vpop.f32.mrf.mxu0
      %v9703 = vadd.f32 0.0, %v9702
      %v9704 = vpop.f32.mrf.mxu0
      %v9705 = vadd.f32 0.0, %v9704
      %9706 = vmatmul.bf16.gmra.mxu0 %v9591
      %v9707 = vpop.f32.mrf.mxu0
      %v9708 = vadd.f32 0.0, %v9707
      %v9709 = vpop.f32.mrf.mxu0
      %v9710 = vadd.f32 0.0, %v9709
      %9711 = vdwg.mxu0
      %9712 = vmatpush.bf16.msra.mxu0 %v9676
      %9713 = vmatpush.bf16.msra.mxu0 %v9675
      %9714 = vmatpush.bf16.msra.mxu0 %v9674
      %9715 = vmatpush.bf16.msra.mxu0 %v9673
      %9716 = vmatpush.bf16.msra.mxu0 %v9672
      %9717 = vmatpush.bf16.msra.mxu0 %v9671
      %9718 = vmatpush.bf16.msra.mxu0 %v9670
      %9719 = vmatpush.bf16.msra.mxu0 %v9669
      %9720 = vmatmul.bf16.gmra.mxu0 %v9590
      %v9721 = vpop.f32.mrf.mxu0
      %v9722 = vadd.f32 %v9703, %v9721
      %v9723 = vpop.f32.mrf.mxu0
      %v9724 = vadd.f32 %v9705, %v9723
      %9725 = vmatmul.bf16.gmra.mxu0 %v9592
      %v9726 = vpop.f32.mrf.mxu0
      %v9727 = vadd.f32 %v9708, %v9726
      %v9728 = vpop.f32.mrf.mxu0
      %v9729 = vadd.f32 %v9710, %v9728
      %9730 = vdwg.mxu0
      %v9735 = vunpack.c.l.b16 %v9476
      %v9736 = vunpack.c.h.b16 %v9476
      %v9737 = vunpack.c.l.b16 %v9477
      %v9738 = vunpack.c.h.b16 %v9477
      %v9739 = vunpack.c.l.b16 %v9494
      %v9740 = vunpack.c.h.b16 %v9494
      %v9741 = vunpack.c.l.b16 %v9495
      %v9742 = vunpack.c.h.b16 %v9495
      %v9743 = vpack.c.b16 %v9737, %v9735
      %v9744 = vpack.c.b16 %v9738, %v9736
      %v9745 = vpack.c.b16 %v9741, %v9739
      %v9746 = vpack.c.b16 %v9742, %v9740
      %v9783 = vunpack.c.l.b16 %v9512
      %v9784 = vunpack.c.l.b16 %v9513
      %v9785 = vunpack.c.l.b16 %v9514
      %v9786 = vunpack.c.l.b16 %v9515
      %v9787 = vunpack.c.l.b16 %v9516
      %v9788 = vunpack.c.l.b16 %v9517
      %v9789 = vunpack.c.l.b16 %v9518
      %v9790 = vunpack.c.l.b16 %v9519
      %v9791 = vunpack.c.l.b16 %v9520
      %v9792 = vunpack.c.l.b16 %v9521
      %v9793 = vunpack.c.l.b16 %v9522
      %v9794 = vunpack.c.l.b16 %v9523
      %v9795 = vunpack.c.l.b16 %v9524
      %v9796 = vunpack.c.l.b16 %v9525
      %v9797 = vunpack.c.l.b16 %v9526
      %v9798 = vunpack.c.l.b16 %v9527
      %v9799 = vunpack.c.l.b16 %v9528
      %v9800 = vunpack.c.l.b16 %v9529
      %v9801 = vunpack.c.l.b16 %v9530
      %v9802 = vunpack.c.l.b16 %v9531
      %v9803 = vunpack.c.l.b16 %v9532
      %v9804 = vunpack.c.l.b16 %v9533
      %v9805 = vunpack.c.l.b16 %v9534
      %v9806 = vunpack.c.l.b16 %v9535
      %v9807 = vunpack.c.l.b16 %v9536
      %v9808 = vunpack.c.l.b16 %v9537
      %v9809 = vunpack.c.l.b16 %v9538
      %v9810 = vunpack.c.l.b16 %v9539
      %v9811 = vunpack.c.l.b16 %v9540
      %v9812 = vunpack.c.l.b16 %v9541
      %v9813 = vunpack.c.l.b16 %v9542
      %v9814 = vunpack.c.l.b16 %v9543
      %v9815 = vpack.c.b16 %v9784, %v9783
      %v9816 = vpack.c.b16 %v9786, %v9785
      %v9817 = vpack.c.b16 %v9788, %v9787
      %v9818 = vpack.c.b16 %v9790, %v9789
      %v9819 = vpack.c.b16 %v9792, %v9791
      %v9820 = vpack.c.b16 %v9794, %v9793
      %v9821 = vpack.c.b16 %v9796, %v9795
      %v9822 = vpack.c.b16 %v9798, %v9797
      %v9823 = vpack.c.b16 %v9800, %v9799
      %v9824 = vpack.c.b16 %v9802, %v9801
      %v9825 = vpack.c.b16 %v9804, %v9803
      %v9826 = vpack.c.b16 %v9806, %v9805
      %v9827 = vpack.c.b16 %v9808, %v9807
      %v9828 = vpack.c.b16 %v9810, %v9809
      %v9829 = vpack.c.b16 %v9812, %v9811
      %v9830 = vpack.c.b16 %v9814, %v9813
      %9847 = vmatpush.bf16.msra.mxu0 %v9822
      %9848 = vmatpush.bf16.msra.mxu0 %v9821
      %9849 = vmatpush.bf16.msra.mxu0 %v9820
      %9850 = vmatpush.bf16.msra.mxu0 %v9819
      %9851 = vmatpush.bf16.msra.mxu0 %v9818
      %9852 = vmatpush.bf16.msra.mxu0 %v9817
      %9853 = vmatpush.bf16.msra.mxu0 %v9816
      %9854 = vmatpush.bf16.msra.mxu0 %v9815
      %9855 = vmatmul.bf16.gmra.mxu0 %v9743
      %v9856 = vpop.f32.mrf.mxu0
      %v9857 = vadd.f32 %v9722, %v9856
      %v9858 = vpop.f32.mrf.mxu0
      %v9859 = vadd.f32 %v9724, %v9858
      %9860 = vmatmul.bf16.gmra.mxu0 %v9745
      %v9861 = vpop.f32.mrf.mxu0
      %v9862 = vadd.f32 %v9727, %v9861
      %v9863 = vpop.f32.mrf.mxu0
      %v9864 = vadd.f32 %v9729, %v9863
      %9865 = vdwg.mxu0
      %9866 = vmatpush.bf16.msra.mxu0 %v9830
      %9867 = vmatpush.bf16.msra.mxu0 %v9829
      %9868 = vmatpush.bf16.msra.mxu0 %v9828
      %9869 = vmatpush.bf16.msra.mxu0 %v9827
      %9870 = vmatpush.bf16.msra.mxu0 %v9826
      %9871 = vmatpush.bf16.msra.mxu0 %v9825
      %9872 = vmatpush.bf16.msra.mxu0 %v9824
      %9873 = vmatpush.bf16.msra.mxu0 %v9823
      %9874 = vmatmul.bf16.gmra.mxu0 %v9744
      %v9875 = vpop.f32.mrf.mxu0
      %v9876 = vadd.f32 %v9857, %v9875
      %v9877 = vpop.f32.mrf.mxu0
      %v9878 = vadd.f32 %v9859, %v9877
      %9879 = vmatmul.bf16.gmra.mxu0 %v9746
      %v9880 = vpop.f32.mrf.mxu0
      %v9881 = vadd.f32 %v9862, %v9880
      %v9882 = vpop.f32.mrf.mxu0
      %v9883 = vadd.f32 %v9864, %v9882
      %9884 = vdwg.mxu0
      %s9885 = scalar_lea.vmem %s10, 256
      %v9886 = vld [vmem:[%s9885] sm:$0xf]
      %v9887 = vld [vmem:[%s9885 + $0x4] sm:$0xf]
      %v9888 = vld [vmem:[%s9885 + $0x8] sm:$0xf]
      %v9889 = vld [vmem:[%s9885 + $0xc] sm:$0xf]
      %v9890 = vld [vmem:[%s9885 + $0x10] sm:$0xf]
      %v9891 = vld [vmem:[%s9885 + $0x14] sm:$0xf]
      %v9892 = vld [vmem:[%s9885 + $0x18] sm:$0xf]
      %v9893 = vld [vmem:[%s9885 + $0x1c] sm:$0xf]
      %v9894 = vld [vmem:[%s9885 + $0x20] sm:$0xf]
      %v9895 = vld [vmem:[%s9885 + $0x24] sm:$0xf]
      %v9896 = vld [vmem:[%s9885 + $0x28] sm:$0xf]
      %v9897 = vld [vmem:[%s9885 + $0x2c] sm:$0xf]
      %v9898 = vld [vmem:[%s9885 + $0x30] sm:$0xf]
      %v9899 = vld [vmem:[%s9885 + $0x34] sm:$0xf]
      %v9900 = vld [vmem:[%s9885 + $0x38] sm:$0xf]
      %v9901 = vld [vmem:[%s9885 + $0x3c] sm:$0xf]
      %v9902 = vld [vmem:[%s9885 + $0x40] sm:$0xf]
      %v9903 = vld [vmem:[%s9885 + $0x44] sm:$0xf]
      %v9904 = vld [vmem:[%s9885 + $0x48] sm:$0xf]
      %v9905 = vld [vmem:[%s9885 + $0x4c] sm:$0xf]
      %v9906 = vld [vmem:[%s9885 + $0x50] sm:$0xf]
      %v9907 = vld [vmem:[%s9885 + $0x54] sm:$0xf]
      %v9908 = vld [vmem:[%s9885 + $0x58] sm:$0xf]
      %v9909 = vld [vmem:[%s9885 + $0x5c] sm:$0xf]
      %v9910 = vld [vmem:[%s9885 + $0x60] sm:$0xf]
      %v9911 = vld [vmem:[%s9885 + $0x64] sm:$0xf]
      %v9912 = vld [vmem:[%s9885 + $0x68] sm:$0xf]
      %v9913 = vld [vmem:[%s9885 + $0x6c] sm:$0xf]
      %v9914 = vld [vmem:[%s9885 + $0x70] sm:$0xf]
      %v9915 = vld [vmem:[%s9885 + $0x74] sm:$0xf]
      %v9916 = vld [vmem:[%s9885 + $0x78] sm:$0xf]
      %v9917 = vld [vmem:[%s9885 + $0x7c] sm:$0xf]
      %v9922 = vunpack.c.l.b16 %v9480
      %v9923 = vunpack.c.h.b16 %v9480
      %v9924 = vunpack.c.l.b16 %v9481
      %v9925 = vunpack.c.h.b16 %v9481
      %v9926 = vunpack.c.l.b16 %v9498
      %v9927 = vunpack.c.h.b16 %v9498
      %v9928 = vunpack.c.l.b16 %v9499
      %v9929 = vunpack.c.h.b16 %v9499
      %v9930 = vpack.c.b16 %v9924, %v9922
      %v9931 = vpack.c.b16 %v9925, %v9923
      %v9932 = vpack.c.b16 %v9928, %v9926
      %v9933 = vpack.c.b16 %v9929, %v9927
      %v9970 = vunpack.c.l.b16 %v9886
      %v9971 = vunpack.c.l.b16 %v9887
      %v9972 = vunpack.c.l.b16 %v9888
      %v9973 = vunpack.c.l.b16 %v9889
      %v9974 = vunpack.c.l.b16 %v9890
      %v9975 = vunpack.c.l.b16 %v9891
      %v9976 = vunpack.c.l.b16 %v9892
      %v9977 = vunpack.c.l.b16 %v9893
      %v9978 = vunpack.c.l.b16 %v9894
      %v9979 = vunpack.c.l.b16 %v9895
      %v9980 = vunpack.c.l.b16 %v9896
      %v9981 = vunpack.c.l.b16 %v9897
      %v9982 = vunpack.c.l.b16 %v9898
      %v9983 = vunpack.c.l.b16 %v9899
      %v9984 = vunpack.c.l.b16 %v9900
      %v9985 = vunpack.c.l.b16 %v9901
      %v9986 = vunpack.c.l.b16 %v9902
      %v9987 = vunpack.c.l.b16 %v9903
      %v9988 = vunpack.c.l.b16 %v9904
      %v9989 = vunpack.c.l.b16 %v9905
      %v9990 = vunpack.c.l.b16 %v9906
      %v9991 = vunpack.c.l.b16 %v9907
      %v9992 = vunpack.c.l.b16 %v9908
      %v9993 = vunpack.c.l.b16 %v9909
      %v9994 = vunpack.c.l.b16 %v9910
      %v9995 = vunpack.c.l.b16 %v9911
      %v9996 = vunpack.c.l.b16 %v9912
      %v9997 = vunpack.c.l.b16 %v9913
      %v9998 = vunpack.c.l.b16 %v9914
      %v9999 = vunpack.c.l.b16 %v9915
      %v10000 = vunpack.c.l.b16 %v9916
      %v10001 = vunpack.c.l.b16 %v9917
      %v10002 = vpack.c.b16 %v9971, %v9970
      %v10003 = vpack.c.b16 %v9973, %v9972
      %v10004 = vpack.c.b16 %v9975, %v9974
      %v10005 = vpack.c.b16 %v9977, %v9976
      %v10006 = vpack.c.b16 %v9979, %v9978
      %v10007 = vpack.c.b16 %v9981, %v9980
      %v10008 = vpack.c.b16 %v9983, %v9982
      %v10009 = vpack.c.b16 %v9985, %v9984
      %v10010 = vpack.c.b16 %v9987, %v9986
      %v10011 = vpack.c.b16 %v9989, %v9988
      %v10012 = vpack.c.b16 %v9991, %v9990
      %v10013 = vpack.c.b16 %v9993, %v9992
      %v10014 = vpack.c.b16 %v9995, %v9994
      %v10015 = vpack.c.b16 %v9997, %v9996
      %v10016 = vpack.c.b16 %v9999, %v9998
      %v10017 = vpack.c.b16 %v10001, %v10000
      %10034 = vmatpush.bf16.msra.mxu0 %v10009
      %10035 = vmatpush.bf16.msra.mxu0 %v10008
      %10036 = vmatpush.bf16.msra.mxu0 %v10007
      %10037 = vmatpush.bf16.msra.mxu0 %v10006
      %10038 = vmatpush.bf16.msra.mxu0 %v10005
      %10039 = vmatpush.bf16.msra.mxu0 %v10004
      %10040 = vmatpush.bf16.msra.mxu0 %v10003
      %10041 = vmatpush.bf16.msra.mxu0 %v10002
      %10042 = vmatmul.bf16.gmra.mxu0 %v9930
      %v10043 = vpop.f32.mrf.mxu0
      %v10044 = vadd.f32 0.0, %v10043
      %v10045 = vpop.f32.mrf.mxu0
      %v10046 = vadd.f32 0.0, %v10045
      %10047 = vmatmul.bf16.gmra.mxu0 %v9932
      %v10048 = vpop.f32.mrf.mxu0
      %v10049 = vadd.f32 0.0, %v10048
      %v10050 = vpop.f32.mrf.mxu0
      %v10051 = vadd.f32 0.0, %v10050
      %10052 = vdwg.mxu0
      %10053 = vmatpush.bf16.msra.mxu0 %v10017
      %10054 = vmatpush.bf16.msra.mxu0 %v10016
      %10055 = vmatpush.bf16.msra.mxu0 %v10015
      %10056 = vmatpush.bf16.msra.mxu0 %v10014
      %10057 = vmatpush.bf16.msra.mxu0 %v10013
      %10058 = vmatpush.bf16.msra.mxu0 %v10012
      %10059 = vmatpush.bf16.msra.mxu0 %v10011
      %10060 = vmatpush.bf16.msra.mxu0 %v10010
      %10061 = vmatmul.bf16.gmra.mxu0 %v9931
      %v10062 = vpop.f32.mrf.mxu0
      %v10063 = vadd.f32 %v10044, %v10062
      %v10064 = vpop.f32.mrf.mxu0
      %v10065 = vadd.f32 %v10046, %v10064
      %10066 = vmatmul.bf16.gmra.mxu0 %v9933
      %v10067 = vpop.f32.mrf.mxu0
      %v10068 = vadd.f32 %v10049, %v10067
      %v10069 = vpop.f32.mrf.mxu0
      %v10070 = vadd.f32 %v10051, %v10069
      %10071 = vdwg.mxu0
      %v10072 = vadd.f32 %v9876, %v10063
      %v10073 = vadd.f32 %v9878, %v10065
      %v10074 = vadd.f32 %v9881, %v10068
      %v10075 = vadd.f32 %v9883, %v10070
      %s10076 = scalar_lea.vmem %s10, 384
      %v10077 = vld [vmem:[%s10076] sm:$0xf]
      %v10078 = vld [vmem:[%s10076 + $0x4] sm:$0xf]
      %v10079 = vld [vmem:[%s10076 + $0x8] sm:$0xf]
      %v10080 = vld [vmem:[%s10076 + $0xc] sm:$0xf]
      %v10081 = vld [vmem:[%s10076 + $0x10] sm:$0xf]
      %v10082 = vld [vmem:[%s10076 + $0x14] sm:$0xf]
      %v10083 = vld [vmem:[%s10076 + $0x18] sm:$0xf]
      %v10084 = vld [vmem:[%s10076 + $0x1c] sm:$0xf]
      %v10085 = vld [vmem:[%s10076 + $0x20] sm:$0xf]
      %v10086 = vld [vmem:[%s10076 + $0x24] sm:$0xf]
      %v10087 = vld [vmem:[%s10076 + $0x28] sm:$0xf]
      %v10088 = vld [vmem:[%s10076 + $0x2c] sm:$0xf]
      %v10089 = vld [vmem:[%s10076 + $0x30] sm:$0xf]
      %v10090 = vld [vmem:[%s10076 + $0x34] sm:$0xf]
      %v10091 = vld [vmem:[%s10076 + $0x38] sm:$0xf]
      %v10092 = vld [vmem:[%s10076 + $0x3c] sm:$0xf]
      %v10093 = vld [vmem:[%s10076 + $0x40] sm:$0xf]
      %v10094 = vld [vmem:[%s10076 + $0x44] sm:$0xf]
      %v10095 = vld [vmem:[%s10076 + $0x48] sm:$0xf]
      %v10096 = vld [vmem:[%s10076 + $0x4c] sm:$0xf]
      %v10097 = vld [vmem:[%s10076 + $0x50] sm:$0xf]
      %v10098 = vld [vmem:[%s10076 + $0x54] sm:$0xf]
      %v10099 = vld [vmem:[%s10076 + $0x58] sm:$0xf]
      %v10100 = vld [vmem:[%s10076 + $0x5c] sm:$0xf]
      %v10101 = vld [vmem:[%s10076 + $0x60] sm:$0xf]
      %v10102 = vld [vmem:[%s10076 + $0x64] sm:$0xf]
      %v10103 = vld [vmem:[%s10076 + $0x68] sm:$0xf]
      %v10104 = vld [vmem:[%s10076 + $0x6c] sm:$0xf]
      %v10105 = vld [vmem:[%s10076 + $0x70] sm:$0xf]
      %v10106 = vld [vmem:[%s10076 + $0x74] sm:$0xf]
      %v10107 = vld [vmem:[%s10076 + $0x78] sm:$0xf]
      %v10108 = vld [vmem:[%s10076 + $0x7c] sm:$0xf]
      %v10113 = vunpack.c.l.b16 %v9482
      %v10114 = vunpack.c.h.b16 %v9482
      %v10115 = vunpack.c.l.b16 %v9483
      %v10116 = vunpack.c.h.b16 %v9483
      %v10117 = vunpack.c.l.b16 %v9500
      %v10118 = vunpack.c.h.b16 %v9500
      %v10119 = vunpack.c.l.b16 %v9501
      %v10120 = vunpack.c.h.b16 %v9501
      %v10121 = vpack.c.b16 %v10115, %v10113
      %v10122 = vpack.c.b16 %v10116, %v10114
      %v10123 = vpack.c.b16 %v10119, %v10117
      %v10124 = vpack.c.b16 %v10120, %v10118
      %v10161 = vunpack.c.l.b16 %v10077
      %v10162 = vunpack.c.l.b16 %v10078
      %v10163 = vunpack.c.l.b16 %v10079
      %v10164 = vunpack.c.l.b16 %v10080
      %v10165 = vunpack.c.l.b16 %v10081
      %v10166 = vunpack.c.l.b16 %v10082
      %v10167 = vunpack.c.l.b16 %v10083
      %v10168 = vunpack.c.l.b16 %v10084
      %v10169 = vunpack.c.l.b16 %v10085
      %v10170 = vunpack.c.l.b16 %v10086
      %v10171 = vunpack.c.l.b16 %v10087
      %v10172 = vunpack.c.l.b16 %v10088
      %v10173 = vunpack.c.l.b16 %v10089
      %v10174 = vunpack.c.l.b16 %v10090
      %v10175 = vunpack.c.l.b16 %v10091
      %v10176 = vunpack.c.l.b16 %v10092
      %v10177 = vunpack.c.l.b16 %v10093
      %v10178 = vunpack.c.l.b16 %v10094
      %v10179 = vunpack.c.l.b16 %v10095
      %v10180 = vunpack.c.l.b16 %v10096
      %v10181 = vunpack.c.l.b16 %v10097
      %v10182 = vunpack.c.l.b16 %v10098
      %v10183 = vunpack.c.l.b16 %v10099
      %v10184 = vunpack.c.l.b16 %v10100
      %v10185 = vunpack.c.l.b16 %v10101
      %v10186 = vunpack.c.l.b16 %v10102
      %v10187 = vunpack.c.l.b16 %v10103
      %v10188 = vunpack.c.l.b16 %v10104
      %v10189 = vunpack.c.l.b16 %v10105
      %v10190 = vunpack.c.l.b16 %v10106
      %v10191 = vunpack.c.l.b16 %v10107
      %v10192 = vunpack.c.l.b16 %v10108
      %v10193 = vpack.c.b16 %v10162, %v10161
      %v10194 = vpack.c.b16 %v10164, %v10163
      %v10195 = vpack.c.b16 %v10166, %v10165
      %v10196 = vpack.c.b16 %v10168, %v10167
      %v10197 = vpack.c.b16 %v10170, %v10169
      %v10198 = vpack.c.b16 %v10172, %v10171
      %v10199 = vpack.c.b16 %v10174, %v10173
      %v10200 = vpack.c.b16 %v10176, %v10175
      %v10201 = vpack.c.b16 %v10178, %v10177
      %v10202 = vpack.c.b16 %v10180, %v10179
      %v10203 = vpack.c.b16 %v10182, %v10181
      %v10204 = vpack.c.b16 %v10184, %v10183
      %v10205 = vpack.c.b16 %v10186, %v10185
      %v10206 = vpack.c.b16 %v10188, %v10187
      %v10207 = vpack.c.b16 %v10190, %v10189
      %v10208 = vpack.c.b16 %v10192, %v10191
      %10225 = vmatpush.bf16.msra.mxu0 %v10200
      %10226 = vmatpush.bf16.msra.mxu0 %v10199
      %10227 = vmatpush.bf16.msra.mxu0 %v10198
      %10228 = vmatpush.bf16.msra.mxu0 %v10197
      %10229 = vmatpush.bf16.msra.mxu0 %v10196
      %10230 = vmatpush.bf16.msra.mxu0 %v10195
      %10231 = vmatpush.bf16.msra.mxu0 %v10194
      %10232 = vmatpush.bf16.msra.mxu0 %v10193
      %10233 = vmatmul.bf16.gmra.mxu0 %v10121
      %v10234 = vpop.f32.mrf.mxu0
      %v10235 = vadd.f32 0.0, %v10234
      %v10236 = vpop.f32.mrf.mxu0
      %v10237 = vadd.f32 0.0, %v10236
      %10238 = vmatmul.bf16.gmra.mxu0 %v10123
      %v10239 = vpop.f32.mrf.mxu0
      %v10240 = vadd.f32 0.0, %v10239
      %v10241 = vpop.f32.mrf.mxu0
      %v10242 = vadd.f32 0.0, %v10241
      %10243 = vdwg.mxu0
      %10244 = vmatpush.bf16.msra.mxu0 %v10208
      %10245 = vmatpush.bf16.msra.mxu0 %v10207
      %10246 = vmatpush.bf16.msra.mxu0 %v10206
      %10247 = vmatpush.bf16.msra.mxu0 %v10205
      %10248 = vmatpush.bf16.msra.mxu0 %v10204
      %10249 = vmatpush.bf16.msra.mxu0 %v10203
      %10250 = vmatpush.bf16.msra.mxu0 %v10202
      %10251 = vmatpush.bf16.msra.mxu0 %v10201
      %10252 = vmatmul.bf16.gmra.mxu0 %v10122
      %v10253 = vpop.f32.mrf.mxu0
      %v10254 = vadd.f32 %v10235, %v10253
      %v10255 = vpop.f32.mrf.mxu0
      %v10256 = vadd.f32 %v10237, %v10255
      %10257 = vmatmul.bf16.gmra.mxu0 %v10124
      %v10258 = vpop.f32.mrf.mxu0
      %v10259 = vadd.f32 %v10240, %v10258
      %v10260 = vpop.f32.mrf.mxu0
      %v10261 = vadd.f32 %v10242, %v10260
      %10262 = vdwg.mxu0
      %v10263 = vadd.f32 %v10072, %v10254
      %v10264 = vadd.f32 %v10073, %v10256
      %v10265 = vadd.f32 %v10074, %v10259
      %v10266 = vadd.f32 %v10075, %v10261
      %s10267 = scalar_lea.vmem %s10, 512
      %v10268 = vld [vmem:[%s10267] sm:$0xf]
      %v10269 = vld [vmem:[%s10267 + $0x4] sm:$0xf]
      %v10270 = vld [vmem:[%s10267 + $0x8] sm:$0xf]
      %v10271 = vld [vmem:[%s10267 + $0xc] sm:$0xf]
      %v10272 = vld [vmem:[%s10267 + $0x10] sm:$0xf]
      %v10273 = vld [vmem:[%s10267 + $0x14] sm:$0xf]
      %v10274 = vld [vmem:[%s10267 + $0x18] sm:$0xf]
      %v10275 = vld [vmem:[%s10267 + $0x1c] sm:$0xf]
      %v10276 = vld [vmem:[%s10267 + $0x20] sm:$0xf]
      %v10277 = vld [vmem:[%s10267 + $0x24] sm:$0xf]
      %v10278 = vld [vmem:[%s10267 + $0x28] sm:$0xf]
      %v10279 = vld [vmem:[%s10267 + $0x2c] sm:$0xf]
      %v10280 = vld [vmem:[%s10267 + $0x30] sm:$0xf]
      %v10281 = vld [vmem:[%s10267 + $0x34] sm:$0xf]
      %v10282 = vld [vmem:[%s10267 + $0x38] sm:$0xf]
      %v10283 = vld [vmem:[%s10267 + $0x3c] sm:$0xf]
      %v10284 = vld [vmem:[%s10267 + $0x40] sm:$0xf]
      %v10285 = vld [vmem:[%s10267 + $0x44] sm:$0xf]
      %v10286 = vld [vmem:[%s10267 + $0x48] sm:$0xf]
      %v10287 = vld [vmem:[%s10267 + $0x4c] sm:$0xf]
      %v10288 = vld [vmem:[%s10267 + $0x50] sm:$0xf]
      %v10289 = vld [vmem:[%s10267 + $0x54] sm:$0xf]
      %v10290 = vld [vmem:[%s10267 + $0x58] sm:$0xf]
      %v10291 = vld [vmem:[%s10267 + $0x5c] sm:$0xf]
      %v10292 = vld [vmem:[%s10267 + $0x60] sm:$0xf]
      %v10293 = vld [vmem:[%s10267 + $0x64] sm:$0xf]
      %v10294 = vld [vmem:[%s10267 + $0x68] sm:$0xf]
      %v10295 = vld [vmem:[%s10267 + $0x6c] sm:$0xf]
      %v10296 = vld [vmem:[%s10267 + $0x70] sm:$0xf]
      %v10297 = vld [vmem:[%s10267 + $0x74] sm:$0xf]
      %v10298 = vld [vmem:[%s10267 + $0x78] sm:$0xf]
      %v10299 = vld [vmem:[%s10267 + $0x7c] sm:$0xf]
      %v10304 = vunpack.c.l.b16 %v9484
      %v10305 = vunpack.c.h.b16 %v9484
      %v10306 = vunpack.c.l.b16 %v9485
      %v10307 = vunpack.c.h.b16 %v9485
      %v10308 = vunpack.c.l.b16 %v9502
      %v10309 = vunpack.c.h.b16 %v9502
      %v10310 = vunpack.c.l.b16 %v9503
      %v10311 = vunpack.c.h.b16 %v9503
      %v10312 = vpack.c.b16 %v10306, %v10304
      %v10313 = vpack.c.b16 %v10307, %v10305
      %v10314 = vpack.c.b16 %v10310, %v10308
      %v10315 = vpack.c.b16 %v10311, %v10309
      %v10352 = vunpack.c.l.b16 %v10268
      %v10353 = vunpack.c.l.b16 %v10269
      %v10354 = vunpack.c.l.b16 %v10270
      %v10355 = vunpack.c.l.b16 %v10271
      %v10356 = vunpack.c.l.b16 %v10272
      %v10357 = vunpack.c.l.b16 %v10273
      %v10358 = vunpack.c.l.b16 %v10274
      %v10359 = vunpack.c.l.b16 %v10275
      %v10360 = vunpack.c.l.b16 %v10276
      %v10361 = vunpack.c.l.b16 %v10277
      %v10362 = vunpack.c.l.b16 %v10278
      %v10363 = vunpack.c.l.b16 %v10279
      %v10364 = vunpack.c.l.b16 %v10280
      %v10365 = vunpack.c.l.b16 %v10281
      %v10366 = vunpack.c.l.b16 %v10282
      %v10367 = vunpack.c.l.b16 %v10283
      %v10368 = vunpack.c.l.b16 %v10284
      %v10369 = vunpack.c.l.b16 %v10285
      %v10370 = vunpack.c.l.b16 %v10286
      %v10371 = vunpack.c.l.b16 %v10287
      %v10372 = vunpack.c.l.b16 %v10288
      %v10373 = vunpack.c.l.b16 %v10289
      %v10374 = vunpack.c.l.b16 %v10290
      %v10375 = vunpack.c.l.b16 %v10291
      %v10376 = vunpack.c.l.b16 %v10292
      %v10377 = vunpack.c.l.b16 %v10293
      %v10378 = vunpack.c.l.b16 %v10294
      %v10379 = vunpack.c.l.b16 %v10295
      %v10380 = vunpack.c.l.b16 %v10296
      %v10381 = vunpack.c.l.b16 %v10297
      %v10382 = vunpack.c.l.b16 %v10298
      %v10383 = vunpack.c.l.b16 %v10299
      %v10384 = vpack.c.b16 %v10353, %v10352
      %v10385 = vpack.c.b16 %v10355, %v10354
      %v10386 = vpack.c.b16 %v10357, %v10356
      %v10387 = vpack.c.b16 %v10359, %v10358
      %v10388 = vpack.c.b16 %v10361, %v10360
      %v10389 = vpack.c.b16 %v10363, %v10362
      %v10390 = vpack.c.b16 %v10365, %v10364
      %v10391 = vpack.c.b16 %v10367, %v10366
      %v10392 = vpack.c.b16 %v10369, %v10368
      %v10393 = vpack.c.b16 %v10371, %v10370
      %v10394 = vpack.c.b16 %v10373, %v10372
      %v10395 = vpack.c.b16 %v10375, %v10374
      %v10396 = vpack.c.b16 %v10377, %v10376
      %v10397 = vpack.c.b16 %v10379, %v10378
      %v10398 = vpack.c.b16 %v10381, %v10380
      %v10399 = vpack.c.b16 %v10383, %v10382
      %10416 = vmatpush.bf16.msra.mxu0 %v10391
      %10417 = vmatpush.bf16.msra.mxu0 %v10390
      %10418 = vmatpush.bf16.msra.mxu0 %v10389
      %10419 = vmatpush.bf16.msra.mxu0 %v10388
      %10420 = vmatpush.bf16.msra.mxu0 %v10387
      %10421 = vmatpush.bf16.msra.mxu0 %v10386
      %10422 = vmatpush.bf16.msra.mxu0 %v10385
      %10423 = vmatpush.bf16.msra.mxu0 %v10384
      %10424 = vmatmul.bf16.gmra.mxu0 %v10312
      %v10425 = vpop.f32.mrf.mxu0
      %v10426 = vadd.f32 0.0, %v10425
      %v10427 = vpop.f32.mrf.mxu0
      %v10428 = vadd.f32 0.0, %v10427
      %10429 = vmatmul.bf16.gmra.mxu0 %v10314
      %v10430 = vpop.f32.mrf.mxu0
      %v10431 = vadd.f32 0.0, %v10430
      %v10432 = vpop.f32.mrf.mxu0
      %v10433 = vadd.f32 0.0, %v10432
      %10434 = vdwg.mxu0
      %10435 = vmatpush.bf16.msra.mxu0 %v10399
      %10436 = vmatpush.bf16.msra.mxu0 %v10398
      %10437 = vmatpush.bf16.msra.mxu0 %v10397
      %10438 = vmatpush.bf16.msra.mxu0 %v10396
      %10439 = vmatpush.bf16.msra.mxu0 %v10395
      %10440 = vmatpush.bf16.msra.mxu0 %v10394
      %10441 = vmatpush.bf16.msra.mxu0 %v10393
      %10442 = vmatpush.bf16.msra.mxu0 %v10392
      %10443 = vmatmul.bf16.gmra.mxu0 %v10313
      %v10444 = vpop.f32.mrf.mxu0
      %v10445 = vadd.f32 %v10426, %v10444
      %v10446 = vpop.f32.mrf.mxu0
      %v10447 = vadd.f32 %v10428, %v10446
      %10448 = vmatmul.bf16.gmra.mxu0 %v10315
      %v10449 = vpop.f32.mrf.mxu0
      %v10450 = vadd.f32 %v10431, %v10449
      %v10451 = vpop.f32.mrf.mxu0
      %v10452 = vadd.f32 %v10433, %v10451
      %10453 = vdwg.mxu0
      %v10454 = vadd.f32 %v10263, %v10445
      %v10455 = vadd.f32 %v10264, %v10447
      %v10456 = vadd.f32 %v10265, %v10450
      %v10457 = vadd.f32 %v10266, %v10452
      %s10458 = scalar_lea.vmem %s10, 640
      %v10459 = vld [vmem:[%s10458] sm:$0xf]
      %v10460 = vld [vmem:[%s10458 + $0x4] sm:$0xf]
      %v10461 = vld [vmem:[%s10458 + $0x8] sm:$0xf]
      %v10462 = vld [vmem:[%s10458 + $0xc] sm:$0xf]
      %v10463 = vld [vmem:[%s10458 + $0x10] sm:$0xf]
      %v10464 = vld [vmem:[%s10458 + $0x14] sm:$0xf]
      %v10465 = vld [vmem:[%s10458 + $0x18] sm:$0xf]
      %v10466 = vld [vmem:[%s10458 + $0x1c] sm:$0xf]
      %v10467 = vld [vmem:[%s10458 + $0x20] sm:$0xf]
      %v10468 = vld [vmem:[%s10458 + $0x24] sm:$0xf]
      %v10469 = vld [vmem:[%s10458 + $0x28] sm:$0xf]
      %v10470 = vld [vmem:[%s10458 + $0x2c] sm:$0xf]
      %v10471 = vld [vmem:[%s10458 + $0x30] sm:$0xf]
      %v10472 = vld [vmem:[%s10458 + $0x34] sm:$0xf]
      %v10473 = vld [vmem:[%s10458 + $0x38] sm:$0xf]
      %v10474 = vld [vmem:[%s10458 + $0x3c] sm:$0xf]
      %v10475 = vld [vmem:[%s10458 + $0x40] sm:$0xf]
      %v10476 = vld [vmem:[%s10458 + $0x44] sm:$0xf]
      %v10477 = vld [vmem:[%s10458 + $0x48] sm:$0xf]
      %v10478 = vld [vmem:[%s10458 + $0x4c] sm:$0xf]
      %v10479 = vld [vmem:[%s10458 + $0x50] sm:$0xf]
      %v10480 = vld [vmem:[%s10458 + $0x54] sm:$0xf]
      %v10481 = vld [vmem:[%s10458 + $0x58] sm:$0xf]
      %v10482 = vld [vmem:[%s10458 + $0x5c] sm:$0xf]
      %v10483 = vld [vmem:[%s10458 + $0x60] sm:$0xf]
      %v10484 = vld [vmem:[%s10458 + $0x64] sm:$0xf]
      %v10485 = vld [vmem:[%s10458 + $0x68] sm:$0xf]
      %v10486 = vld [vmem:[%s10458 + $0x6c] sm:$0xf]
      %v10487 = vld [vmem:[%s10458 + $0x70] sm:$0xf]
      %v10488 = vld [vmem:[%s10458 + $0x74] sm:$0xf]
      %v10489 = vld [vmem:[%s10458 + $0x78] sm:$0xf]
      %v10490 = vld [vmem:[%s10458 + $0x7c] sm:$0xf]
      %v10495 = vunpack.c.l.b16 %v9486
      %v10496 = vunpack.c.h.b16 %v9486
      %v10497 = vunpack.c.l.b16 %v9487
      %v10498 = vunpack.c.h.b16 %v9487
      %v10499 = vunpack.c.l.b16 %v9504
      %v10500 = vunpack.c.h.b16 %v9504
      %v10501 = vunpack.c.l.b16 %v9505
      %v10502 = vunpack.c.h.b16 %v9505
      %v10503 = vpack.c.b16 %v10497, %v10495
      %v10504 = vpack.c.b16 %v10498, %v10496
      %v10505 = vpack.c.b16 %v10501, %v10499
      %v10506 = vpack.c.b16 %v10502, %v10500
      %v10543 = vunpack.c.l.b16 %v10459
      %v10544 = vunpack.c.l.b16 %v10460
      %v10545 = vunpack.c.l.b16 %v10461
      %v10546 = vunpack.c.l.b16 %v10462
      %v10547 = vunpack.c.l.b16 %v10463
      %v10548 = vunpack.c.l.b16 %v10464
      %v10549 = vunpack.c.l.b16 %v10465
      %v10550 = vunpack.c.l.b16 %v10466
      %v10551 = vunpack.c.l.b16 %v10467
      %v10552 = vunpack.c.l.b16 %v10468
      %v10553 = vunpack.c.l.b16 %v10469
      %v10554 = vunpack.c.l.b16 %v10470
      %v10555 = vunpack.c.l.b16 %v10471
      %v10556 = vunpack.c.l.b16 %v10472
      %v10557 = vunpack.c.l.b16 %v10473
      %v10558 = vunpack.c.l.b16 %v10474
      %v10559 = vunpack.c.l.b16 %v10475
      %v10560 = vunpack.c.l.b16 %v10476
      %v10561 = vunpack.c.l.b16 %v10477
      %v10562 = vunpack.c.l.b16 %v10478
      %v10563 = vunpack.c.l.b16 %v10479
      %v10564 = vunpack.c.l.b16 %v10480
      %v10565 = vunpack.c.l.b16 %v10481
      %v10566 = vunpack.c.l.b16 %v10482
      %v10567 = vunpack.c.l.b16 %v10483
      %v10568 = vunpack.c.l.b16 %v10484
      %v10569 = vunpack.c.l.b16 %v10485
      %v10570 = vunpack.c.l.b16 %v10486
      %v10571 = vunpack.c.l.b16 %v10487
      %v10572 = vunpack.c.l.b16 %v10488
      %v10573 = vunpack.c.l.b16 %v10489
      %v10574 = vunpack.c.l.b16 %v10490
      %v10575 = vpack.c.b16 %v10544, %v10543
      %v10576 = vpack.c.b16 %v10546, %v10545
      %v10577 = vpack.c.b16 %v10548, %v10547
      %v10578 = vpack.c.b16 %v10550, %v10549
      %v10579 = vpack.c.b16 %v10552, %v10551
      %v10580 = vpack.c.b16 %v10554, %v10553
      %v10581 = vpack.c.b16 %v10556, %v10555
      %v10582 = vpack.c.b16 %v10558, %v10557
      %v10583 = vpack.c.b16 %v10560, %v10559
      %v10584 = vpack.c.b16 %v10562, %v10561
      %v10585 = vpack.c.b16 %v10564, %v10563
      %v10586 = vpack.c.b16 %v10566, %v10565
      %v10587 = vpack.c.b16 %v10568, %v10567
      %v10588 = vpack.c.b16 %v10570, %v10569
      %v10589 = vpack.c.b16 %v10572, %v10571
      %v10590 = vpack.c.b16 %v10574, %v10573
      %10607 = vmatpush.bf16.msra.mxu0 %v10582
      %10608 = vmatpush.bf16.msra.mxu0 %v10581
      %10609 = vmatpush.bf16.msra.mxu0 %v10580
      %10610 = vmatpush.bf16.msra.mxu0 %v10579
      %10611 = vmatpush.bf16.msra.mxu0 %v10578
      %10612 = vmatpush.bf16.msra.mxu0 %v10577
      %10613 = vmatpush.bf16.msra.mxu0 %v10576
      %10614 = vmatpush.bf16.msra.mxu0 %v10575
      %10615 = vmatmul.bf16.gmra.mxu0 %v10503
      %v10616 = vpop.f32.mrf.mxu0
      %v10617 = vadd.f32 0.0, %v10616
      %v10618 = vpop.f32.mrf.mxu0
      %v10619 = vadd.f32 0.0, %v10618
      %10620 = vmatmul.bf16.gmra.mxu0 %v10505
      %v10621 = vpop.f32.mrf.mxu0
      %v10622 = vadd.f32 0.0, %v10621
      %v10623 = vpop.f32.mrf.mxu0
      %v10624 = vadd.f32 0.0, %v10623
      %10625 = vdwg.mxu0
      %10626 = vmatpush.bf16.msra.mxu0 %v10590
      %10627 = vmatpush.bf16.msra.mxu0 %v10589
      %10628 = vmatpush.bf16.msra.mxu0 %v10588
      %10629 = vmatpush.bf16.msra.mxu0 %v10587
      %10630 = vmatpush.bf16.msra.mxu0 %v10586
      %10631 = vmatpush.bf16.msra.mxu0 %v10585
      %10632 = vmatpush.bf16.msra.mxu0 %v10584
      %10633 = vmatpush.bf16.msra.mxu0 %v10583
      %10634 = vmatmul.bf16.gmra.mxu0 %v10504
      %v10635 = vpop.f32.mrf.mxu0
      %v10636 = vadd.f32 %v10617, %v10635
      %v10637 = vpop.f32.mrf.mxu0
      %v10638 = vadd.f32 %v10619, %v10637
      %10639 = vmatmul.bf16.gmra.mxu0 %v10506
      %v10640 = vpop.f32.mrf.mxu0
      %v10641 = vadd.f32 %v10622, %v10640
      %v10642 = vpop.f32.mrf.mxu0
      %v10643 = vadd.f32 %v10624, %v10642
      %10644 = vdwg.mxu0
      %v10645 = vadd.f32 %v10454, %v10636
      %v10646 = vadd.f32 %v10455, %v10638
      %v10647 = vadd.f32 %v10456, %v10641
      %v10648 = vadd.f32 %v10457, %v10643
      %s10649 = scalar_lea.vmem %s10, 768
      %v10650 = vld [vmem:[%s10649] sm:$0xf]
      %v10651 = vld [vmem:[%s10649 + $0x4] sm:$0xf]
      %v10652 = vld [vmem:[%s10649 + $0x8] sm:$0xf]
      %v10653 = vld [vmem:[%s10649 + $0xc] sm:$0xf]
      %v10654 = vld [vmem:[%s10649 + $0x10] sm:$0xf]
      %v10655 = vld [vmem:[%s10649 + $0x14] sm:$0xf]
      %v10656 = vld [vmem:[%s10649 + $0x18] sm:$0xf]
      %v10657 = vld [vmem:[%s10649 + $0x1c] sm:$0xf]
      %v10658 = vld [vmem:[%s10649 + $0x20] sm:$0xf]
      %v10659 = vld [vmem:[%s10649 + $0x24] sm:$0xf]
      %v10660 = vld [vmem:[%s10649 + $0x28] sm:$0xf]
      %v10661 = vld [vmem:[%s10649 + $0x2c] sm:$0xf]
      %v10662 = vld [vmem:[%s10649 + $0x30] sm:$0xf]
      %v10663 = vld [vmem:[%s10649 + $0x34] sm:$0xf]
      %v10664 = vld [vmem:[%s10649 + $0x38] sm:$0xf]
      %v10665 = vld [vmem:[%s10649 + $0x3c] sm:$0xf]
      %v10666 = vld [vmem:[%s10649 + $0x40] sm:$0xf]
      %v10667 = vld [vmem:[%s10649 + $0x44] sm:$0xf]
      %v10668 = vld [vmem:[%s10649 + $0x48] sm:$0xf]
      %v10669 = vld [vmem:[%s10649 + $0x4c] sm:$0xf]
      %v10670 = vld [vmem:[%s10649 + $0x50] sm:$0xf]
      %v10671 = vld [vmem:[%s10649 + $0x54] sm:$0xf]
      %v10672 = vld [vmem:[%s10649 + $0x58] sm:$0xf]
      %v10673 = vld [vmem:[%s10649 + $0x5c] sm:$0xf]
      %v10674 = vld [vmem:[%s10649 + $0x60] sm:$0xf]
      %v10675 = vld [vmem:[%s10649 + $0x64] sm:$0xf]
      %v10676 = vld [vmem:[%s10649 + $0x68] sm:$0xf]
      %v10677 = vld [vmem:[%s10649 + $0x6c] sm:$0xf]
      %v10678 = vld [vmem:[%s10649 + $0x70] sm:$0xf]
      %v10679 = vld [vmem:[%s10649 + $0x74] sm:$0xf]
      %v10680 = vld [vmem:[%s10649 + $0x78] sm:$0xf]
      %v10681 = vld [vmem:[%s10649 + $0x7c] sm:$0xf]
      %v10686 = vunpack.c.l.b16 %v9488
      %v10687 = vunpack.c.h.b16 %v9488
      %v10688 = vunpack.c.l.b16 %v9489
      %v10689 = vunpack.c.h.b16 %v9489
      %v10690 = vunpack.c.l.b16 %v9506
      %v10691 = vunpack.c.h.b16 %v9506
      %v10692 = vunpack.c.l.b16 %v9507
      %v10693 = vunpack.c.h.b16 %v9507
      %v10694 = vpack.c.b16 %v10688, %v10686
      %v10695 = vpack.c.b16 %v10689, %v10687
      %v10696 = vpack.c.b16 %v10692, %v10690
      %v10697 = vpack.c.b16 %v10693, %v10691
      %v10734 = vunpack.c.l.b16 %v10650
      %v10735 = vunpack.c.l.b16 %v10651
      %v10736 = vunpack.c.l.b16 %v10652
      %v10737 = vunpack.c.l.b16 %v10653
      %v10738 = vunpack.c.l.b16 %v10654
      %v10739 = vunpack.c.l.b16 %v10655
      %v10740 = vunpack.c.l.b16 %v10656
      %v10741 = vunpack.c.l.b16 %v10657
      %v10742 = vunpack.c.l.b16 %v10658
      %v10743 = vunpack.c.l.b16 %v10659
      %v10744 = vunpack.c.l.b16 %v10660
      %v10745 = vunpack.c.l.b16 %v10661
      %v10746 = vunpack.c.l.b16 %v10662
      %v10747 = vunpack.c.l.b16 %v10663
      %v10748 = vunpack.c.l.b16 %v10664
      %v10749 = vunpack.c.l.b16 %v10665
      %v10750 = vunpack.c.l.b16 %v10666
      %v10751 = vunpack.c.l.b16 %v10667
      %v10752 = vunpack.c.l.b16 %v10668
      %v10753 = vunpack.c.l.b16 %v10669
      %v10754 = vunpack.c.l.b16 %v10670
      %v10755 = vunpack.c.l.b16 %v10671
      %v10756 = vunpack.c.l.b16 %v10672
      %v10757 = vunpack.c.l.b16 %v10673
      %v10758 = vunpack.c.l.b16 %v10674
      %v10759 = vunpack.c.l.b16 %v10675
      %v10760 = vunpack.c.l.b16 %v10676
      %v10761 = vunpack.c.l.b16 %v10677
      %v10762 = vunpack.c.l.b16 %v10678
      %v10763 = vunpack.c.l.b16 %v10679
      %v10764 = vunpack.c.l.b16 %v10680
      %v10765 = vunpack.c.l.b16 %v10681
      %v10766 = vpack.c.b16 %v10735, %v10734
      %v10767 = vpack.c.b16 %v10737, %v10736
      %v10768 = vpack.c.b16 %v10739, %v10738
      %v10769 = vpack.c.b16 %v10741, %v10740
      %v10770 = vpack.c.b16 %v10743, %v10742
      %v10771 = vpack.c.b16 %v10745, %v10744
      %v10772 = vpack.c.b16 %v10747, %v10746
      %v10773 = vpack.c.b16 %v10749, %v10748
      %v10774 = vpack.c.b16 %v10751, %v10750
      %v10775 = vpack.c.b16 %v10753, %v10752
      %v10776 = vpack.c.b16 %v10755, %v10754
      %v10777 = vpack.c.b16 %v10757, %v10756
      %v10778 = vpack.c.b16 %v10759, %v10758
      %v10779 = vpack.c.b16 %v10761, %v10760
      %v10780 = vpack.c.b16 %v10763, %v10762
      %v10781 = vpack.c.b16 %v10765, %v10764
      %10798 = vmatpush.bf16.msra.mxu0 %v10773
      %10799 = vmatpush.bf16.msra.mxu0 %v10772
      %10800 = vmatpush.bf16.msra.mxu0 %v10771
      %10801 = vmatpush.bf16.msra.mxu0 %v10770
      %10802 = vmatpush.bf16.msra.mxu0 %v10769
      %10803 = vmatpush.bf16.msra.mxu0 %v10768
      %10804 = vmatpush.bf16.msra.mxu0 %v10767
      %10805 = vmatpush.bf16.msra.mxu0 %v10766
      %10806 = vmatmul.bf16.gmra.mxu0 %v10694
      %v10807 = vpop.f32.mrf.mxu0
      %v10808 = vadd.f32 0.0, %v10807
      %v10809 = vpop.f32.mrf.mxu0
      %v10810 = vadd.f32 0.0, %v10809
      %10811 = vmatmul.bf16.gmra.mxu0 %v10696
      %v10812 = vpop.f32.mrf.mxu0
      %v10813 = vadd.f32 0.0, %v10812
      %v10814 = vpop.f32.mrf.mxu0
      %v10815 = vadd.f32 0.0, %v10814
      %10816 = vdwg.mxu0
      %10817 = vmatpush.bf16.msra.mxu0 %v10781
      %10818 = vmatpush.bf16.msra.mxu0 %v10780
      %10819 = vmatpush.bf16.msra.mxu0 %v10779
      %10820 = vmatpush.bf16.msra.mxu0 %v10778
      %10821 = vmatpush.bf16.msra.mxu0 %v10777
      %10822 = vmatpush.bf16.msra.mxu0 %v10776
      %10823 = vmatpush.bf16.msra.mxu0 %v10775
      %10824 = vmatpush.bf16.msra.mxu0 %v10774
      %10825 = vmatmul.bf16.gmra.mxu0 %v10695
      %v10826 = vpop.f32.mrf.mxu0
      %v10827 = vadd.f32 %v10808, %v10826
      %v10828 = vpop.f32.mrf.mxu0
      %v10829 = vadd.f32 %v10810, %v10828
      %10830 = vmatmul.bf16.gmra.mxu0 %v10697
      %v10831 = vpop.f32.mrf.mxu0
      %v10832 = vadd.f32 %v10813, %v10831
      %v10833 = vpop.f32.mrf.mxu0
      %v10834 = vadd.f32 %v10815, %v10833
      %10835 = vdwg.mxu0
      %v10836 = vadd.f32 %v10645, %v10827
      %v10837 = vadd.f32 %v10646, %v10829
      %v10838 = vadd.f32 %v10647, %v10832
      %v10839 = vadd.f32 %v10648, %v10834
      %s10840 = scalar_lea.vmem %s10, 896
      %v10841 = vld [vmem:[%s10840] sm:$0xf]
      %v10842 = vld [vmem:[%s10840 + $0x4] sm:$0xf]
      %v10843 = vld [vmem:[%s10840 + $0x8] sm:$0xf]
      %v10844 = vld [vmem:[%s10840 + $0xc] sm:$0xf]
      %v10845 = vld [vmem:[%s10840 + $0x10] sm:$0xf]
      %v10846 = vld [vmem:[%s10840 + $0x14] sm:$0xf]
      %v10847 = vld [vmem:[%s10840 + $0x18] sm:$0xf]
      %v10848 = vld [vmem:[%s10840 + $0x1c] sm:$0xf]
      %v10849 = vld [vmem:[%s10840 + $0x20] sm:$0xf]
      %v10850 = vld [vmem:[%s10840 + $0x24] sm:$0xf]
      %v10851 = vld [vmem:[%s10840 + $0x28] sm:$0xf]
      %v10852 = vld [vmem:[%s10840 + $0x2c] sm:$0xf]
      %v10853 = vld [vmem:[%s10840 + $0x30] sm:$0xf]
      %v10854 = vld [vmem:[%s10840 + $0x34] sm:$0xf]
      %v10855 = vld [vmem:[%s10840 + $0x38] sm:$0xf]
      %v10856 = vld [vmem:[%s10840 + $0x3c] sm:$0xf]
      %v10857 = vld [vmem:[%s10840 + $0x40] sm:$0xf]
      %v10858 = vld [vmem:[%s10840 + $0x44] sm:$0xf]
      %v10859 = vld [vmem:[%s10840 + $0x48] sm:$0xf]
      %v10860 = vld [vmem:[%s10840 + $0x4c] sm:$0xf]
      %v10861 = vld [vmem:[%s10840 + $0x50] sm:$0xf]
      %v10862 = vld [vmem:[%s10840 + $0x54] sm:$0xf]
      %v10863 = vld [vmem:[%s10840 + $0x58] sm:$0xf]
      %v10864 = vld [vmem:[%s10840 + $0x5c] sm:$0xf]
      %v10865 = vld [vmem:[%s10840 + $0x60] sm:$0xf]
      %v10866 = vld [vmem:[%s10840 + $0x64] sm:$0xf]
      %v10867 = vld [vmem:[%s10840 + $0x68] sm:$0xf]
      %v10868 = vld [vmem:[%s10840 + $0x6c] sm:$0xf]
      %v10869 = vld [vmem:[%s10840 + $0x70] sm:$0xf]
      %v10870 = vld [vmem:[%s10840 + $0x74] sm:$0xf]
      %v10871 = vld [vmem:[%s10840 + $0x78] sm:$0xf]
      %v10872 = vld [vmem:[%s10840 + $0x7c] sm:$0xf]
      %v10877 = vunpack.c.l.b16 %v9490
      %v10878 = vunpack.c.h.b16 %v9490
      %v10879 = vunpack.c.l.b16 %v9491
      %v10880 = vunpack.c.h.b16 %v9491
      %v10881 = vunpack.c.l.b16 %v9508
      %v10882 = vunpack.c.h.b16 %v9508
      %v10883 = vunpack.c.l.b16 %v9509
      %v10884 = vunpack.c.h.b16 %v9509
      %v10885 = vpack.c.b16 %v10879, %v10877
      %v10886 = vpack.c.b16 %v10880, %v10878
      %v10887 = vpack.c.b16 %v10883, %v10881
      %v10888 = vpack.c.b16 %v10884, %v10882
      %v10925 = vunpack.c.l.b16 %v10841
      %v10926 = vunpack.c.l.b16 %v10842
      %v10927 = vunpack.c.l.b16 %v10843
      %v10928 = vunpack.c.l.b16 %v10844
      %v10929 = vunpack.c.l.b16 %v10845
      %v10930 = vunpack.c.l.b16 %v10846
      %v10931 = vunpack.c.l.b16 %v10847
      %v10932 = vunpack.c.l.b16 %v10848
      %v10933 = vunpack.c.l.b16 %v10849
      %v10934 = vunpack.c.l.b16 %v10850
      %v10935 = vunpack.c.l.b16 %v10851
      %v10936 = vunpack.c.l.b16 %v10852
      %v10937 = vunpack.c.l.b16 %v10853
      %v10938 = vunpack.c.l.b16 %v10854
      %v10939 = vunpack.c.l.b16 %v10855
      %v10940 = vunpack.c.l.b16 %v10856
      %v10941 = vunpack.c.l.b16 %v10857
      %v10942 = vunpack.c.l.b16 %v10858
      %v10943 = vunpack.c.l.b16 %v10859
      %v10944 = vunpack.c.l.b16 %v10860
      %v10945 = vunpack.c.l.b16 %v10861
      %v10946 = vunpack.c.l.b16 %v10862
      %v10947 = vunpack.c.l.b16 %v10863
      %v10948 = vunpack.c.l.b16 %v10864
      %v10949 = vunpack.c.l.b16 %v10865
      %v10950 = vunpack.c.l.b16 %v10866
      %v10951 = vunpack.c.l.b16 %v10867
      %v10952 = vunpack.c.l.b16 %v10868
      %v10953 = vunpack.c.l.b16 %v10869
      %v10954 = vunpack.c.l.b16 %v10870
      %v10955 = vunpack.c.l.b16 %v10871
      %v10956 = vunpack.c.l.b16 %v10872
      %v10957 = vpack.c.b16 %v10926, %v10925
      %v10958 = vpack.c.b16 %v10928, %v10927
      %v10959 = vpack.c.b16 %v10930, %v10929
      %v10960 = vpack.c.b16 %v10932, %v10931
      %v10961 = vpack.c.b16 %v10934, %v10933
      %v10962 = vpack.c.b16 %v10936, %v10935
      %v10963 = vpack.c.b16 %v10938, %v10937
      %v10964 = vpack.c.b16 %v10940, %v10939
      %v10965 = vpack.c.b16 %v10942, %v10941
      %v10966 = vpack.c.b16 %v10944, %v10943
      %v10967 = vpack.c.b16 %v10946, %v10945
      %v10968 = vpack.c.b16 %v10948, %v10947
      %v10969 = vpack.c.b16 %v10950, %v10949
      %v10970 = vpack.c.b16 %v10952, %v10951
      %v10971 = vpack.c.b16 %v10954, %v10953
      %v10972 = vpack.c.b16 %v10956, %v10955
      %10989 = vmatpush.bf16.msra.mxu0 %v10964
      %10990 = vmatpush.bf16.msra.mxu0 %v10963
      %10991 = vmatpush.bf16.msra.mxu0 %v10962
      %10992 = vmatpush.bf16.msra.mxu0 %v10961
      %10993 = vmatpush.bf16.msra.mxu0 %v10960
      %10994 = vmatpush.bf16.msra.mxu0 %v10959
      %10995 = vmatpush.bf16.msra.mxu0 %v10958
      %10996 = vmatpush.bf16.msra.mxu0 %v10957
      %10997 = vmatmul.bf16.gmra.mxu0 %v10885
      %v10998 = vpop.f32.mrf.mxu0
      %v10999 = vadd.f32 0.0, %v10998
      %v11000 = vpop.f32.mrf.mxu0
      %v11001 = vadd.f32 0.0, %v11000
      %11002 = vmatmul.bf16.gmra.mxu0 %v10887
      %v11003 = vpop.f32.mrf.mxu0
      %v11004 = vadd.f32 0.0, %v11003
      %v11005 = vpop.f32.mrf.mxu0
      %v11006 = vadd.f32 0.0, %v11005
      %11007 = vdwg.mxu0
      %11008 = vmatpush.bf16.msra.mxu0 %v10972
      %11009 = vmatpush.bf16.msra.mxu0 %v10971
      %11010 = vmatpush.bf16.msra.mxu0 %v10970
      %11011 = vmatpush.bf16.msra.mxu0 %v10969
      %11012 = vmatpush.bf16.msra.mxu0 %v10968
      %11013 = vmatpush.bf16.msra.mxu0 %v10967
      %11014 = vmatpush.bf16.msra.mxu0 %v10966
      %11015 = vmatpush.bf16.msra.mxu0 %v10965
      %11016 = vmatmul.bf16.gmra.mxu0 %v10886
      %v11017 = vpop.f32.mrf.mxu0
      %v11018 = vadd.f32 %v10999, %v11017
      %v11019 = vpop.f32.mrf.mxu0
      %v11020 = vadd.f32 %v11001, %v11019
      %11021 = vmatmul.bf16.gmra.mxu0 %v10888
      %v11022 = vpop.f32.mrf.mxu0
      %v11023 = vadd.f32 %v11004, %v11022
      %v11024 = vpop.f32.mrf.mxu0
      %v11025 = vadd.f32 %v11006, %v11024
      %11026 = vdwg.mxu0
      %v11027 = vadd.f32 %v10836, %v11018
      %v11028 = vadd.f32 %v10837, %v11020
      %v11029 = vadd.f32 %v10838, %v11023
      %v11030 = vadd.f32 %v10839, %v11025
      %s11031 = scalar_lea.vmem %s10, 1024
      %v11032 = vld [vmem:[%s11031] sm:$0xf]
      %v11033 = vld [vmem:[%s11031 + $0x4] sm:$0xf]
      %v11034 = vld [vmem:[%s11031 + $0x8] sm:$0xf]
      %v11035 = vld [vmem:[%s11031 + $0xc] sm:$0xf]
      %v11036 = vld [vmem:[%s11031 + $0x10] sm:$0xf]
      %v11037 = vld [vmem:[%s11031 + $0x14] sm:$0xf]
      %v11038 = vld [vmem:[%s11031 + $0x18] sm:$0xf]
      %v11039 = vld [vmem:[%s11031 + $0x1c] sm:$0xf]
      %v11040 = vld [vmem:[%s11031 + $0x20] sm:$0xf]
      %v11041 = vld [vmem:[%s11031 + $0x24] sm:$0xf]
      %v11042 = vld [vmem:[%s11031 + $0x28] sm:$0xf]
      %v11043 = vld [vmem:[%s11031 + $0x2c] sm:$0xf]
      %v11044 = vld [vmem:[%s11031 + $0x30] sm:$0xf]
      %v11045 = vld [vmem:[%s11031 + $0x34] sm:$0xf]
      %v11046 = vld [vmem:[%s11031 + $0x38] sm:$0xf]
      %v11047 = vld [vmem:[%s11031 + $0x3c] sm:$0xf]
      %v11048 = vld [vmem:[%s11031 + $0x40] sm:$0xf]
      %v11049 = vld [vmem:[%s11031 + $0x44] sm:$0xf]
      %v11050 = vld [vmem:[%s11031 + $0x48] sm:$0xf]
      %v11051 = vld [vmem:[%s11031 + $0x4c] sm:$0xf]
      %v11052 = vld [vmem:[%s11031 + $0x50] sm:$0xf]
      %v11053 = vld [vmem:[%s11031 + $0x54] sm:$0xf]
      %v11054 = vld [vmem:[%s11031 + $0x58] sm:$0xf]
      %v11055 = vld [vmem:[%s11031 + $0x5c] sm:$0xf]
      %v11056 = vld [vmem:[%s11031 + $0x60] sm:$0xf]
      %v11057 = vld [vmem:[%s11031 + $0x64] sm:$0xf]
      %v11058 = vld [vmem:[%s11031 + $0x68] sm:$0xf]
      %v11059 = vld [vmem:[%s11031 + $0x6c] sm:$0xf]
      %v11060 = vld [vmem:[%s11031 + $0x70] sm:$0xf]
      %v11061 = vld [vmem:[%s11031 + $0x74] sm:$0xf]
      %v11062 = vld [vmem:[%s11031 + $0x78] sm:$0xf]
      %v11063 = vld [vmem:[%s11031 + $0x7c] sm:$0xf]
      %v11068 = vunpack.c.l.b16 %v9492
      %v11069 = vunpack.c.h.b16 %v9492
      %v11070 = vunpack.c.l.b16 %v9493
      %v11071 = vunpack.c.h.b16 %v9493
      %v11072 = vunpack.c.l.b16 %v9510
      %v11073 = vunpack.c.h.b16 %v9510
      %v11074 = vunpack.c.l.b16 %v9511
      %v11075 = vunpack.c.h.b16 %v9511
      %v11076 = vpack.c.b16 %v11070, %v11068
      %v11077 = vpack.c.b16 %v11071, %v11069
      %v11078 = vpack.c.b16 %v11074, %v11072
      %v11079 = vpack.c.b16 %v11075, %v11073
      %v11116 = vunpack.c.l.b16 %v11032
      %v11117 = vunpack.c.l.b16 %v11033
      %v11118 = vunpack.c.l.b16 %v11034
      %v11119 = vunpack.c.l.b16 %v11035
      %v11120 = vunpack.c.l.b16 %v11036
      %v11121 = vunpack.c.l.b16 %v11037
      %v11122 = vunpack.c.l.b16 %v11038
      %v11123 = vunpack.c.l.b16 %v11039
      %v11124 = vunpack.c.l.b16 %v11040
      %v11125 = vunpack.c.l.b16 %v11041
      %v11126 = vunpack.c.l.b16 %v11042
      %v11127 = vunpack.c.l.b16 %v11043
      %v11128 = vunpack.c.l.b16 %v11044
      %v11129 = vunpack.c.l.b16 %v11045
      %v11130 = vunpack.c.l.b16 %v11046
      %v11131 = vunpack.c.l.b16 %v11047
      %v11132 = vunpack.c.l.b16 %v11048
      %v11133 = vunpack.c.l.b16 %v11049
      %v11134 = vunpack.c.l.b16 %v11050
      %v11135 = vunpack.c.l.b16 %v11051
      %v11136 = vunpack.c.l.b16 %v11052
      %v11137 = vunpack.c.l.b16 %v11053
      %v11138 = vunpack.c.l.b16 %v11054
      %v11139 = vunpack.c.l.b16 %v11055
      %v11140 = vunpack.c.l.b16 %v11056
      %v11141 = vunpack.c.l.b16 %v11057
      %v11142 = vunpack.c.l.b16 %v11058
      %v11143 = vunpack.c.l.b16 %v11059
      %v11144 = vunpack.c.l.b16 %v11060
      %v11145 = vunpack.c.l.b16 %v11061
      %v11146 = vunpack.c.l.b16 %v11062
      %v11147 = vunpack.c.l.b16 %v11063
      %v11148 = vpack.c.b16 %v11117, %v11116
      %v11149 = vpack.c.b16 %v11119, %v11118
      %v11150 = vpack.c.b16 %v11121, %v11120
      %v11151 = vpack.c.b16 %v11123, %v11122
      %v11152 = vpack.c.b16 %v11125, %v11124
      %v11153 = vpack.c.b16 %v11127, %v11126
      %v11154 = vpack.c.b16 %v11129, %v11128
      %v11155 = vpack.c.b16 %v11131, %v11130
      %v11156 = vpack.c.b16 %v11133, %v11132
      %v11157 = vpack.c.b16 %v11135, %v11134
      %v11158 = vpack.c.b16 %v11137, %v11136
      %v11159 = vpack.c.b16 %v11139, %v11138
      %v11160 = vpack.c.b16 %v11141, %v11140
      %v11161 = vpack.c.b16 %v11143, %v11142
      %v11162 = vpack.c.b16 %v11145, %v11144
      %v11163 = vpack.c.b16 %v11147, %v11146
      %11180 = vmatpush.bf16.msra.mxu0 %v11155
      %11181 = vmatpush.bf16.msra.mxu0 %v11154
      %11182 = vmatpush.bf16.msra.mxu0 %v11153
      %11183 = vmatpush.bf16.msra.mxu0 %v11152
      %11184 = vmatpush.bf16.msra.mxu0 %v11151
      %11185 = vmatpush.bf16.msra.mxu0 %v11150
      %11186 = vmatpush.bf16.msra.mxu0 %v11149
      %11187 = vmatpush.bf16.msra.mxu0 %v11148
      %11188 = vmatmul.bf16.gmra.mxu0 %v11076
      %v11189 = vpop.f32.mrf.mxu0
      %v11190 = vadd.f32 0.0, %v11189
      %v11191 = vpop.f32.mrf.mxu0
      %v11192 = vadd.f32 0.0, %v11191
      %11193 = vmatmul.bf16.gmra.mxu0 %v11078
      %v11194 = vpop.f32.mrf.mxu0
      %v11195 = vadd.f32 0.0, %v11194
      %v11196 = vpop.f32.mrf.mxu0
      %v11197 = vadd.f32 0.0, %v11196
      %11198 = vdwg.mxu0
      %11199 = vmatpush.bf16.msra.mxu0 %v11163
      %11200 = vmatpush.bf16.msra.mxu0 %v11162
      %11201 = vmatpush.bf16.msra.mxu0 %v11161
      %11202 = vmatpush.bf16.msra.mxu0 %v11160
      %11203 = vmatpush.bf16.msra.mxu0 %v11159
      %11204 = vmatpush.bf16.msra.mxu0 %v11158
      %11205 = vmatpush.bf16.msra.mxu0 %v11157
      %11206 = vmatpush.bf16.msra.mxu0 %v11156
      %11207 = vmatmul.bf16.gmra.mxu0 %v11077
      %v11208 = vpop.f32.mrf.mxu0
      %v11209 = vadd.f32 %v11190, %v11208
      %v11210 = vpop.f32.mrf.mxu0
      %v11211 = vadd.f32 %v11192, %v11210
      %11212 = vmatmul.bf16.gmra.mxu0 %v11079
      %v11213 = vpop.f32.mrf.mxu0
      %v11214 = vadd.f32 %v11195, %v11213
      %v11215 = vpop.f32.mrf.mxu0
      %v11216 = vadd.f32 %v11197, %v11215
      %11217 = vdwg.mxu0
      %v11218 = vadd.f32 %v11027, %v11209
      %v11219 = vadd.f32 %v11028, %v11211
      %v11220 = vadd.f32 %v11029, %v11214
      %v11221 = vadd.f32 %v11030, %v11216
      %v11222 = vld [vmem:[%s11] sm:$0x1]
      %v11224 = vperm.slane %v11222, 0
      %v11226 = vadd.f32 %v11218, %v11224
      %v11227 = vadd.f32 %v11219, %v11224
      %v11228 = vadd.f32 %v11220, %v11224
      %v11229 = vadd.f32 %v11221, %v11224
      %v11230 = vmax.f32 %v11226, 0.0
      %v11231 = vmax.f32 %v11227, 0.0
      %v11232 = vmax.f32 %v11228, 0.0
      %v11233 = vmax.f32 %v11229, 0.0
      %v11234 = vpack.c.bf16 %v11230, %v11230
      %v11235 = vpack.c.bf16 %v11231, %v11231
      %v11236 = vpack.c.bf16 %v11232, %v11232
      %v11237 = vpack.c.bf16 %v11233, %v11233
      %v11240 = vunpack.c.l.b16 %v11234
      %v11241 = vunpack.c.l.b16 %v11235
      %v11242 = vpack.c.b16 %v11241, %v11240
      %11244 = vmatpush.bf16.msra.mxu0 0
      %11245 = vmatpush.bf16.msra.mxu0 0
      %11246 = vmatpush.bf16.msra.mxu0 0
      %11247 = vmatpush.bf16.msra.mxu0 0
      %11248 = vmatpush.bf16.msra.mxu0 0
      %11249 = vmatpush.bf16.msra.mxu0 0
      %11250 = vmatpush.bf16.msra.mxu0 0
      %11251 = vmatpush.bf16.msra.mxu0 %v11242
      %11252 = vmatmul.bf16.gmra.mxu0 %v9224
      %v11253 = vpop.f32.mrf.mxu0
      %v11254 = vadd.f32 0.0, %v11253
      %v11255 = vpop.f32.mrf.mxu0
      %v11256 = vadd.f32 0.0, %v11255
      %11257 = vmatmul.bf16.gmra.mxu0 %v9227
      %v11258 = vpop.f32.mrf.mxu0
      %v11259 = vadd.f32 0.0, %v11258
      %v11260 = vpop.f32.mrf.mxu0
      %v11261 = vadd.f32 0.0, %v11260
      %11262 = vmatmul.bf16.gmra.mxu0 %v9230
      %v11263 = vpop.f32.mrf.mxu0
      %v11264 = vadd.f32 0.0, %v11263
      %v11265 = vpop.f32.mrf.mxu0
      %v11266 = vadd.f32 0.0, %v11265
      %11267 = vmatmul.bf16.gmra.mxu0 %v9233
      %v11268 = vpop.f32.mrf.mxu0
      %v11269 = vadd.f32 0.0, %v11268
      %v11270 = vpop.f32.mrf.mxu0
      %v11271 = vadd.f32 0.0, %v11270
      %11272 = vmatmul.bf16.gmra.mxu0 %v9236
      %v11273 = vpop.f32.mrf.mxu0
      %v11274 = vadd.f32 0.0, %v11273
      %v11275 = vpop.f32.mrf.mxu0
      %v11276 = vadd.f32 0.0, %v11275
      %11277 = vmatmul.bf16.gmra.mxu0 %v9239
      %v11278 = vpop.f32.mrf.mxu0
      %v11279 = vadd.f32 0.0, %v11278
      %v11280 = vpop.f32.mrf.mxu0
      %v11281 = vadd.f32 0.0, %v11280
      %11282 = vmatmul.bf16.gmra.mxu0 %v9242
      %v11283 = vpop.f32.mrf.mxu0
      %v11284 = vadd.f32 0.0, %v11283
      %v11285 = vpop.f32.mrf.mxu0
      %v11286 = vadd.f32 0.0, %v11285
      %11287 = vmatmul.bf16.gmra.mxu0 %v9245
      %v11288 = vpop.f32.mrf.mxu0
      %v11289 = vadd.f32 0.0, %v11288
      %v11290 = vpop.f32.mrf.mxu0
      %v11291 = vadd.f32 0.0, %v11290
      %11292 = vmatmul.bf16.gmra.mxu0 %v9248
      %v11293 = vpop.f32.mrf.mxu0
      %v11294 = vadd.f32 0.0, %v11293
      %v11295 = vpop.f32.mrf.mxu0
      %v11296 = vadd.f32 0.0, %v11295
      %11297 = vdwg.mxu0
      %v11300 = vunpack.c.l.b16 %v11236
      %v11301 = vunpack.c.l.b16 %v11237
      %v11302 = vpack.c.b16 %v11301, %v11300
      %11304 = vmatpush.bf16.msra.mxu0 0
      %11305 = vmatpush.bf16.msra.mxu0 0
      %11306 = vmatpush.bf16.msra.mxu0 0
      %11307 = vmatpush.bf16.msra.mxu0 0
      %11308 = vmatpush.bf16.msra.mxu0 0
      %11309 = vmatpush.bf16.msra.mxu0 0
      %11310 = vmatpush.bf16.msra.mxu0 0
      %11311 = vmatpush.bf16.msra.mxu0 %v11302
      %11312 = vmatmul.bf16.gmra.mxu0 %v9224
      %v11313 = vpop.f32.mrf.mxu0
      %v11314 = vadd.f32 0.0, %v11313
      %v11315 = vpop.f32.mrf.mxu0
      %v11316 = vadd.f32 0.0, %v11315
      %11317 = vmatmul.bf16.gmra.mxu0 %v9227
      %v11318 = vpop.f32.mrf.mxu0
      %v11319 = vadd.f32 0.0, %v11318
      %v11320 = vpop.f32.mrf.mxu0
      %v11321 = vadd.f32 0.0, %v11320
      %11322 = vmatmul.bf16.gmra.mxu0 %v9230
      %v11323 = vpop.f32.mrf.mxu0
      %v11324 = vadd.f32 0.0, %v11323
      %v11325 = vpop.f32.mrf.mxu0
      %v11326 = vadd.f32 0.0, %v11325
      %11327 = vmatmul.bf16.gmra.mxu0 %v9233
      %v11328 = vpop.f32.mrf.mxu0
      %v11329 = vadd.f32 0.0, %v11328
      %v11330 = vpop.f32.mrf.mxu0
      %v11331 = vadd.f32 0.0, %v11330
      %11332 = vmatmul.bf16.gmra.mxu0 %v9236
      %v11333 = vpop.f32.mrf.mxu0
      %v11334 = vadd.f32 0.0, %v11333
      %v11335 = vpop.f32.mrf.mxu0
      %v11336 = vadd.f32 0.0, %v11335
      %11337 = vmatmul.bf16.gmra.mxu0 %v9239
      %v11338 = vpop.f32.mrf.mxu0
      %v11339 = vadd.f32 0.0, %v11338
      %v11340 = vpop.f32.mrf.mxu0
      %v11341 = vadd.f32 0.0, %v11340
      %11342 = vmatmul.bf16.gmra.mxu0 %v9242
      %v11343 = vpop.f32.mrf.mxu0
      %v11344 = vadd.f32 0.0, %v11343
      %v11345 = vpop.f32.mrf.mxu0
      %v11346 = vadd.f32 0.0, %v11345
      %11347 = vmatmul.bf16.gmra.mxu0 %v9245
      %v11348 = vpop.f32.mrf.mxu0
      %v11349 = vadd.f32 0.0, %v11348
      %v11350 = vpop.f32.mrf.mxu0
      %v11351 = vadd.f32 0.0, %v11350
      %11352 = vmatmul.bf16.gmra.mxu0 %v9248
      %v11353 = vpop.f32.mrf.mxu0
      %v11354 = vadd.f32 0.0, %v11353
      %v11355 = vpop.f32.mrf.mxu0
      %v11356 = vadd.f32 0.0, %v11355
      %11357 = vdwg.mxu0
      %v11358 = vpack.c.bf16 %v11254, %v11254
      %v11359 = vpack.c.bf16 %v11256, %v11256
      %v11360 = vpack.c.bf16 %v11259, %v11259
      %v11361 = vpack.c.bf16 %v11261, %v11261
      %v11362 = vpack.c.bf16 %v11264, %v11264
      %v11363 = vpack.c.bf16 %v11266, %v11266
      %v11364 = vpack.c.bf16 %v11269, %v11269
      %v11365 = vpack.c.bf16 %v11271, %v11271
      %v11366 = vpack.c.bf16 %v11274, %v11274
      %v11367 = vpack.c.bf16 %v11276, %v11276
      %v11368 = vpack.c.bf16 %v11279, %v11279
      %v11369 = vpack.c.bf16 %v11281, %v11281
      %v11370 = vpack.c.bf16 %v11284, %v11284
      %v11371 = vpack.c.bf16 %v11286, %v11286
      %v11372 = vpack.c.bf16 %v11289, %v11289
      %v11373 = vpack.c.bf16 %v11291, %v11291
      %v11374 = vpack.c.bf16 %v11294, %v11294
      %v11375 = vpack.c.bf16 %v11296, %v11296
      %v11376 = vpack.c.bf16 %v11314, %v11314
      %v11377 = vpack.c.bf16 %v11316, %v11316
      %v11378 = vpack.c.bf16 %v11319, %v11319
      %v11379 = vpack.c.bf16 %v11321, %v11321
      %v11380 = vpack.c.bf16 %v11324, %v11324
      %v11381 = vpack.c.bf16 %v11326, %v11326
      %v11382 = vpack.c.bf16 %v11329, %v11329
      %v11383 = vpack.c.bf16 %v11331, %v11331
      %v11384 = vpack.c.bf16 %v11334, %v11334
      %v11385 = vpack.c.bf16 %v11336, %v11336
      %v11386 = vpack.c.bf16 %v11339, %v11339
      %v11387 = vpack.c.bf16 %v11341, %v11341
      %v11388 = vpack.c.bf16 %v11344, %v11344
      %v11389 = vpack.c.bf16 %v11346, %v11346
      %v11390 = vpack.c.bf16 %v11349, %v11349
      %v11391 = vpack.c.bf16 %v11351, %v11351
      %v11392 = vpack.c.bf16 %v11354, %v11354
      %v11393 = vpack.c.bf16 %v11356, %v11356
      %v11394 = vld [vmem:[%s12] sm:$0xf]
      %v11395 = vld [vmem:[%s12 + $0x4] sm:$0xf]
      %v11396 = vld [vmem:[%s12 + $0x8] sm:$0xf]
      %v11397 = vld [vmem:[%s12 + $0xc] sm:$0xf]
      %v11398 = vld [vmem:[%s12 + $0x10] sm:$0xf]
      %v11399 = vld [vmem:[%s12 + $0x14] sm:$0xf]
      %v11400 = vld [vmem:[%s12 + $0x18] sm:$0xf]
      %v11401 = vld [vmem:[%s12 + $0x1c] sm:$0xf]
      %v11402 = vld [vmem:[%s12 + $0x20] sm:$0xf]
      %v11403 = vld [vmem:[%s12 + $0x24] sm:$0xf]
      %v11404 = vld [vmem:[%s12 + $0x28] sm:$0xf]
      %v11405 = vld [vmem:[%s12 + $0x2c] sm:$0xf]
      %v11406 = vld [vmem:[%s12 + $0x30] sm:$0xf]
      %v11407 = vld [vmem:[%s12 + $0x34] sm:$0xf]
      %v11408 = vld [vmem:[%s12 + $0x38] sm:$0xf]
      %v11409 = vld [vmem:[%s12 + $0x3c] sm:$0xf]
      %s11410 = scalar_lea.vmem %s12, 64
      %v11411 = vld [vmem:[%s11410] sm:$0xf]
      %v11412 = vld [vmem:[%s11410 + $0x4] sm:$0xf]
      %v11413 = vld [vmem:[%s11410 + $0x8] sm:$0xf]
      %v11414 = vld [vmem:[%s11410 + $0xc] sm:$0xf]
      %v11415 = vld [vmem:[%s11410 + $0x10] sm:$0xf]
      %v11416 = vld [vmem:[%s11410 + $0x14] sm:$0xf]
      %v11417 = vld [vmem:[%s11410 + $0x18] sm:$0xf]
      %v11418 = vld [vmem:[%s11410 + $0x1c] sm:$0xf]
      %v11419 = vld [vmem:[%s11410 + $0x20] sm:$0xf]
      %v11420 = vld [vmem:[%s11410 + $0x24] sm:$0xf]
      %v11421 = vld [vmem:[%s11410 + $0x28] sm:$0xf]
      %v11422 = vld [vmem:[%s11410 + $0x2c] sm:$0xf]
      %v11423 = vld [vmem:[%s11410 + $0x30] sm:$0xf]
      %v11424 = vld [vmem:[%s11410 + $0x34] sm:$0xf]
      %v11425 = vld [vmem:[%s11410 + $0x38] sm:$0xf]
      %v11426 = vld [vmem:[%s11410 + $0x3c] sm:$0xf]
      %v11431 = vunpack.c.l.b16 %v11360
      %v11432 = vunpack.c.l.b16 %v11361
      %v11433 = vunpack.c.l.b16 %v11378
      %v11434 = vunpack.c.l.b16 %v11379
      %v11435 = vpack.c.b16 %v11432, %v11431
      %v11436 = vpack.c.b16 %v11434, %v11433
      %v11455 = vunpack.c.l.b16 %v11411
      %v11456 = vunpack.c.l.b16 %v11412
      %v11457 = vunpack.c.l.b16 %v11413
      %v11458 = vunpack.c.l.b16 %v11414
      %v11459 = vunpack.c.l.b16 %v11415
      %v11460 = vunpack.c.l.b16 %v11416
      %v11461 = vunpack.c.l.b16 %v11417
      %v11462 = vunpack.c.l.b16 %v11418
      %v11463 = vunpack.c.l.b16 %v11419
      %v11464 = vunpack.c.l.b16 %v11420
      %v11465 = vunpack.c.l.b16 %v11421
      %v11466 = vunpack.c.l.b16 %v11422
      %v11467 = vunpack.c.l.b16 %v11423
      %v11468 = vunpack.c.l.b16 %v11424
      %v11469 = vunpack.c.l.b16 %v11425
      %v11470 = vunpack.c.l.b16 %v11426
      %v11471 = vpack.c.b16 %v11456, %v11455
      %v11472 = vpack.c.b16 %v11458, %v11457
      %v11473 = vpack.c.b16 %v11460, %v11459
      %v11474 = vpack.c.b16 %v11462, %v11461
      %v11475 = vpack.c.b16 %v11464, %v11463
      %v11476 = vpack.c.b16 %v11466, %v11465
      %v11477 = vpack.c.b16 %v11468, %v11467
      %v11478 = vpack.c.b16 %v11470, %v11469
      %11487 = vmatpush.bf16.msra.mxu0 %v11478
      %11488 = vmatpush.bf16.msra.mxu0 %v11477
      %11489 = vmatpush.bf16.msra.mxu0 %v11476
      %11490 = vmatpush.bf16.msra.mxu0 %v11475
      %11491 = vmatpush.bf16.msra.mxu0 %v11474
      %11492 = vmatpush.bf16.msra.mxu0 %v11473
      %11493 = vmatpush.bf16.msra.mxu0 %v11472
      %11494 = vmatpush.bf16.msra.mxu0 %v11471
      %11495 = vmatmul.bf16.gmra.mxu0 %v11435
      %v11496 = vpop.f32.mrf.mxu0
      %v11497 = vadd.f32 0.0, %v11496
      %v11498 = vpop.f32.mrf.mxu0
      %v11499 = vadd.f32 0.0, %v11498
      %11500 = vmatmul.bf16.gmra.mxu0 %v11436
      %v11501 = vpop.f32.mrf.mxu0
      %v11502 = vadd.f32 0.0, %v11501
      %v11503 = vpop.f32.mrf.mxu0
      %v11504 = vadd.f32 0.0, %v11503
      %11505 = vdwg.mxu0
      %v11510 = vunpack.c.l.b16 %v11358
      %v11511 = vunpack.c.l.b16 %v11359
      %v11512 = vunpack.c.l.b16 %v11376
      %v11513 = vunpack.c.l.b16 %v11377
      %v11514 = vpack.c.b16 %v11511, %v11510
      %v11515 = vpack.c.b16 %v11513, %v11512
      %v11534 = vunpack.c.l.b16 %v11394
      %v11535 = vunpack.c.l.b16 %v11395
      %v11536 = vunpack.c.l.b16 %v11396
      %v11537 = vunpack.c.l.b16 %v11397
      %v11538 = vunpack.c.l.b16 %v11398
      %v11539 = vunpack.c.l.b16 %v11399
      %v11540 = vunpack.c.l.b16 %v11400
      %v11541 = vunpack.c.l.b16 %v11401
      %v11542 = vunpack.c.l.b16 %v11402
      %v11543 = vunpack.c.l.b16 %v11403
      %v11544 = vunpack.c.l.b16 %v11404
      %v11545 = vunpack.c.l.b16 %v11405
      %v11546 = vunpack.c.l.b16 %v11406
      %v11547 = vunpack.c.l.b16 %v11407
      %v11548 = vunpack.c.l.b16 %v11408
      %v11549 = vunpack.c.l.b16 %v11409
      %v11550 = vpack.c.b16 %v11535, %v11534
      %v11551 = vpack.c.b16 %v11537, %v11536
      %v11552 = vpack.c.b16 %v11539, %v11538
      %v11553 = vpack.c.b16 %v11541, %v11540
      %v11554 = vpack.c.b16 %v11543, %v11542
      %v11555 = vpack.c.b16 %v11545, %v11544
      %v11556 = vpack.c.b16 %v11547, %v11546
      %v11557 = vpack.c.b16 %v11549, %v11548
      %11566 = vmatpush.bf16.msra.mxu0 %v11557
      %11567 = vmatpush.bf16.msra.mxu0 %v11556
      %11568 = vmatpush.bf16.msra.mxu0 %v11555
      %11569 = vmatpush.bf16.msra.mxu0 %v11554
      %11570 = vmatpush.bf16.msra.mxu0 %v11553
      %11571 = vmatpush.bf16.msra.mxu0 %v11552
      %11572 = vmatpush.bf16.msra.mxu0 %v11551
      %11573 = vmatpush.bf16.msra.mxu0 %v11550
      %11574 = vmatmul.bf16.gmra.mxu0 %v11514
      %v11575 = vpop.f32.mrf.mxu0
      %v11576 = vadd.f32 %v11497, %v11575
      %v11577 = vpop.f32.mrf.mxu0
      %v11578 = vadd.f32 %v11499, %v11577
      %11579 = vmatmul.bf16.gmra.mxu0 %v11515
      %v11580 = vpop.f32.mrf.mxu0
      %v11581 = vadd.f32 %v11502, %v11580
      %v11582 = vpop.f32.mrf.mxu0
      %v11583 = vadd.f32 %v11504, %v11582
      %11584 = vdwg.mxu0
      %s11585 = scalar_lea.vmem %s12, 128
      %v11586 = vld [vmem:[%s11585] sm:$0xf]
      %v11587 = vld [vmem:[%s11585 + $0x4] sm:$0xf]
      %v11588 = vld [vmem:[%s11585 + $0x8] sm:$0xf]
      %v11589 = vld [vmem:[%s11585 + $0xc] sm:$0xf]
      %v11590 = vld [vmem:[%s11585 + $0x10] sm:$0xf]
      %v11591 = vld [vmem:[%s11585 + $0x14] sm:$0xf]
      %v11592 = vld [vmem:[%s11585 + $0x18] sm:$0xf]
      %v11593 = vld [vmem:[%s11585 + $0x1c] sm:$0xf]
      %v11594 = vld [vmem:[%s11585 + $0x20] sm:$0xf]
      %v11595 = vld [vmem:[%s11585 + $0x24] sm:$0xf]
      %v11596 = vld [vmem:[%s11585 + $0x28] sm:$0xf]
      %v11597 = vld [vmem:[%s11585 + $0x2c] sm:$0xf]
      %v11598 = vld [vmem:[%s11585 + $0x30] sm:$0xf]
      %v11599 = vld [vmem:[%s11585 + $0x34] sm:$0xf]
      %v11600 = vld [vmem:[%s11585 + $0x38] sm:$0xf]
      %v11601 = vld [vmem:[%s11585 + $0x3c] sm:$0xf]
      %v11606 = vunpack.c.l.b16 %v11362
      %v11607 = vunpack.c.l.b16 %v11363
      %v11608 = vunpack.c.l.b16 %v11380
      %v11609 = vunpack.c.l.b16 %v11381
      %v11610 = vpack.c.b16 %v11607, %v11606
      %v11611 = vpack.c.b16 %v11609, %v11608
      %v11630 = vunpack.c.l.b16 %v11586
      %v11631 = vunpack.c.l.b16 %v11587
      %v11632 = vunpack.c.l.b16 %v11588
      %v11633 = vunpack.c.l.b16 %v11589
      %v11634 = vunpack.c.l.b16 %v11590
      %v11635 = vunpack.c.l.b16 %v11591
      %v11636 = vunpack.c.l.b16 %v11592
      %v11637 = vunpack.c.l.b16 %v11593
      %v11638 = vunpack.c.l.b16 %v11594
      %v11639 = vunpack.c.l.b16 %v11595
      %v11640 = vunpack.c.l.b16 %v11596
      %v11641 = vunpack.c.l.b16 %v11597
      %v11642 = vunpack.c.l.b16 %v11598
      %v11643 = vunpack.c.l.b16 %v11599
      %v11644 = vunpack.c.l.b16 %v11600
      %v11645 = vunpack.c.l.b16 %v11601
      %v11646 = vpack.c.b16 %v11631, %v11630
      %v11647 = vpack.c.b16 %v11633, %v11632
      %v11648 = vpack.c.b16 %v11635, %v11634
      %v11649 = vpack.c.b16 %v11637, %v11636
      %v11650 = vpack.c.b16 %v11639, %v11638
      %v11651 = vpack.c.b16 %v11641, %v11640
      %v11652 = vpack.c.b16 %v11643, %v11642
      %v11653 = vpack.c.b16 %v11645, %v11644
      %11662 = vmatpush.bf16.msra.mxu0 %v11653
      %11663 = vmatpush.bf16.msra.mxu0 %v11652
      %11664 = vmatpush.bf16.msra.mxu0 %v11651
      %11665 = vmatpush.bf16.msra.mxu0 %v11650
      %11666 = vmatpush.bf16.msra.mxu0 %v11649
      %11667 = vmatpush.bf16.msra.mxu0 %v11648
      %11668 = vmatpush.bf16.msra.mxu0 %v11647
      %11669 = vmatpush.bf16.msra.mxu0 %v11646
      %11670 = vmatmul.bf16.gmra.mxu0 %v11610
      %v11671 = vpop.f32.mrf.mxu0
      %v11672 = vadd.f32 0.0, %v11671
      %v11673 = vpop.f32.mrf.mxu0
      %v11674 = vadd.f32 0.0, %v11673
      %11675 = vmatmul.bf16.gmra.mxu0 %v11611
      %v11676 = vpop.f32.mrf.mxu0
      %v11677 = vadd.f32 0.0, %v11676
      %v11678 = vpop.f32.mrf.mxu0
      %v11679 = vadd.f32 0.0, %v11678
      %11680 = vdwg.mxu0
      %v11681 = vadd.f32 %v11576, %v11672
      %v11682 = vadd.f32 %v11578, %v11674
      %v11683 = vadd.f32 %v11581, %v11677
      %v11684 = vadd.f32 %v11583, %v11679
      %s11685 = scalar_lea.vmem %s12, 192
      %v11686 = vld [vmem:[%s11685] sm:$0xf]
      %v11687 = vld [vmem:[%s11685 + $0x4] sm:$0xf]
      %v11688 = vld [vmem:[%s11685 + $0x8] sm:$0xf]
      %v11689 = vld [vmem:[%s11685 + $0xc] sm:$0xf]
      %v11690 = vld [vmem:[%s11685 + $0x10] sm:$0xf]
      %v11691 = vld [vmem:[%s11685 + $0x14] sm:$0xf]
      %v11692 = vld [vmem:[%s11685 + $0x18] sm:$0xf]
      %v11693 = vld [vmem:[%s11685 + $0x1c] sm:$0xf]
      %v11694 = vld [vmem:[%s11685 + $0x20] sm:$0xf]
      %v11695 = vld [vmem:[%s11685 + $0x24] sm:$0xf]
      %v11696 = vld [vmem:[%s11685 + $0x28] sm:$0xf]
      %v11697 = vld [vmem:[%s11685 + $0x2c] sm:$0xf]
      %v11698 = vld [vmem:[%s11685 + $0x30] sm:$0xf]
      %v11699 = vld [vmem:[%s11685 + $0x34] sm:$0xf]
      %v11700 = vld [vmem:[%s11685 + $0x38] sm:$0xf]
      %v11701 = vld [vmem:[%s11685 + $0x3c] sm:$0xf]
      %v11706 = vunpack.c.l.b16 %v11364
      %v11707 = vunpack.c.l.b16 %v11365
      %v11708 = vunpack.c.l.b16 %v11382
      %v11709 = vunpack.c.l.b16 %v11383
      %v11710 = vpack.c.b16 %v11707, %v11706
      %v11711 = vpack.c.b16 %v11709, %v11708
      %v11730 = vunpack.c.l.b16 %v11686
      %v11731 = vunpack.c.l.b16 %v11687
      %v11732 = vunpack.c.l.b16 %v11688
      %v11733 = vunpack.c.l.b16 %v11689
      %v11734 = vunpack.c.l.b16 %v11690
      %v11735 = vunpack.c.l.b16 %v11691
      %v11736 = vunpack.c.l.b16 %v11692
      %v11737 = vunpack.c.l.b16 %v11693
      %v11738 = vunpack.c.l.b16 %v11694
      %v11739 = vunpack.c.l.b16 %v11695
      %v11740 = vunpack.c.l.b16 %v11696
      %v11741 = vunpack.c.l.b16 %v11697
      %v11742 = vunpack.c.l.b16 %v11698
      %v11743 = vunpack.c.l.b16 %v11699
      %v11744 = vunpack.c.l.b16 %v11700
      %v11745 = vunpack.c.l.b16 %v11701
      %v11746 = vpack.c.b16 %v11731, %v11730
      %v11747 = vpack.c.b16 %v11733, %v11732
      %v11748 = vpack.c.b16 %v11735, %v11734
      %v11749 = vpack.c.b16 %v11737, %v11736
      %v11750 = vpack.c.b16 %v11739, %v11738
      %v11751 = vpack.c.b16 %v11741, %v11740
      %v11752 = vpack.c.b16 %v11743, %v11742
      %v11753 = vpack.c.b16 %v11745, %v11744
      %11762 = vmatpush.bf16.msra.mxu0 %v11753
      %11763 = vmatpush.bf16.msra.mxu0 %v11752
      %11764 = vmatpush.bf16.msra.mxu0 %v11751
      %11765 = vmatpush.bf16.msra.mxu0 %v11750
      %11766 = vmatpush.bf16.msra.mxu0 %v11749
      %11767 = vmatpush.bf16.msra.mxu0 %v11748
      %11768 = vmatpush.bf16.msra.mxu0 %v11747
      %11769 = vmatpush.bf16.msra.mxu0 %v11746
      %11770 = vmatmul.bf16.gmra.mxu0 %v11710
      %v11771 = vpop.f32.mrf.mxu0
      %v11772 = vadd.f32 0.0, %v11771
      %v11773 = vpop.f32.mrf.mxu0
      %v11774 = vadd.f32 0.0, %v11773
      %11775 = vmatmul.bf16.gmra.mxu0 %v11711
      %v11776 = vpop.f32.mrf.mxu0
      %v11777 = vadd.f32 0.0, %v11776
      %v11778 = vpop.f32.mrf.mxu0
      %v11779 = vadd.f32 0.0, %v11778
      %11780 = vdwg.mxu0
      %v11781 = vadd.f32 %v11681, %v11772
      %v11782 = vadd.f32 %v11682, %v11774
      %v11783 = vadd.f32 %v11683, %v11777
      %v11784 = vadd.f32 %v11684, %v11779
      %s11785 = scalar_lea.vmem %s12, 256
      %v11786 = vld [vmem:[%s11785] sm:$0xf]
      %v11787 = vld [vmem:[%s11785 + $0x4] sm:$0xf]
      %v11788 = vld [vmem:[%s11785 + $0x8] sm:$0xf]
      %v11789 = vld [vmem:[%s11785 + $0xc] sm:$0xf]
      %v11790 = vld [vmem:[%s11785 + $0x10] sm:$0xf]
      %v11791 = vld [vmem:[%s11785 + $0x14] sm:$0xf]
      %v11792 = vld [vmem:[%s11785 + $0x18] sm:$0xf]
      %v11793 = vld [vmem:[%s11785 + $0x1c] sm:$0xf]
      %v11794 = vld [vmem:[%s11785 + $0x20] sm:$0xf]
      %v11795 = vld [vmem:[%s11785 + $0x24] sm:$0xf]
      %v11796 = vld [vmem:[%s11785 + $0x28] sm:$0xf]
      %v11797 = vld [vmem:[%s11785 + $0x2c] sm:$0xf]
      %v11798 = vld [vmem:[%s11785 + $0x30] sm:$0xf]
      %v11799 = vld [vmem:[%s11785 + $0x34] sm:$0xf]
      %v11800 = vld [vmem:[%s11785 + $0x38] sm:$0xf]
      %v11801 = vld [vmem:[%s11785 + $0x3c] sm:$0xf]
      %v11806 = vunpack.c.l.b16 %v11366
      %v11807 = vunpack.c.l.b16 %v11367
      %v11808 = vunpack.c.l.b16 %v11384
      %v11809 = vunpack.c.l.b16 %v11385
      %v11810 = vpack.c.b16 %v11807, %v11806
      %v11811 = vpack.c.b16 %v11809, %v11808
      %v11830 = vunpack.c.l.b16 %v11786
      %v11831 = vunpack.c.l.b16 %v11787
      %v11832 = vunpack.c.l.b16 %v11788
      %v11833 = vunpack.c.l.b16 %v11789
      %v11834 = vunpack.c.l.b16 %v11790
      %v11835 = vunpack.c.l.b16 %v11791
      %v11836 = vunpack.c.l.b16 %v11792
      %v11837 = vunpack.c.l.b16 %v11793
      %v11838 = vunpack.c.l.b16 %v11794
      %v11839 = vunpack.c.l.b16 %v11795
      %v11840 = vunpack.c.l.b16 %v11796
      %v11841 = vunpack.c.l.b16 %v11797
      %v11842 = vunpack.c.l.b16 %v11798
      %v11843 = vunpack.c.l.b16 %v11799
      %v11844 = vunpack.c.l.b16 %v11800
      %v11845 = vunpack.c.l.b16 %v11801
      %v11846 = vpack.c.b16 %v11831, %v11830
      %v11847 = vpack.c.b16 %v11833, %v11832
      %v11848 = vpack.c.b16 %v11835, %v11834
      %v11849 = vpack.c.b16 %v11837, %v11836
      %v11850 = vpack.c.b16 %v11839, %v11838
      %v11851 = vpack.c.b16 %v11841, %v11840
      %v11852 = vpack.c.b16 %v11843, %v11842
      %v11853 = vpack.c.b16 %v11845, %v11844
      %11862 = vmatpush.bf16.msra.mxu0 %v11853
      %11863 = vmatpush.bf16.msra.mxu0 %v11852
      %11864 = vmatpush.bf16.msra.mxu0 %v11851
      %11865 = vmatpush.bf16.msra.mxu0 %v11850
      %11866 = vmatpush.bf16.msra.mxu0 %v11849
      %11867 = vmatpush.bf16.msra.mxu0 %v11848
      %11868 = vmatpush.bf16.msra.mxu0 %v11847
      %11869 = vmatpush.bf16.msra.mxu0 %v11846
      %11870 = vmatmul.bf16.gmra.mxu0 %v11810
      %v11871 = vpop.f32.mrf.mxu0
      %v11872 = vadd.f32 0.0, %v11871
      %v11873 = vpop.f32.mrf.mxu0
      %v11874 = vadd.f32 0.0, %v11873
      %11875 = vmatmul.bf16.gmra.mxu0 %v11811
      %v11876 = vpop.f32.mrf.mxu0
      %v11877 = vadd.f32 0.0, %v11876
      %v11878 = vpop.f32.mrf.mxu0
      %v11879 = vadd.f32 0.0, %v11878
      %11880 = vdwg.mxu0
      %v11881 = vadd.f32 %v11781, %v11872
      %v11882 = vadd.f32 %v11782, %v11874
      %v11883 = vadd.f32 %v11783, %v11877
      %v11884 = vadd.f32 %v11784, %v11879
      %s11885 = scalar_lea.vmem %s12, 320
      %v11886 = vld [vmem:[%s11885] sm:$0xf]
      %v11887 = vld [vmem:[%s11885 + $0x4] sm:$0xf]
      %v11888 = vld [vmem:[%s11885 + $0x8] sm:$0xf]
      %v11889 = vld [vmem:[%s11885 + $0xc] sm:$0xf]
      %v11890 = vld [vmem:[%s11885 + $0x10] sm:$0xf]
      %v11891 = vld [vmem:[%s11885 + $0x14] sm:$0xf]
      %v11892 = vld [vmem:[%s11885 + $0x18] sm:$0xf]
      %v11893 = vld [vmem:[%s11885 + $0x1c] sm:$0xf]
      %v11894 = vld [vmem:[%s11885 + $0x20] sm:$0xf]
      %v11895 = vld [vmem:[%s11885 + $0x24] sm:$0xf]
      %v11896 = vld [vmem:[%s11885 + $0x28] sm:$0xf]
      %v11897 = vld [vmem:[%s11885 + $0x2c] sm:$0xf]
      %v11898 = vld [vmem:[%s11885 + $0x30] sm:$0xf]
      %v11899 = vld [vmem:[%s11885 + $0x34] sm:$0xf]
      %v11900 = vld [vmem:[%s11885 + $0x38] sm:$0xf]
      %v11901 = vld [vmem:[%s11885 + $0x3c] sm:$0xf]
      %v11906 = vunpack.c.l.b16 %v11368
      %v11907 = vunpack.c.l.b16 %v11369
      %v11908 = vunpack.c.l.b16 %v11386
      %v11909 = vunpack.c.l.b16 %v11387
      %v11910 = vpack.c.b16 %v11907, %v11906
      %v11911 = vpack.c.b16 %v11909, %v11908
      %v11930 = vunpack.c.l.b16 %v11886
      %v11931 = vunpack.c.l.b16 %v11887
      %v11932 = vunpack.c.l.b16 %v11888
      %v11933 = vunpack.c.l.b16 %v11889
      %v11934 = vunpack.c.l.b16 %v11890
      %v11935 = vunpack.c.l.b16 %v11891
      %v11936 = vunpack.c.l.b16 %v11892
      %v11937 = vunpack.c.l.b16 %v11893
      %v11938 = vunpack.c.l.b16 %v11894
      %v11939 = vunpack.c.l.b16 %v11895
      %v11940 = vunpack.c.l.b16 %v11896
      %v11941 = vunpack.c.l.b16 %v11897
      %v11942 = vunpack.c.l.b16 %v11898
      %v11943 = vunpack.c.l.b16 %v11899
      %v11944 = vunpack.c.l.b16 %v11900
      %v11945 = vunpack.c.l.b16 %v11901
      %v11946 = vpack.c.b16 %v11931, %v11930
      %v11947 = vpack.c.b16 %v11933, %v11932
      %v11948 = vpack.c.b16 %v11935, %v11934
      %v11949 = vpack.c.b16 %v11937, %v11936
      %v11950 = vpack.c.b16 %v11939, %v11938
      %v11951 = vpack.c.b16 %v11941, %v11940
      %v11952 = vpack.c.b16 %v11943, %v11942
      %v11953 = vpack.c.b16 %v11945, %v11944
      %11962 = vmatpush.bf16.msra.mxu0 %v11953
      %11963 = vmatpush.bf16.msra.mxu0 %v11952
      %11964 = vmatpush.bf16.msra.mxu0 %v11951
      %11965 = vmatpush.bf16.msra.mxu0 %v11950
      %11966 = vmatpush.bf16.msra.mxu0 %v11949
      %11967 = vmatpush.bf16.msra.mxu0 %v11948
      %11968 = vmatpush.bf16.msra.mxu0 %v11947
      %11969 = vmatpush.bf16.msra.mxu0 %v11946
      %11970 = vmatmul.bf16.gmra.mxu0 %v11910
      %v11971 = vpop.f32.mrf.mxu0
      %v11972 = vadd.f32 0.0, %v11971
      %v11973 = vpop.f32.mrf.mxu0
      %v11974 = vadd.f32 0.0, %v11973
      %11975 = vmatmul.bf16.gmra.mxu0 %v11911
      %v11976 = vpop.f32.mrf.mxu0
      %v11977 = vadd.f32 0.0, %v11976
      %v11978 = vpop.f32.mrf.mxu0
      %v11979 = vadd.f32 0.0, %v11978
      %11980 = vdwg.mxu0
      %v11981 = vadd.f32 %v11881, %v11972
      %v11982 = vadd.f32 %v11882, %v11974
      %v11983 = vadd.f32 %v11883, %v11977
      %v11984 = vadd.f32 %v11884, %v11979
      %s11985 = scalar_lea.vmem %s12, 384
      %v11986 = vld [vmem:[%s11985] sm:$0xf]
      %v11987 = vld [vmem:[%s11985 + $0x4] sm:$0xf]
      %v11988 = vld [vmem:[%s11985 + $0x8] sm:$0xf]
      %v11989 = vld [vmem:[%s11985 + $0xc] sm:$0xf]
      %v11990 = vld [vmem:[%s11985 + $0x10] sm:$0xf]
      %v11991 = vld [vmem:[%s11985 + $0x14] sm:$0xf]
      %v11992 = vld [vmem:[%s11985 + $0x18] sm:$0xf]
      %v11993 = vld [vmem:[%s11985 + $0x1c] sm:$0xf]
      %v11994 = vld [vmem:[%s11985 + $0x20] sm:$0xf]
      %v11995 = vld [vmem:[%s11985 + $0x24] sm:$0xf]
      %v11996 = vld [vmem:[%s11985 + $0x28] sm:$0xf]
      %v11997 = vld [vmem:[%s11985 + $0x2c] sm:$0xf]
      %v11998 = vld [vmem:[%s11985 + $0x30] sm:$0xf]
      %v11999 = vld [vmem:[%s11985 + $0x34] sm:$0xf]
      %v12000 = vld [vmem:[%s11985 + $0x38] sm:$0xf]
      %v12001 = vld [vmem:[%s11985 + $0x3c] sm:$0xf]
      %v12006 = vunpack.c.l.b16 %v11370
      %v12007 = vunpack.c.l.b16 %v11371
      %v12008 = vunpack.c.l.b16 %v11388
      %v12009 = vunpack.c.l.b16 %v11389
      %v12010 = vpack.c.b16 %v12007, %v12006
      %v12011 = vpack.c.b16 %v12009, %v12008
      %v12030 = vunpack.c.l.b16 %v11986
      %v12031 = vunpack.c.l.b16 %v11987
      %v12032 = vunpack.c.l.b16 %v11988
      %v12033 = vunpack.c.l.b16 %v11989
      %v12034 = vunpack.c.l.b16 %v11990
      %v12035 = vunpack.c.l.b16 %v11991
      %v12036 = vunpack.c.l.b16 %v11992
      %v12037 = vunpack.c.l.b16 %v11993
      %v12038 = vunpack.c.l.b16 %v11994
      %v12039 = vunpack.c.l.b16 %v11995
      %v12040 = vunpack.c.l.b16 %v11996
      %v12041 = vunpack.c.l.b16 %v11997
      %v12042 = vunpack.c.l.b16 %v11998
      %v12043 = vunpack.c.l.b16 %v11999
      %v12044 = vunpack.c.l.b16 %v12000
      %v12045 = vunpack.c.l.b16 %v12001
      %v12046 = vpack.c.b16 %v12031, %v12030
      %v12047 = vpack.c.b16 %v12033, %v12032
      %v12048 = vpack.c.b16 %v12035, %v12034
      %v12049 = vpack.c.b16 %v12037, %v12036
      %v12050 = vpack.c.b16 %v12039, %v12038
      %v12051 = vpack.c.b16 %v12041, %v12040
      %v12052 = vpack.c.b16 %v12043, %v12042
      %v12053 = vpack.c.b16 %v12045, %v12044
      %12062 = vmatpush.bf16.msra.mxu0 %v12053
      %12063 = vmatpush.bf16.msra.mxu0 %v12052
      %12064 = vmatpush.bf16.msra.mxu0 %v12051
      %12065 = vmatpush.bf16.msra.mxu0 %v12050
      %12066 = vmatpush.bf16.msra.mxu0 %v12049
      %12067 = vmatpush.bf16.msra.mxu0 %v12048
      %12068 = vmatpush.bf16.msra.mxu0 %v12047
      %12069 = vmatpush.bf16.msra.mxu0 %v12046
      %12070 = vmatmul.bf16.gmra.mxu0 %v12010
      %v12071 = vpop.f32.mrf.mxu0
      %v12072 = vadd.f32 0.0, %v12071
      %v12073 = vpop.f32.mrf.mxu0
      %v12074 = vadd.f32 0.0, %v12073
      %12075 = vmatmul.bf16.gmra.mxu0 %v12011
      %v12076 = vpop.f32.mrf.mxu0
      %v12077 = vadd.f32 0.0, %v12076
      %v12078 = vpop.f32.mrf.mxu0
      %v12079 = vadd.f32 0.0, %v12078
      %12080 = vdwg.mxu0
      %v12081 = vadd.f32 %v11981, %v12072
      %v12082 = vadd.f32 %v11982, %v12074
      %v12083 = vadd.f32 %v11983, %v12077
      %v12084 = vadd.f32 %v11984, %v12079
      %s12085 = scalar_lea.vmem %s12, 448
      %v12086 = vld [vmem:[%s12085] sm:$0xf]
      %v12087 = vld [vmem:[%s12085 + $0x4] sm:$0xf]
      %v12088 = vld [vmem:[%s12085 + $0x8] sm:$0xf]
      %v12089 = vld [vmem:[%s12085 + $0xc] sm:$0xf]
      %v12090 = vld [vmem:[%s12085 + $0x10] sm:$0xf]
      %v12091 = vld [vmem:[%s12085 + $0x14] sm:$0xf]
      %v12092 = vld [vmem:[%s12085 + $0x18] sm:$0xf]
      %v12093 = vld [vmem:[%s12085 + $0x1c] sm:$0xf]
      %v12094 = vld [vmem:[%s12085 + $0x20] sm:$0xf]
      %v12095 = vld [vmem:[%s12085 + $0x24] sm:$0xf]
      %v12096 = vld [vmem:[%s12085 + $0x28] sm:$0xf]
      %v12097 = vld [vmem:[%s12085 + $0x2c] sm:$0xf]
      %v12098 = vld [vmem:[%s12085 + $0x30] sm:$0xf]
      %v12099 = vld [vmem:[%s12085 + $0x34] sm:$0xf]
      %v12100 = vld [vmem:[%s12085 + $0x38] sm:$0xf]
      %v12101 = vld [vmem:[%s12085 + $0x3c] sm:$0xf]
      %v12106 = vunpack.c.l.b16 %v11372
      %v12107 = vunpack.c.l.b16 %v11373
      %v12108 = vunpack.c.l.b16 %v11390
      %v12109 = vunpack.c.l.b16 %v11391
      %v12110 = vpack.c.b16 %v12107, %v12106
      %v12111 = vpack.c.b16 %v12109, %v12108
      %v12130 = vunpack.c.l.b16 %v12086
      %v12131 = vunpack.c.l.b16 %v12087
      %v12132 = vunpack.c.l.b16 %v12088
      %v12133 = vunpack.c.l.b16 %v12089
      %v12134 = vunpack.c.l.b16 %v12090
      %v12135 = vunpack.c.l.b16 %v12091
      %v12136 = vunpack.c.l.b16 %v12092
      %v12137 = vunpack.c.l.b16 %v12093
      %v12138 = vunpack.c.l.b16 %v12094
      %v12139 = vunpack.c.l.b16 %v12095
      %v12140 = vunpack.c.l.b16 %v12096
      %v12141 = vunpack.c.l.b16 %v12097
      %v12142 = vunpack.c.l.b16 %v12098
      %v12143 = vunpack.c.l.b16 %v12099
      %v12144 = vunpack.c.l.b16 %v12100
      %v12145 = vunpack.c.l.b16 %v12101
      %v12146 = vpack.c.b16 %v12131, %v12130
      %v12147 = vpack.c.b16 %v12133, %v12132
      %v12148 = vpack.c.b16 %v12135, %v12134
      %v12149 = vpack.c.b16 %v12137, %v12136
      %v12150 = vpack.c.b16 %v12139, %v12138
      %v12151 = vpack.c.b16 %v12141, %v12140
      %v12152 = vpack.c.b16 %v12143, %v12142
      %v12153 = vpack.c.b16 %v12145, %v12144
      %12162 = vmatpush.bf16.msra.mxu0 %v12153
      %12163 = vmatpush.bf16.msra.mxu0 %v12152
      %12164 = vmatpush.bf16.msra.mxu0 %v12151
      %12165 = vmatpush.bf16.msra.mxu0 %v12150
      %12166 = vmatpush.bf16.msra.mxu0 %v12149
      %12167 = vmatpush.bf16.msra.mxu0 %v12148
      %12168 = vmatpush.bf16.msra.mxu0 %v12147
      %12169 = vmatpush.bf16.msra.mxu0 %v12146
      %12170 = vmatmul.bf16.gmra.mxu0 %v12110
      %v12171 = vpop.f32.mrf.mxu0
      %v12172 = vadd.f32 0.0, %v12171
      %v12173 = vpop.f32.mrf.mxu0
      %v12174 = vadd.f32 0.0, %v12173
      %12175 = vmatmul.bf16.gmra.mxu0 %v12111
      %v12176 = vpop.f32.mrf.mxu0
      %v12177 = vadd.f32 0.0, %v12176
      %v12178 = vpop.f32.mrf.mxu0
      %v12179 = vadd.f32 0.0, %v12178
      %12180 = vdwg.mxu0
      %v12181 = vadd.f32 %v12081, %v12172
      %v12182 = vadd.f32 %v12082, %v12174
      %v12183 = vadd.f32 %v12083, %v12177
      %v12184 = vadd.f32 %v12084, %v12179
      %s12185 = scalar_lea.vmem %s12, 512
      %v12186 = vld [vmem:[%s12185] sm:$0xf]
      %v12187 = vld [vmem:[%s12185 + $0x4] sm:$0xf]
      %v12188 = vld [vmem:[%s12185 + $0x8] sm:$0xf]
      %v12189 = vld [vmem:[%s12185 + $0xc] sm:$0xf]
      %v12190 = vld [vmem:[%s12185 + $0x10] sm:$0xf]
      %v12191 = vld [vmem:[%s12185 + $0x14] sm:$0xf]
      %v12192 = vld [vmem:[%s12185 + $0x18] sm:$0xf]
      %v12193 = vld [vmem:[%s12185 + $0x1c] sm:$0xf]
      %v12194 = vld [vmem:[%s12185 + $0x20] sm:$0xf]
      %v12195 = vld [vmem:[%s12185 + $0x24] sm:$0xf]
      %v12196 = vld [vmem:[%s12185 + $0x28] sm:$0xf]
      %v12197 = vld [vmem:[%s12185 + $0x2c] sm:$0xf]
      %v12198 = vld [vmem:[%s12185 + $0x30] sm:$0xf]
      %v12199 = vld [vmem:[%s12185 + $0x34] sm:$0xf]
      %v12200 = vld [vmem:[%s12185 + $0x38] sm:$0xf]
      %v12201 = vld [vmem:[%s12185 + $0x3c] sm:$0xf]
      %v12206 = vunpack.c.l.b16 %v11374
      %v12207 = vunpack.c.l.b16 %v11375
      %v12208 = vunpack.c.l.b16 %v11392
      %v12209 = vunpack.c.l.b16 %v11393
      %v12210 = vpack.c.b16 %v12207, %v12206
      %v12211 = vpack.c.b16 %v12209, %v12208
      %v12230 = vunpack.c.l.b16 %v12186
      %v12231 = vunpack.c.l.b16 %v12187
      %v12232 = vunpack.c.l.b16 %v12188
      %v12233 = vunpack.c.l.b16 %v12189
      %v12234 = vunpack.c.l.b16 %v12190
      %v12235 = vunpack.c.l.b16 %v12191
      %v12236 = vunpack.c.l.b16 %v12192
      %v12237 = vunpack.c.l.b16 %v12193
      %v12238 = vunpack.c.l.b16 %v12194
      %v12239 = vunpack.c.l.b16 %v12195
      %v12240 = vunpack.c.l.b16 %v12196
      %v12241 = vunpack.c.l.b16 %v12197
      %v12242 = vunpack.c.l.b16 %v12198
      %v12243 = vunpack.c.l.b16 %v12199
      %v12244 = vunpack.c.l.b16 %v12200
      %v12245 = vunpack.c.l.b16 %v12201
      %v12246 = vpack.c.b16 %v12231, %v12230
      %v12247 = vpack.c.b16 %v12233, %v12232
      %v12248 = vpack.c.b16 %v12235, %v12234
      %v12249 = vpack.c.b16 %v12237, %v12236
      %v12250 = vpack.c.b16 %v12239, %v12238
      %v12251 = vpack.c.b16 %v12241, %v12240
      %v12252 = vpack.c.b16 %v12243, %v12242
      %v12253 = vpack.c.b16 %v12245, %v12244
      %12262 = vmatpush.bf16.msra.mxu0 %v12253
      %12263 = vmatpush.bf16.msra.mxu0 %v12252
      %12264 = vmatpush.bf16.msra.mxu0 %v12251
      %12265 = vmatpush.bf16.msra.mxu0 %v12250
      %12266 = vmatpush.bf16.msra.mxu0 %v12249
      %12267 = vmatpush.bf16.msra.mxu0 %v12248
      %12268 = vmatpush.bf16.msra.mxu0 %v12247
      %12269 = vmatpush.bf16.msra.mxu0 %v12246
      %12270 = vmatmul.bf16.gmra.mxu0 %v12210
      %v12271 = vpop.f32.mrf.mxu0
      %v12272 = vadd.f32 0.0, %v12271
      %v12273 = vpop.f32.mrf.mxu0
      %v12274 = vadd.f32 0.0, %v12273
      %12275 = vmatmul.bf16.gmra.mxu0 %v12211
      %v12276 = vpop.f32.mrf.mxu0
      %v12277 = vadd.f32 0.0, %v12276
      %v12278 = vpop.f32.mrf.mxu0
      %v12279 = vadd.f32 0.0, %v12278
      %12280 = vdwg.mxu0
      %v12281 = vadd.f32 %v12181, %v12272
      %v12282 = vadd.f32 %v12182, %v12274
      %v12283 = vadd.f32 %v12183, %v12277
      %v12284 = vadd.f32 %v12184, %v12279
      %v12285 = vld [vmem:[%s13] sm:$0x1]
      %v12287 = vperm.slane %v12285, 0
      %v12289 = vadd.f32 %v12281, %v12287
      %v12290 = vadd.f32 %v12282, %v12287
      %v12291 = vadd.f32 %v12283, %v12287
      %v12292 = vadd.f32 %v12284, %v12287
      %v12293 = vmax.f32 %v12289, 0.0
      %v12294 = vmax.f32 %v12290, 0.0
      %v12295 = vmax.f32 %v12291, 0.0
      %v12296 = vmax.f32 %v12292, 0.0
      %v12297 = vpack.c.bf16 %v12293, %v12293
      %v12298 = vpack.c.bf16 %v12294, %v12294
      %v12299 = vpack.c.bf16 %v12295, %v12295
      %v12300 = vpack.c.bf16 %v12296, %v12296
      %v12301 = vunpack.c.l.bf16 %v12297
      %v12302 = vunpack.c.l.bf16 %v12298
      %v12303 = vunpack.c.l.bf16 %v12299
      %v12304 = vunpack.c.l.bf16 %v12300
      %v12305 = vld [vmem:[%s14] sm:$0x1]
      %v12307 = vperm.slane %v12305, 0
      %v12309 = vmul.f32 %v12301, %v12307
      %v12310 = vmul.f32 %v12302, %v12307
      %v12311 = vmul.f32 %v12303, %v12307
      %v12312 = vmul.f32 %v12304, %v12307
      %v12313 = vsel %vm6066, %v12309, 0.0
      %12314 = vadd.xlane.f32.xlu0 %v12313
      %v12315 = vpop.xlane.xlu0 %12314
      %v12316 = vsel %vm6066, %v12310, 0.0
      %12317 = vadd.xlane.f32.xlu0 %v12316
      %v12318 = vpop.xlane.xlu0 %12317
      %v12319 = vsel %vm6066, %v12311, 0.0
      %12320 = vadd.xlane.f32.xlu0 %v12319
      %v12321 = vpop.xlane.xlu0 %12320
      %v12322 = vsel %vm6066, %v12312, 0.0
      %12323 = vadd.xlane.f32.xlu0 %v12322
      %v12324 = vpop.xlane.xlu0 %12323
      %v12325 = vld [vmem:[#allocation2] sm:$0x1]
      %v12327 = vperm.slane %v12325, 0
      %12328 = vset.pattern.permute.xlu0 0
      %12329 = vperm.xlu0 %12328, %v12327
      %v12330 = vpop.permute.xlu0 %12329
      %v12332 = vadd.f32 %v12315, %v12330
      %v12333 = vadd.f32 %v12318, %v12330
      %v12334 = vadd.f32 %v12321, %v12330
      %v12335 = vadd.f32 %v12324, %v12330
      %v12340 = vlaneseq
      %v12341 = vand.u32 %v12340, 127
      %v12342 = vperm.slane %v12332, %v12341
      %v12343 = vadd.s32 %v12341, 4294967288
      %v12344 = vperm.slane %v12333, %v12343
      %vm12345 = vcmask 130112
      %v12346 = vsel %vm12345, %v12344, %v12342
      %v12347 = vperm.slane %v12334, %v12341
      %v12348 = vperm.slane %v12335, %v12343
      %v12349 = vsel %vm12345, %v12348, %v12347
      %vm12352 = vcmask 122880
      %12353 = vst.msk [vmem:[%s526] sm:$0x1] %vm12352, %v12346
      %12354 = vst.msk [vmem:[%s526 + $0x1] sm:$0x1] %vm12352, %v12349
      %s12355 = smul.u32 2, %s29
      %p12356 = scmp.lt.s32.totalorder %s12355, 3
      %s12357 = scalar_select %p12356, %s12355, 3
      %s12358 = scalar_lea.vmem %s16, %s12357
      // Predicated region
      $region85: #{simple_bevformer_forward.1} parent=83 // pred_check
        %p12359 = pneg %p388
      $region86: #{simple_bevformer_forward.1} parent=83 // pred_check_branch
        %12361 = sbr.rel (%p12359) target = $region88
      $region87: #{simple_bevformer_forward.1} parent=83 // pred_region
        %s12362 = smul.u32 2, %s29
      $region88: #{simple_bevformer_forward.1} parent=83 // pred_fallthru
        _
    $region84: #{simple_bevformer_forward.1} parent=5 // pred_fallthru
      _
    %p12363 = scmp.le.s32.totalorder 2, %s24
    // Predicated region
    $region89: #{simple_bevformer_forward.1} parent=5 // pred_check
      %p12364 = pneg %p12363
    $region90: #{simple_bevformer_forward.1} parent=5 // pred_check_branch
      %12366 = sbr.rel (%p12364) target = $region92
    $region91: #{simple_bevformer_forward.1} parent=5 // pred_region
      %s12367 = ssub.s32 %s24, 2
      // Predicated region
      $region93: #{simple_bevformer_forward.1} parent=91 // pred_check
        %p12368 = pneg %p394
      $region94: #{simple_bevformer_forward.1} parent=91 // pred_check_branch
        %12370 = sbr.rel (%p12368) target = $region96
      $region95: #{simple_bevformer_forward.1} parent=91 // pred_region
        %s12371 = smul.u32 2, %s30
        %p12372 = scmp.lt.s32.totalorder %s12371, 3
        %s12373 = scalar_select %p12372, %s12371, 3
        %s12374 = scalar_lea.vmem %s16, %s12373
      $region96: #{simple_bevformer_forward.1} parent=91 // pred_fallthru
        _
    $region92: #{simple_bevformer_forward.1} parent=5 // pred_fallthru
      _
  $region6: #{simple_bevformer_forward.1} parent=0 // loop_footer
    %s28 = sadd.s32 1, %s24
  $region7: #{simple_bevformer_forward.1} parent=0 // loop_footer_branch
    %23 = sbr.rel target = $region3
  $region8: #{simple_bevformer_forward.1} parent=0 // loop_exit
    _

</llo_original>
